<compile_context>
chip_gen: v6e
topology: v6e:2x2x1
jax: 0.10.0
libtpu: 0.0.40
codegen_flags: <defaults>
</compile_context>

<pallas_src>
import jax
import jax.numpy as jnp
from jax.experimental import pallas as pl
from jax.experimental.pallas import tpu as pltpu

# ----------------------------- model hyper-parameters -----------------------------
IMG_SIZE = 224                        # F.interpolate(x, 224, mode='bilinear')
PATCH = 16
GRID = IMG_SIZE // PATCH              # 14
N_TOKENS = GRID * GRID                # 196
TOK_PAD = 256                         # tokens per sample padded to 256 (MXU-friendly M)
FEATURE_SIZE = 32                     # dino.feature_size
N_FEATURES = 16                       # DPTHead(n_features)
MLP_HIDDEN = 64
N_BLOCKS = 4                          # get_intermediate_features_for_tensor(x, 4)
TARGET_SIZE = 64                      # nn.Upsample(target_size)
C_IN = 3
PATCH_DIM = C_IN * PATCH * PATCH      # 768


def _pick_bt(B, max_bt=16):
    """Batch-tile size: largest divisor of B (<= max_bt) that still leaves >= 2 grid
    steps (both v7x TensorCores busy); otherwise the largest divisor."""
    divisors = [d for d in range(1, min(B, max_bt) + 1) if B % d == 0]
    parallel = [d for d in divisors if B // d >= 2]
    return max(parallel) if parallel else max(divisors)


# ===================================================================================
# Kernel 1: bilinear resize (Bt*C images) -> 224x224, f32 math, bf16 output.
#           Width pass = ONE batched matmul over (Bt*C*H, W); height pass = small
#           static loop of (224,H)@(H,224) dots per image.
# ===================================================================================
def _resize_kernel(x_ref, rh_ref, rwt_ref, o_ref):
    # x_ref : (Bt*C*H, W) f32   rh_ref : (224, H) f32   rwt_ref : (W, 224) f32
    # o_ref : (Bt*C, 224, 224) bf16
    f32 = jnp.float32
    H = rh_ref.shape[1]
    n_img = o_ref.shape[0]
    # width pass, all images/channels folded into M
    xw = jnp.dot(x_ref[...], rwt_ref[...], preferred_element_type=f32)   # (Bt*C*H, 224)
    # height pass per image (K = H is tiny; static unroll over Bt*C images)
    for k in range(n_img):
        img = jnp.dot(rh_ref[...], xw[k * H:(k + 1) * H, :],
                      preferred_element_type=f32)                        # (224, 224) f32
        o_ref[k] = img.astype(o_ref.dtype)


def bilinear_resize_to_224(x_rows, rh, rwt, *, B, C, H, Bt):
    """x_rows: (B*C*H, W) f32 -> (B*C, 224, 224) bf16, grid over batch tiles."""
    n_steps = B // Bt
    W = x_rows.shape[1]
    return pl.pallas_call(
        _resize_kernel,
        out_shape=jax.ShapeDtypeStruct((B * C, IMG_SIZE, IMG_SIZE), jnp.bfloat16),
        grid_spec=pltpu.PrefetchScalarGridSpec(
            num_scalar_prefetch=0,
            grid=(n_steps,),
            in_specs=[
                pl.BlockSpec((Bt * C * H, W), lambda i: (i, 0)),
                pl.BlockSpec((IMG_SIZE, H), lambda i: (0, 0)),
                pl.BlockSpec((W, IMG_SIZE), lambda i: (0, 0)),
            ],
            out_specs=pl.BlockSpec((Bt * C, IMG_SIZE, IMG_SIZE), lambda i: (i, 0, 0)),
        ),
        compiler_params=pltpu.CompilerParams(dimension_semantics=("parallel",)),
    )(x_rows, rh, rwt)


# ===================================================================================
# Kernel 2: fused [patch-embed + 4 residual MLP blocks + DPT head + nearest upsample]
#           with batch folded into M = Bt*256; all weights resident in VMEM.
# ===================================================================================
def _backbone_head_kernel(p_ref, posb_ref, pw_ref,
                          w1_ref, b1_ref, w2_ref, b2_ref,
                          projw_ref, projb_ref, fusew_ref, fuseb_ref,
                          o1w_ref, o1b_ref, o2w_ref, o2b_ref,
                          gr_ref, gct_ref, o_ref):
    f32, bf16 = jnp.float32, jnp.bfloat16
    Bt = o_ref.shape[0]

    # --- synthetic frozen DINO backbone: patch embed + (pos emb + bias), M = Bt*256 ---
    tok = jnp.dot(p_ref[...], pw_ref[...], preferred_element_type=f32)   # (M, 32)
    tok = tok + posb_ref[...]

    # --- 4 residual GELU-MLP blocks; keep every level for the head ---
    levels = []
    for l in range(N_BLOCKS):
        h1 = jnp.dot(tok.astype(bf16), w1_ref[l],
                     preferred_element_type=f32) + b1_ref[l]              # (M, 64)
        h1 = jax.nn.gelu(h1)   # TODO(synk): tanh-approx vs torch's exact erf GELU
        h2 = jnp.dot(h1.astype(bf16), w2_ref[l],
                     preferred_element_type=f32) + b2_ref[l]              # (M, 32)
        tok = tok + h2
        levels.append(tok)

    # --- DPT-style head: all 4 per-level 1x1 projections as ONE block-diag matmul ---
    lv_cat = jnp.concatenate(levels, axis=-1).astype(bf16)                # (M, 128)
    proj = jnp.dot(lv_cat, projw_ref[...],
                   preferred_element_type=f32) + projb_ref[...]           # (M, 64)

    # fuse deepest -> shallowest (M is large after batch-fold, MXU stays busy)
    acc = proj[:, (N_BLOCKS - 1) * N_FEATURES:]                           # (M, 16)
    for l in range(N_BLOCKS - 2, -1, -1):
        lv = proj[:, l * N_FEATURES:(l + 1) * N_FEATURES]
        acc = jnp.dot((acc + lv).astype(bf16), fusew_ref[l],
                      preferred_element_type=f32) + fuseb_ref[l]
        acc = jnp.maximum(acc, 0.0)                                       # (M, 16)

    h = jnp.dot(acc.astype(bf16), o1w_ref[...],
                preferred_element_type=f32) + o1b_ref[...]                # (M, 8)
    h = jnp.maximum(h, 0.0)
    # final 8 -> 1 conv as a VPU multiply + lane reduction (avoids an N=1 MXU matmul)
    depth = jnp.sum(h * o2w_ref[...], axis=-1, keepdims=True) + o2b_ref[...]
    depth = jnp.maximum(depth, 0.0)                                       # (M, 1)

    # --- nn.Upsample(64, nearest): out_b = Gr @ (depth_b * Gc^T) per sample
    #     (pad tokens contribute nothing: their Gr/GcT rows/cols are zero) ---
    for b in range(Bt):
        d_b = depth[b * TOK_PAD:(b + 1) * TOK_PAD, :]                     # (256, 1)
        dsc = (d_b * gct_ref[...]).astype(bf16)                           # (256, 64)
        out = jnp.dot(gr_ref[...], dsc, preferred_element_type=f32)       # (64, 64)
        o_ref[b] = out.astype(o_ref.dtype)


def fused_backbone_head(p_flat, posb, params, *, B, Bt):
    """p_flat: (B*256, 768) bf16, posb: (Bt*256, 32) f32 -> depth (B, 64, 64) f32."""
    n_steps = B // Bt
    c = params["consts"]
    weights = (posb, params["patch_w"],
               params["w1"], params["b1"], params["w2"], params["b2"],
               params["proj_w_bd"], params["proj_b"],
               params["fuse_w"], params["fuse_b"],
               params["out1_w"], params["out1_b"], params["out2_w"], params["out2_b"],
               c["gr"], c["gct"])

    def _full(arr):
        nd = arr.ndim
        return pl.BlockSpec(arr.shape, lambda i, _nd=nd: (0,) * _nd)

    in_specs = ([pl.BlockSpec((Bt * TOK_PAD, PATCH_DIM), lambda i: (i, 0))]
                + [_full(a) for a in weights])

    return pl.pallas_call(
        _backbone_head_kernel,
        out_shape=jax.ShapeDtypeStruct((B, TARGET_SIZE, TARGET_SIZE), jnp.float32),
        grid_spec=pltpu.PrefetchScalarGridSpec(
            num_scalar_prefetch=0,
            grid=(n_steps,),
            in_specs=in_specs,
            out_specs=pl.BlockSpec((Bt, TARGET_SIZE, TARGET_SIZE), lambda i: (i, 0, 0)),
        ),
        compiler_params=pltpu.CompilerParams(dimension_semantics=("parallel",)),
    )(p_flat, *weights)


# ----------------------------- precomputed resize constants -----------------------------
def bilinear_resize_matrix(in_size, out_size):
    """PyTorch F.interpolate(mode='bilinear', align_corners=False) interpolation matrix."""
    out_idx = jnp.arange(out_size, dtype=jnp.float32)
    scale = in_size / out_size
    src = jnp.clip((out_idx + 0.5) * scale - 0.5, 0.0, None)
    i0 = jnp.clip(jnp.floor(src).astype(jnp.int32), 0, in_size - 1)
    i1 = jnp.clip(i0 + 1, 0, in_size - 1)
    w1 = jnp.clip(src - i0.astype(jnp.float32), 0.0, 1.0)
    w0 = 1.0 - w1
    return (jax.nn.one_hot(i0, in_size, dtype=jnp.float32) * w0[:, None]
            + jax.nn.one_hot(i1, in_size, dtype=jnp.float32) * w1[:, None])   # (out, in)


def make_consts(in_h, in_w):
    rh = bilinear_resize_matrix(in_h, IMG_SIZE)                 # (224, H) f32
    rw = bilinear_resize_matrix(in_w, IMG_SIZE)                 # (224, W) f32
    # nearest-neighbour 14x14 -> 64x64 selection, factored as Gr / Gc^T, padded to 256 tokens
    t = jnp.arange(N_TOKENS, dtype=jnp.int32)
    sel = jnp.floor(jnp.arange(TARGET_SIZE, dtype=jnp.float32)
                    * (GRID / TARGET_SIZE)).astype(jnp.int32)
    sel = jnp.clip(sel, 0, GRID - 1)                            # (64,)
    gr = (t[None, :] // GRID == sel[:, None]).astype(jnp.float32)    # (64, 196)
    gct = (t[:, None] % GRID == sel[None, :]).astype(jnp.float32)    # (196, 64)
    gr = jnp.pad(gr, ((0, 0), (0, TOK_PAD - N_TOKENS)))              # (64, 256)
    gct = jnp.pad(gct, ((0, TOK_PAD - N_TOKENS), (0, 0)))            # (256, 64)
    return {"rh": rh,                       # f32: resize arithmetic stays f32
            "rwt": rw.T,                    # (W, 224) f32
            "gr": gr.astype(jnp.bfloat16),
            "gct": gct}                     # f32 (0/1 values)


# ----------------------------- deterministic parameter init -----------------------------
def init_params(key, in_h, in_w):
    keys = iter(jax.random.split(key, 32))

    def w(shape, dtype=jnp.bfloat16, scale=0.02):
        return (scale * jax.random.normal(next(keys), shape, jnp.float32)).astype(dtype)

    f32 = jnp.float32
    # per-level 1x1 projections packed into one block-diagonal (128, 64) weight
    proj_w = w((N_BLOCKS, FEATURE_SIZE, N_FEATURES), f32)
    proj_bd = jnp.zeros((N_BLOCKS * FEATURE_SIZE, N_BLOCKS * N_FEATURES), f32)
    for l in range(N_BLOCKS):
        proj_bd = proj_bd.at[l * FEATURE_SIZE:(l + 1) * FEATURE_SIZE,
                             l * N_FEATURES:(l + 1) * N_FEATURES].set(proj_w[l])

    return {
        # synthetic frozen DINO backbone
        "patch_w": w((PATCH_DIM, FEATURE_SIZE)),
        "patch_b": w((1, FEATURE_SIZE), f32),
        "pos_emb": w((TOK_PAD, FEATURE_SIZE), f32),
        "w1": w((N_BLOCKS, FEATURE_SIZE, MLP_HIDDEN)),
        "b1": w((N_BLOCKS, 1, MLP_HIDDEN), f32),
        "w2": w((N_BLOCKS, MLP_HIDDEN, FEATURE_SIZE)),
        "b2": w((N_BLOCKS, 1, FEATURE_SIZE), f32),
        # DPT head
        "proj_w_bd": proj_bd.astype(jnp.bfloat16),                 # (128, 64) block-diag
        "proj_b": w((1, N_BLOCKS * N_FEATURES), f32),              # (1, 64)
        "fuse_w": w((N_BLOCKS - 1, N_FEATURES, N_FEATURES)),
        "fuse_b": w((N_BLOCKS - 1, 1, N_FEATURES), f32),
        "out1_w": w((N_FEATURES, N_FEATURES // 2)),
        "out1_b": w((1, N_FEATURES // 2), f32),
        "out2_w": w((1, N_FEATURES // 2), f32),                    # VPU mul + lane reduce
        "out2_b": w((1, 1), f32),
        # resize / upsample constants (input spatial dims fixed at init)
        "consts": make_consts(in_h, in_w),
    }


# ----------------------------- DPTDepthModel.forward -----------------------------
def dpt_depth_model_forward(params, x):
    """x: (B, 3, H, W) NCHW f32 -> (B, 1, TARGET_SIZE, TARGET_SIZE) NCHW f32."""
    B, C, H, W = x.shape
    Bt = _pick_bt(B)
    c = params["consts"]

    # 1) F.interpolate(x, 224, mode='bilinear')                 [Pallas kernel 1]
    x_rows = x.astype(jnp.float32).reshape(B * C * H, W)        # free reshape
    img = bilinear_resize_to_224(x_rows, c["rh"], c["rwt"],
                                 B=B, C=C, H=H, Bt=Bt)          # (B*C, 224, 224) bf16

    # 2) patchify to ViT tokens + pad 196 -> 256 tokens (single XLA transpose; see header
    #    TODO(synk) on why this relayout is not done inside the kernel)
    p = (img.reshape(B, C, GRID, PATCH, GRID, PATCH)
            .transpose(0, 2, 4, 1, 3, 5)
            .reshape(B, N_TOKENS, PATCH_DIM))
    p = jnp.pad(p, ((0, 0), (0, TOK_PAD - N_TOKENS), (0, 0)))
    p = p.reshape(B * TOK_PAD, PATCH_DIM)                       # (B*256, 768) bf16

    # 3) frozen backbone + torch.stack(f).transpose(0,1) + DPTHead + nn.Upsample
    #                                                           [Pallas kernel 2, fused]
    posb = jnp.tile(params["pos_emb"] + params["patch_b"], (Bt, 1))   # (Bt*256, 32) f32
    depth = fused_backbone_head(p, posb, params, B=B, Bt=Bt)          # (B, 64, 64) f32
    return depth.reshape(B, 1, TARGET_SIZE, TARGET_SIZE)


if __name__ == "__main__":
    key = jax.random.PRNGKey(0)
    kp, kx = jax.random.split(key)
    B, H, W = 2, 16, 16
    params = init_params(kp, H, W)
    x = jax.random.normal(kx, (B, C_IN, H, W), dtype=jnp.float32)

    fwd = jax.jit(dpt_depth_model_forward)
    out = fwd(params, x)
    jax.block_until_ready(out)

    assert out.shape == (B, 1, TARGET_SIZE, TARGET_SIZE), out.shape
    assert out.dtype == jnp.float32
    assert bool(jnp.isfinite(out).all())
    print("KERNEL_OK")
</pallas_src>

<mosaic_0001>
module attributes {stable_mosaic.version = 11 : i64} {
  func.func @_resize_kernel(%arg0: i32, %arg1: memref<48x16xf32, #tpu.memory_space<vmem>>, %arg2: memref<224x16xf32, #tpu.memory_space<vmem>>, %arg3: memref<16x224xf32, #tpu.memory_space<vmem>>, %arg4: memref<3x224x224xbf16, #tpu.memory_space<vmem>>) attributes {dimension_semantics = [#tpu.dimension_semantics<parallel>], iteration_bounds = array<i64: 2>, scalar_prefetch = 0 : i64, scratch_operands = 0 : i64, tpu.core_type = #tpu.core_type<tc>, window_params = [{transform_indices = @transform_0, window_bounds = array<i64: 48, 16>}, {pipeline_mode = #tpu.pipeline_mode<synchronous>, transform_indices = @transform_1, window_bounds = array<i64: 224, 16>}, {pipeline_mode = #tpu.pipeline_mode<synchronous>, transform_indices = @transform_2, window_bounds = array<i64: 16, 224>}, {transform_indices = @transform_3, window_bounds = array<i64: 3, 224, 224>}]} {
    %c0 = arith.constant 0 : index
    %c0_0 = arith.constant 0 : index
    %0 = vector.load %arg1[%c0, %c0_0] : memref<48x16xf32, #tpu.memory_space<vmem>>, vector<48x16xf32>
    %c0_1 = arith.constant 0 : index
    %c0_2 = arith.constant 0 : index
    %1 = vector.load %arg3[%c0_1, %c0_2] : memref<16x224xf32, #tpu.memory_space<vmem>>, vector<16x224xf32>
    %cst = arith.constant dense<0.000000e+00> : vector<48x224xf32>
    %2 = tpu.matmul %0, %1, %cst {dimension_numbers = #tpu.dot_dimension_numbers<[1], [0], [0], [1], [0, 0, 1, 1], [], []>} : vector<48x16xf32>, vector<16x224xf32>, vector<48x224xf32> -> vector<48x224xf32>
    %c0_3 = arith.constant 0 : index
    %c0_4 = arith.constant 0 : index
    %3 = vector.load %arg2[%c0_3, %c0_4] : memref<224x16xf32, #tpu.memory_space<vmem>>, vector<224x16xf32>
    %4 = vector.extract_strided_slice %2 {offsets = [0, 0], sizes = [16, 224], strides = [1, 1]} : vector<48x224xf32> to vector<16x224xf32>
    %cst_5 = arith.constant dense<0.000000e+00> : vector<224x224xf32>
    %5 = tpu.matmul %3, %4, %cst_5 {dimension_numbers = #tpu.dot_dimension_numbers<[1], [0], [0], [1], [0, 0, 1, 1], [], []>} : vector<224x16xf32>, vector<16x224xf32>, vector<224x224xf32> -> vector<224x224xf32>
    %6 = arith.truncf %5 : vector<224x224xf32> to vector<224x224xbf16>
    %c0_6 = arith.constant 0 : index
    %c0_7 = arith.constant 0 : index
    %c0_8 = arith.constant 0 : index
    %7 = vector.load %arg4[%c0_6, %c0_7, %c0_8] : memref<3x224x224xbf16, #tpu.memory_space<vmem>>, vector<1x224x224xbf16>
    %8 = vector.shape_cast %7 : vector<1x224x224xbf16> to vector<224x224xbf16>
    %9 = vector.shape_cast %6 : vector<224x224xbf16> to vector<1x224x224xbf16>
    tpu.vector_store %arg4[%c0_6, %c0_7, %c0_8], %9 {strides = array<i32>} : memref<3x224x224xbf16, #tpu.memory_space<vmem>>, vector<1x224x224xbf16>,
    %c0_9 = arith.constant 0 : index
    %c0_10 = arith.constant 0 : index
    %10 = vector.load %arg2[%c0_9, %c0_10] : memref<224x16xf32, #tpu.memory_space<vmem>>, vector<224x16xf32>
    %11 = vector.extract_strided_slice %2 {offsets = [16, 0], sizes = [16, 224], strides = [1, 1]} : vector<48x224xf32> to vector<16x224xf32>
    %cst_11 = arith.constant dense<0.000000e+00> : vector<224x224xf32>
    %12 = tpu.matmul %10, %11, %cst_11 {dimension_numbers = #tpu.dot_dimension_numbers<[1], [0], [0], [1], [0, 0, 1, 1], [], []>} : vector<224x16xf32>, vector<16x224xf32>, vector<224x224xf32> -> vector<224x224xf32>
    %13 = arith.truncf %12 : vector<224x224xf32> to vector<224x224xbf16>
    %c1 = arith.constant 1 : index
    %c0_12 = arith.constant 0 : index
    %c0_13 = arith.constant 0 : index
    %14 = vector.load %arg4[%c1, %c0_12, %c0_13] : memref<3x224x224xbf16, #tpu.memory_space<vmem>>, vector<1x224x224xbf16>
    %15 = vector.shape_cast %14 : vector<1x224x224xbf16> to vector<224x224xbf16>
    %16 = vector.shape_cast %13 : vector<224x224xbf16> to vector<1x224x224xbf16>
    tpu.vector_store %arg4[%c1, %c0_12, %c0_13], %16 {strides = array<i32>} : memref<3x224x224xbf16, #tpu.memory_space<vmem>>, vector<1x224x224xbf16>,
    %c0_14 = arith.constant 0 : index
    %c0_15 = arith.constant 0 : index
    %17 = vector.load %arg2[%c0_14, %c0_15] : memref<224x16xf32, #tpu.memory_space<vmem>>, vector<224x16xf32>
    %18 = vector.extract_strided_slice %2 {offsets = [32, 0], sizes = [16, 224], strides = [1, 1]} : vector<48x224xf32> to vector<16x224xf32>
    %cst_16 = arith.constant dense<0.000000e+00> : vector<224x224xf32>
    %19 = tpu.matmul %17, %18, %cst_16 {dimension_numbers = #tpu.dot_dimension_numbers<[1], [0], [0], [1], [0, 0, 1, 1], [], []>} : vector<224x16xf32>, vector<16x224xf32>, vector<224x224xf32> -> vector<224x224xf32>
    %20 = arith.truncf %19 : vector<224x224xf32> to vector<224x224xbf16>
    %c2 = arith.constant 2 : index
    %c0_17 = arith.constant 0 : index
    %c0_18 = arith.constant 0 : index
    %21 = vector.load %arg4[%c2, %c0_17, %c0_18] : memref<3x224x224xbf16, #tpu.memory_space<vmem>>, vector<1x224x224xbf16>
    %22 = vector.shape_cast %21 : vector<1x224x224xbf16> to vector<224x224xbf16>
    %23 = vector.shape_cast %20 : vector<224x224xbf16> to vector<1x224x224xbf16>
    tpu.vector_store %arg4[%c2, %c0_17, %c0_18], %23 {strides = array<i32>} : memref<3x224x224xbf16, #tpu.memory_space<vmem>>, vector<1x224x224xbf16>,
    return
  }
  func.func @transform_0(%arg0: i32) -> (i32, i32) {
    %c0_i32 = arith.constant 0 : i32
    %c0_i32_0 = arith.constant 0 : i32
    return %arg0, %c0_i32 : i32, i32
  }
  func.func @transform_1(%arg0: i32) -> (i32, i32) {
    %c0_i32 = arith.constant 0 : i32
    %c0_i32_0 = arith.constant 0 : i32
    %c0_i32_1 = arith.constant 0 : i32
    return %c0_i32, %c0_i32_0 : i32, i32
  }
  func.func @transform_2(%arg0: i32) -> (i32, i32) {
    %c0_i32 = arith.constant 0 : i32
    %c0_i32_0 = arith.constant 0 : i32
    %c0_i32_1 = arith.constant 0 : i32
    return %c0_i32, %c0_i32_0 : i32, i32
  }
  func.func @transform_3(%arg0: i32) -> (i32, i32, i32) {
    %c0_i32 = arith.constant 0 : i32
    %c0_i32_0 = arith.constant 0 : i32
    %c0_i32_1 = arith.constant 0 : i32
    return %arg0, %c0_i32, %c0_i32_0 : i32, i32, i32
  }
}

module attributes {stable_mosaic.version = 11 : i64} {
  func.func @_backbone_head_kernel(%arg0: i32, %arg1: memref<256x768xbf16, #tpu.memory_space<vmem>>, %arg2: memref<256x32xf32, #tpu.memory_space<vmem>>, %arg3: memref<768x32xbf16, #tpu.memory_space<vmem>>, %arg4: memref<4x32x64xbf16, #tpu.memory_space<vmem>>, %arg5: memref<4x1x64xf32, #tpu.memory_space<vmem>>, %arg6: memref<4x64x32xbf16, #tpu.memory_space<vmem>>, %arg7: memref<4x1x32xf32, #tpu.memory_space<vmem>>, %arg8: memref<128x64xbf16, #tpu.memory_space<vmem>>, %arg9: memref<1x64xf32, #tpu.memory_space<vmem>>, %arg10: memref<3x16x16xbf16, #tpu.memory_space<vmem>>, %arg11: memref<3x1x16xf32, #tpu.memory_space<vmem>>, %arg12: memref<16x8xbf16, #tpu.memory_space<vmem>>, %arg13: memref<1x8xf32, #tpu.memory_space<vmem>>, %arg14: memref<1x8xf32, #tpu.memory_space<vmem>>, %arg15: memref<1x1xf32, #tpu.memory_space<vmem>>, %arg16: memref<64x256xbf16, #tpu.memory_space<vmem>>, %arg17: memref<256x64xf32, #tpu.memory_space<vmem>>, %arg18: memref<1x64x64xf32, #tpu.memory_space<vmem>>) attributes {dimension_semantics = [#tpu.dimension_semantics<parallel>], iteration_bounds = array<i64: 2>, scalar_prefetch = 0 : i64, scratch_operands = 0 : i64, tpu.core_type = #tpu.core_type<tc>, window_params = [{transform_indices = @transform_0, window_bounds = array<i64: 256, 768>}, {pipeline_mode = #tpu.pipeline_mode<synchronous>, transform_indices = @transform_1, window_bounds = array<i64: 256, 32>}, {pipeline_mode = #tpu.pipeline_mode<synchronous>, transform_indices = @transform_2, window_bounds = array<i64: 768, 32>}, {pipeline_mode = #tpu.pipeline_mode<synchronous>, transform_indices = @transform_3, window_bounds = array<i64: 4, 32, 64>}, {pipeline_mode = #tpu.pipeline_mode<synchronous>, transform_indices = @transform_4, window_bounds = array<i64: 4, 1, 64>}, {pipeline_mode = #tpu.pipeline_mode<synchronous>, transform_indices = @transform_5, window_bounds = array<i64: 4, 64, 32>}, {pipeline_mode = #tpu.pipeline_mode<synchronous>, transform_indices = @transform_6, window_bounds = array<i64: 4, 1, 32>}, {pipeline_mode = #tpu.pipeline_mode<synchronous>, transform_indices = @transform_7, window_bounds = array<i64: 128, 64>}, {pipeline_mode = #tpu.pipeline_mode<synchronous>, transform_indices = @transform_8, window_bounds = array<i64: 1, 64>}, {pipeline_mode = #tpu.pipeline_mode<synchronous>, transform_indices = @transform_9, window_bounds = array<i64: 3, 16, 16>}, {pipeline_mode = #tpu.pipeline_mode<synchronous>, transform_indices = @transform_10, window_bounds = array<i64: 3, 1, 16>}, {pipeline_mode = #tpu.pipeline_mode<synchronous>, transform_indices = @transform_11, window_bounds = array<i64: 16, 8>}, {pipeline_mode = #tpu.pipeline_mode<synchronous>, transform_indices = @transform_12, window_bounds = array<i64: 1, 8>}, {pipeline_mode = #tpu.pipeline_mode<synchronous>, transform_indices = @transform_13, window_bounds = array<i64: 1, 8>}, {pipeline_mode = #tpu.pipeline_mode<synchronous>, transform_indices = @transform_14, window_bounds = array<i64: 1, 1>}, {pipeline_mode = #tpu.pipeline_mode<synchronous>, transform_indices = @transform_15, window_bounds = array<i64: 64, 256>}, {pipeline_mode = #tpu.pipeline_mode<synchronous>, transform_indices = @transform_16, window_bounds = array<i64: 256, 64>}, {transform_indices = @transform_17, window_bounds = array<i64: 1, 64, 64>}]} {
    %c0 = arith.constant 0 : index
    %c0_0 = arith.constant 0 : index
    %0 = vector.load %arg1[%c0, %c0_0] : memref<256x768xbf16, #tpu.memory_space<vmem>>, vector<256x768xbf16>
    %c0_1 = arith.constant 0 : index
    %c0_2 = arith.constant 0 : index
    %1 = vector.load %arg3[%c0_1, %c0_2] : memref<768x32xbf16, #tpu.memory_space<vmem>>, vector<768x32xbf16>
    %cst = arith.constant dense<0.000000e+00> : vector<256x32xf32>
    %2 = tpu.matmul %0, %1, %cst {dimension_numbers = #tpu.dot_dimension_numbers<[1], [0], [0], [1], [0, 0, 1, 1], [], []>} : vector<256x768xbf16>, vector<768x32xbf16>, vector<256x32xf32> -> vector<256x32xf32>
    %c0_3 = arith.constant 0 : index
    %c0_4 = arith.constant 0 : index
    %3 = vector.load %arg2[%c0_3, %c0_4] : memref<256x32xf32, #tpu.memory_space<vmem>>, vector<256x32xf32>
    %4 = arith.addf %2, %3 : vector<256x32xf32>
    %5 = arith.truncf %4 : vector<256x32xf32> to vector<256x32xbf16>
    %c0_5 = arith.constant 0 : index
    %c0_6 = arith.constant 0 : index
    %c0_7 = arith.constant 0 : index
    %6 = vector.load %arg4[%c0_5, %c0_6, %c0_7] : memref<4x32x64xbf16, #tpu.memory_space<vmem>>, vector<1x32x64xbf16>
    %7 = vector.shape_cast %6 : vector<1x32x64xbf16> to vector<32x64xbf16>
    %cst_8 = arith.constant dense<0.000000e+00> : vector<256x64xf32>
    %8 = tpu.matmul %5, %7, %cst_8 {dimension_numbers = #tpu.dot_dimension_numbers<[1], [0], [0], [1], [0, 0, 1, 1], [], []>} : vector<256x32xbf16>, vector<32x64xbf16>, vector<256x64xf32> -> vector<256x64xf32>
    %c0_9 = arith.constant 0 : index
    %c0_10 = arith.constant 0 : index
    %c0_11 = arith.constant 0 : index
    %9 = vector.load %arg5[%c0_9, %c0_10, %c0_11] : memref<4x1x64xf32, #tpu.memory_space<vmem>>, vector<1x1x64xf32>
    %10 = vector.shape_cast %9 : vector<1x1x64xf32> to vector<1x64xf32>
    %11 = vector.broadcast %10 : vector<1x64xf32> to vector<256x64xf32>
    %12 = arith.addf %8, %11 : vector<256x64xf32>
    %13 = arith.mulf %12, %12 : vector<256x64xf32>
    %14 = arith.mulf %12, %13 : vector<256x64xf32>
    %cst_12 = arith.constant 4.471500e-02 : f32
    %15 = vector.broadcast %cst_12 : f32 to vector<256x64xf32>
    %16 = arith.mulf %15, %14 : vector<256x64xf32>
    %17 = arith.addf %12, %16 : vector<256x64xf32>
    %cst_13 = arith.constant 0.797884583 : f32
    %18 = vector.broadcast %cst_13 : f32 to vector<256x64xf32>
    %19 = arith.mulf %18, %17 : vector<256x64xf32>
    %20 = math.tanh %19 : vector<256x64xf32>
    %cst_14 = arith.constant 1.000000e+00 : f32
    %21 = vector.broadcast %cst_14 : f32 to vector<256x64xf32>
    %22 = arith.addf %21, %20 : vector<256x64xf32>
    %cst_15 = arith.constant 5.000000e-01 : f32
    %23 = vector.broadcast %cst_15 : f32 to vector<256x64xf32>
    %24 = arith.mulf %23, %22 : vector<256x64xf32>
    %25 = arith.mulf %12, %24 : vector<256x64xf32>
    %26 = arith.truncf %25 : vector<256x64xf32> to vector<256x64xbf16>
    %c0_16 = arith.constant 0 : index
    %c0_17 = arith.constant 0 : index
    %c0_18 = arith.constant 0 : index
    %27 = vector.load %arg6[%c0_16, %c0_17, %c0_18] : memref<4x64x32xbf16, #tpu.memory_space<vmem>>, vector<1x64x32xbf16>
    %28 = vector.shape_cast %27 : vector<1x64x32xbf16> to vector<64x32xbf16>
    %cst_19 = arith.constant dense<0.000000e+00> : vector<256x32xf32>
    %29 = tpu.matmul %26, %28, %cst_19 {dimension_numbers = #tpu.dot_dimension_numbers<[1], [0], [0], [1], [0, 0, 1, 1], [], []>} : vector<256x64xbf16>, vector<64x32xbf16>, vector<256x32xf32> -> vector<256x32xf32>
    %c0_20 = arith.constant 0 : index
    %c0_21 = arith.constant 0 : index
    %c0_22 = arith.constant 0 : index
    %30 = vector.load %arg7[%c0_20, %c0_21, %c0_22] : memref<4x1x32xf32, #tpu.memory_space<vmem>>, vector<1x1x32xf32>
    %31 = vector.shape_cast %30 : vector<1x1x32xf32> to vector<1x32xf32>
    %32 = vector.broadcast %31 : vector<1x32xf32> to vector<256x32xf32>
    %33 = arith.addf %29, %32 : vector<256x32xf32>
    %34 = arith.addf %4, %33 : vector<256x32xf32>
    %35 = arith.truncf %34 : vector<256x32xf32> to vector<256x32xbf16>
    %c1 = arith.constant 1 : index
    %c0_23 = arith.constant 0 : index
    %c0_24 = arith.constant 0 : index
    %36 = vector.load %arg4[%c1, %c0_23, %c0_24] : memref<4x32x64xbf16, #tpu.memory_space<vmem>>, vector<1x32x64xbf16>
    %37 = vector.shape_cast %36 : vector<1x32x64xbf16> to vector<32x64xbf16>
    %cst_25 = arith.constant dense<0.000000e+00> : vector<256x64xf32>
    %38 = tpu.matmul %35, %37, %cst_25 {dimension_numbers = #tpu.dot_dimension_numbers<[1], [0], [0], [1], [0, 0, 1, 1], [], []>} : vector<256x32xbf16>, vector<32x64xbf16>, vector<256x64xf32> -> vector<256x64xf32>
    %c1_26 = arith.constant 1 : index
    %c0_27 = arith.constant 0 : index
    %c0_28 = arith.constant 0 : index
    %39 = vector.load %arg5[%c1_26, %c0_27, %c0_28] : memref<4x1x64xf32, #tpu.memory_space<vmem>>, vector<1x1x64xf32>
    %40 = vector.shape_cast %39 : vector<1x1x64xf32> to vector<1x64xf32>
    %41 = vector.broadcast %40 : vector<1x64xf32> to vector<256x64xf32>
    %42 = arith.addf %38, %41 : vector<256x64xf32>
    %43 = arith.mulf %42, %42 : vector<256x64xf32>
    %44 = arith.mulf %42, %43 : vector<256x64xf32>
    %cst_29 = arith.constant 4.471500e-02 : f32
    %45 = vector.broadcast %cst_29 : f32 to vector<256x64xf32>
    %46 = arith.mulf %45, %44 : vector<256x64xf32>
    %47 = arith.addf %42, %46 : vector<256x64xf32>
    %cst_30 = arith.constant 0.797884583 : f32
    %48 = vector.broadcast %cst_30 : f32 to vector<256x64xf32>
    %49 = arith.mulf %48, %47 : vector<256x64xf32>
    %50 = math.tanh %49 : vector<256x64xf32>
    %cst_31 = arith.constant 1.000000e+00 : f32
    %51 = vector.broadcast %cst_31 : f32 to vector<256x64xf32>
    %52 = arith.addf %51, %50 : vector<256x64xf32>
    %cst_32 = arith.constant 5.000000e-01 : f32
    %53 = vector.broadcast %cst_32 : f32 to vector<256x64xf32>
    %54 = arith.mulf %53, %52 : vector<256x64xf32>
    %55 = arith.mulf %42, %54 : vector<256x64xf32>
    %56 = arith.truncf %55 : vector<256x64xf32> to vector<256x64xbf16>
    %c1_33 = arith.constant 1 : index
    %c0_34 = arith.constant 0 : index
    %c0_35 = arith.constant 0 : index
    %57 = vector.load %arg6[%c1_33, %c0_34, %c0_35] : memref<4x64x32xbf16, #tpu.memory_space<vmem>>, vector<1x64x32xbf16>
    %58 = vector.shape_cast %57 : vector<1x64x32xbf16> to vector<64x32xbf16>
    %cst_36 = arith.constant dense<0.000000e+00> : vector<256x32xf32>
    %59 = tpu.matmul %56, %58, %cst_36 {dimension_numbers = #tpu.dot_dimension_numbers<[1], [0], [0], [1], [0, 0, 1, 1], [], []>} : vector<256x64xbf16>, vector<64x32xbf16>, vector<256x32xf32> -> vector<256x32xf32>
    %c1_37 = arith.constant 1 : index
    %c0_38 = arith.constant 0 : index
    %c0_39 = arith.constant 0 : index
    %60 = vector.load %arg7[%c1_37, %c0_38, %c0_39] : memref<4x1x32xf32, #tpu.memory_space<vmem>>, vector<1x1x32xf32>
    %61 = vector.shape_cast %60 : vector<1x1x32xf32> to vector<1x32xf32>
    %62 = vector.broadcast %61 : vector<1x32xf32> to vector<256x32xf32>
    %63 = arith.addf %59, %62 : vector<256x32xf32>
    %64 = arith.addf %34, %63 : vector<256x32xf32>
    %65 = arith.truncf %64 : vector<256x32xf32> to vector<256x32xbf16>
    %c2 = arith.constant 2 : index
    %c0_40 = arith.constant 0 : index
    %c0_41 = arith.constant 0 : index
    %66 = vector.load %arg4[%c2, %c0_40, %c0_41] : memref<4x32x64xbf16, #tpu.memory_space<vmem>>, vector<1x32x64xbf16>
    %67 = vector.shape_cast %66 : vector<1x32x64xbf16> to vector<32x64xbf16>
    %cst_42 = arith.constant dense<0.000000e+00> : vector<256x64xf32>
    %68 = tpu.matmul %65, %67, %cst_42 {dimension_numbers = #tpu.dot_dimension_numbers<[1], [0], [0], [1], [0, 0, 1, 1], [], []>} : vector<256x32xbf16>, vector<32x64xbf16>, vector<256x64xf32> -> vector<256x64xf32>
    %c2_43 = arith.constant 2 : index
    %c0_44 = arith.constant 0 : index
    %c0_45 = arith.constant 0 : index
    %69 = vector.load %arg5[%c2_43, %c0_44, %c0_45] : memref<4x1x64xf32, #tpu.memory_space<vmem>>, vector<1x1x64xf32>
    %70 = vector.shape_cast %69 : vector<1x1x64xf32> to vector<1x64xf32>
    %71 = vector.broadcast %70 : vector<1x64xf32> to vector<256x64xf32>
    %72 = arith.addf %68, %71 : vector<256x64xf32>
    %73 = arith.mulf %72, %72 : vector<256x64xf32>
    %74 = arith.mulf %72, %73 : vector<256x64xf32>
    %cst_46 = arith.constant 4.471500e-02 : f32
    %75 = vector.broadcast %cst_46 : f32 to vector<256x64xf32>
    %76 = arith.mulf %75, %74 : vector<256x64xf32>
    %77 = arith.addf %72, %76 : vector<256x64xf32>
    %cst_47 = arith.constant 0.797884583 : f32
    %78 = vector.broadcast %cst_47 : f32 to vector<256x64xf32>
    %79 = arith.mulf %78, %77 : vector<256x64xf32>
    %80 = math.tanh %79 : vector<256x64xf32>
    %cst_48 = arith.constant 1.000000e+00 : f32
    %81 = vector.broadcast %cst_48 : f32 to vector<256x64xf32>
    %82 = arith.addf %81, %80 : vector<256x64xf32>
    %cst_49 = arith.constant 5.000000e-01 : f32
    %83 = vector.broadcast %cst_49 : f32 to vector<256x64xf32>
    %84 = arith.mulf %83, %82 : vector<256x64xf32>
    %85 = arith.mulf %72, %84 : vector<256x64xf32>
    %86 = arith.truncf %85 : vector<256x64xf32> to vector<256x64xbf16>
    %c2_50 = arith.constant 2 : index
    %c0_51 = arith.constant 0 : index
    %c0_52 = arith.constant 0 : index
    %87 = vector.load %arg6[%c2_50, %c0_51, %c0_52] : memref<4x64x32xbf16, #tpu.memory_space<vmem>>, vector<1x64x32xbf16>
    %88 = vector.shape_cast %87 : vector<1x64x32xbf16> to vector<64x32xbf16>
    %cst_53 = arith.constant dense<0.000000e+00> : vector<256x32xf32>
    %89 = tpu.matmul %86, %88, %cst_53 {dimension_numbers = #tpu.dot_dimension_numbers<[1], [0], [0], [1], [0, 0, 1, 1], [], []>} : vector<256x64xbf16>, vector<64x32xbf16>, vector<256x32xf32> -> vector<256x32xf32>
    %c2_54 = arith.constant 2 : index
    %c0_55 = arith.constant 0 : index
    %c0_56 = arith.constant 0 : index
    %90 = vector.load %arg7[%c2_54, %c0_55, %c0_56] : memref<4x1x32xf32, #tpu.memory_space<vmem>>, vector<1x1x32xf32>
    %91 = vector.shape_cast %90 : vector<1x1x32xf32> to vector<1x32xf32>
    %92 = vector.broadcast %91 : vector<1x32xf32> to vector<256x32xf32>
    %93 = arith.addf %89, %92 : vector<256x32xf32>
    %94 = arith.addf %64, %93 : vector<256x32xf32>
    %95 = arith.truncf %94 : vector<256x32xf32> to vector<256x32xbf16>
    %c3 = arith.constant 3 : index
    %c0_57 = arith.constant 0 : index
    %c0_58 = arith.constant 0 : index
    %96 = vector.load %arg4[%c3, %c0_57, %c0_58] : memref<4x32x64xbf16, #tpu.memory_space<vmem>>, vector<1x32x64xbf16>
    %97 = vector.shape_cast %96 : vector<1x32x64xbf16> to vector<32x64xbf16>
    %cst_59 = arith.constant dense<0.000000e+00> : vector<256x64xf32>
    %98 = tpu.matmul %95, %97, %cst_59 {dimension_numbers = #tpu.dot_dimension_numbers<[1], [0], [0], [1], [0, 0, 1, 1], [], []>} : vector<256x32xbf16>, vector<32x64xbf16>, vector<256x64xf32> -> vector<256x64xf32>
    %c3_60 = arith.constant 3 : index
    %c0_61 = arith.constant 0 : index
    %c0_62 = arith.constant 0 : index
    %99 = vector.load %arg5[%c3_60, %c0_61, %c0_62] : memref<4x1x64xf32, #tpu.memory_space<vmem>>, vector<1x1x64xf32>
    %100 = vector.shape_cast %99 : vector<1x1x64xf32> to vector<1x64xf32>
    %101 = vector.broadcast %100 : vector<1x64xf32> to vector<256x64xf32>
    %102 = arith.addf %98, %101 : vector<256x64xf32>
    %103 = arith.mulf %102, %102 : vector<256x64xf32>
    %104 = arith.mulf %102, %103 : vector<256x64xf32>
    %cst_63 = arith.constant 4.471500e-02 : f32
    %105 = vector.broadcast %cst_63 : f32 to vector<256x64xf32>
    %106 = arith.mulf %105, %104 : vector<256x64xf32>
    %107 = arith.addf %102, %106 : vector<256x64xf32>
    %cst_64 = arith.constant 0.797884583 : f32
    %108 = vector.broadcast %cst_64 : f32 to vector<256x64xf32>
    %109 = arith.mulf %108, %107 : vector<256x64xf32>
    %110 = math.tanh %109 : vector<256x64xf32>
    %cst_65 = arith.constant 1.000000e+00 : f32
    %111 = vector.broadcast %cst_65 : f32 to vector<256x64xf32>
    %112 = arith.addf %111, %110 : vector<256x64xf32>
    %cst_66 = arith.constant 5.000000e-01 : f32
    %113 = vector.broadcast %cst_66 : f32 to vector<256x64xf32>
    %114 = arith.mulf %113, %112 : vector<256x64xf32>
    %115 = arith.mulf %102, %114 : vector<256x64xf32>
    %116 = arith.truncf %115 : vector<256x64xf32> to vector<256x64xbf16>
    %c3_67 = arith.constant 3 : index
    %c0_68 = arith.constant 0 : index
    %c0_69 = arith.constant 0 : index
    %117 = vector.load %arg6[%c3_67, %c0_68, %c0_69] : memref<4x64x32xbf16, #tpu.memory_space<vmem>>, vector<1x64x32xbf16>
    %118 = vector.shape_cast %117 : vector<1x64x32xbf16> to vector<64x32xbf16>
    %cst_70 = arith.constant dense<0.000000e+00> : vector<256x32xf32>
    %119 = tpu.matmul %116, %118, %cst_70 {dimension_numbers = #tpu.dot_dimension_numbers<[1], [0], [0], [1], [0, 0, 1, 1], [], []>} : vector<256x64xbf16>, vector<64x32xbf16>, vector<256x32xf32> -> vector<256x32xf32>
    %c3_71 = arith.constant 3 : index
    %c0_72 = arith.constant 0 : index
    %c0_73 = arith.constant 0 : index
    %120 = vector.load %arg7[%c3_71, %c0_72, %c0_73] : memref<4x1x32xf32, #tpu.memory_space<vmem>>, vector<1x1x32xf32>
    %121 = vector.shape_cast %120 : vector<1x1x32xf32> to vector<1x32xf32>
    %122 = vector.broadcast %121 : vector<1x32xf32> to vector<256x32xf32>
    %123 = arith.addf %119, %122 : vector<256x32xf32>
    %124 = arith.addf %94, %123 : vector<256x32xf32>
    %125 = tpu.concatenate %34, %64, %94, %124 in 1 : vector<256x32xf32>, vector<256x32xf32>, vector<256x32xf32>, vector<256x32xf32> -> vector<256x128xf32>
    %126 = arith.truncf %125 : vector<256x128xf32> to vector<256x128xbf16>
    %c0_74 = arith.constant 0 : index
    %c0_75 = arith.constant 0 : index
    %127 = vector.load %arg8[%c0_74, %c0_75] : memref<128x64xbf16, #tpu.memory_space<vmem>>, vector<128x64xbf16>
    %cst_76 = arith.constant dense<0.000000e+00> : vector<256x64xf32>
    %128 = tpu.matmul %126, %127, %cst_76 {dimension_numbers = #tpu.dot_dimension_numbers<[1], [0], [0], [1], [0, 0, 1, 1], [], []>} : vector<256x128xbf16>, vector<128x64xbf16>, vector<256x64xf32> -> vector<256x64xf32>
    %c0_77 = arith.constant 0 : index
    %c0_78 = arith.constant 0 : index
    %129 = vector.load %arg9[%c0_77, %c0_78] : memref<1x64xf32, #tpu.memory_space<vmem>>, vector<1x64xf32>
    %130 = vector.broadcast %129 : vector<1x64xf32> to vector<256x64xf32>
    %131 = arith.addf %128, %130 : vector<256x64xf32>
    %132 = vector.extract_strided_slice %131 {offsets = [0, 48], sizes = [256, 16], strides = [1, 1]} : vector<256x64xf32> to vector<256x16xf32>
    %133 = vector.extract_strided_slice %131 {offsets = [0, 32], sizes = [256, 16], strides = [1, 1]} : vector<256x64xf32> to vector<256x16xf32>
    %134 = arith.addf %132, %133 : vector<256x16xf32>
    %135 = arith.truncf %134 : vector<256x16xf32> to vector<256x16xbf16>
    %c2_79 = arith.constant 2 : index
    %c0_80 = arith.constant 0 : index
    %c0_81 = arith.constant 0 : index
    %136 = vector.load %arg10[%c2_79, %c0_80, %c0_81] : memref<3x16x16xbf16, #tpu.memory_space<vmem>>, vector<1x16x16xbf16>
    %137 = vector.shape_cast %136 : vector<1x16x16xbf16> to vector<16x16xbf16>
    %cst_82 = arith.constant dense<0.000000e+00> : vector<256x16xf32>
    %138 = tpu.matmul %135, %137, %cst_82 {dimension_numbers = #tpu.dot_dimension_numbers<[1], [0], [0], [1], [0, 0, 1, 1], [], []>} : vector<256x16xbf16>, vector<16x16xbf16>, vector<256x16xf32> -> vector<256x16xf32>
    %c2_83 = arith.constant 2 : index
    %c0_84 = arith.constant 0 : index
    %c0_85 = arith.constant 0 : index
    %139 = vector.load %arg11[%c2_83, %c0_84, %c0_85] : memref<3x1x16xf32, #tpu.memory_space<vmem>>, vector<1x1x16xf32>
    %140 = vector.shape_cast %139 : vector<1x1x16xf32> to vector<1x16xf32>
    %141 = vector.broadcast %140 : vector<1x16xf32> to vector<256x16xf32>
    %142 = arith.addf %138, %141 : vector<256x16xf32>
    %cst_86 = arith.constant 0.000000e+00 : f32
    %143 = vector.broadcast %cst_86 : f32 to vector<256x16xf32>
    %144 = arith.maximumf %142, %143 : vector<256x16xf32>
    %145 = vector.extract_strided_slice %131 {offsets = [0, 16], sizes = [256, 16], strides = [1, 1]} : vector<256x64xf32> to vector<256x16xf32>
    %146 = arith.addf %144, %145 : vector<256x16xf32>
    %147 = arith.truncf %146 : vector<256x16xf32> to vector<256x16xbf16>
    %c1_87 = arith.constant 1 : index
    %c0_88 = arith.constant 0 : index
    %c0_89 = arith.constant 0 : index
    %148 = vector.load %arg10[%c1_87, %c0_88, %c0_89] : memref<3x16x16xbf16, #tpu.memory_space<vmem>>, vector<1x16x16xbf16>
    %149 = vector.shape_cast %148 : vector<1x16x16xbf16> to vector<16x16xbf16>
    %cst_90 = arith.constant dense<0.000000e+00> : vector<256x16xf32>
    %150 = tpu.matmul %147, %149, %cst_90 {dimension_numbers = #tpu.dot_dimension_numbers<[1], [0], [0], [1], [0, 0, 1, 1], [], []>} : vector<256x16xbf16>, vector<16x16xbf16>, vector<256x16xf32> -> vector<256x16xf32>
    %c1_91 = arith.constant 1 : index
    %c0_92 = arith.constant 0 : index
    %c0_93 = arith.constant 0 : index
    %151 = vector.load %arg11[%c1_91, %c0_92, %c0_93] : memref<3x1x16xf32, #tpu.memory_space<vmem>>, vector<1x1x16xf32>
    %152 = vector.shape_cast %151 : vector<1x1x16xf32> to vector<1x16xf32>
    %153 = vector.broadcast %152 : vector<1x16xf32> to vector<256x16xf32>
    %154 = arith.addf %150, %153 : vector<256x16xf32>
    %cst_94 = arith.constant 0.000000e+00 : f32
    %155 = vector.broadcast %cst_94 : f32 to vector<256x16xf32>
    %156 = arith.maximumf %154, %155 : vector<256x16xf32>
    %157 = vector.extract_strided_slice %131 {offsets = [0, 0], sizes = [256, 16], strides = [1, 1]} : vector<256x64xf32> to vector<256x16xf32>
    %158 = arith.addf %156, %157 : vector<256x16xf32>
    %159 = arith.truncf %158 : vector<256x16xf32> to vector<256x16xbf16>
    %c0_95 = arith.constant 0 : index
    %c0_96 = arith.constant 0 : index
    %c0_97 = arith.constant 0 : index
    %160 = vector.load %arg10[%c0_95, %c0_96, %c0_97] : memref<3x16x16xbf16, #tpu.memory_space<vmem>>, vector<1x16x16xbf16>
    %161 = vector.shape_cast %160 : vector<1x16x16xbf16> to vector<16x16xbf16>
    %cst_98 = arith.constant dense<0.000000e+00> : vector<256x16xf32>
    %162 = tpu.matmul %159, %161, %cst_98 {dimension_numbers = #tpu.dot_dimension_numbers<[1], [0], [0], [1], [0, 0, 1, 1], [], []>} : vector<256x16xbf16>, vector<16x16xbf16>, vector<256x16xf32> -> vector<256x16xf32>
    %c0_99 = arith.constant 0 : index
    %c0_100 = arith.constant 0 : index
    %c0_101 = arith.constant 0 : index
    %163 = vector.load %arg11[%c0_99, %c0_100, %c0_101] : memref<3x1x16xf32, #tpu.memory_space<vmem>>, vector<1x1x16xf32>
    %164 = vector.shape_cast %163 : vector<1x1x16xf32> to vector<1x16xf32>
    %165 = vector.broadcast %164 : vector<1x16xf32> to vector<256x16xf32>
    %166 = arith.addf %162, %165 : vector<256x16xf32>
    %cst_102 = arith.constant 0.000000e+00 : f32
    %167 = vector.broadcast %cst_102 : f32 to vector<256x16xf32>
    %168 = arith.maximumf %166, %167 : vector<256x16xf32>
    %169 = arith.truncf %168 : vector<256x16xf32> to vector<256x16xbf16>
    %c0_103 = arith.constant 0 : index
    %c0_104 = arith.constant 0 : index
    %170 = vector.load %arg12[%c0_103, %c0_104] : memref<16x8xbf16, #tpu.memory_space<vmem>>, vector<16x8xbf16>
    %cst_105 = arith.constant dense<0.000000e+00> : vector<256x8xf32>
    %171 = tpu.matmul %169, %170, %cst_105 {dimension_numbers = #tpu.dot_dimension_numbers<[1], [0], [0], [1], [0, 0, 1, 1], [], []>} : vector<256x16xbf16>, vector<16x8xbf16>, vector<256x8xf32> -> vector<256x8xf32>
    %c0_106 = arith.constant 0 : index
    %c0_107 = arith.constant 0 : index
    %172 = vector.load %arg13[%c0_106, %c0_107] : memref<1x8xf32, #tpu.memory_space<vmem>>, vector<1x8xf32>
    %173 = vector.broadcast %172 : vector<1x8xf32> to vector<256x8xf32>
    %174 = arith.addf %171, %173 : vector<256x8xf32>
    %cst_108 = arith.constant 0.000000e+00 : f32
    %175 = vector.broadcast %cst_108 : f32 to vector<256x8xf32>
    %176 = arith.maximumf %174, %175 : vector<256x8xf32>
    %c0_109 = arith.constant 0 : index
    %c0_110 = arith.constant 0 : index
    %177 = vector.load %arg14[%c0_109, %c0_110] : memref<1x8xf32, #tpu.memory_space<vmem>>, vector<1x8xf32>
    %178 = vector.broadcast %177 : vector<1x8xf32> to vector<256x8xf32>
    %179 = arith.mulf %176, %178 : vector<256x8xf32>
    %cst_111 = arith.constant dense<0.000000e+00> : vector<256xf32>
    %180 = vector.multi_reduction <add>, %179, %cst_111 [1] : vector<256x8xf32> to vector<256xf32>
    %181 = vector.shape_cast %180 : vector<256xf32> to vector<256x1xf32>
    %c0_112 = arith.constant 0 : index
    %c0_113 = arith.constant 0 : index
    %182 = vector.load %arg15[%c0_112, %c0_113] : memref<1x1xf32, #tpu.memory_space<vmem>>, vector<1x1xf32>
    %183 = vector.broadcast %182 : vector<1x1xf32> to vector<256x1xf32>
    %184 = arith.addf %181, %183 : vector<256x1xf32>
    %cst_114 = arith.constant 0.000000e+00 : f32
    %185 = vector.broadcast %cst_114 : f32 to vector<256x1xf32>
    %186 = arith.maximumf %184, %185 : vector<256x1xf32>
    %c0_115 = arith.constant 0 : index
    %c0_116 = arith.constant 0 : index
    %187 = vector.load %arg17[%c0_115, %c0_116] : memref<256x64xf32, #tpu.memory_space<vmem>>, vector<256x64xf32>
    %188 = vector.broadcast %186 : vector<256x1xf32> to vector<256x64xf32>
    %189 = arith.mulf %188, %187 : vector<256x64xf32>
    %190 = arith.truncf %189 : vector<256x64xf32> to vector<256x64xbf16>
    %c0_117 = arith.constant 0 : index
    %c0_118 = arith.constant 0 : index
    %191 = vector.load %arg16[%c0_117, %c0_118] : memref<64x256xbf16, #tpu.memory_space<vmem>>, vector<64x256xbf16>
    %cst_119 = arith.constant dense<0.000000e+00> : vector<64x64xf32>
    %192 = tpu.matmul %191, %190, %cst_119 {dimension_numbers = #tpu.dot_dimension_numbers<[1], [0], [0], [1], [0, 0, 1, 1], [], []>} : vector<64x256xbf16>, vector<256x64xbf16>, vector<64x64xf32> -> vector<64x64xf32>
    %c0_120 = arith.constant 0 : index
    %c0_121 = arith.constant 0 : index
    %c0_122 = arith.constant 0 : index
    %193 = vector.load %arg18[%c0_120, %c0_121, %c0_122] : memref<1x64x64xf32, #tpu.memory_space<vmem>>, vector<1x64x64xf32>
    %194 = vector.shape_cast %193 : vector<1x64x64xf32> to vector<64x64xf32>
    %195 = vector.shape_cast %192 : vector<64x64xf32> to vector<1x64x64xf32>
    tpu.vector_store %arg18[%c0_120, %c0_121, %c0_122], %195 {strides = array<i32>} : memref<1x64x64xf32, #tpu.memory_space<vmem>>, vector<1x64x64xf32>,
    return
  }
  func.func @transform_0(%arg0: i32) -> (i32, i32) {
    %c0_i32 = arith.constant 0 : i32
    %c0_i32_0 = arith.constant 0 : i32
    return %arg0, %c0_i32 : i32, i32
  }
  func.func @transform_1(%arg0: i32) -> (i32, i32) {
    %c0_i32 = arith.constant 0 : i32
    %c0_i32_0 = arith.constant 0 : i32
    %c0_i32_1 = arith.constant 0 : i32
    return %c0_i32, %c0_i32_0 : i32, i32
  }
  func.func @transform_2(%arg0: i32) -> (i32, i32) {
    %c0_i32 = arith.constant 0 : i32
    %c0_i32_0 = arith.constant 0 : i32
    %c0_i32_1 = arith.constant 0 : i32
    return %c0_i32, %c0_i32_0 : i32, i32
  }
  func.func @transform_3(%arg0: i32) -> (i32, i32, i32) {
    %c0_i32 = arith.constant 0 : i32
    %c0_i32_0 = arith.constant 0 : i32
    %c0_i32_1 = arith.constant 0 : i32
    %c0_i32_2 = arith.constant 0 : i32
    return %c0_i32, %c0_i32_0, %c0_i32_1 : i32, i32, i32
  }
  func.func @transform_4(%arg0: i32) -> (i32, i32, i32) {
    %c0_i32 = arith.constant 0 : i32
    %c0_i32_0 = arith.constant 0 : i32
    %c0_i32_1 = arith.constant 0 : i32
    %c0_i32_2 = arith.constant 0 : i32
    return %c0_i32, %c0_i32_0, %c0_i32_1 : i32, i32, i32
  }
  func.func @transform_5(%arg0: i32) -> (i32, i32, i32) {
    %c0_i32 = arith.constant 0 : i32
    %c0_i32_0 = arith.constant 0 : i32
    %c0_i32_1 = arith.constant 0 : i32
    %c0_i32_2 = arith.constant 0 : i32
    return %c0_i32, %c0_i32_0, %c0_i32_1 : i32, i32, i32
  }
  func.func @transform_6(%arg0: i32) -> (i32, i32, i32) {
    %c0_i32 = arith.constant 0 : i32
    %c0_i32_0 = arith.constant 0 : i32
    %c0_i32_1 = arith.constant 0 : i32
    %c0_i32_2 = arith.constant 0 : i32
    return %c0_i32, %c0_i32_0, %c0_i32_1 : i32, i32, i32
  }
  func.func @transform_7(%arg0: i32) -> (i32, i32) {
    %c0_i32 = arith.constant 0 : i32
    %c0_i32_0 = arith.constant 0 : i32
    %c0_i32_1 = arith.constant 0 : i32
    return %c0_i32, %c0_i32_0 : i32, i32
  }
  func.func @transform_8(%arg0: i32) -> (i32, i32) {
    %c0_i32 = arith.constant 0 : i32
    %c0_i32_0 = arith.constant 0 : i32
    %c0_i32_1 = arith.constant 0 : i32
    return %c0_i32, %c0_i32_0 : i32, i32
  }
  func.func @transform_9(%arg0: i32) -> (i32, i32, i32) {
    %c0_i32 = arith.constant 0 : i32
    %c0_i32_0 = arith.constant 0 : i32
    %c0_i32_1 = arith.constant 0 : i32
    %c0_i32_2 = arith.constant 0 : i32
    return %c0_i32, %c0_i32_0, %c0_i32_1 : i32, i32, i32
  }
  func.func @transform_10(%arg0: i32) -> (i32, i32, i32) {
    %c0_i32 = arith.constant 0 : i32
    %c0_i32_0 = arith.constant 0 : i32
    %c0_i32_1 = arith.constant 0 : i32
    %c0_i32_2 = arith.constant 0 : i32
    return %c0_i32, %c0_i32_0, %c0_i32_1 : i32, i32, i32
  }
  func.func @transform_11(%arg0: i32) -> (i32, i32) {
    %c0_i32 = arith.constant 0 : i32
    %c0_i32_0 = arith.constant 0 : i32
    %c0_i32_1 = arith.constant 0 : i32
    return %c0_i32, %c0_i32_0 : i32, i32
  }
  func.func @transform_12(%arg0: i32) -> (i32, i32) {
    %c0_i32 = arith.constant 0 : i32
    %c0_i32_0 = arith.constant 0 : i32
    %c0_i32_1 = arith.constant 0 : i32
    return %c0_i32, %c0_i32_0 : i32, i32
  }
  func.func @transform_13(%arg0: i32) -> (i32, i32) {
    %c0_i32 = arith.constant 0 : i32
    %c0_i32_0 = arith.constant 0 : i32
    %c0_i32_1 = arith.constant 0 : i32
    return %c0_i32, %c0_i32_0 : i32, i32
  }
  func.func @transform_14(%arg0: i32) -> (i32, i32) {
    %c0_i32 = arith.constant 0 : i32
    %c0_i32_0 = arith.constant 0 : i32
    %c0_i32_1 = arith.constant 0 : i32
    return %c0_i32, %c0_i32_0 : i32, i32
  }
  func.func @transform_15(%arg0: i32) -> (i32, i32) {
    %c0_i32 = arith.constant 0 : i32
    %c0_i32_0 = arith.constant 0 : i32
    %c0_i32_1 = arith.constant 0 : i32
    return %c0_i32, %c0_i32_0 : i32, i32
  }
  func.func @transform_16(%arg0: i32) -> (i32, i32) {
    %c0_i32 = arith.constant 0 : i32
    %c0_i32_0 = arith.constant 0 : i32
    %c0_i32_1 = arith.constant 0 : i32
    return %c0_i32, %c0_i32_0 : i32, i32
  }
  func.func @transform_17(%arg0: i32) -> (i32, i32, i32) {
    %c0_i32 = arith.constant 0 : i32
    %c0_i32_0 = arith.constant 0 : i32
    %c0_i32_1 = arith.constant 0 : i32
    return %arg0, %c0_i32, %c0_i32_0 : i32, i32, i32
  }
}

</mosaic_0001>

<llo_original>
// kernel: dpt_depth_model_forward.2
$region0: #{dpt_depth_model_forward.2}
  #allocation0 [shape = 'u32[]', space=smem, size = 0x4, offset = 0x4, fixed_abs, tag = 'smem constant byte address 0x4 - core index']
  #allocation1 [shape = 'u32[144,128]{1,0:T(1,128)}', space=vmem, size = 0x12000, scoped, tag = 'internal scratch']
  %s0 = inlined_call_operand.hbm [shape: f32[96,16], index: 0, kind: input, shape index: {}]
  %s1 = inlined_call_operand.vmem [shape: f32[224,16], index: 1, kind: input, shape index: {}]
  %s2 = inlined_call_operand.hbm [shape: f32[16,224], index: 2, kind: input, shape index: {}]
  %s3 = inlined_call_operand.vmem [shape: bf16[6,224,224], index: 3, kind: output, shape index: {}]
  %s4 = sld [smem:[#allocation0]]
  $region53: #{dpt_depth_model_forward.2} parent=0
    _
  %s6 = ssub.s32 1, %s4
  %s7 = scalar_select 0, %s6, %s4
  $region1: #{dpt_depth_model_forward.2} parent=0
    #allocation2 [shape = 'u8[49152]{0}', space=vmem, size = 0xc000, scoped, tag = 'input window, operand 0']
    #allocation3 [shape = 's32[2]{0}', space=sflag, size = 0x8, scoped, tag = 'scoped memory for dpt_depth_model_forward.2']
    #allocation4 [shape = 'u8[16384]{0}', space=vmem, size = 0x4000, scoped, tag = 'input window, operand 2, single buffered']
    #allocation5 [shape = 's32[1]{0}', space=sflag, size = 0x4, scoped, tag = 'scoped memory for dpt_depth_model_forward.2']
    %8 = vsyncpa [#allocation3], 0
    %s9 = scalar_lea.sflag [#allocation3], 1
    %10 = vsyncpa %s9, 0
    %11 = vsyncpa [#allocation5], 0
    loop: start=0, step=1, limit=4
    $region2: #{dpt_depth_model_forward.2} parent=1 // loop_pre_header
      _
    $region3: #{dpt_depth_model_forward.2} parent=1 // loop_header
      %s13 = sphi 0, %s17
      %p14 = scmp.ge.s32.totalorder %s13, 4
      %s23 = sphi 0, %s25
      %s26 = sphi 0, %s23
      %s27 = sphi 0, %s26
      %s43 = sphi 0, %s27
      %s47 = sphi 0, %s47
      %s49 = sphi 0, %s47
      %s50 = sphi 0, %s49
      %s64 = sphi 0, %s50
      %s68 = sphi 0, %s68
      %s70 = sphi 0, %s68
      %s71 = sphi 0, %s70
      %s85 = sphi 0, %s71
      %s91 = sphi 0, %s93
      %s94 = sphi 0, %s91
      %s95 = sphi 0, %s94
      %s111 = sphi 0, %s95
    $region4: #{dpt_depth_model_forward.2} parent=1 // loop_header_branch
      %16 = sbr.rel (%p14) target = $region8
    $region5: #{dpt_depth_model_forward.2} parent=1 // loop_body
      %s18 = ssub.s32 %s13, 1
      %s19 = ssub.s32 %s13, 2
      %s20 = sadd.s32 %s13, 1
      %s21 = ssub.s32 %s13, %s20
      %p22 = scmp.eq.s32.totalorder %s21, 0
      %s24 = sadd.s32 %s23, 1
      %s25 = scalar_select %p22, %s23, %s24
      %p28 = pneg %p22
      %p29 = scmp.eq.s32.totalorder %s13, 1
      %p30 = por %p28, %p29
      %p31 = scmp.ne.s32.totalorder %s23, %s26
      %p32 = scmp.eq.s32.totalorder %s13, 0
      %p33 = por %p31, %p32
      %p34 = scmp.ne.s32.totalorder %s23, %s26
      %p35 = scmp.eq.s32.totalorder %s18, 1
      %p36 = por %p34, %p35
      %p37 = scmp.ne.s32.totalorder %s26, %s27
      %p38 = scmp.eq.s32.totalorder %s18, 0
      %p39 = por %p37, %p38
      %p40 = scmp.ne.s32.totalorder %s26, %s27
      %p41 = scmp.eq.s32.totalorder %s19, 1
      %p42 = por %p40, %p41
      %p44 = scmp.ne.s32.totalorder %s27, %s43
      %p45 = scmp.eq.s32.totalorder %s19, 0
      %p46 = por %p44, %p45
      %s48 = sadd.s32 %s47, 1
      %p51 = scmp.eq.s32.totalorder %s13, 1
      %p52 = scmp.ne.s32.totalorder %s47, %s49
      %p53 = scmp.eq.s32.totalorder %s13, 0
      %p54 = por %p52, %p53
      %p55 = scmp.ne.s32.totalorder %s47, %s49
      %p56 = scmp.eq.s32.totalorder %s18, 1
      %p57 = por %p55, %p56
      %p58 = scmp.ne.s32.totalorder %s49, %s50
      %p59 = scmp.eq.s32.totalorder %s18, 0
      %p60 = por %p58, %p59
      %p61 = scmp.ne.s32.totalorder %s49, %s50
      %p62 = scmp.eq.s32.totalorder %s19, 1
      %p63 = por %p61, %p62
      %p65 = scmp.ne.s32.totalorder %s50, %s64
      %p66 = scmp.eq.s32.totalorder %s19, 0
      %p67 = por %p65, %p66
      %s69 = sadd.s32 %s68, 1
      %p72 = scmp.eq.s32.totalorder %s13, 1
      %p73 = scmp.ne.s32.totalorder %s68, %s70
      %p74 = scmp.eq.s32.totalorder %s13, 0
      %p75 = por %p73, %p74
      %p76 = scmp.ne.s32.totalorder %s68, %s70
      %p77 = scmp.eq.s32.totalorder %s18, 1
      %p78 = por %p76, %p77
      %p79 = scmp.ne.s32.totalorder %s70, %s71
      %p80 = scmp.eq.s32.totalorder %s18, 0
      %p81 = por %p79, %p80
      %p82 = scmp.ne.s32.totalorder %s70, %s71
      %p83 = scmp.eq.s32.totalorder %s19, 1
      %p84 = por %p82, %p83
      %p86 = scmp.ne.s32.totalorder %s71, %s85
      %p87 = scmp.eq.s32.totalorder %s19, 0
      %p88 = por %p86, %p87
      %s89 = ssub.s32 %s13, %s20
      %p90 = scmp.eq.s32.totalorder %s89, 0
      %s92 = sadd.s32 %s91, 1
      %s93 = scalar_select %p90, %s91, %s92
      %p96 = pneg %p90
      %p97 = scmp.eq.s32.totalorder %s13, 1
      %p98 = por %p96, %p97
      %p99 = scmp.ne.s32.totalorder %s91, %s94
      %p100 = scmp.eq.s32.totalorder %s13, 0
      %p101 = por %p99, %p100
      %p102 = scmp.ne.s32.totalorder %s91, %s94
      %p103 = scmp.eq.s32.totalorder %s18, 1
      %p104 = por %p102, %p103
      %p105 = scmp.ne.s32.totalorder %s94, %s95
      %p106 = scmp.eq.s32.totalorder %s18, 0
      %p107 = por %p105, %p106
      %p108 = scmp.ne.s32.totalorder %s94, %s95
      %p109 = scmp.eq.s32.totalorder %s19, 1
      %p110 = por %p108, %p109
      %p112 = scmp.ne.s32.totalorder %s95, %s111
      %p113 = scmp.eq.s32.totalorder %s19, 0
      %p114 = por %p112, %p113
      %p115 = scmp.le.s32.totalorder 1, %s13
      %p116 = scmp.lt.s32.totalorder %s13, 3
      %p117 = pnand %p115, %p116
      %p118 = pneg %p117
      // Predicated region
      $region9: #{dpt_depth_model_forward.2} parent=5 // pred_check
        _
      $region10: #{dpt_depth_model_forward.2} parent=5 // pred_check_branch
        %120 = sbr.rel (%p117) target = $region12
      $region11: #{dpt_depth_model_forward.2} parent=5 // pred_region
        %s121 = ssub.s32 %s13, 1
        // Predicated region
        $region13: #{dpt_depth_model_forward.2} parent=11 // pred_check
          %p122 = pneg %p60
        $region14: #{dpt_depth_model_forward.2} parent=11 // pred_check_branch
          %124 = sbr.rel (%p122) target = $region16
        $region15: #{dpt_depth_model_forward.2} parent=11 // pred_region
          _
        $region16: #{dpt_depth_model_forward.2} parent=11 // pred_fallthru
          _
        // Predicated region
        $region17: #{dpt_depth_model_forward.2} parent=11 // pred_check
          %p125 = pneg %p81
        $region18: #{dpt_depth_model_forward.2} parent=11 // pred_check_branch
          %127 = sbr.rel (%p125) target = $region20
        $region19: #{dpt_depth_model_forward.2} parent=11 // pred_region
          %s129 = ssub.s32 512, 512
          %130 = vsyncadd [#allocation5], %s129
          %s131 = sshll.u32 [#allocation4], 4
          %s132 = int_to_ptr.vmem [resolvable:$true] %s131
          %137 = dma.hbm_to_vmem [thread:$0]  %s2, 512, %s132, [#allocation5], 256, 256, 16
        $region20: #{dpt_depth_model_forward.2} parent=11 // pred_fallthru
          _
      $region12: #{dpt_depth_model_forward.2} parent=5 // pred_fallthru
        _
      %p138 = scmp.lt.s32.totalorder %s13, 2
      // Predicated region
      $region21: #{dpt_depth_model_forward.2} parent=5 // pred_check
        %p139 = pneg %p138
      $region22: #{dpt_depth_model_forward.2} parent=5 // pred_check_branch
        %141 = sbr.rel (%p139) target = $region24
      $region23: #{dpt_depth_model_forward.2} parent=5 // pred_region
        // Predicated region
        $region25: #{dpt_depth_model_forward.2} parent=23 // pred_check
          %p142 = pneg %p33
        $region26: #{dpt_depth_model_forward.2} parent=23 // pred_check_branch
          %144 = sbr.rel (%p142) target = $region28
        $region27: #{dpt_depth_model_forward.2} parent=23 // pred_region
          %s145 = sand.u32 %s23, 1
          %s146 = scalar_lea.sflag [#allocation3], %s145
          %s147 = sand.u32 %s23, 1
          %s148 = smul.addr %s147, 48
          %s149 = scalar_lea.vmem [#allocation2], %s148
          %s150 = smul.u32 6, %s13
          %s152 = ssub.s32 768, 768
          %153 = vsyncadd %s146, %s152
          %s154 = smul.addr %s150, 128
          %s155 = scalar_lea.hbm %s0, %s154
          %s156 = sshll.u32 %s149, 4
          %s157 = int_to_ptr.vmem [resolvable:$true] %s156
          %162 = dma.hbm_to_vmem [thread:$0]  %s155, 768, %s157, %s146, 128, 128, 8
        $region28: #{dpt_depth_model_forward.2} parent=23 // pred_fallthru
          _
      $region24: #{dpt_depth_model_forward.2} parent=5 // pred_fallthru
        _
      %p163 = scmp.le.s32.totalorder 1, %s13
      %p164 = scmp.lt.s32.totalorder %s13, 3
      %p165 = pnand %p163, %p164
      %p166 = pneg %p165
      // Predicated region
      $region29: #{dpt_depth_model_forward.2} parent=5 // pred_check
        _
      $region30: #{dpt_depth_model_forward.2} parent=5 // pred_check_branch
        %168 = sbr.rel (%p165) target = $region32
      $region31: #{dpt_depth_model_forward.2} parent=5 // pred_region
        %s169 = ssub.s32 %s13, 1
        %s170 = sand.u32 %s26, 1
        %s171 = scalar_lea.sflag [#allocation3], %s170
        %s172 = sand.u32 %s26, 1
        %s173 = smul.addr %s172, 48
        %s174 = scalar_lea.vmem [#allocation2], %s173
        // Predicated region
        $region33: #{dpt_depth_model_forward.2} parent=31 // pred_check
          %p175 = pneg %p39
        $region34: #{dpt_depth_model_forward.2} parent=31 // pred_check_branch
          %177 = sbr.rel (%p175) target = $region36
        $region35: #{dpt_depth_model_forward.2} parent=31 // pred_region
          %178 = dma.done %s171, 768
        $region36: #{dpt_depth_model_forward.2} parent=31 // pred_fallthru
          _
        // Predicated region
        $region37: #{dpt_depth_model_forward.2} parent=31 // pred_check
          %p179 = pneg %p81
        $region38: #{dpt_depth_model_forward.2} parent=31 // pred_check_branch
          %181 = sbr.rel (%p179) target = $region40
        $region39: #{dpt_depth_model_forward.2} parent=31 // pred_region
          %182 = dma.done [#allocation5], 512
        $region40: #{dpt_depth_model_forward.2} parent=31 // pred_fallthru
          _
        %s183 = sand.u32 %s26, 1
        %s184 = scalar_lea.sflag [#allocation3], %s183
        %s185 = sand.u32 %s26, 1
        %s186 = smul.addr %s185, 48
        %s187 = scalar_lea.vmem [#allocation2], %s186
        %p188 = pneg %p39
        %p189 = pneg %p36
        %p190 = pneg %p60
        %p191 = pneg %p57
        %p192 = pneg %p81
        %p193 = pneg %p78
        %p194 = pneg %p107
        %p195 = pneg %p104
        %s196 = smul.u32 3, %s18
        %p197 = scmp.lt.s32.totalorder %s196, 5
        %s198 = scalar_select %p197, %s196, 5
        %s199 = smul.addr %s198, 56
        %s200 = smul.addr %s199, 4
        %s201 = scalar_lea.vmem %s3, %s200
        %s202 = smul.u32 6, %s18
        %s203 = smul.u32 3, %s18
        %p204 = scmp.lt.s32.totalorder %s203, 5
        %s205 = scalar_select %p204, %s203, 5
        %s206 = smul.addr %s205, 56
        %s207 = smul.addr %s206, 4
        %s208 = scalar_lea.vmem %s3, %s207
        %s209 = smul.u32 3, %s18
        %v210 = vld [vmem:[%s174] sm:$0xff]
        %v211 = vld [vmem:[%s174 + $0x8] sm:$0xff]
        %v212 = vld [vmem:[%s174 + $0x10] sm:$0xff]
        %v213 = vld [vmem:[%s174 + $0x18] sm:$0xff]
        %v214 = vld [vmem:[%s174 + $0x20] sm:$0xff]
        %v215 = vld [vmem:[%s174 + $0x28] sm:$0xff]
        %v216 = vld [vmem:[#allocation4] sm:$0xff]
        %v217 = vld [vmem:[#allocation4 + $0x8] sm:$0xff]
        %v218 = vld [vmem:[#allocation4 + $0x10] sm:$0xff]
        %v219 = vld [vmem:[#allocation4 + $0x18] sm:$0xff]
        %vm220 = vcmask 130048
        %v222 = vsel %vm220, %v210, 0
        %v225 = vsel %vm220, %v211, 0
        %v228 = vsel %vm220, %v212, 0
        %v231 = vsel %vm220, %v213, 0
        %v234 = vsel %vm220, %v214, 0
        %v237 = vsel %vm220, %v215, 0
        %239 = vmatprep.subr.mxu0 0.0
        %240 = vmatpush1.msra.mxu0 0.0
        %241 = vmatprep.subr.mxu0 0.0
        %242 = vmatpush1.msra.mxu0 0.0
        %243 = vmatprep.subr.mxu0 0.0
        %244 = vmatpush1.msra.mxu0 0.0
        %245 = vmatprep.subr.mxu0 0.0
        %246 = vmatpush1.msra.mxu0 0.0
        %247 = vmatprep.subr.mxu0 0.0
        %248 = vmatpush1.msra.mxu0 0.0
        %249 = vmatprep.subr.mxu0 0.0
        %250 = vmatpush1.msra.mxu0 0.0
        %251 = vmatprep.subr.mxu0 0.0
        %252 = vmatpush1.msra.mxu0 0.0
        %253 = vmatprep.subr.mxu0 0.0
        %254 = vmatpush1.msra.mxu0 0.0
        %255 = vmatprep.subr.mxu0 0.0
        %256 = vmatpush1.msra.mxu0 0.0
        %257 = vmatprep.subr.mxu0 0.0
        %258 = vmatpush1.msra.mxu0 0.0
        %259 = vmatprep.subr.mxu0 0.0
        %260 = vmatpush1.msra.mxu0 0.0
        %261 = vmatprep.subr.mxu0 0.0
        %262 = vmatpush1.msra.mxu0 0.0
        %263 = vmatprep.subr.mxu0 0.0
        %264 = vmatpush1.msra.mxu0 0.0
        %265 = vmatprep.subr.mxu0 0.0
        %266 = vmatpush1.msra.mxu0 0.0
        %267 = vmatprep.subr.mxu0 %v219
        %268 = vmatpush1.msra.mxu0 %v218
        %269 = vmatprep.subr.mxu0 %v217
        %270 = vmatpush1.msra.mxu0 %v216
        %271 = vmatprep.subr.mxu0 0.0
        %272 = vmatpush2.msra.mxu0 0.0
        %273 = vmatprep.subr.mxu0 0.0
        %274 = vmatpush2.msra.mxu0 0.0
        %275 = vmatprep.subr.mxu0 0.0
        %276 = vmatpush2.msra.mxu0 0.0
        %277 = vmatprep.subr.mxu0 0.0
        %278 = vmatpush2.msra.mxu0 0.0
        %279 = vmatprep.subr.mxu0 0.0
        %280 = vmatpush2.msra.mxu0 0.0
        %281 = vmatprep.subr.mxu0 0.0
        %282 = vmatpush2.msra.mxu0 0.0
        %283 = vmatprep.subr.mxu0 0.0
        %284 = vmatpush2.msra.mxu0 0.0
        %285 = vmatprep.subr.mxu0 0.0
        %286 = vmatpush2.msra.mxu0 0.0
        %287 = vmatprep.subr.mxu0 0.0
        %288 = vmatpush2.msra.mxu0 0.0
        %289 = vmatprep.subr.mxu0 0.0
        %290 = vmatpush2.msra.mxu0 0.0
        %291 = vmatprep.subr.mxu0 0.0
        %292 = vmatpush2.msra.mxu0 0.0
        %293 = vmatprep.subr.mxu0 0.0
        %294 = vmatpush2.msra.mxu0 0.0
        %295 = vmatprep.subr.mxu0 0.0
        %296 = vmatpush2.msra.mxu0 0.0
        %297 = vmatprep.subr.mxu0 0.0
        %298 = vmatpush2.msra.mxu0 0.0
        %299 = vmatprep.subr.mxu0 0.0
        %300 = vmatpush2.msra.mxu0 0.0
        %301 = vmatprep.subr.mxu0 0.0
        %302 = vmatpush2.msra.mxu0 0.0
        %303 = vmatprep.mubr.f32.mxu0 0.0
        %304 = vmatmul.mubr.f32.gmra.mxu0 %v222
        %v305 = vpop.f32.mrf.mxu0
        %v306 = vadd.f32 0.0, %v305
        %v307 = vpop.f32.mrf.mxu0
        %v308 = vadd.f32 0.0, %v307
        %309 = vmatprep.mubr.f32.mxu0 0.0
        %310 = vmatmul.mubr.f32.gmra.mxu0 %v225
        %v311 = vpop.f32.mrf.mxu0
        %v312 = vadd.f32 0.0, %v311
        %v313 = vpop.f32.mrf.mxu0
        %v314 = vadd.f32 0.0, %v313
        %315 = vmatprep.mubr.f32.mxu0 0.0
        %316 = vmatmul.mubr.f32.gmra.mxu0 %v228
        %v317 = vpop.f32.mrf.mxu0
        %v318 = vadd.f32 0.0, %v317
        %v319 = vpop.f32.mrf.mxu0
        %v320 = vadd.f32 0.0, %v319
        %321 = vmatprep.mubr.f32.mxu0 0.0
        %322 = vmatmul.mubr.f32.gmra.mxu0 %v231
        %v323 = vpop.f32.mrf.mxu0
        %v324 = vadd.f32 0.0, %v323
        %v325 = vpop.f32.mrf.mxu0
        %v326 = vadd.f32 0.0, %v325
        %327 = vmatprep.mubr.f32.mxu0 0.0
        %328 = vmatmul.mubr.f32.gmra.mxu0 %v234
        %v329 = vpop.f32.mrf.mxu0
        %v330 = vadd.f32 0.0, %v329
        %v331 = vpop.f32.mrf.mxu0
        %v332 = vadd.f32 0.0, %v331
        %333 = vmatprep.mubr.f32.mxu0 0.0
        %334 = vmatmul.mubr.f32.gmra.mxu0 %v237
        %v335 = vpop.f32.mrf.mxu0
        %v336 = vadd.f32 0.0, %v335
        %v337 = vpop.f32.mrf.mxu0
        %v338 = vadd.f32 0.0, %v337
        %339 = vdwg.mxu0
        %v340 = vld [vmem:[%s1] sm:$0xff]
        %v341 = vld [vmem:[%s1 + $0x8] sm:$0xff]
        %v342 = vld [vmem:[%s1 + $0x10] sm:$0xff]
        %v343 = vld [vmem:[%s1 + $0x18] sm:$0xff]
        %v344 = vld [vmem:[%s1 + $0x20] sm:$0xff]
        %v345 = vld [vmem:[%s1 + $0x28] sm:$0xff]
        %v346 = vld [vmem:[%s1 + $0x30] sm:$0xff]
        %v347 = vld [vmem:[%s1 + $0x38] sm:$0xff]
        %v348 = vld [vmem:[%s1 + $0x40] sm:$0xff]
        %v349 = vld [vmem:[%s1 + $0x48] sm:$0xff]
        %v350 = vld [vmem:[%s1 + $0x50] sm:$0xff]
        %v351 = vld [vmem:[%s1 + $0x58] sm:$0xff]
        %v352 = vld [vmem:[%s1 + $0x60] sm:$0xff]
        %v353 = vld [vmem:[%s1 + $0x68] sm:$0xff]
        %v354 = vld [vmem:[%s1 + $0x70] sm:$0xff]
        %v355 = vld [vmem:[%s1 + $0x78] sm:$0xff]
        %v356 = vld [vmem:[%s1 + $0x80] sm:$0xff]
        %v357 = vld [vmem:[%s1 + $0x88] sm:$0xff]
        %v358 = vld [vmem:[%s1 + $0x90] sm:$0xff]
        %v359 = vld [vmem:[%s1 + $0x98] sm:$0xff]
        %v360 = vld [vmem:[%s1 + $0xa0] sm:$0xff]
        %v361 = vld [vmem:[%s1 + $0xa8] sm:$0xff]
        %v362 = vld [vmem:[%s1 + $0xb0] sm:$0xff]
        %v363 = vld [vmem:[%s1 + $0xb8] sm:$0xff]
        %v364 = vld [vmem:[%s1 + $0xc0] sm:$0xff]
        %v365 = vld [vmem:[%s1 + $0xc8] sm:$0xff]
        %v366 = vld [vmem:[%s1 + $0xd0] sm:$0xff]
        %v367 = vld [vmem:[%s1 + $0xd8] sm:$0xff]
        %v369 = vsel %vm220, %v340, 0
        %v372 = vsel %vm220, %v341, 0
        %v375 = vsel %vm220, %v342, 0
        %v378 = vsel %vm220, %v343, 0
        %v381 = vsel %vm220, %v344, 0
        %v384 = vsel %vm220, %v345, 0
        %v387 = vsel %vm220, %v346, 0
        %v390 = vsel %vm220, %v347, 0
        %v393 = vsel %vm220, %v348, 0
        %v396 = vsel %vm220, %v349, 0
        %v399 = vsel %vm220, %v350, 0
        %v402 = vsel %vm220, %v351, 0
        %v405 = vsel %vm220, %v352, 0
        %v408 = vsel %vm220, %v353, 0
        %v411 = vsel %vm220, %v354, 0
        %v414 = vsel %vm220, %v355, 0
        %v417 = vsel %vm220, %v356, 0
        %v420 = vsel %vm220, %v357, 0
        %v423 = vsel %vm220, %v358, 0
        %v426 = vsel %vm220, %v359, 0
        %v429 = vsel %vm220, %v360, 0
        %v432 = vsel %vm220, %v361, 0
        %v435 = vsel %vm220, %v362, 0
        %v438 = vsel %vm220, %v363, 0
        %v441 = vsel %vm220, %v364, 0
        %v444 = vsel %vm220, %v365, 0
        %v447 = vsel %vm220, %v366, 0
        %v450 = vsel %vm220, %v367, 0
        %452 = vmatprep.subr.mxu0 0.0
        %453 = vmatpush1.msra.mxu0 0.0
        %454 = vmatprep.subr.mxu0 0.0
        %455 = vmatpush1.msra.mxu0 0.0
        %456 = vmatprep.subr.mxu0 0.0
        %457 = vmatpush1.msra.mxu0 0.0
        %458 = vmatprep.subr.mxu0 0.0
        %459 = vmatpush1.msra.mxu0 0.0
        %460 = vmatprep.subr.mxu0 0.0
        %461 = vmatpush1.msra.mxu0 0.0
        %462 = vmatprep.subr.mxu0 0.0
        %463 = vmatpush1.msra.mxu0 0.0
        %464 = vmatprep.subr.mxu0 0.0
        %465 = vmatpush1.msra.mxu0 0.0
        %466 = vmatprep.subr.mxu0 0.0
        %467 = vmatpush1.msra.mxu0 0.0
        %468 = vmatprep.subr.mxu0 0.0
        %469 = vmatpush1.msra.mxu0 0.0
        %470 = vmatprep.subr.mxu0 0.0
        %471 = vmatpush1.msra.mxu0 0.0
        %472 = vmatprep.subr.mxu0 0.0
        %473 = vmatpush1.msra.mxu0 0.0
        %474 = vmatprep.subr.mxu0 0.0
        %475 = vmatpush1.msra.mxu0 0.0
        %476 = vmatprep.subr.mxu0 0.0
        %477 = vmatpush1.msra.mxu0 0.0
        %478 = vmatprep.subr.mxu0 0.0
        %479 = vmatpush1.msra.mxu0 0.0
        %480 = vmatprep.subr.mxu0 %v314
        %481 = vmatpush1.msra.mxu0 %v312
        %482 = vmatprep.subr.mxu0 %v308
        %483 = vmatpush1.msra.mxu0 %v306
        %484 = vmatprep.subr.mxu0 0.0
        %485 = vmatpush2.msra.mxu0 0.0
        %486 = vmatprep.subr.mxu0 0.0
        %487 = vmatpush2.msra.mxu0 0.0
        %488 = vmatprep.subr.mxu0 0.0
        %489 = vmatpush2.msra.mxu0 0.0
        %490 = vmatprep.subr.mxu0 0.0
        %491 = vmatpush2.msra.mxu0 0.0
        %492 = vmatprep.subr.mxu0 0.0
        %493 = vmatpush2.msra.mxu0 0.0
        %494 = vmatprep.subr.mxu0 0.0
        %495 = vmatpush2.msra.mxu0 0.0
        %496 = vmatprep.subr.mxu0 0.0
        %497 = vmatpush2.msra.mxu0 0.0
        %498 = vmatprep.subr.mxu0 0.0
        %499 = vmatpush2.msra.mxu0 0.0
        %500 = vmatprep.subr.mxu0 0.0
        %501 = vmatpush2.msra.mxu0 0.0
        %502 = vmatprep.subr.mxu0 0.0
        %503 = vmatpush2.msra.mxu0 0.0
        %504 = vmatprep.subr.mxu0 0.0
        %505 = vmatpush2.msra.mxu0 0.0
        %506 = vmatprep.subr.mxu0 0.0
        %507 = vmatpush2.msra.mxu0 0.0
        %508 = vmatprep.subr.mxu0 0.0
        %509 = vmatpush2.msra.mxu0 0.0
        %510 = vmatprep.subr.mxu0 0.0
        %511 = vmatpush2.msra.mxu0 0.0
        %512 = vmatprep.subr.mxu0 0.0
        %513 = vmatpush2.msra.mxu0 0.0
        %514 = vmatprep.subr.mxu0 0.0
        %515 = vmatpush2.msra.mxu0 0.0
        %516 = vmatprep.mubr.f32.mxu0 0.0
        %517 = vmatmul.mubr.f32.gmra.mxu0 %v369
        %v518 = vpop.f32.mrf.mxu0
        %v519 = vadd.f32 0.0, %v518
        %v520 = vpop.f32.mrf.mxu0
        %v521 = vadd.f32 0.0, %v520
        %522 = vmatprep.mubr.f32.mxu0 0.0
        %523 = vmatmul.mubr.f32.gmra.mxu0 %v372
        %v524 = vpop.f32.mrf.mxu0
        %v525 = vadd.f32 0.0, %v524
        %v526 = vpop.f32.mrf.mxu0
        %v527 = vadd.f32 0.0, %v526
        %528 = vmatprep.mubr.f32.mxu0 0.0
        %529 = vmatmul.mubr.f32.gmra.mxu0 %v375
        %v530 = vpop.f32.mrf.mxu0
        %v531 = vadd.f32 0.0, %v530
        %v532 = vpop.f32.mrf.mxu0
        %v533 = vadd.f32 0.0, %v532
        %534 = vmatprep.mubr.f32.mxu0 0.0
        %535 = vmatmul.mubr.f32.gmra.mxu0 %v378
        %v536 = vpop.f32.mrf.mxu0
        %v537 = vadd.f32 0.0, %v536
        %v538 = vpop.f32.mrf.mxu0
        %v539 = vadd.f32 0.0, %v538
        %540 = vmatprep.mubr.f32.mxu0 0.0
        %541 = vmatmul.mubr.f32.gmra.mxu0 %v381
        %v542 = vpop.f32.mrf.mxu0
        %v543 = vadd.f32 0.0, %v542
        %v544 = vpop.f32.mrf.mxu0
        %v545 = vadd.f32 0.0, %v544
        %546 = vmatprep.mubr.f32.mxu0 0.0
        %547 = vmatmul.mubr.f32.gmra.mxu0 %v384
        %v548 = vpop.f32.mrf.mxu0
        %v549 = vadd.f32 0.0, %v548
        %v550 = vpop.f32.mrf.mxu0
        %v551 = vadd.f32 0.0, %v550
        %552 = vmatprep.mubr.f32.mxu0 0.0
        %553 = vmatmul.mubr.f32.gmra.mxu0 %v387
        %v554 = vpop.f32.mrf.mxu0
        %v555 = vadd.f32 0.0, %v554
        %v556 = vpop.f32.mrf.mxu0
        %v557 = vadd.f32 0.0, %v556
        %558 = vmatprep.mubr.f32.mxu0 0.0
        %559 = vmatmul.mubr.f32.gmra.mxu0 %v390
        %v560 = vpop.f32.mrf.mxu0
        %v561 = vadd.f32 0.0, %v560
        %v562 = vpop.f32.mrf.mxu0
        %v563 = vadd.f32 0.0, %v562
        %564 = vmatprep.mubr.f32.mxu0 0.0
        %565 = vmatmul.mubr.f32.gmra.mxu0 %v393
        %v566 = vpop.f32.mrf.mxu0
        %v567 = vadd.f32 0.0, %v566
        %v568 = vpop.f32.mrf.mxu0
        %v569 = vadd.f32 0.0, %v568
        %570 = vmatprep.mubr.f32.mxu0 0.0
        %571 = vmatmul.mubr.f32.gmra.mxu0 %v396
        %v572 = vpop.f32.mrf.mxu0
        %v573 = vadd.f32 0.0, %v572
        %v574 = vpop.f32.mrf.mxu0
        %v575 = vadd.f32 0.0, %v574
        %576 = vmatprep.mubr.f32.mxu0 0.0
        %577 = vmatmul.mubr.f32.gmra.mxu0 %v399
        %v578 = vpop.f32.mrf.mxu0
        %v579 = vadd.f32 0.0, %v578
        %v580 = vpop.f32.mrf.mxu0
        %v581 = vadd.f32 0.0, %v580
        %582 = vmatprep.mubr.f32.mxu0 0.0
        %583 = vmatmul.mubr.f32.gmra.mxu0 %v402
        %v584 = vpop.f32.mrf.mxu0
        %v585 = vadd.f32 0.0, %v584
        %v586 = vpop.f32.mrf.mxu0
        %v587 = vadd.f32 0.0, %v586
        %588 = vmatprep.mubr.f32.mxu0 0.0
        %589 = vmatmul.mubr.f32.gmra.mxu0 %v405
        %v590 = vpop.f32.mrf.mxu0
        %v591 = vadd.f32 0.0, %v590
        %v592 = vpop.f32.mrf.mxu0
        %v593 = vadd.f32 0.0, %v592
        %594 = vmatprep.mubr.f32.mxu0 0.0
        %595 = vmatmul.mubr.f32.gmra.mxu0 %v408
        %v596 = vpop.f32.mrf.mxu0
        %v597 = vadd.f32 0.0, %v596
        %v598 = vpop.f32.mrf.mxu0
        %v599 = vadd.f32 0.0, %v598
        %600 = vmatprep.mubr.f32.mxu0 0.0
        %601 = vmatmul.mubr.f32.gmra.mxu0 %v411
        %v602 = vpop.f32.mrf.mxu0
        %v603 = vadd.f32 0.0, %v602
        %v604 = vpop.f32.mrf.mxu0
        %v605 = vadd.f32 0.0, %v604
        %606 = vmatprep.mubr.f32.mxu0 0.0
        %607 = vmatmul.mubr.f32.gmra.mxu0 %v414
        %v608 = vpop.f32.mrf.mxu0
        %v609 = vadd.f32 0.0, %v608
        %v610 = vpop.f32.mrf.mxu0
        %v611 = vadd.f32 0.0, %v610
        %612 = vmatprep.mubr.f32.mxu0 0.0
        %613 = vmatmul.mubr.f32.gmra.mxu0 %v417
        %v614 = vpop.f32.mrf.mxu0
        %v615 = vadd.f32 0.0, %v614
        %v616 = vpop.f32.mrf.mxu0
        %v617 = vadd.f32 0.0, %v616
        %618 = vmatprep.mubr.f32.mxu0 0.0
        %619 = vmatmul.mubr.f32.gmra.mxu0 %v420
        %v620 = vpop.f32.mrf.mxu0
        %v621 = vadd.f32 0.0, %v620
        %v622 = vpop.f32.mrf.mxu0
        %v623 = vadd.f32 0.0, %v622
        %624 = vmatprep.mubr.f32.mxu0 0.0
        %625 = vmatmul.mubr.f32.gmra.mxu0 %v423
        %v626 = vpop.f32.mrf.mxu0
        %v627 = vadd.f32 0.0, %v626
        %v628 = vpop.f32.mrf.mxu0
        %v629 = vadd.f32 0.0, %v628
        %630 = vmatprep.mubr.f32.mxu0 0.0
        %631 = vmatmul.mubr.f32.gmra.mxu0 %v426
        %v632 = vpop.f32.mrf.mxu0
        %v633 = vadd.f32 0.0, %v632
        %v634 = vpop.f32.mrf.mxu0
        %v635 = vadd.f32 0.0, %v634
        %636 = vmatprep.mubr.f32.mxu0 0.0
        %637 = vmatmul.mubr.f32.gmra.mxu0 %v429
        %v638 = vpop.f32.mrf.mxu0
        %v639 = vadd.f32 0.0, %v638
        %v640 = vpop.f32.mrf.mxu0
        %v641 = vadd.f32 0.0, %v640
        %642 = vmatprep.mubr.f32.mxu0 0.0
        %643 = vmatmul.mubr.f32.gmra.mxu0 %v432
        %v644 = vpop.f32.mrf.mxu0
        %v645 = vadd.f32 0.0, %v644
        %v646 = vpop.f32.mrf.mxu0
        %v647 = vadd.f32 0.0, %v646
        %648 = vmatprep.mubr.f32.mxu0 0.0
        %649 = vmatmul.mubr.f32.gmra.mxu0 %v435
        %v650 = vpop.f32.mrf.mxu0
        %v651 = vadd.f32 0.0, %v650
        %v652 = vpop.f32.mrf.mxu0
        %v653 = vadd.f32 0.0, %v652
        %654 = vmatprep.mubr.f32.mxu0 0.0
        %655 = vmatmul.mubr.f32.gmra.mxu0 %v438
        %v656 = vpop.f32.mrf.mxu0
        %v657 = vadd.f32 0.0, %v656
        %v658 = vpop.f32.mrf.mxu0
        %v659 = vadd.f32 0.0, %v658
        %660 = vmatprep.mubr.f32.mxu0 0.0
        %661 = vmatmul.mubr.f32.gmra.mxu0 %v441
        %v662 = vpop.f32.mrf.mxu0
        %v663 = vadd.f32 0.0, %v662
        %v664 = vpop.f32.mrf.mxu0
        %v665 = vadd.f32 0.0, %v664
        %666 = vmatprep.mubr.f32.mxu0 0.0
        %667 = vmatmul.mubr.f32.gmra.mxu0 %v444
        %v668 = vpop.f32.mrf.mxu0
        %v669 = vadd.f32 0.0, %v668
        %v670 = vpop.f32.mrf.mxu0
        %v671 = vadd.f32 0.0, %v670
        %672 = vmatprep.mubr.f32.mxu0 0.0
        %673 = vmatmul.mubr.f32.gmra.mxu0 %v447
        %v674 = vpop.f32.mrf.mxu0
        %v675 = vadd.f32 0.0, %v674
        %v676 = vpop.f32.mrf.mxu0
        %v677 = vadd.f32 0.0, %v676
        %678 = vmatprep.mubr.f32.mxu0 0.0
        %679 = vmatmul.mubr.f32.gmra.mxu0 %v450
        %v680 = vpop.f32.mrf.mxu0
        %v681 = vadd.f32 0.0, %v680
        %v682 = vpop.f32.mrf.mxu0
        %v683 = vadd.f32 0.0, %v682
        %684 = vdwg.mxu0
        %v685 = vpack.c.bf16 %v525, %v519
        %v686 = vpack.c.bf16 %v527, %v521
        %v687 = vpack.c.bf16 %v537, %v531
        %v688 = vpack.c.bf16 %v539, %v533
        %v689 = vpack.c.bf16 %v549, %v543
        %v690 = vpack.c.bf16 %v551, %v545
        %v691 = vpack.c.bf16 %v561, %v555
        %v692 = vpack.c.bf16 %v563, %v557
        %v693 = vpack.c.bf16 %v573, %v567
        %v694 = vpack.c.bf16 %v575, %v569
        %v695 = vpack.c.bf16 %v585, %v579
        %v696 = vpack.c.bf16 %v587, %v581
        %v697 = vpack.c.bf16 %v597, %v591
        %v698 = vpack.c.bf16 %v599, %v593
        %v699 = vpack.c.bf16 %v609, %v603
        %v700 = vpack.c.bf16 %v611, %v605
        %v701 = vpack.c.bf16 %v621, %v615
        %v702 = vpack.c.bf16 %v623, %v617
        %v703 = vpack.c.bf16 %v633, %v627
        %v704 = vpack.c.bf16 %v635, %v629
        %v705 = vpack.c.bf16 %v645, %v639
        %v706 = vpack.c.bf16 %v647, %v641
        %v707 = vpack.c.bf16 %v657, %v651
        %v708 = vpack.c.bf16 %v659, %v653
        %v709 = vpack.c.bf16 %v669, %v663
        %v710 = vpack.c.bf16 %v671, %v665
        %v711 = vpack.c.bf16 %v681, %v675
        %v712 = vpack.c.bf16 %v683, %v677
        %v741 = vunpack.c.l.b16 %v685
        %v742 = vunpack.c.l.b16 %v686
        %v743 = vunpack.c.h.b16 %v685
        %v744 = vunpack.c.h.b16 %v686
        %v745 = vunpack.c.l.b16 %v687
        %v746 = vunpack.c.l.b16 %v688
        %v747 = vunpack.c.h.b16 %v687
        %v748 = vunpack.c.h.b16 %v688
        %v749 = vunpack.c.l.b16 %v689
        %v750 = vunpack.c.l.b16 %v690
        %v751 = vunpack.c.h.b16 %v689
        %v752 = vunpack.c.h.b16 %v690
        %v753 = vunpack.c.l.b16 %v691
        %v754 = vunpack.c.l.b16 %v692
        %v755 = vunpack.c.h.b16 %v691
        %v756 = vunpack.c.h.b16 %v692
        %v757 = vunpack.c.l.b16 %v693
        %v758 = vunpack.c.l.b16 %v694
        %v759 = vunpack.c.h.b16 %v693
        %v760 = vunpack.c.h.b16 %v694
        %v761 = vunpack.c.l.b16 %v695
        %v762 = vunpack.c.l.b16 %v696
        %v763 = vunpack.c.h.b16 %v695
        %v764 = vunpack.c.h.b16 %v696
        %v765 = vunpack.c.l.b16 %v697
        %v766 = vunpack.c.l.b16 %v698
        %v767 = vunpack.c.h.b16 %v697
        %v768 = vunpack.c.h.b16 %v698
        %v769 = vunpack.c.l.b16 %v699
        %v770 = vunpack.c.l.b16 %v700
        %v771 = vunpack.c.h.b16 %v699
        %v772 = vunpack.c.h.b16 %v700
        %v773 = vunpack.c.l.b16 %v701
        %v774 = vunpack.c.l.b16 %v702
        %v775 = vunpack.c.h.b16 %v701
        %v776 = vunpack.c.h.b16 %v702
        %v777 = vunpack.c.l.b16 %v703
        %v778 = vunpack.c.l.b16 %v704
        %v779 = vunpack.c.h.b16 %v703
        %v780 = vunpack.c.h.b16 %v704
        %v781 = vunpack.c.l.b16 %v705
        %v782 = vunpack.c.l.b16 %v706
        %v783 = vunpack.c.h.b16 %v705
        %v784 = vunpack.c.h.b16 %v706
        %v785 = vunpack.c.l.b16 %v707
        %v786 = vunpack.c.l.b16 %v708
        %v787 = vunpack.c.h.b16 %v707
        %v788 = vunpack.c.h.b16 %v708
        %v789 = vunpack.c.l.b16 %v709
        %v790 = vunpack.c.l.b16 %v710
        %v791 = vunpack.c.h.b16 %v709
        %v792 = vunpack.c.h.b16 %v710
        %v793 = vunpack.c.l.b16 %v711
        %v794 = vunpack.c.l.b16 %v712
        %v795 = vunpack.c.h.b16 %v711
        %v796 = vunpack.c.h.b16 %v712
        %v797 = vpack.c.b16 %v742, %v741
        %v798 = vpack.c.b16 %v744, %v743
        %v799 = vpack.c.b16 %v746, %v745
        %v800 = vpack.c.b16 %v748, %v747
        %v801 = vpack.c.b16 %v750, %v749
        %v802 = vpack.c.b16 %v752, %v751
        %v803 = vpack.c.b16 %v754, %v753
        %v804 = vpack.c.b16 %v756, %v755
        %v805 = vpack.c.b16 %v758, %v757
        %v806 = vpack.c.b16 %v760, %v759
        %v807 = vpack.c.b16 %v762, %v761
        %v808 = vpack.c.b16 %v764, %v763
        %v809 = vpack.c.b16 %v766, %v765
        %v810 = vpack.c.b16 %v768, %v767
        %v811 = vpack.c.b16 %v770, %v769
        %v812 = vpack.c.b16 %v772, %v771
        %v813 = vpack.c.b16 %v774, %v773
        %v814 = vpack.c.b16 %v776, %v775
        %v815 = vpack.c.b16 %v778, %v777
        %v816 = vpack.c.b16 %v780, %v779
        %v817 = vpack.c.b16 %v782, %v781
        %v818 = vpack.c.b16 %v784, %v783
        %v819 = vpack.c.b16 %v786, %v785
        %v820 = vpack.c.b16 %v788, %v787
        %v821 = vpack.c.b16 %v790, %v789
        %v822 = vpack.c.b16 %v792, %v791
        %v823 = vpack.c.b16 %v794, %v793
        %v824 = vpack.c.b16 %v796, %v795
        %vm853 = vcmask 1043456
        %vm854 = vcmask 785412
        %vm855 = vmor %vm854, %vm853
        %856 = vst.msk [vmem:[%s208] sm:$0xff] %vm855, %v797
        %857 = vst.msk [vmem:[%s208 + $0x8] sm:$0xff] %vm855, %v798
        %858 = vst.msk [vmem:[%s208 + $0x10] sm:$0xff] %vm855, %v799
        %859 = vst.msk [vmem:[%s208 + $0x18] sm:$0xff] %vm855, %v800
        %860 = vst.msk [vmem:[%s208 + $0x20] sm:$0xff] %vm855, %v801
        %861 = vst.msk [vmem:[%s208 + $0x28] sm:$0xff] %vm855, %v802
        %862 = vst.msk [vmem:[%s208 + $0x30] sm:$0xff] %vm855, %v803
        %863 = vst.msk [vmem:[%s208 + $0x38] sm:$0xff] %vm855, %v804
        %864 = vst.msk [vmem:[%s208 + $0x40] sm:$0xff] %vm855, %v805
        %865 = vst.msk [vmem:[%s208 + $0x48] sm:$0xff] %vm855, %v806
        %866 = vst.msk [vmem:[%s208 + $0x50] sm:$0xff] %vm855, %v807
        %867 = vst.msk [vmem:[%s208 + $0x58] sm:$0xff] %vm855, %v808
        %868 = vst.msk [vmem:[%s208 + $0x60] sm:$0xff] %vm855, %v809
        %869 = vst.msk [vmem:[%s208 + $0x68] sm:$0xff] %vm855, %v810
        %870 = vst.msk [vmem:[%s208 + $0x70] sm:$0xff] %vm855, %v811
        %871 = vst.msk [vmem:[%s208 + $0x78] sm:$0xff] %vm855, %v812
        %872 = vst.msk [vmem:[%s208 + $0x80] sm:$0xff] %vm855, %v813
        %873 = vst.msk [vmem:[%s208 + $0x88] sm:$0xff] %vm855, %v814
        %874 = vst.msk [vmem:[%s208 + $0x90] sm:$0xff] %vm855, %v815
        %875 = vst.msk [vmem:[%s208 + $0x98] sm:$0xff] %vm855, %v816
        %876 = vst.msk [vmem:[%s208 + $0xa0] sm:$0xff] %vm855, %v817
        %877 = vst.msk [vmem:[%s208 + $0xa8] sm:$0xff] %vm855, %v818
        %878 = vst.msk [vmem:[%s208 + $0xb0] sm:$0xff] %vm855, %v819
        %879 = vst.msk [vmem:[%s208 + $0xb8] sm:$0xff] %vm855, %v820
        %880 = vst.msk [vmem:[%s208 + $0xc0] sm:$0xff] %vm855, %v821
        %881 = vst.msk [vmem:[%s208 + $0xc8] sm:$0xff] %vm855, %v822
        %882 = vst.msk [vmem:[%s208 + $0xd0] sm:$0xff] %vm855, %v823
        %883 = vst.msk [vmem:[%s208 + $0xd8] sm:$0xff] %vm855, %v824
        %v884 = vld [vmem:[%s1] sm:$0xff]
        %v885 = vld [vmem:[%s1 + $0x8] sm:$0xff]
        %v886 = vld [vmem:[%s1 + $0x10] sm:$0xff]
        %v887 = vld [vmem:[%s1 + $0x18] sm:$0xff]
        %v888 = vld [vmem:[%s1 + $0x20] sm:$0xff]
        %v889 = vld [vmem:[%s1 + $0x28] sm:$0xff]
        %v890 = vld [vmem:[%s1 + $0x30] sm:$0xff]
        %v891 = vld [vmem:[%s1 + $0x38] sm:$0xff]
        %v892 = vld [vmem:[%s1 + $0x40] sm:$0xff]
        %v893 = vld [vmem:[%s1 + $0x48] sm:$0xff]
        %v894 = vld [vmem:[%s1 + $0x50] sm:$0xff]
        %v895 = vld [vmem:[%s1 + $0x58] sm:$0xff]
        %v896 = vld [vmem:[%s1 + $0x60] sm:$0xff]
        %v897 = vld [vmem:[%s1 + $0x68] sm:$0xff]
        %v898 = vld [vmem:[%s1 + $0x70] sm:$0xff]
        %v899 = vld [vmem:[%s1 + $0x78] sm:$0xff]
        %v900 = vld [vmem:[%s1 + $0x80] sm:$0xff]
        %v901 = vld [vmem:[%s1 + $0x88] sm:$0xff]
        %v902 = vld [vmem:[%s1 + $0x90] sm:$0xff]
        %v903 = vld [vmem:[%s1 + $0x98] sm:$0xff]
        %v904 = vld [vmem:[%s1 + $0xa0] sm:$0xff]
        %v905 = vld [vmem:[%s1 + $0xa8] sm:$0xff]
        %v906 = vld [vmem:[%s1 + $0xb0] sm:$0xff]
        %v907 = vld [vmem:[%s1 + $0xb8] sm:$0xff]
        %v908 = vld [vmem:[%s1 + $0xc0] sm:$0xff]
        %v909 = vld [vmem:[%s1 + $0xc8] sm:$0xff]
        %v910 = vld [vmem:[%s1 + $0xd0] sm:$0xff]
        %v911 = vld [vmem:[%s1 + $0xd8] sm:$0xff]
        %v913 = vsel %vm220, %v884, 0
        %v916 = vsel %vm220, %v885, 0
        %v919 = vsel %vm220, %v886, 0
        %v922 = vsel %vm220, %v887, 0
        %v925 = vsel %vm220, %v888, 0
        %v928 = vsel %vm220, %v889, 0
        %v931 = vsel %vm220, %v890, 0
        %v934 = vsel %vm220, %v891, 0
        %v937 = vsel %vm220, %v892, 0
        %v940 = vsel %vm220, %v893, 0
        %v943 = vsel %vm220, %v894, 0
        %v946 = vsel %vm220, %v895, 0
        %v949 = vsel %vm220, %v896, 0
        %v952 = vsel %vm220, %v897, 0
        %v955 = vsel %vm220, %v898, 0
        %v958 = vsel %vm220, %v899, 0
        %v961 = vsel %vm220, %v900, 0
        %v964 = vsel %vm220, %v901, 0
        %v967 = vsel %vm220, %v902, 0
        %v970 = vsel %vm220, %v903, 0
        %v973 = vsel %vm220, %v904, 0
        %v976 = vsel %vm220, %v905, 0
        %v979 = vsel %vm220, %v906, 0
        %v982 = vsel %vm220, %v907, 0
        %v985 = vsel %vm220, %v908, 0
        %v988 = vsel %vm220, %v909, 0
        %v991 = vsel %vm220, %v910, 0
        %v994 = vsel %vm220, %v911, 0
        %996 = vmatprep.subr.mxu0 0.0
        %997 = vmatpush1.msra.mxu0 0.0
        %998 = vmatprep.subr.mxu0 0.0
        %999 = vmatpush1.msra.mxu0 0.0
        %1000 = vmatprep.subr.mxu0 0.0
        %1001 = vmatpush1.msra.mxu0 0.0
        %1002 = vmatprep.subr.mxu0 0.0
        %1003 = vmatpush1.msra.mxu0 0.0
        %1004 = vmatprep.subr.mxu0 0.0
        %1005 = vmatpush1.msra.mxu0 0.0
        %1006 = vmatprep.subr.mxu0 0.0
        %1007 = vmatpush1.msra.mxu0 0.0
        %1008 = vmatprep.subr.mxu0 0.0
        %1009 = vmatpush1.msra.mxu0 0.0
        %1010 = vmatprep.subr.mxu0 0.0
        %1011 = vmatpush1.msra.mxu0 0.0
        %1012 = vmatprep.subr.mxu0 0.0
        %1013 = vmatpush1.msra.mxu0 0.0
        %1014 = vmatprep.subr.mxu0 0.0
        %1015 = vmatpush1.msra.mxu0 0.0
        %1016 = vmatprep.subr.mxu0 0.0
        %1017 = vmatpush1.msra.mxu0 0.0
        %1018 = vmatprep.subr.mxu0 0.0
        %1019 = vmatpush1.msra.mxu0 0.0
        %1020 = vmatprep.subr.mxu0 0.0
        %1021 = vmatpush1.msra.mxu0 0.0
        %1022 = vmatprep.subr.mxu0 0.0
        %1023 = vmatpush1.msra.mxu0 0.0
        %1024 = vmatprep.subr.mxu0 %v326
        %1025 = vmatpush1.msra.mxu0 %v324
        %1026 = vmatprep.subr.mxu0 %v320
        %1027 = vmatpush1.msra.mxu0 %v318
        %1028 = vmatprep.subr.mxu0 0.0
        %1029 = vmatpush2.msra.mxu0 0.0
        %1030 = vmatprep.subr.mxu0 0.0
        %1031 = vmatpush2.msra.mxu0 0.0
        %1032 = vmatprep.subr.mxu0 0.0
        %1033 = vmatpush2.msra.mxu0 0.0
        %1034 = vmatprep.subr.mxu0 0.0
        %1035 = vmatpush2.msra.mxu0 0.0
        %1036 = vmatprep.subr.mxu0 0.0
        %1037 = vmatpush2.msra.mxu0 0.0
        %1038 = vmatprep.subr.mxu0 0.0
        %1039 = vmatpush2.msra.mxu0 0.0
        %1040 = vmatprep.subr.mxu0 0.0
        %1041 = vmatpush2.msra.mxu0 0.0
        %1042 = vmatprep.subr.mxu0 0.0
        %1043 = vmatpush2.msra.mxu0 0.0
        %1044 = vmatprep.subr.mxu0 0.0
        %1045 = vmatpush2.msra.mxu0 0.0
        %1046 = vmatprep.subr.mxu0 0.0
        %1047 = vmatpush2.msra.mxu0 0.0
        %1048 = vmatprep.subr.mxu0 0.0
        %1049 = vmatpush2.msra.mxu0 0.0
        %1050 = vmatprep.subr.mxu0 0.0
        %1051 = vmatpush2.msra.mxu0 0.0
        %1052 = vmatprep.subr.mxu0 0.0
        %1053 = vmatpush2.msra.mxu0 0.0
        %1054 = vmatprep.subr.mxu0 0.0
        %1055 = vmatpush2.msra.mxu0 0.0
        %1056 = vmatprep.subr.mxu0 0.0
        %1057 = vmatpush2.msra.mxu0 0.0
        %1058 = vmatprep.subr.mxu0 0.0
        %1059 = vmatpush2.msra.mxu0 0.0
        %1060 = vmatprep.mubr.f32.mxu0 0.0
        %1061 = vmatmul.mubr.f32.gmra.mxu0 %v913
        %v1062 = vpop.f32.mrf.mxu0
        %v1063 = vadd.f32 0.0, %v1062
        %v1064 = vpop.f32.mrf.mxu0
        %v1065 = vadd.f32 0.0, %v1064
        %1066 = vmatprep.mubr.f32.mxu0 0.0
        %1067 = vmatmul.mubr.f32.gmra.mxu0 %v916
        %v1068 = vpop.f32.mrf.mxu0
        %v1069 = vadd.f32 0.0, %v1068
        %v1070 = vpop.f32.mrf.mxu0
        %v1071 = vadd.f32 0.0, %v1070
        %1072 = vmatprep.mubr.f32.mxu0 0.0
        %1073 = vmatmul.mubr.f32.gmra.mxu0 %v919
        %v1074 = vpop.f32.mrf.mxu0
        %v1075 = vadd.f32 0.0, %v1074
        %v1076 = vpop.f32.mrf.mxu0
        %v1077 = vadd.f32 0.0, %v1076
        %1078 = vmatprep.mubr.f32.mxu0 0.0
        %1079 = vmatmul.mubr.f32.gmra.mxu0 %v922
        %v1080 = vpop.f32.mrf.mxu0
        %v1081 = vadd.f32 0.0, %v1080
        %v1082 = vpop.f32.mrf.mxu0
        %v1083 = vadd.f32 0.0, %v1082
        %1084 = vmatprep.mubr.f32.mxu0 0.0
        %1085 = vmatmul.mubr.f32.gmra.mxu0 %v925
        %v1086 = vpop.f32.mrf.mxu0
        %v1087 = vadd.f32 0.0, %v1086
        %v1088 = vpop.f32.mrf.mxu0
        %v1089 = vadd.f32 0.0, %v1088
        %1090 = vmatprep.mubr.f32.mxu0 0.0
        %1091 = vmatmul.mubr.f32.gmra.mxu0 %v928
        %v1092 = vpop.f32.mrf.mxu0
        %v1093 = vadd.f32 0.0, %v1092
        %v1094 = vpop.f32.mrf.mxu0
        %v1095 = vadd.f32 0.0, %v1094
        %1096 = vmatprep.mubr.f32.mxu0 0.0
        %1097 = vmatmul.mubr.f32.gmra.mxu0 %v931
        %v1098 = vpop.f32.mrf.mxu0
        %v1099 = vadd.f32 0.0, %v1098
        %v1100 = vpop.f32.mrf.mxu0
        %v1101 = vadd.f32 0.0, %v1100
        %1102 = vmatprep.mubr.f32.mxu0 0.0
        %1103 = vmatmul.mubr.f32.gmra.mxu0 %v934
        %v1104 = vpop.f32.mrf.mxu0
        %v1105 = vadd.f32 0.0, %v1104
        %v1106 = vpop.f32.mrf.mxu0
        %v1107 = vadd.f32 0.0, %v1106
        %1108 = vmatprep.mubr.f32.mxu0 0.0
        %1109 = vmatmul.mubr.f32.gmra.mxu0 %v937
        %v1110 = vpop.f32.mrf.mxu0
        %v1111 = vadd.f32 0.0, %v1110
        %v1112 = vpop.f32.mrf.mxu0
        %v1113 = vadd.f32 0.0, %v1112
        %1114 = vmatprep.mubr.f32.mxu0 0.0
        %1115 = vmatmul.mubr.f32.gmra.mxu0 %v940
        %v1116 = vpop.f32.mrf.mxu0
        %v1117 = vadd.f32 0.0, %v1116
        %v1118 = vpop.f32.mrf.mxu0
        %v1119 = vadd.f32 0.0, %v1118
        %1120 = vmatprep.mubr.f32.mxu0 0.0
        %1121 = vmatmul.mubr.f32.gmra.mxu0 %v943
        %v1122 = vpop.f32.mrf.mxu0
        %v1123 = vadd.f32 0.0, %v1122
        %v1124 = vpop.f32.mrf.mxu0
        %v1125 = vadd.f32 0.0, %v1124
        %1126 = vmatprep.mubr.f32.mxu0 0.0
        %1127 = vmatmul.mubr.f32.gmra.mxu0 %v946
        %v1128 = vpop.f32.mrf.mxu0
        %v1129 = vadd.f32 0.0, %v1128
        %v1130 = vpop.f32.mrf.mxu0
        %v1131 = vadd.f32 0.0, %v1130
        %1132 = vmatprep.mubr.f32.mxu0 0.0
        %1133 = vmatmul.mubr.f32.gmra.mxu0 %v949
        %v1134 = vpop.f32.mrf.mxu0
        %v1135 = vadd.f32 0.0, %v1134
        %v1136 = vpop.f32.mrf.mxu0
        %v1137 = vadd.f32 0.0, %v1136
        %1138 = vmatprep.mubr.f32.mxu0 0.0
        %1139 = vmatmul.mubr.f32.gmra.mxu0 %v952
        %v1140 = vpop.f32.mrf.mxu0
        %v1141 = vadd.f32 0.0, %v1140
        %v1142 = vpop.f32.mrf.mxu0
        %v1143 = vadd.f32 0.0, %v1142
        %1144 = vmatprep.mubr.f32.mxu0 0.0
        %1145 = vmatmul.mubr.f32.gmra.mxu0 %v955
        %v1146 = vpop.f32.mrf.mxu0
        %v1147 = vadd.f32 0.0, %v1146
        %v1148 = vpop.f32.mrf.mxu0
        %v1149 = vadd.f32 0.0, %v1148
        %1150 = vmatprep.mubr.f32.mxu0 0.0
        %1151 = vmatmul.mubr.f32.gmra.mxu0 %v958
        %v1152 = vpop.f32.mrf.mxu0
        %v1153 = vadd.f32 0.0, %v1152
        %v1154 = vpop.f32.mrf.mxu0
        %v1155 = vadd.f32 0.0, %v1154
        %1156 = vmatprep.mubr.f32.mxu0 0.0
        %1157 = vmatmul.mubr.f32.gmra.mxu0 %v961
        %v1158 = vpop.f32.mrf.mxu0
        %v1159 = vadd.f32 0.0, %v1158
        %v1160 = vpop.f32.mrf.mxu0
        %v1161 = vadd.f32 0.0, %v1160
        %1162 = vmatprep.mubr.f32.mxu0 0.0
        %1163 = vmatmul.mubr.f32.gmra.mxu0 %v964
        %v1164 = vpop.f32.mrf.mxu0
        %v1165 = vadd.f32 0.0, %v1164
        %v1166 = vpop.f32.mrf.mxu0
        %v1167 = vadd.f32 0.0, %v1166
        %1168 = vmatprep.mubr.f32.mxu0 0.0
        %1169 = vmatmul.mubr.f32.gmra.mxu0 %v967
        %v1170 = vpop.f32.mrf.mxu0
        %v1171 = vadd.f32 0.0, %v1170
        %v1172 = vpop.f32.mrf.mxu0
        %v1173 = vadd.f32 0.0, %v1172
        %1174 = vmatprep.mubr.f32.mxu0 0.0
        %1175 = vmatmul.mubr.f32.gmra.mxu0 %v970
        %v1176 = vpop.f32.mrf.mxu0
        %v1177 = vadd.f32 0.0, %v1176
        %v1178 = vpop.f32.mrf.mxu0
        %v1179 = vadd.f32 0.0, %v1178
        %1180 = vmatprep.mubr.f32.mxu0 0.0
        %1181 = vmatmul.mubr.f32.gmra.mxu0 %v973
        %v1182 = vpop.f32.mrf.mxu0
        %v1183 = vadd.f32 0.0, %v1182
        %v1184 = vpop.f32.mrf.mxu0
        %v1185 = vadd.f32 0.0, %v1184
        %1186 = vmatprep.mubr.f32.mxu0 0.0
        %1187 = vmatmul.mubr.f32.gmra.mxu0 %v976
        %v1188 = vpop.f32.mrf.mxu0
        %v1189 = vadd.f32 0.0, %v1188
        %v1190 = vpop.f32.mrf.mxu0
        %v1191 = vadd.f32 0.0, %v1190
        %1192 = vmatprep.mubr.f32.mxu0 0.0
        %1193 = vmatmul.mubr.f32.gmra.mxu0 %v979
        %v1194 = vpop.f32.mrf.mxu0
        %v1195 = vadd.f32 0.0, %v1194
        %v1196 = vpop.f32.mrf.mxu0
        %v1197 = vadd.f32 0.0, %v1196
        %1198 = vmatprep.mubr.f32.mxu0 0.0
        %1199 = vmatmul.mubr.f32.gmra.mxu0 %v982
        %v1200 = vpop.f32.mrf.mxu0
        %v1201 = vadd.f32 0.0, %v1200
        %v1202 = vpop.f32.mrf.mxu0
        %v1203 = vadd.f32 0.0, %v1202
        %1204 = vmatprep.mubr.f32.mxu0 0.0
        %1205 = vmatmul.mubr.f32.gmra.mxu0 %v985
        %v1206 = vpop.f32.mrf.mxu0
        %v1207 = vadd.f32 0.0, %v1206
        %v1208 = vpop.f32.mrf.mxu0
        %v1209 = vadd.f32 0.0, %v1208
        %1210 = vmatprep.mubr.f32.mxu0 0.0
        %1211 = vmatmul.mubr.f32.gmra.mxu0 %v988
        %v1212 = vpop.f32.mrf.mxu0
        %v1213 = vadd.f32 0.0, %v1212
        %v1214 = vpop.f32.mrf.mxu0
        %v1215 = vadd.f32 0.0, %v1214
        %1216 = vmatprep.mubr.f32.mxu0 0.0
        %1217 = vmatmul.mubr.f32.gmra.mxu0 %v991
        %v1218 = vpop.f32.mrf.mxu0
        %v1219 = vadd.f32 0.0, %v1218
        %v1220 = vpop.f32.mrf.mxu0
        %v1221 = vadd.f32 0.0, %v1220
        %1222 = vmatprep.mubr.f32.mxu0 0.0
        %1223 = vmatmul.mubr.f32.gmra.mxu0 %v994
        %v1224 = vpop.f32.mrf.mxu0
        %v1225 = vadd.f32 0.0, %v1224
        %v1226 = vpop.f32.mrf.mxu0
        %v1227 = vadd.f32 0.0, %v1226
        %1228 = vdwg.mxu0
        %v1229 = vpack.c.bf16 %v1069, %v1063
        %v1230 = vpack.c.bf16 %v1071, %v1065
        %v1231 = vpack.c.bf16 %v1081, %v1075
        %v1232 = vpack.c.bf16 %v1083, %v1077
        %v1233 = vpack.c.bf16 %v1093, %v1087
        %v1234 = vpack.c.bf16 %v1095, %v1089
        %v1235 = vpack.c.bf16 %v1105, %v1099
        %v1236 = vpack.c.bf16 %v1107, %v1101
        %v1237 = vpack.c.bf16 %v1117, %v1111
        %v1238 = vpack.c.bf16 %v1119, %v1113
        %v1239 = vpack.c.bf16 %v1129, %v1123
        %v1240 = vpack.c.bf16 %v1131, %v1125
        %v1241 = vpack.c.bf16 %v1141, %v1135
        %v1242 = vpack.c.bf16 %v1143, %v1137
        %v1243 = vpack.c.bf16 %v1153, %v1147
        %v1244 = vpack.c.bf16 %v1155, %v1149
        %v1245 = vpack.c.bf16 %v1165, %v1159
        %v1246 = vpack.c.bf16 %v1167, %v1161
        %v1247 = vpack.c.bf16 %v1177, %v1171
        %v1248 = vpack.c.bf16 %v1179, %v1173
        %v1249 = vpack.c.bf16 %v1189, %v1183
        %v1250 = vpack.c.bf16 %v1191, %v1185
        %v1251 = vpack.c.bf16 %v1201, %v1195
        %v1252 = vpack.c.bf16 %v1203, %v1197
        %v1253 = vpack.c.bf16 %v1213, %v1207
        %v1254 = vpack.c.bf16 %v1215, %v1209
        %v1255 = vpack.c.bf16 %v1225, %v1219
        %v1256 = vpack.c.bf16 %v1227, %v1221
        %v1285 = vunpack.c.l.b16 %v1229
        %v1286 = vunpack.c.l.b16 %v1230
        %v1287 = vunpack.c.h.b16 %v1229
        %v1288 = vunpack.c.h.b16 %v1230
        %v1289 = vunpack.c.l.b16 %v1231
        %v1290 = vunpack.c.l.b16 %v1232
        %v1291 = vunpack.c.h.b16 %v1231
        %v1292 = vunpack.c.h.b16 %v1232
        %v1293 = vunpack.c.l.b16 %v1233
        %v1294 = vunpack.c.l.b16 %v1234
        %v1295 = vunpack.c.h.b16 %v1233
        %v1296 = vunpack.c.h.b16 %v1234
        %v1297 = vunpack.c.l.b16 %v1235
        %v1298 = vunpack.c.l.b16 %v1236
        %v1299 = vunpack.c.h.b16 %v1235
        %v1300 = vunpack.c.h.b16 %v1236
        %v1301 = vunpack.c.l.b16 %v1237
        %v1302 = vunpack.c.l.b16 %v1238
        %v1303 = vunpack.c.h.b16 %v1237
        %v1304 = vunpack.c.h.b16 %v1238
        %v1305 = vunpack.c.l.b16 %v1239
        %v1306 = vunpack.c.l.b16 %v1240
        %v1307 = vunpack.c.h.b16 %v1239
        %v1308 = vunpack.c.h.b16 %v1240
        %v1309 = vunpack.c.l.b16 %v1241
        %v1310 = vunpack.c.l.b16 %v1242
        %v1311 = vunpack.c.h.b16 %v1241
        %v1312 = vunpack.c.h.b16 %v1242
        %v1313 = vunpack.c.l.b16 %v1243
        %v1314 = vunpack.c.l.b16 %v1244
        %v1315 = vunpack.c.h.b16 %v1243
        %v1316 = vunpack.c.h.b16 %v1244
        %v1317 = vunpack.c.l.b16 %v1245
        %v1318 = vunpack.c.l.b16 %v1246
        %v1319 = vunpack.c.h.b16 %v1245
        %v1320 = vunpack.c.h.b16 %v1246
        %v1321 = vunpack.c.l.b16 %v1247
        %v1322 = vunpack.c.l.b16 %v1248
        %v1323 = vunpack.c.h.b16 %v1247
        %v1324 = vunpack.c.h.b16 %v1248
        %v1325 = vunpack.c.l.b16 %v1249
        %v1326 = vunpack.c.l.b16 %v1250
        %v1327 = vunpack.c.h.b16 %v1249
        %v1328 = vunpack.c.h.b16 %v1250
        %v1329 = vunpack.c.l.b16 %v1251
        %v1330 = vunpack.c.l.b16 %v1252
        %v1331 = vunpack.c.h.b16 %v1251
        %v1332 = vunpack.c.h.b16 %v1252
        %v1333 = vunpack.c.l.b16 %v1253
        %v1334 = vunpack.c.l.b16 %v1254
        %v1335 = vunpack.c.h.b16 %v1253
        %v1336 = vunpack.c.h.b16 %v1254
        %v1337 = vunpack.c.l.b16 %v1255
        %v1338 = vunpack.c.l.b16 %v1256
        %v1339 = vunpack.c.h.b16 %v1255
        %v1340 = vunpack.c.h.b16 %v1256
        %v1341 = vpack.c.b16 %v1286, %v1285
        %v1342 = vpack.c.b16 %v1288, %v1287
        %v1343 = vpack.c.b16 %v1290, %v1289
        %v1344 = vpack.c.b16 %v1292, %v1291
        %v1345 = vpack.c.b16 %v1294, %v1293
        %v1346 = vpack.c.b16 %v1296, %v1295
        %v1347 = vpack.c.b16 %v1298, %v1297
        %v1348 = vpack.c.b16 %v1300, %v1299
        %v1349 = vpack.c.b16 %v1302, %v1301
        %v1350 = vpack.c.b16 %v1304, %v1303
        %v1351 = vpack.c.b16 %v1306, %v1305
        %v1352 = vpack.c.b16 %v1308, %v1307
        %v1353 = vpack.c.b16 %v1310, %v1309
        %v1354 = vpack.c.b16 %v1312, %v1311
        %v1355 = vpack.c.b16 %v1314, %v1313
        %v1356 = vpack.c.b16 %v1316, %v1315
        %v1357 = vpack.c.b16 %v1318, %v1317
        %v1358 = vpack.c.b16 %v1320, %v1319
        %v1359 = vpack.c.b16 %v1322, %v1321
        %v1360 = vpack.c.b16 %v1324, %v1323
        %v1361 = vpack.c.b16 %v1326, %v1325
        %v1362 = vpack.c.b16 %v1328, %v1327
        %v1363 = vpack.c.b16 %v1330, %v1329
        %v1364 = vpack.c.b16 %v1332, %v1331
        %v1365 = vpack.c.b16 %v1334, %v1333
        %v1366 = vpack.c.b16 %v1336, %v1335
        %v1367 = vpack.c.b16 %v1338, %v1337
        %v1368 = vpack.c.b16 %v1340, %v1339
        %s1397 = scalar_lea.vmem %s208, 224
        %1398 = vst.msk [vmem:[%s1397] sm:$0xff] %vm855, %v1341
        %1399 = vst.msk [vmem:[%s1397 + $0x8] sm:$0xff] %vm855, %v1342
        %1400 = vst.msk [vmem:[%s1397 + $0x10] sm:$0xff] %vm855, %v1343
        %1401 = vst.msk [vmem:[%s1397 + $0x18] sm:$0xff] %vm855, %v1344
        %1402 = vst.msk [vmem:[%s1397 + $0x20] sm:$0xff] %vm855, %v1345
        %1403 = vst.msk [vmem:[%s1397 + $0x28] sm:$0xff] %vm855, %v1346
        %1404 = vst.msk [vmem:[%s1397 + $0x30] sm:$0xff] %vm855, %v1347
        %1405 = vst.msk [vmem:[%s1397 + $0x38] sm:$0xff] %vm855, %v1348
        %1406 = vst.msk [vmem:[%s1397 + $0x40] sm:$0xff] %vm855, %v1349
        %1407 = vst.msk [vmem:[%s1397 + $0x48] sm:$0xff] %vm855, %v1350
        %1408 = vst.msk [vmem:[%s1397 + $0x50] sm:$0xff] %vm855, %v1351
        %1409 = vst.msk [vmem:[%s1397 + $0x58] sm:$0xff] %vm855, %v1352
        %1410 = vst.msk [vmem:[%s1397 + $0x60] sm:$0xff] %vm855, %v1353
        %1411 = vst.msk [vmem:[%s1397 + $0x68] sm:$0xff] %vm855, %v1354
        %1412 = vst.msk [vmem:[%s1397 + $0x70] sm:$0xff] %vm855, %v1355
        %1413 = vst.msk [vmem:[%s1397 + $0x78] sm:$0xff] %vm855, %v1356
        %1414 = vst.msk [vmem:[%s1397 + $0x80] sm:$0xff] %vm855, %v1357
        %1415 = vst.msk [vmem:[%s1397 + $0x88] sm:$0xff] %vm855, %v1358
        %1416 = vst.msk [vmem:[%s1397 + $0x90] sm:$0xff] %vm855, %v1359
        %1417 = vst.msk [vmem:[%s1397 + $0x98] sm:$0xff] %vm855, %v1360
        %1418 = vst.msk [vmem:[%s1397 + $0xa0] sm:$0xff] %vm855, %v1361
        %1419 = vst.msk [vmem:[%s1397 + $0xa8] sm:$0xff] %vm855, %v1362
        %1420 = vst.msk [vmem:[%s1397 + $0xb0] sm:$0xff] %vm855, %v1363
        %1421 = vst.msk [vmem:[%s1397 + $0xb8] sm:$0xff] %vm855, %v1364
        %1422 = vst.msk [vmem:[%s1397 + $0xc0] sm:$0xff] %vm855, %v1365
        %1423 = vst.msk [vmem:[%s1397 + $0xc8] sm:$0xff] %vm855, %v1366
        %1424 = vst.msk [vmem:[%s1397 + $0xd0] sm:$0xff] %vm855, %v1367
        %1425 = vst.msk [vmem:[%s1397 + $0xd8] sm:$0xff] %vm855, %v1368
        %v1426 = vld [vmem:[%s1] sm:$0xff]
        %v1427 = vld [vmem:[%s1 + $0x8] sm:$0xff]
        %v1428 = vld [vmem:[%s1 + $0x10] sm:$0xff]
        %v1429 = vld [vmem:[%s1 + $0x18] sm:$0xff]
        %v1430 = vld [vmem:[%s1 + $0x20] sm:$0xff]
        %v1431 = vld [vmem:[%s1 + $0x28] sm:$0xff]
        %v1432 = vld [vmem:[%s1 + $0x30] sm:$0xff]
        %v1433 = vld [vmem:[%s1 + $0x38] sm:$0xff]
        %v1434 = vld [vmem:[%s1 + $0x40] sm:$0xff]
        %v1435 = vld [vmem:[%s1 + $0x48] sm:$0xff]
        %v1436 = vld [vmem:[%s1 + $0x50] sm:$0xff]
        %v1437 = vld [vmem:[%s1 + $0x58] sm:$0xff]
        %v1438 = vld [vmem:[%s1 + $0x60] sm:$0xff]
        %v1439 = vld [vmem:[%s1 + $0x68] sm:$0xff]
        %v1440 = vld [vmem:[%s1 + $0x70] sm:$0xff]
        %v1441 = vld [vmem:[%s1 + $0x78] sm:$0xff]
        %v1442 = vld [vmem:[%s1 + $0x80] sm:$0xff]
        %v1443 = vld [vmem:[%s1 + $0x88] sm:$0xff]
        %v1444 = vld [vmem:[%s1 + $0x90] sm:$0xff]
        %v1445 = vld [vmem:[%s1 + $0x98] sm:$0xff]
        %v1446 = vld [vmem:[%s1 + $0xa0] sm:$0xff]
        %v1447 = vld [vmem:[%s1 + $0xa8] sm:$0xff]
        %v1448 = vld [vmem:[%s1 + $0xb0] sm:$0xff]
        %v1449 = vld [vmem:[%s1 + $0xb8] sm:$0xff]
        %v1450 = vld [vmem:[%s1 + $0xc0] sm:$0xff]
        %v1451 = vld [vmem:[%s1 + $0xc8] sm:$0xff]
        %v1452 = vld [vmem:[%s1 + $0xd0] sm:$0xff]
        %v1453 = vld [vmem:[%s1 + $0xd8] sm:$0xff]
        %v1455 = vsel %vm220, %v1426, 0
        %v1458 = vsel %vm220, %v1427, 0
        %v1461 = vsel %vm220, %v1428, 0
        %v1464 = vsel %vm220, %v1429, 0
        %v1467 = vsel %vm220, %v1430, 0
        %v1470 = vsel %vm220, %v1431, 0
        %v1473 = vsel %vm220, %v1432, 0
        %v1476 = vsel %vm220, %v1433, 0
        %v1479 = vsel %vm220, %v1434, 0
        %v1482 = vsel %vm220, %v1435, 0
        %v1485 = vsel %vm220, %v1436, 0
        %v1488 = vsel %vm220, %v1437, 0
        %v1491 = vsel %vm220, %v1438, 0
        %v1494 = vsel %vm220, %v1439, 0
        %v1497 = vsel %vm220, %v1440, 0
        %v1500 = vsel %vm220, %v1441, 0
        %v1503 = vsel %vm220, %v1442, 0
        %v1506 = vsel %vm220, %v1443, 0
        %v1509 = vsel %vm220, %v1444, 0
        %v1512 = vsel %vm220, %v1445, 0
        %v1515 = vsel %vm220, %v1446, 0
        %v1518 = vsel %vm220, %v1447, 0
        %v1521 = vsel %vm220, %v1448, 0
        %v1524 = vsel %vm220, %v1449, 0
        %v1527 = vsel %vm220, %v1450, 0
        %v1530 = vsel %vm220, %v1451, 0
        %v1533 = vsel %vm220, %v1452, 0
        %v1536 = vsel %vm220, %v1453, 0
        %1538 = vmatprep.subr.mxu0 0.0
        %1539 = vmatpush1.msra.mxu0 0.0
        %1540 = vmatprep.subr.mxu0 0.0
        %1541 = vmatpush1.msra.mxu0 0.0
        %1542 = vmatprep.subr.mxu0 0.0
        %1543 = vmatpush1.msra.mxu0 0.0
        %1544 = vmatprep.subr.mxu0 0.0
        %1545 = vmatpush1.msra.mxu0 0.0
        %1546 = vmatprep.subr.mxu0 0.0
        %1547 = vmatpush1.msra.mxu0 0.0
        %1548 = vmatprep.subr.mxu0 0.0
        %1549 = vmatpush1.msra.mxu0 0.0
        %1550 = vmatprep.subr.mxu0 0.0
        %1551 = vmatpush1.msra.mxu0 0.0
        %1552 = vmatprep.subr.mxu0 0.0
        %1553 = vmatpush1.msra.mxu0 0.0
        %1554 = vmatprep.subr.mxu0 0.0
        %1555 = vmatpush1.msra.mxu0 0.0
        %1556 = vmatprep.subr.mxu0 0.0
        %1557 = vmatpush1.msra.mxu0 0.0
        %1558 = vmatprep.subr.mxu0 0.0
        %1559 = vmatpush1.msra.mxu0 0.0
        %1560 = vmatprep.subr.mxu0 0.0
        %1561 = vmatpush1.msra.mxu0 0.0
        %1562 = vmatprep.subr.mxu0 0.0
        %1563 = vmatpush1.msra.mxu0 0.0
        %1564 = vmatprep.subr.mxu0 0.0
        %1565 = vmatpush1.msra.mxu0 0.0
        %1566 = vmatprep.subr.mxu0 %v338
        %1567 = vmatpush1.msra.mxu0 %v336
        %1568 = vmatprep.subr.mxu0 %v332
        %1569 = vmatpush1.msra.mxu0 %v330
        %1570 = vmatprep.subr.mxu0 0.0
        %1571 = vmatpush2.msra.mxu0 0.0
        %1572 = vmatprep.subr.mxu0 0.0
        %1573 = vmatpush2.msra.mxu0 0.0
        %1574 = vmatprep.subr.mxu0 0.0
        %1575 = vmatpush2.msra.mxu0 0.0
        %1576 = vmatprep.subr.mxu0 0.0
        %1577 = vmatpush2.msra.mxu0 0.0
        %1578 = vmatprep.subr.mxu0 0.0
        %1579 = vmatpush2.msra.mxu0 0.0
        %1580 = vmatprep.subr.mxu0 0.0
        %1581 = vmatpush2.msra.mxu0 0.0
        %1582 = vmatprep.subr.mxu0 0.0
        %1583 = vmatpush2.msra.mxu0 0.0
        %1584 = vmatprep.subr.mxu0 0.0
        %1585 = vmatpush2.msra.mxu0 0.0
        %1586 = vmatprep.subr.mxu0 0.0
        %1587 = vmatpush2.msra.mxu0 0.0
        %1588 = vmatprep.subr.mxu0 0.0
        %1589 = vmatpush2.msra.mxu0 0.0
        %1590 = vmatprep.subr.mxu0 0.0
        %1591 = vmatpush2.msra.mxu0 0.0
        %1592 = vmatprep.subr.mxu0 0.0
        %1593 = vmatpush2.msra.mxu0 0.0
        %1594 = vmatprep.subr.mxu0 0.0
        %1595 = vmatpush2.msra.mxu0 0.0
        %1596 = vmatprep.subr.mxu0 0.0
        %1597 = vmatpush2.msra.mxu0 0.0
        %1598 = vmatprep.subr.mxu0 0.0
        %1599 = vmatpush2.msra.mxu0 0.0
        %1600 = vmatprep.subr.mxu0 0.0
        %1601 = vmatpush2.msra.mxu0 0.0
        %1602 = vmatprep.mubr.f32.mxu0 0.0
        %1603 = vmatmul.mubr.f32.gmra.mxu0 %v1455
        %v1604 = vpop.f32.mrf.mxu0
        %v1605 = vadd.f32 0.0, %v1604
        %v1606 = vpop.f32.mrf.mxu0
        %v1607 = vadd.f32 0.0, %v1606
        %1608 = vmatprep.mubr.f32.mxu0 0.0
        %1609 = vmatmul.mubr.f32.gmra.mxu0 %v1458
        %v1610 = vpop.f32.mrf.mxu0
        %v1611 = vadd.f32 0.0, %v1610
        %v1612 = vpop.f32.mrf.mxu0
        %v1613 = vadd.f32 0.0, %v1612
        %1614 = vmatprep.mubr.f32.mxu0 0.0
        %1615 = vmatmul.mubr.f32.gmra.mxu0 %v1461
        %v1616 = vpop.f32.mrf.mxu0
        %v1617 = vadd.f32 0.0, %v1616
        %v1618 = vpop.f32.mrf.mxu0
        %v1619 = vadd.f32 0.0, %v1618
        %1620 = vmatprep.mubr.f32.mxu0 0.0
        %1621 = vmatmul.mubr.f32.gmra.mxu0 %v1464
        %v1622 = vpop.f32.mrf.mxu0
        %v1623 = vadd.f32 0.0, %v1622
        %v1624 = vpop.f32.mrf.mxu0
        %v1625 = vadd.f32 0.0, %v1624
        %1626 = vmatprep.mubr.f32.mxu0 0.0
        %1627 = vmatmul.mubr.f32.gmra.mxu0 %v1467
        %v1628 = vpop.f32.mrf.mxu0
        %v1629 = vadd.f32 0.0, %v1628
        %v1630 = vpop.f32.mrf.mxu0
        %v1631 = vadd.f32 0.0, %v1630
        %1632 = vmatprep.mubr.f32.mxu0 0.0
        %1633 = vmatmul.mubr.f32.gmra.mxu0 %v1470
        %v1634 = vpop.f32.mrf.mxu0
        %v1635 = vadd.f32 0.0, %v1634
        %v1636 = vpop.f32.mrf.mxu0
        %v1637 = vadd.f32 0.0, %v1636
        %1638 = vmatprep.mubr.f32.mxu0 0.0
        %1639 = vmatmul.mubr.f32.gmra.mxu0 %v1473
        %v1640 = vpop.f32.mrf.mxu0
        %v1641 = vadd.f32 0.0, %v1640
        %v1642 = vpop.f32.mrf.mxu0
        %v1643 = vadd.f32 0.0, %v1642
        %1644 = vmatprep.mubr.f32.mxu0 0.0
        %1645 = vmatmul.mubr.f32.gmra.mxu0 %v1476
        %v1646 = vpop.f32.mrf.mxu0
        %v1647 = vadd.f32 0.0, %v1646
        %v1648 = vpop.f32.mrf.mxu0
        %v1649 = vadd.f32 0.0, %v1648
        %1650 = vmatprep.mubr.f32.mxu0 0.0
        %1651 = vmatmul.mubr.f32.gmra.mxu0 %v1479
        %v1652 = vpop.f32.mrf.mxu0
        %v1653 = vadd.f32 0.0, %v1652
        %v1654 = vpop.f32.mrf.mxu0
        %v1655 = vadd.f32 0.0, %v1654
        %1656 = vmatprep.mubr.f32.mxu0 0.0
        %1657 = vmatmul.mubr.f32.gmra.mxu0 %v1482
        %v1658 = vpop.f32.mrf.mxu0
        %v1659 = vadd.f32 0.0, %v1658
        %v1660 = vpop.f32.mrf.mxu0
        %v1661 = vadd.f32 0.0, %v1660
        %1662 = vmatprep.mubr.f32.mxu0 0.0
        %1663 = vmatmul.mubr.f32.gmra.mxu0 %v1485
        %v1664 = vpop.f32.mrf.mxu0
        %v1665 = vadd.f32 0.0, %v1664
        %v1666 = vpop.f32.mrf.mxu0
        %v1667 = vadd.f32 0.0, %v1666
        %1668 = vmatprep.mubr.f32.mxu0 0.0
        %1669 = vmatmul.mubr.f32.gmra.mxu0 %v1488
        %v1670 = vpop.f32.mrf.mxu0
        %v1671 = vadd.f32 0.0, %v1670
        %v1672 = vpop.f32.mrf.mxu0
        %v1673 = vadd.f32 0.0, %v1672
        %1674 = vmatprep.mubr.f32.mxu0 0.0
        %1675 = vmatmul.mubr.f32.gmra.mxu0 %v1491
        %v1676 = vpop.f32.mrf.mxu0
        %v1677 = vadd.f32 0.0, %v1676
        %v1678 = vpop.f32.mrf.mxu0
        %v1679 = vadd.f32 0.0, %v1678
        %1680 = vmatprep.mubr.f32.mxu0 0.0
        %1681 = vmatmul.mubr.f32.gmra.mxu0 %v1494
        %v1682 = vpop.f32.mrf.mxu0
        %v1683 = vadd.f32 0.0, %v1682
        %v1684 = vpop.f32.mrf.mxu0
        %v1685 = vadd.f32 0.0, %v1684
        %1686 = vmatprep.mubr.f32.mxu0 0.0
        %1687 = vmatmul.mubr.f32.gmra.mxu0 %v1497
        %v1688 = vpop.f32.mrf.mxu0
        %v1689 = vadd.f32 0.0, %v1688
        %v1690 = vpop.f32.mrf.mxu0
        %v1691 = vadd.f32 0.0, %v1690
        %1692 = vmatprep.mubr.f32.mxu0 0.0
        %1693 = vmatmul.mubr.f32.gmra.mxu0 %v1500
        %v1694 = vpop.f32.mrf.mxu0
        %v1695 = vadd.f32 0.0, %v1694
        %v1696 = vpop.f32.mrf.mxu0
        %v1697 = vadd.f32 0.0, %v1696
        %1698 = vmatprep.mubr.f32.mxu0 0.0
        %1699 = vmatmul.mubr.f32.gmra.mxu0 %v1503
        %v1700 = vpop.f32.mrf.mxu0
        %v1701 = vadd.f32 0.0, %v1700
        %v1702 = vpop.f32.mrf.mxu0
        %v1703 = vadd.f32 0.0, %v1702
        %1704 = vmatprep.mubr.f32.mxu0 0.0
        %1705 = vmatmul.mubr.f32.gmra.mxu0 %v1506
        %v1706 = vpop.f32.mrf.mxu0
        %v1707 = vadd.f32 0.0, %v1706
        %v1708 = vpop.f32.mrf.mxu0
        %v1709 = vadd.f32 0.0, %v1708
        %1710 = vmatprep.mubr.f32.mxu0 0.0
        %1711 = vmatmul.mubr.f32.gmra.mxu0 %v1509
        %v1712 = vpop.f32.mrf.mxu0
        %v1713 = vadd.f32 0.0, %v1712
        %v1714 = vpop.f32.mrf.mxu0
        %v1715 = vadd.f32 0.0, %v1714
        %1716 = vmatprep.mubr.f32.mxu0 0.0
        %1717 = vmatmul.mubr.f32.gmra.mxu0 %v1512
        %v1718 = vpop.f32.mrf.mxu0
        %v1719 = vadd.f32 0.0, %v1718
        %v1720 = vpop.f32.mrf.mxu0
        %v1721 = vadd.f32 0.0, %v1720
        %1722 = vmatprep.mubr.f32.mxu0 0.0
        %1723 = vmatmul.mubr.f32.gmra.mxu0 %v1515
        %v1724 = vpop.f32.mrf.mxu0
        %v1725 = vadd.f32 0.0, %v1724
        %v1726 = vpop.f32.mrf.mxu0
        %v1727 = vadd.f32 0.0, %v1726
        %1728 = vmatprep.mubr.f32.mxu0 0.0
        %1729 = vmatmul.mubr.f32.gmra.mxu0 %v1518
        %v1730 = vpop.f32.mrf.mxu0
        %v1731 = vadd.f32 0.0, %v1730
        %v1732 = vpop.f32.mrf.mxu0
        %v1733 = vadd.f32 0.0, %v1732
        %1734 = vmatprep.mubr.f32.mxu0 0.0
        %1735 = vmatmul.mubr.f32.gmra.mxu0 %v1521
        %v1736 = vpop.f32.mrf.mxu0
        %v1737 = vadd.f32 0.0, %v1736
        %v1738 = vpop.f32.mrf.mxu0
        %v1739 = vadd.f32 0.0, %v1738
        %1740 = vmatprep.mubr.f32.mxu0 0.0
        %1741 = vmatmul.mubr.f32.gmra.mxu0 %v1524
        %v1742 = vpop.f32.mrf.mxu0
        %v1743 = vadd.f32 0.0, %v1742
        %v1744 = vpop.f32.mrf.mxu0
        %v1745 = vadd.f32 0.0, %v1744
        %1746 = vmatprep.mubr.f32.mxu0 0.0
        %1747 = vmatmul.mubr.f32.gmra.mxu0 %v1527
        %v1748 = vpop.f32.mrf.mxu0
        %v1749 = vadd.f32 0.0, %v1748
        %v1750 = vpop.f32.mrf.mxu0
        %v1751 = vadd.f32 0.0, %v1750
        %1752 = vmatprep.mubr.f32.mxu0 0.0
        %1753 = vmatmul.mubr.f32.gmra.mxu0 %v1530
        %v1754 = vpop.f32.mrf.mxu0
        %v1755 = vadd.f32 0.0, %v1754
        %v1756 = vpop.f32.mrf.mxu0
        %v1757 = vadd.f32 0.0, %v1756
        %1758 = vmatprep.mubr.f32.mxu0 0.0
        %1759 = vmatmul.mubr.f32.gmra.mxu0 %v1533
        %v1760 = vpop.f32.mrf.mxu0
        %v1761 = vadd.f32 0.0, %v1760
        %v1762 = vpop.f32.mrf.mxu0
        %v1763 = vadd.f32 0.0, %v1762
        %1764 = vmatprep.mubr.f32.mxu0 0.0
        %1765 = vmatmul.mubr.f32.gmra.mxu0 %v1536
        %v1766 = vpop.f32.mrf.mxu0
        %v1767 = vadd.f32 0.0, %v1766
        %v1768 = vpop.f32.mrf.mxu0
        %v1769 = vadd.f32 0.0, %v1768
        %1770 = vdwg.mxu0
        %v1771 = vpack.c.bf16 %v1611, %v1605
        %v1772 = vpack.c.bf16 %v1613, %v1607
        %v1773 = vpack.c.bf16 %v1623, %v1617
        %v1774 = vpack.c.bf16 %v1625, %v1619
        %v1775 = vpack.c.bf16 %v1635, %v1629
        %v1776 = vpack.c.bf16 %v1637, %v1631
        %v1777 = vpack.c.bf16 %v1647, %v1641
        %v1778 = vpack.c.bf16 %v1649, %v1643
        %v1779 = vpack.c.bf16 %v1659, %v1653
        %v1780 = vpack.c.bf16 %v1661, %v1655
        %v1781 = vpack.c.bf16 %v1671, %v1665
        %v1782 = vpack.c.bf16 %v1673, %v1667
        %v1783 = vpack.c.bf16 %v1683, %v1677
        %v1784 = vpack.c.bf16 %v1685, %v1679
        %v1785 = vpack.c.bf16 %v1695, %v1689
        %v1786 = vpack.c.bf16 %v1697, %v1691
        %v1787 = vpack.c.bf16 %v1707, %v1701
        %v1788 = vpack.c.bf16 %v1709, %v1703
        %v1789 = vpack.c.bf16 %v1719, %v1713
        %v1790 = vpack.c.bf16 %v1721, %v1715
        %v1791 = vpack.c.bf16 %v1731, %v1725
        %v1792 = vpack.c.bf16 %v1733, %v1727
        %v1793 = vpack.c.bf16 %v1743, %v1737
        %v1794 = vpack.c.bf16 %v1745, %v1739
        %v1795 = vpack.c.bf16 %v1755, %v1749
        %v1796 = vpack.c.bf16 %v1757, %v1751
        %v1797 = vpack.c.bf16 %v1767, %v1761
        %v1798 = vpack.c.bf16 %v1769, %v1763
        %v1827 = vunpack.c.l.b16 %v1771
        %v1828 = vunpack.c.l.b16 %v1772
        %v1829 = vunpack.c.h.b16 %v1771
        %v1830 = vunpack.c.h.b16 %v1772
        %v1831 = vunpack.c.l.b16 %v1773
        %v1832 = vunpack.c.l.b16 %v1774
        %v1833 = vunpack.c.h.b16 %v1773
        %v1834 = vunpack.c.h.b16 %v1774
        %v1835 = vunpack.c.l.b16 %v1775
        %v1836 = vunpack.c.l.b16 %v1776
        %v1837 = vunpack.c.h.b16 %v1775
        %v1838 = vunpack.c.h.b16 %v1776
        %v1839 = vunpack.c.l.b16 %v1777
        %v1840 = vunpack.c.l.b16 %v1778
        %v1841 = vunpack.c.h.b16 %v1777
        %v1842 = vunpack.c.h.b16 %v1778
        %v1843 = vunpack.c.l.b16 %v1779
        %v1844 = vunpack.c.l.b16 %v1780
        %v1845 = vunpack.c.h.b16 %v1779
        %v1846 = vunpack.c.h.b16 %v1780
        %v1847 = vunpack.c.l.b16 %v1781
        %v1848 = vunpack.c.l.b16 %v1782
        %v1849 = vunpack.c.h.b16 %v1781
        %v1850 = vunpack.c.h.b16 %v1782
        %v1851 = vunpack.c.l.b16 %v1783
        %v1852 = vunpack.c.l.b16 %v1784
        %v1853 = vunpack.c.h.b16 %v1783
        %v1854 = vunpack.c.h.b16 %v1784
        %v1855 = vunpack.c.l.b16 %v1785
        %v1856 = vunpack.c.l.b16 %v1786
        %v1857 = vunpack.c.h.b16 %v1785
        %v1858 = vunpack.c.h.b16 %v1786
        %v1859 = vunpack.c.l.b16 %v1787
        %v1860 = vunpack.c.l.b16 %v1788
        %v1861 = vunpack.c.h.b16 %v1787
        %v1862 = vunpack.c.h.b16 %v1788
        %v1863 = vunpack.c.l.b16 %v1789
        %v1864 = vunpack.c.l.b16 %v1790
        %v1865 = vunpack.c.h.b16 %v1789
        %v1866 = vunpack.c.h.b16 %v1790
        %v1867 = vunpack.c.l.b16 %v1791
        %v1868 = vunpack.c.l.b16 %v1792
        %v1869 = vunpack.c.h.b16 %v1791
        %v1870 = vunpack.c.h.b16 %v1792
        %v1871 = vunpack.c.l.b16 %v1793
        %v1872 = vunpack.c.l.b16 %v1794
        %v1873 = vunpack.c.h.b16 %v1793
        %v1874 = vunpack.c.h.b16 %v1794
        %v1875 = vunpack.c.l.b16 %v1795
        %v1876 = vunpack.c.l.b16 %v1796
        %v1877 = vunpack.c.h.b16 %v1795
        %v1878 = vunpack.c.h.b16 %v1796
        %v1879 = vunpack.c.l.b16 %v1797
        %v1880 = vunpack.c.l.b16 %v1798
        %v1881 = vunpack.c.h.b16 %v1797
        %v1882 = vunpack.c.h.b16 %v1798
        %v1883 = vpack.c.b16 %v1828, %v1827
        %v1884 = vpack.c.b16 %v1830, %v1829
        %v1885 = vpack.c.b16 %v1832, %v1831
        %v1886 = vpack.c.b16 %v1834, %v1833
        %v1887 = vpack.c.b16 %v1836, %v1835
        %v1888 = vpack.c.b16 %v1838, %v1837
        %v1889 = vpack.c.b16 %v1840, %v1839
        %v1890 = vpack.c.b16 %v1842, %v1841
        %v1891 = vpack.c.b16 %v1844, %v1843
        %v1892 = vpack.c.b16 %v1846, %v1845
        %v1893 = vpack.c.b16 %v1848, %v1847
        %v1894 = vpack.c.b16 %v1850, %v1849
        %v1895 = vpack.c.b16 %v1852, %v1851
        %v1896 = vpack.c.b16 %v1854, %v1853
        %v1897 = vpack.c.b16 %v1856, %v1855
        %v1898 = vpack.c.b16 %v1858, %v1857
        %v1899 = vpack.c.b16 %v1860, %v1859
        %v1900 = vpack.c.b16 %v1862, %v1861
        %v1901 = vpack.c.b16 %v1864, %v1863
        %v1902 = vpack.c.b16 %v1866, %v1865
        %v1903 = vpack.c.b16 %v1868, %v1867
        %v1904 = vpack.c.b16 %v1870, %v1869
        %v1905 = vpack.c.b16 %v1872, %v1871
        %v1906 = vpack.c.b16 %v1874, %v1873
        %v1907 = vpack.c.b16 %v1876, %v1875
        %v1908 = vpack.c.b16 %v1878, %v1877
        %v1909 = vpack.c.b16 %v1880, %v1879
        %v1910 = vpack.c.b16 %v1882, %v1881
        %s1939 = scalar_lea.vmem %s208, 448
        %1940 = vst.msk [vmem:[%s1939] sm:$0xff] %vm855, %v1883
        %1941 = vst.msk [vmem:[%s1939 + $0x8] sm:$0xff] %vm855, %v1884
        %1942 = vst.msk [vmem:[%s1939 + $0x10] sm:$0xff] %vm855, %v1885
        %1943 = vst.msk [vmem:[%s1939 + $0x18] sm:$0xff] %vm855, %v1886
        %1944 = vst.msk [vmem:[%s1939 + $0x20] sm:$0xff] %vm855, %v1887
        %1945 = vst.msk [vmem:[%s1939 + $0x28] sm:$0xff] %vm855, %v1888
        %1946 = vst.msk [vmem:[%s1939 + $0x30] sm:$0xff] %vm855, %v1889
        %1947 = vst.msk [vmem:[%s1939 + $0x38] sm:$0xff] %vm855, %v1890
        %1948 = vst.msk [vmem:[%s1939 + $0x40] sm:$0xff] %vm855, %v1891
        %1949 = vst.msk [vmem:[%s1939 + $0x48] sm:$0xff] %vm855, %v1892
        %1950 = vst.msk [vmem:[%s1939 + $0x50] sm:$0xff] %vm855, %v1893
        %1951 = vst.msk [vmem:[%s1939 + $0x58] sm:$0xff] %vm855, %v1894
        %1952 = vst.msk [vmem:[%s1939 + $0x60] sm:$0xff] %vm855, %v1895
        %1953 = vst.msk [vmem:[%s1939 + $0x68] sm:$0xff] %vm855, %v1896
        %1954 = vst.msk [vmem:[%s1939 + $0x70] sm:$0xff] %vm855, %v1897
        %1955 = vst.msk [vmem:[%s1939 + $0x78] sm:$0xff] %vm855, %v1898
        %1956 = vst.msk [vmem:[%s1939 + $0x80] sm:$0xff] %vm855, %v1899
        %1957 = vst.msk [vmem:[%s1939 + $0x88] sm:$0xff] %vm855, %v1900
        %1958 = vst.msk [vmem:[%s1939 + $0x90] sm:$0xff] %vm855, %v1901
        %1959 = vst.msk [vmem:[%s1939 + $0x98] sm:$0xff] %vm855, %v1902
        %1960 = vst.msk [vmem:[%s1939 + $0xa0] sm:$0xff] %vm855, %v1903
        %1961 = vst.msk [vmem:[%s1939 + $0xa8] sm:$0xff] %vm855, %v1904
        %1962 = vst.msk [vmem:[%s1939 + $0xb0] sm:$0xff] %vm855, %v1905
        %1963 = vst.msk [vmem:[%s1939 + $0xb8] sm:$0xff] %vm855, %v1906
        %1964 = vst.msk [vmem:[%s1939 + $0xc0] sm:$0xff] %vm855, %v1907
        %1965 = vst.msk [vmem:[%s1939 + $0xc8] sm:$0xff] %vm855, %v1908
        %1966 = vst.msk [vmem:[%s1939 + $0xd0] sm:$0xff] %vm855, %v1909
        %1967 = vst.msk [vmem:[%s1939 + $0xd8] sm:$0xff] %vm855, %v1910
        %s1968 = smul.u32 3, %s18
        %p1969 = scmp.lt.s32.totalorder %s1968, 5
        %s1970 = scalar_select %p1969, %s1968, 5
        %s1971 = smul.addr %s1970, 56
        %s1972 = smul.addr %s1971, 4
        %s1973 = scalar_lea.vmem %s3, %s1972
        // Predicated region
        $region41: #{dpt_depth_model_forward.2} parent=31 // pred_check
          %p1974 = pneg %p104
        $region42: #{dpt_depth_model_forward.2} parent=31 // pred_check_branch
          %1976 = sbr.rel (%p1974) target = $region44
        $region43: #{dpt_depth_model_forward.2} parent=31 // pred_region
          %s1977 = smul.u32 3, %s18
        $region44: #{dpt_depth_model_forward.2} parent=31 // pred_fallthru
          _
      $region32: #{dpt_depth_model_forward.2} parent=5 // pred_fallthru
        _
      %p1978 = scmp.le.s32.totalorder 2, %s13
      // Predicated region
      $region45: #{dpt_depth_model_forward.2} parent=5 // pred_check
        %p1979 = pneg %p1978
      $region46: #{dpt_depth_model_forward.2} parent=5 // pred_check_branch
        %1981 = sbr.rel (%p1979) target = $region48
      $region47: #{dpt_depth_model_forward.2} parent=5 // pred_region
        %s1982 = ssub.s32 %s13, 2
        // Predicated region
        $region49: #{dpt_depth_model_forward.2} parent=47 // pred_check
          %p1983 = pneg %p110
        $region50: #{dpt_depth_model_forward.2} parent=47 // pred_check_branch
          %1985 = sbr.rel (%p1983) target = $region52
        $region51: #{dpt_depth_model_forward.2} parent=47 // pred_region
          %s1986 = smul.u32 3, %s19
          %p1987 = scmp.lt.s32.totalorder %s1986, 5
          %s1988 = scalar_select %p1987, %s1986, 5
          %s1989 = smul.addr %s1988, 56
          %s1990 = smul.addr %s1989, 4
          %s1991 = scalar_lea.vmem %s3, %s1990
        $region52: #{dpt_depth_model_forward.2} parent=47 // pred_fallthru
          _
      $region48: #{dpt_depth_model_forward.2} parent=5 // pred_fallthru
        _
    $region6: #{dpt_depth_model_forward.2} parent=1 // loop_footer
      %s17 = sadd.s32 1, %s13
    $region7: #{dpt_depth_model_forward.2} parent=1 // loop_footer_branch
      %12 = sbr.rel target = $region3
    $region8: #{dpt_depth_model_forward.2} parent=1 // loop_exit
      _
    %1992 = vsyncpa [#allocation3], 1
    %s1993 = scalar_lea.sflag [#allocation3], 1
    %1994 = vsyncpa %s1993, 1
    %1995 = vsyncpa [#allocation5], 1

// kernel: dpt_depth_model_forward.3
$region0: #{dpt_depth_model_forward.3}
  #allocation0 [shape = 'u32[]', space=smem, size = 0x4, offset = 0x4, fixed_abs, tag = 'smem constant byte address 0x4 - core index']
  #allocation1 [shape = 'u32[144,128]{1,0:T(1,128)}', space=vmem, size = 0x12000, scoped, tag = 'internal scratch']
  #allocation2 [shape = 'f32[1,1]{1,0:T(1,128)S(1)}', space=vmem, size = 0x200, scoped, tag = 'scoped memory for dpt_depth_model_forward.3']
  %s0 = inlined_call_operand.vmem [shape: bf16[512,768], index: 0, kind: input, shape index: {}]
  %s1 = inlined_call_operand.vmem [shape: f32[256,32], index: 1, kind: input, shape index: {}]
  %s2 = inlined_call_operand.vmem [shape: bf16[768,32], index: 2, kind: input, shape index: {}]
  %s3 = inlined_call_operand.vmem [shape: bf16[4,32,64], index: 3, kind: input, shape index: {}]
  %s4 = inlined_call_operand.vmem [shape: f32[4,1,64], index: 4, kind: input, shape index: {}]
  %s5 = inlined_call_operand.vmem [shape: bf16[4,64,32], index: 5, kind: input, shape index: {}]
  %s6 = inlined_call_operand.vmem [shape: f32[4,1,32], index: 6, kind: input, shape index: {}]
  %s7 = inlined_call_operand.vmem [shape: bf16[128,64], index: 7, kind: input, shape index: {}]
  %s8 = inlined_call_operand.vmem [shape: f32[1,64], index: 8, kind: input, shape index: {}]
  %s9 = inlined_call_operand.vmem [shape: bf16[3,16,16], index: 9, kind: input, shape index: {}]
  %s10 = inlined_call_operand.vmem [shape: f32[3,1,16], index: 10, kind: input, shape index: {}]
  %s11 = inlined_call_operand.vmem [shape: bf16[16,8], index: 11, kind: input, shape index: {}]
  %s12 = inlined_call_operand.vmem [shape: f32[1,8], index: 12, kind: input, shape index: {}]
  %s13 = inlined_call_operand.vmem [shape: f32[1,8], index: 13, kind: input, shape index: {}]
  %s14 = inlined_call_operand.<no memory space> [shape: f32[1,1], index: 14, kind: input, shape index: {}]
  %s15 = inlined_call_operand.vmem [shape: bf16[64,256], index: 15, kind: input, shape index: {}]
  %s16 = inlined_call_operand.vmem [shape: f32[256,64], index: 16, kind: input, shape index: {}]
  %s17 = inlined_call_operand.hbm [shape: f32[2,64,64], index: 17, kind: output, shape index: {}]
  %s18 = sld [smem:[#allocation0]]
  $region101: #{dpt_depth_model_forward.3} parent=0
    _
  %s20 = ssub.s32 1, %s18
  %s21 = scalar_select 0, %s20, %s18
  %v22 = vstv %s14
  %23 = vst [vmem:[#allocation2] sm:$0x1] %v22
  $region1: #{dpt_depth_model_forward.3} parent=0
    #allocation3 [shape = 'u8[65536]{0}', space=vmem, size = 0x10000, scoped, tag = 'output window, operand 0']
    #allocation4 [shape = 's32[2]{0}', space=sflag, size = 0x8, scoped, tag = 'scoped memory for dpt_depth_model_forward.3']
    %24 = vsyncpa [#allocation4], 0
    %s25 = scalar_lea.sflag [#allocation4], 1
    %26 = vsyncpa %s25, 0
    loop: start=0, step=1, limit=4
    $region2: #{dpt_depth_model_forward.3} parent=1 // loop_pre_header
      _
    $region3: #{dpt_depth_model_forward.3} parent=1 // loop_header
      %s28 = sphi 0, %s32
      %p29 = scmp.ge.s32.totalorder %s28, 4
      %s38 = sphi 0, %s40
      %s41 = sphi 0, %s38
      %s42 = sphi 0, %s41
      %s58 = sphi 0, %s42
      %s62 = sphi 0, %s62
      %s64 = sphi 0, %s62
      %s65 = sphi 0, %s64
      %s79 = sphi 0, %s65
      %s83 = sphi 0, %s83
      %s85 = sphi 0, %s83
      %s86 = sphi 0, %s85
      %s100 = sphi 0, %s86
      %s104 = sphi 0, %s104
      %s106 = sphi 0, %s104
      %s107 = sphi 0, %s106
      %s121 = sphi 0, %s107
      %s125 = sphi 0, %s125
      %s127 = sphi 0, %s125
      %s128 = sphi 0, %s127
      %s142 = sphi 0, %s128
      %s146 = sphi 0, %s146
      %s148 = sphi 0, %s146
      %s149 = sphi 0, %s148
      %s163 = sphi 0, %s149
      %s167 = sphi 0, %s167
      %s169 = sphi 0, %s167
      %s170 = sphi 0, %s169
      %s184 = sphi 0, %s170
      %s188 = sphi 0, %s188
      %s190 = sphi 0, %s188
      %s191 = sphi 0, %s190
      %s205 = sphi 0, %s191
      %s209 = sphi 0, %s209
      %s211 = sphi 0, %s209
      %s212 = sphi 0, %s211
      %s226 = sphi 0, %s212
      %s230 = sphi 0, %s230
      %s232 = sphi 0, %s230
      %s233 = sphi 0, %s232
      %s247 = sphi 0, %s233
      %s251 = sphi 0, %s251
      %s253 = sphi 0, %s251
      %s254 = sphi 0, %s253
      %s268 = sphi 0, %s254
      %s272 = sphi 0, %s272
      %s274 = sphi 0, %s272
      %s275 = sphi 0, %s274
      %s289 = sphi 0, %s275
      %s293 = sphi 0, %s293
      %s295 = sphi 0, %s293
      %s296 = sphi 0, %s295
      %s310 = sphi 0, %s296
      %s314 = sphi 0, %s314
      %s316 = sphi 0, %s314
      %s317 = sphi 0, %s316
      %s331 = sphi 0, %s317
      %s335 = sphi 0, %s335
      %s337 = sphi 0, %s335
      %s338 = sphi 0, %s337
      %s352 = sphi 0, %s338
      %s356 = sphi 0, %s356
      %s358 = sphi 0, %s356
      %s359 = sphi 0, %s358
      %s373 = sphi 0, %s359
      %s377 = sphi 0, %s377
      %s379 = sphi 0, %s377
      %s380 = sphi 0, %s379
      %s394 = sphi 0, %s380
      %s400 = sphi 0, %s402
      %s403 = sphi 0, %s400
      %s404 = sphi 0, %s403
      %s420 = sphi 0, %s404
    $region4: #{dpt_depth_model_forward.3} parent=1 // loop_header_branch
      %31 = sbr.rel (%p29) target = $region8
    $region5: #{dpt_depth_model_forward.3} parent=1 // loop_body
      %s33 = ssub.s32 %s28, 1
      %s34 = ssub.s32 %s28, 2
      %s35 = sadd.s32 %s28, 1
      %s36 = ssub.s32 %s28, %s35
      %p37 = scmp.eq.s32.totalorder %s36, 0
      %s39 = sadd.s32 %s38, 1
      %s40 = scalar_select %p37, %s38, %s39
      %p43 = pneg %p37
      %p44 = scmp.eq.s32.totalorder %s28, 1
      %p45 = por %p43, %p44
      %p46 = scmp.ne.s32.totalorder %s38, %s41
      %p47 = scmp.eq.s32.totalorder %s28, 0
      %p48 = por %p46, %p47
      %p49 = scmp.ne.s32.totalorder %s38, %s41
      %p50 = scmp.eq.s32.totalorder %s33, 1
      %p51 = por %p49, %p50
      %p52 = scmp.ne.s32.totalorder %s41, %s42
      %p53 = scmp.eq.s32.totalorder %s33, 0
      %p54 = por %p52, %p53
      %p55 = scmp.ne.s32.totalorder %s41, %s42
      %p56 = scmp.eq.s32.totalorder %s34, 1
      %p57 = por %p55, %p56
      %p59 = scmp.ne.s32.totalorder %s42, %s58
      %p60 = scmp.eq.s32.totalorder %s34, 0
      %p61 = por %p59, %p60
      %s63 = sadd.s32 %s62, 1
      %p66 = scmp.eq.s32.totalorder %s28, 1
      %p67 = scmp.ne.s32.totalorder %s62, %s64
      %p68 = scmp.eq.s32.totalorder %s28, 0
      %p69 = por %p67, %p68
      %p70 = scmp.ne.s32.totalorder %s62, %s64
      %p71 = scmp.eq.s32.totalorder %s33, 1
      %p72 = por %p70, %p71
      %p73 = scmp.ne.s32.totalorder %s64, %s65
      %p74 = scmp.eq.s32.totalorder %s33, 0
      %p75 = por %p73, %p74
      %p76 = scmp.ne.s32.totalorder %s64, %s65
      %p77 = scmp.eq.s32.totalorder %s34, 1
      %p78 = por %p76, %p77
      %p80 = scmp.ne.s32.totalorder %s65, %s79
      %p81 = scmp.eq.s32.totalorder %s34, 0
      %p82 = por %p80, %p81
      %s84 = sadd.s32 %s83, 1
      %p87 = scmp.eq.s32.totalorder %s28, 1
      %p88 = scmp.ne.s32.totalorder %s83, %s85
      %p89 = scmp.eq.s32.totalorder %s28, 0
      %p90 = por %p88, %p89
      %p91 = scmp.ne.s32.totalorder %s83, %s85
      %p92 = scmp.eq.s32.totalorder %s33, 1
      %p93 = por %p91, %p92
      %p94 = scmp.ne.s32.totalorder %s85, %s86
      %p95 = scmp.eq.s32.totalorder %s33, 0
      %p96 = por %p94, %p95
      %p97 = scmp.ne.s32.totalorder %s85, %s86
      %p98 = scmp.eq.s32.totalorder %s34, 1
      %p99 = por %p97, %p98
      %p101 = scmp.ne.s32.totalorder %s86, %s100
      %p102 = scmp.eq.s32.totalorder %s34, 0
      %p103 = por %p101, %p102
      %s105 = sadd.s32 %s104, 1
      %p108 = scmp.eq.s32.totalorder %s28, 1
      %p109 = scmp.ne.s32.totalorder %s104, %s106
      %p110 = scmp.eq.s32.totalorder %s28, 0
      %p111 = por %p109, %p110
      %p112 = scmp.ne.s32.totalorder %s104, %s106
      %p113 = scmp.eq.s32.totalorder %s33, 1
      %p114 = por %p112, %p113
      %p115 = scmp.ne.s32.totalorder %s106, %s107
      %p116 = scmp.eq.s32.totalorder %s33, 0
      %p117 = por %p115, %p116
      %p118 = scmp.ne.s32.totalorder %s106, %s107
      %p119 = scmp.eq.s32.totalorder %s34, 1
      %p120 = por %p118, %p119
      %p122 = scmp.ne.s32.totalorder %s107, %s121
      %p123 = scmp.eq.s32.totalorder %s34, 0
      %p124 = por %p122, %p123
      %s126 = sadd.s32 %s125, 1
      %p129 = scmp.eq.s32.totalorder %s28, 1
      %p130 = scmp.ne.s32.totalorder %s125, %s127
      %p131 = scmp.eq.s32.totalorder %s28, 0
      %p132 = por %p130, %p131
      %p133 = scmp.ne.s32.totalorder %s125, %s127
      %p134 = scmp.eq.s32.totalorder %s33, 1
      %p135 = por %p133, %p134
      %p136 = scmp.ne.s32.totalorder %s127, %s128
      %p137 = scmp.eq.s32.totalorder %s33, 0
      %p138 = por %p136, %p137
      %p139 = scmp.ne.s32.totalorder %s127, %s128
      %p140 = scmp.eq.s32.totalorder %s34, 1
      %p141 = por %p139, %p140
      %p143 = scmp.ne.s32.totalorder %s128, %s142
      %p144 = scmp.eq.s32.totalorder %s34, 0
      %p145 = por %p143, %p144
      %s147 = sadd.s32 %s146, 1
      %p150 = scmp.eq.s32.totalorder %s28, 1
      %p151 = scmp.ne.s32.totalorder %s146, %s148
      %p152 = scmp.eq.s32.totalorder %s28, 0
      %p153 = por %p151, %p152
      %p154 = scmp.ne.s32.totalorder %s146, %s148
      %p155 = scmp.eq.s32.totalorder %s33, 1
      %p156 = por %p154, %p155
      %p157 = scmp.ne.s32.totalorder %s148, %s149
      %p158 = scmp.eq.s32.totalorder %s33, 0
      %p159 = por %p157, %p158
      %p160 = scmp.ne.s32.totalorder %s148, %s149
      %p161 = scmp.eq.s32.totalorder %s34, 1
      %p162 = por %p160, %p161
      %p164 = scmp.ne.s32.totalorder %s149, %s163
      %p165 = scmp.eq.s32.totalorder %s34, 0
      %p166 = por %p164, %p165
      %s168 = sadd.s32 %s167, 1
      %p171 = scmp.eq.s32.totalorder %s28, 1
      %p172 = scmp.ne.s32.totalorder %s167, %s169
      %p173 = scmp.eq.s32.totalorder %s28, 0
      %p174 = por %p172, %p173
      %p175 = scmp.ne.s32.totalorder %s167, %s169
      %p176 = scmp.eq.s32.totalorder %s33, 1
      %p177 = por %p175, %p176
      %p178 = scmp.ne.s32.totalorder %s169, %s170
      %p179 = scmp.eq.s32.totalorder %s33, 0
      %p180 = por %p178, %p179
      %p181 = scmp.ne.s32.totalorder %s169, %s170
      %p182 = scmp.eq.s32.totalorder %s34, 1
      %p183 = por %p181, %p182
      %p185 = scmp.ne.s32.totalorder %s170, %s184
      %p186 = scmp.eq.s32.totalorder %s34, 0
      %p187 = por %p185, %p186
      %s189 = sadd.s32 %s188, 1
      %p192 = scmp.eq.s32.totalorder %s28, 1
      %p193 = scmp.ne.s32.totalorder %s188, %s190
      %p194 = scmp.eq.s32.totalorder %s28, 0
      %p195 = por %p193, %p194
      %p196 = scmp.ne.s32.totalorder %s188, %s190
      %p197 = scmp.eq.s32.totalorder %s33, 1
      %p198 = por %p196, %p197
      %p199 = scmp.ne.s32.totalorder %s190, %s191
      %p200 = scmp.eq.s32.totalorder %s33, 0
      %p201 = por %p199, %p200
      %p202 = scmp.ne.s32.totalorder %s190, %s191
      %p203 = scmp.eq.s32.totalorder %s34, 1
      %p204 = por %p202, %p203
      %p206 = scmp.ne.s32.totalorder %s191, %s205
      %p207 = scmp.eq.s32.totalorder %s34, 0
      %p208 = por %p206, %p207
      %s210 = sadd.s32 %s209, 1
      %p213 = scmp.eq.s32.totalorder %s28, 1
      %p214 = scmp.ne.s32.totalorder %s209, %s211
      %p215 = scmp.eq.s32.totalorder %s28, 0
      %p216 = por %p214, %p215
      %p217 = scmp.ne.s32.totalorder %s209, %s211
      %p218 = scmp.eq.s32.totalorder %s33, 1
      %p219 = por %p217, %p218
      %p220 = scmp.ne.s32.totalorder %s211, %s212
      %p221 = scmp.eq.s32.totalorder %s33, 0
      %p222 = por %p220, %p221
      %p223 = scmp.ne.s32.totalorder %s211, %s212
      %p224 = scmp.eq.s32.totalorder %s34, 1
      %p225 = por %p223, %p224
      %p227 = scmp.ne.s32.totalorder %s212, %s226
      %p228 = scmp.eq.s32.totalorder %s34, 0
      %p229 = por %p227, %p228
      %s231 = sadd.s32 %s230, 1
      %p234 = scmp.eq.s32.totalorder %s28, 1
      %p235 = scmp.ne.s32.totalorder %s230, %s232
      %p236 = scmp.eq.s32.totalorder %s28, 0
      %p237 = por %p235, %p236
      %p238 = scmp.ne.s32.totalorder %s230, %s232
      %p239 = scmp.eq.s32.totalorder %s33, 1
      %p240 = por %p238, %p239
      %p241 = scmp.ne.s32.totalorder %s232, %s233
      %p242 = scmp.eq.s32.totalorder %s33, 0
      %p243 = por %p241, %p242
      %p244 = scmp.ne.s32.totalorder %s232, %s233
      %p245 = scmp.eq.s32.totalorder %s34, 1
      %p246 = por %p244, %p245
      %p248 = scmp.ne.s32.totalorder %s233, %s247
      %p249 = scmp.eq.s32.totalorder %s34, 0
      %p250 = por %p248, %p249
      %s252 = sadd.s32 %s251, 1
      %p255 = scmp.eq.s32.totalorder %s28, 1
      %p256 = scmp.ne.s32.totalorder %s251, %s253
      %p257 = scmp.eq.s32.totalorder %s28, 0
      %p258 = por %p256, %p257
      %p259 = scmp.ne.s32.totalorder %s251, %s253
      %p260 = scmp.eq.s32.totalorder %s33, 1
      %p261 = por %p259, %p260
      %p262 = scmp.ne.s32.totalorder %s253, %s254
      %p263 = scmp.eq.s32.totalorder %s33, 0
      %p264 = por %p262, %p263
      %p265 = scmp.ne.s32.totalorder %s253, %s254
      %p266 = scmp.eq.s32.totalorder %s34, 1
      %p267 = por %p265, %p266
      %p269 = scmp.ne.s32.totalorder %s254, %s268
      %p270 = scmp.eq.s32.totalorder %s34, 0
      %p271 = por %p269, %p270
      %s273 = sadd.s32 %s272, 1
      %p276 = scmp.eq.s32.totalorder %s28, 1
      %p277 = scmp.ne.s32.totalorder %s272, %s274
      %p278 = scmp.eq.s32.totalorder %s28, 0
      %p279 = por %p277, %p278
      %p280 = scmp.ne.s32.totalorder %s272, %s274
      %p281 = scmp.eq.s32.totalorder %s33, 1
      %p282 = por %p280, %p281
      %p283 = scmp.ne.s32.totalorder %s274, %s275
      %p284 = scmp.eq.s32.totalorder %s33, 0
      %p285 = por %p283, %p284
      %p286 = scmp.ne.s32.totalorder %s274, %s275
      %p287 = scmp.eq.s32.totalorder %s34, 1
      %p288 = por %p286, %p287
      %p290 = scmp.ne.s32.totalorder %s275, %s289
      %p291 = scmp.eq.s32.totalorder %s34, 0
      %p292 = por %p290, %p291
      %s294 = sadd.s32 %s293, 1
      %p297 = scmp.eq.s32.totalorder %s28, 1
      %p298 = scmp.ne.s32.totalorder %s293, %s295
      %p299 = scmp.eq.s32.totalorder %s28, 0
      %p300 = por %p298, %p299
      %p301 = scmp.ne.s32.totalorder %s293, %s295
      %p302 = scmp.eq.s32.totalorder %s33, 1
      %p303 = por %p301, %p302
      %p304 = scmp.ne.s32.totalorder %s295, %s296
      %p305 = scmp.eq.s32.totalorder %s33, 0
      %p306 = por %p304, %p305
      %p307 = scmp.ne.s32.totalorder %s295, %s296
      %p308 = scmp.eq.s32.totalorder %s34, 1
      %p309 = por %p307, %p308
      %p311 = scmp.ne.s32.totalorder %s296, %s310
      %p312 = scmp.eq.s32.totalorder %s34, 0
      %p313 = por %p311, %p312
      %s315 = sadd.s32 %s314, 1
      %p318 = scmp.eq.s32.totalorder %s28, 1
      %p319 = scmp.ne.s32.totalorder %s314, %s316
      %p320 = scmp.eq.s32.totalorder %s28, 0
      %p321 = por %p319, %p320
      %p322 = scmp.ne.s32.totalorder %s314, %s316
      %p323 = scmp.eq.s32.totalorder %s33, 1
      %p324 = por %p322, %p323
      %p325 = scmp.ne.s32.totalorder %s316, %s317
      %p326 = scmp.eq.s32.totalorder %s33, 0
      %p327 = por %p325, %p326
      %p328 = scmp.ne.s32.totalorder %s316, %s317
      %p329 = scmp.eq.s32.totalorder %s34, 1
      %p330 = por %p328, %p329
      %p332 = scmp.ne.s32.totalorder %s317, %s331
      %p333 = scmp.eq.s32.totalorder %s34, 0
      %p334 = por %p332, %p333
      %s336 = sadd.s32 %s335, 1
      %p339 = scmp.eq.s32.totalorder %s28, 1
      %p340 = scmp.ne.s32.totalorder %s335, %s337
      %p341 = scmp.eq.s32.totalorder %s28, 0
      %p342 = por %p340, %p341
      %p343 = scmp.ne.s32.totalorder %s335, %s337
      %p344 = scmp.eq.s32.totalorder %s33, 1
      %p345 = por %p343, %p344
      %p346 = scmp.ne.s32.totalorder %s337, %s338
      %p347 = scmp.eq.s32.totalorder %s33, 0
      %p348 = por %p346, %p347
      %p349 = scmp.ne.s32.totalorder %s337, %s338
      %p350 = scmp.eq.s32.totalorder %s34, 1
      %p351 = por %p349, %p350
      %p353 = scmp.ne.s32.totalorder %s338, %s352
      %p354 = scmp.eq.s32.totalorder %s34, 0
      %p355 = por %p353, %p354
      %s357 = sadd.s32 %s356, 1
      %p360 = scmp.eq.s32.totalorder %s28, 1
      %p361 = scmp.ne.s32.totalorder %s356, %s358
      %p362 = scmp.eq.s32.totalorder %s28, 0
      %p363 = por %p361, %p362
      %p364 = scmp.ne.s32.totalorder %s356, %s358
      %p365 = scmp.eq.s32.totalorder %s33, 1
      %p366 = por %p364, %p365
      %p367 = scmp.ne.s32.totalorder %s358, %s359
      %p368 = scmp.eq.s32.totalorder %s33, 0
      %p369 = por %p367, %p368
      %p370 = scmp.ne.s32.totalorder %s358, %s359
      %p371 = scmp.eq.s32.totalorder %s34, 1
      %p372 = por %p370, %p371
      %p374 = scmp.ne.s32.totalorder %s359, %s373
      %p375 = scmp.eq.s32.totalorder %s34, 0
      %p376 = por %p374, %p375
      %s378 = sadd.s32 %s377, 1
      %p381 = scmp.eq.s32.totalorder %s28, 1
      %p382 = scmp.ne.s32.totalorder %s377, %s379
      %p383 = scmp.eq.s32.totalorder %s28, 0
      %p384 = por %p382, %p383
      %p385 = scmp.ne.s32.totalorder %s377, %s379
      %p386 = scmp.eq.s32.totalorder %s33, 1
      %p387 = por %p385, %p386
      %p388 = scmp.ne.s32.totalorder %s379, %s380
      %p389 = scmp.eq.s32.totalorder %s33, 0
      %p390 = por %p388, %p389
      %p391 = scmp.ne.s32.totalorder %s379, %s380
      %p392 = scmp.eq.s32.totalorder %s34, 1
      %p393 = por %p391, %p392
      %p395 = scmp.ne.s32.totalorder %s380, %s394
      %p396 = scmp.eq.s32.totalorder %s34, 0
      %p397 = por %p395, %p396
      %s398 = ssub.s32 %s28, %s35
      %p399 = scmp.eq.s32.totalorder %s398, 0
      %s401 = sadd.s32 %s400, 1
      %s402 = scalar_select %p399, %s400, %s401
      %p405 = pneg %p399
      %p406 = scmp.eq.s32.totalorder %s28, 1
      %p407 = por %p405, %p406
      %p408 = scmp.ne.s32.totalorder %s400, %s403
      %p409 = scmp.eq.s32.totalorder %s28, 0
      %p410 = por %p408, %p409
      %p411 = scmp.ne.s32.totalorder %s400, %s403
      %p412 = scmp.eq.s32.totalorder %s33, 1
      %p413 = por %p411, %p412
      %p414 = scmp.ne.s32.totalorder %s403, %s404
      %p415 = scmp.eq.s32.totalorder %s33, 0
      %p416 = por %p414, %p415
      %p417 = scmp.ne.s32.totalorder %s403, %s404
      %p418 = scmp.eq.s32.totalorder %s34, 1
      %p419 = por %p417, %p418
      %p421 = scmp.ne.s32.totalorder %s404, %s420
      %p422 = scmp.eq.s32.totalorder %s34, 0
      %p423 = por %p421, %p422
      %p424 = scmp.le.s32.totalorder 1, %s28
      %p425 = scmp.lt.s32.totalorder %s28, 3
      %p426 = pnand %p424, %p425
      %p427 = pneg %p426
      // Predicated region
      $region9: #{dpt_depth_model_forward.3} parent=5 // pred_check
        _
      $region10: #{dpt_depth_model_forward.3} parent=5 // pred_check_branch
        %429 = sbr.rel (%p426) target = $region12
      $region11: #{dpt_depth_model_forward.3} parent=5 // pred_region
        %s430 = ssub.s32 %s28, 1
        // Predicated region
        $region13: #{dpt_depth_model_forward.3} parent=11 // pred_check
          %p431 = pneg %p75
        $region14: #{dpt_depth_model_forward.3} parent=11 // pred_check_branch
          %433 = sbr.rel (%p431) target = $region16
        $region15: #{dpt_depth_model_forward.3} parent=11 // pred_region
          _
        $region16: #{dpt_depth_model_forward.3} parent=11 // pred_fallthru
          _
        // Predicated region
        $region17: #{dpt_depth_model_forward.3} parent=11 // pred_check
          %p434 = pneg %p96
        $region18: #{dpt_depth_model_forward.3} parent=11 // pred_check_branch
          %436 = sbr.rel (%p434) target = $region20
        $region19: #{dpt_depth_model_forward.3} parent=11 // pred_region
          _
        $region20: #{dpt_depth_model_forward.3} parent=11 // pred_fallthru
          _
        // Predicated region
        $region21: #{dpt_depth_model_forward.3} parent=11 // pred_check
          %p437 = pneg %p117
        $region22: #{dpt_depth_model_forward.3} parent=11 // pred_check_branch
          %439 = sbr.rel (%p437) target = $region24
        $region23: #{dpt_depth_model_forward.3} parent=11 // pred_region
          _
        $region24: #{dpt_depth_model_forward.3} parent=11 // pred_fallthru
          _
        // Predicated region
        $region25: #{dpt_depth_model_forward.3} parent=11 // pred_check
          %p440 = pneg %p138
        $region26: #{dpt_depth_model_forward.3} parent=11 // pred_check_branch
          %442 = sbr.rel (%p440) target = $region28
        $region27: #{dpt_depth_model_forward.3} parent=11 // pred_region
          _
        $region28: #{dpt_depth_model_forward.3} parent=11 // pred_fallthru
          _
        // Predicated region
        $region29: #{dpt_depth_model_forward.3} parent=11 // pred_check
          %p443 = pneg %p159
        $region30: #{dpt_depth_model_forward.3} parent=11 // pred_check_branch
          %445 = sbr.rel (%p443) target = $region32
        $region31: #{dpt_depth_model_forward.3} parent=11 // pred_region
          _
        $region32: #{dpt_depth_model_forward.3} parent=11 // pred_fallthru
          _
        // Predicated region
        $region33: #{dpt_depth_model_forward.3} parent=11 // pred_check
          %p446 = pneg %p180
        $region34: #{dpt_depth_model_forward.3} parent=11 // pred_check_branch
          %448 = sbr.rel (%p446) target = $region36
        $region35: #{dpt_depth_model_forward.3} parent=11 // pred_region
          _
        $region36: #{dpt_depth_model_forward.3} parent=11 // pred_fallthru
          _
        // Predicated region
        $region37: #{dpt_depth_model_forward.3} parent=11 // pred_check
          %p449 = pneg %p201
        $region38: #{dpt_depth_model_forward.3} parent=11 // pred_check_branch
          %451 = sbr.rel (%p449) target = $region40
        $region39: #{dpt_depth_model_forward.3} parent=11 // pred_region
          _
        $region40: #{dpt_depth_model_forward.3} parent=11 // pred_fallthru
          _
        // Predicated region
        $region41: #{dpt_depth_model_forward.3} parent=11 // pred_check
          %p452 = pneg %p222
        $region42: #{dpt_depth_model_forward.3} parent=11 // pred_check_branch
          %454 = sbr.rel (%p452) target = $region44
        $region43: #{dpt_depth_model_forward.3} parent=11 // pred_region
          _
        $region44: #{dpt_depth_model_forward.3} parent=11 // pred_fallthru
          _
        // Predicated region
        $region45: #{dpt_depth_model_forward.3} parent=11 // pred_check
          %p455 = pneg %p243
        $region46: #{dpt_depth_model_forward.3} parent=11 // pred_check_branch
          %457 = sbr.rel (%p455) target = $region48
        $region47: #{dpt_depth_model_forward.3} parent=11 // pred_region
          _
        $region48: #{dpt_depth_model_forward.3} parent=11 // pred_fallthru
          _
        // Predicated region
        $region49: #{dpt_depth_model_forward.3} parent=11 // pred_check
          %p458 = pneg %p264
        $region50: #{dpt_depth_model_forward.3} parent=11 // pred_check_branch
          %460 = sbr.rel (%p458) target = $region52
        $region51: #{dpt_depth_model_forward.3} parent=11 // pred_region
          _
        $region52: #{dpt_depth_model_forward.3} parent=11 // pred_fallthru
          _
        // Predicated region
        $region53: #{dpt_depth_model_forward.3} parent=11 // pred_check
          %p461 = pneg %p285
        $region54: #{dpt_depth_model_forward.3} parent=11 // pred_check_branch
          %463 = sbr.rel (%p461) target = $region56
        $region55: #{dpt_depth_model_forward.3} parent=11 // pred_region
          _
        $region56: #{dpt_depth_model_forward.3} parent=11 // pred_fallthru
          _
        // Predicated region
        $region57: #{dpt_depth_model_forward.3} parent=11 // pred_check
          %p464 = pneg %p306
        $region58: #{dpt_depth_model_forward.3} parent=11 // pred_check_branch
          %466 = sbr.rel (%p464) target = $region60
        $region59: #{dpt_depth_model_forward.3} parent=11 // pred_region
          _
        $region60: #{dpt_depth_model_forward.3} parent=11 // pred_fallthru
          _
        // Predicated region
        $region61: #{dpt_depth_model_forward.3} parent=11 // pred_check
          %p467 = pneg %p327
        $region62: #{dpt_depth_model_forward.3} parent=11 // pred_check_branch
          %469 = sbr.rel (%p467) target = $region64
        $region63: #{dpt_depth_model_forward.3} parent=11 // pred_region
          _
        $region64: #{dpt_depth_model_forward.3} parent=11 // pred_fallthru
          _
        // Predicated region
        $region65: #{dpt_depth_model_forward.3} parent=11 // pred_check
          %p470 = pneg %p348
        $region66: #{dpt_depth_model_forward.3} parent=11 // pred_check_branch
          %472 = sbr.rel (%p470) target = $region68
        $region67: #{dpt_depth_model_forward.3} parent=11 // pred_region
          _
        $region68: #{dpt_depth_model_forward.3} parent=11 // pred_fallthru
          _
        // Predicated region
        $region69: #{dpt_depth_model_forward.3} parent=11 // pred_check
          %p473 = pneg %p369
        $region70: #{dpt_depth_model_forward.3} parent=11 // pred_check_branch
          %475 = sbr.rel (%p473) target = $region72
        $region71: #{dpt_depth_model_forward.3} parent=11 // pred_region
          _
        $region72: #{dpt_depth_model_forward.3} parent=11 // pred_fallthru
          _
        // Predicated region
        $region73: #{dpt_depth_model_forward.3} parent=11 // pred_check
          %p476 = pneg %p390
        $region74: #{dpt_depth_model_forward.3} parent=11 // pred_check_branch
          %478 = sbr.rel (%p476) target = $region76
        $region75: #{dpt_depth_model_forward.3} parent=11 // pred_region
          _
        $region76: #{dpt_depth_model_forward.3} parent=11 // pred_fallthru
          _
      $region12: #{dpt_depth_model_forward.3} parent=5 // pred_fallthru
        _
      %p479 = scmp.lt.s32.totalorder %s28, 2
      // Predicated region
      $region77: #{dpt_depth_model_forward.3} parent=5 // pred_check
        %p480 = pneg %p479
      $region78: #{dpt_depth_model_forward.3} parent=5 // pred_check_branch
        %482 = sbr.rel (%p480) target = $region80
      $region79: #{dpt_depth_model_forward.3} parent=5 // pred_region
        // Predicated region
        $region81: #{dpt_depth_model_forward.3} parent=79 // pred_check
          %p483 = pneg %p48
        $region82: #{dpt_depth_model_forward.3} parent=79 // pred_check_branch
          %485 = sbr.rel (%p483) target = $region84
        $region83: #{dpt_depth_model_forward.3} parent=79 // pred_region
          %s486 = smul.u32 32, %s28
          %p487 = scmp.lt.s32.totalorder %s486, 63
          %s488 = scalar_select %p487, %s486, 63
          %s489 = smul.addr %s488, 6
          %s490 = smul.addr %s489, 4
          %s491 = scalar_lea.vmem %s0, %s490
          %s492 = smul.u32 32, %s28
        $region84: #{dpt_depth_model_forward.3} parent=79 // pred_fallthru
          _
      $region80: #{dpt_depth_model_forward.3} parent=5 // pred_fallthru
        _
      %p493 = scmp.le.s32.totalorder 1, %s28
      %p494 = scmp.lt.s32.totalorder %s28, 3
      %p495 = pnand %p493, %p494
      %p496 = pneg %p495
      // Predicated region
      $region85: #{dpt_depth_model_forward.3} parent=5 // pred_check
        _
      $region86: #{dpt_depth_model_forward.3} parent=5 // pred_check_branch
        %498 = sbr.rel (%p495) target = $region88
      $region87: #{dpt_depth_model_forward.3} parent=5 // pred_region
        %s499 = ssub.s32 %s28, 1
        %s500 = smul.u32 32, %s33
        %p501 = scmp.lt.s32.totalorder %s500, 63
        %s502 = scalar_select %p501, %s500, 63
        %s503 = smul.addr %s502, 6
        %s504 = smul.addr %s503, 4
        %s505 = scalar_lea.vmem %s0, %s504
        %p506 = pneg %p54
        %p507 = pneg %p51
        %p508 = pneg %p75
        %p509 = pneg %p72
        %p510 = pneg %p96
        %p511 = pneg %p93
        %p512 = pneg %p117
        %p513 = pneg %p114
        %p514 = pneg %p138
        %p515 = pneg %p135
        %p516 = pneg %p159
        %p517 = pneg %p156
        %p518 = pneg %p180
        %p519 = pneg %p177
        %p520 = pneg %p201
        %p521 = pneg %p198
        %p522 = pneg %p222
        %p523 = pneg %p219
        %p524 = pneg %p243
        %p525 = pneg %p240
        %p526 = pneg %p264
        %p527 = pneg %p261
        %p528 = pneg %p285
        %p529 = pneg %p282
        %p530 = pneg %p306
        %p531 = pneg %p303
        %p532 = pneg %p327
        %p533 = pneg %p324
        %p534 = pneg %p348
        %p535 = pneg %p345
        %p536 = pneg %p369
        %p537 = pneg %p366
        %p538 = pneg %p390
        %p539 = pneg %p387
        %p540 = pneg %p416
        %p541 = pneg %p413
        %s542 = sand.u32 %s403, 1
        %s543 = scalar_lea.sflag [#allocation4], %s542
        %s544 = sand.u32 %s403, 1
        %s545 = smul.addr %s544, 64
        %s546 = scalar_lea.vmem [#allocation3], %s545
        %s547 = smul.u32 32, %s33
        %p548 = scmp.lt.s32.totalorder %s547, 63
        %s549 = scalar_select %p548, %s547, 63
        %s550 = smul.addr %s549, 6
        %s551 = smul.addr %s550, 4
        %s552 = scalar_lea.vmem %s0, %s551
        %s553 = smul.u32 32, %s33
        %v555 = vld [vmem:[%s552] sm:$0xff]
        %v556 = vld [vmem:[%s552 + $0x8] sm:$0xff]
        %v557 = vld [vmem:[%s552 + $0x10] sm:$0xff]
        %v558 = vld [vmem:[%s552 + $0x18] sm:$0xff]
        %v559 = vld [vmem:[%s552 + $0x20] sm:$0xff]
        %v560 = vld [vmem:[%s552 + $0x28] sm:$0xff]
        %v561 = vld [vmem:[%s552 + $0x30] sm:$0xff]
        %v562 = vld [vmem:[%s552 + $0x38] sm:$0xff]
        %v563 = vld [vmem:[%s552 + $0x40] sm:$0xff]
        %v564 = vld [vmem:[%s552 + $0x48] sm:$0xff]
        %v565 = vld [vmem:[%s552 + $0x50] sm:$0xff]
        %v566 = vld [vmem:[%s552 + $0x58] sm:$0xff]
        %v567 = vld [vmem:[%s552 + $0x60] sm:$0xff]
        %v568 = vld [vmem:[%s552 + $0x68] sm:$0xff]
        %v569 = vld [vmem:[%s552 + $0x70] sm:$0xff]
        %v570 = vld [vmem:[%s552 + $0x78] sm:$0xff]
        %v571 = vld [vmem:[%s552 + $0x80] sm:$0xff]
        %v572 = vld [vmem:[%s552 + $0x88] sm:$0xff]
        %v573 = vld [vmem:[%s552 + $0x90] sm:$0xff]
        %v574 = vld [vmem:[%s552 + $0x98] sm:$0xff]
        %v575 = vld [vmem:[%s552 + $0xa0] sm:$0xff]
        %v576 = vld [vmem:[%s552 + $0xa8] sm:$0xff]
        %v577 = vld [vmem:[%s552 + $0xb0] sm:$0xff]
        %v578 = vld [vmem:[%s552 + $0xb8] sm:$0xff]
        %v579 = vld [vmem:[%s552 + $0xc0] sm:$0xff]
        %v580 = vld [vmem:[%s552 + $0xc8] sm:$0xff]
        %v581 = vld [vmem:[%s552 + $0xd0] sm:$0xff]
        %v582 = vld [vmem:[%s552 + $0xd8] sm:$0xff]
        %v583 = vld [vmem:[%s552 + $0xe0] sm:$0xff]
        %v584 = vld [vmem:[%s552 + $0xe8] sm:$0xff]
        %v585 = vld [vmem:[%s552 + $0xf0] sm:$0xff]
        %v586 = vld [vmem:[%s552 + $0xf8] sm:$0xff]
        %v587 = vld [vmem:[%s552 + $0x100] sm:$0xff]
        %v588 = vld [vmem:[%s552 + $0x108] sm:$0xff]
        %v589 = vld [vmem:[%s552 + $0x110] sm:$0xff]
        %v590 = vld [vmem:[%s552 + $0x118] sm:$0xff]
        %v591 = vld [vmem:[%s552 + $0x120] sm:$0xff]
        %v592 = vld [vmem:[%s552 + $0x128] sm:$0xff]
        %v593 = vld [vmem:[%s552 + $0x130] sm:$0xff]
        %v594 = vld [vmem:[%s552 + $0x138] sm:$0xff]
        %v595 = vld [vmem:[%s552 + $0x140] sm:$0xff]
        %v596 = vld [vmem:[%s552 + $0x148] sm:$0xff]
        %v597 = vld [vmem:[%s552 + $0x150] sm:$0xff]
        %v598 = vld [vmem:[%s552 + $0x158] sm:$0xff]
        %v599 = vld [vmem:[%s552 + $0x160] sm:$0xff]
        %v600 = vld [vmem:[%s552 + $0x168] sm:$0xff]
        %v601 = vld [vmem:[%s552 + $0x170] sm:$0xff]
        %v602 = vld [vmem:[%s552 + $0x178] sm:$0xff]
        %v603 = vld [vmem:[%s552 + $0x180] sm:$0xff]
        %v604 = vld [vmem:[%s552 + $0x188] sm:$0xff]
        %v605 = vld [vmem:[%s552 + $0x190] sm:$0xff]
        %v606 = vld [vmem:[%s552 + $0x198] sm:$0xff]
        %v607 = vld [vmem:[%s552 + $0x1a0] sm:$0xff]
        %v608 = vld [vmem:[%s552 + $0x1a8] sm:$0xff]
        %v609 = vld [vmem:[%s552 + $0x1b0] sm:$0xff]
        %v610 = vld [vmem:[%s552 + $0x1b8] sm:$0xff]
        %v611 = vld [vmem:[%s552 + $0x1c0] sm:$0xff]
        %v612 = vld [vmem:[%s552 + $0x1c8] sm:$0xff]
        %v613 = vld [vmem:[%s552 + $0x1d0] sm:$0xff]
        %v614 = vld [vmem:[%s552 + $0x1d8] sm:$0xff]
        %v615 = vld [vmem:[%s552 + $0x1e0] sm:$0xff]
        %v616 = vld [vmem:[%s552 + $0x1e8] sm:$0xff]
        %v617 = vld [vmem:[%s552 + $0x1f0] sm:$0xff]
        %v618 = vld [vmem:[%s552 + $0x1f8] sm:$0xff]
        %v619 = vld [vmem:[%s552 + $0x200] sm:$0xff]
        %v620 = vld [vmem:[%s552 + $0x208] sm:$0xff]
        %v621 = vld [vmem:[%s552 + $0x210] sm:$0xff]
        %v622 = vld [vmem:[%s552 + $0x218] sm:$0xff]
        %v623 = vld [vmem:[%s552 + $0x220] sm:$0xff]
        %v624 = vld [vmem:[%s552 + $0x228] sm:$0xff]
        %v625 = vld [vmem:[%s552 + $0x230] sm:$0xff]
        %v626 = vld [vmem:[%s552 + $0x238] sm:$0xff]
        %v627 = vld [vmem:[%s552 + $0x240] sm:$0xff]
        %v628 = vld [vmem:[%s552 + $0x248] sm:$0xff]
        %v629 = vld [vmem:[%s552 + $0x250] sm:$0xff]
        %v630 = vld [vmem:[%s552 + $0x258] sm:$0xff]
        %v631 = vld [vmem:[%s552 + $0x260] sm:$0xff]
        %v632 = vld [vmem:[%s552 + $0x268] sm:$0xff]
        %v633 = vld [vmem:[%s552 + $0x270] sm:$0xff]
        %v634 = vld [vmem:[%s552 + $0x278] sm:$0xff]
        %v635 = vld [vmem:[%s552 + $0x280] sm:$0xff]
        %v636 = vld [vmem:[%s552 + $0x288] sm:$0xff]
        %v637 = vld [vmem:[%s552 + $0x290] sm:$0xff]
        %v638 = vld [vmem:[%s552 + $0x298] sm:$0xff]
        %v639 = vld [vmem:[%s552 + $0x2a0] sm:$0xff]
        %v640 = vld [vmem:[%s552 + $0x2a8] sm:$0xff]
        %v641 = vld [vmem:[%s552 + $0x2b0] sm:$0xff]
        %v642 = vld [vmem:[%s552 + $0x2b8] sm:$0xff]
        %v643 = vld [vmem:[%s552 + $0x2c0] sm:$0xff]
        %v644 = vld [vmem:[%s552 + $0x2c8] sm:$0xff]
        %v645 = vld [vmem:[%s552 + $0x2d0] sm:$0xff]
        %v646 = vld [vmem:[%s552 + $0x2d8] sm:$0xff]
        %v647 = vld [vmem:[%s552 + $0x2e0] sm:$0xff]
        %v648 = vld [vmem:[%s552 + $0x2e8] sm:$0xff]
        %v649 = vld [vmem:[%s552 + $0x2f0] sm:$0xff]
        %v650 = vld [vmem:[%s552 + $0x2f8] sm:$0xff]
        %v651 = vld [vmem:[%s2] sm:$0xf]
        %v652 = vld [vmem:[%s2 + $0x4] sm:$0xf]
        %v653 = vld [vmem:[%s2 + $0x8] sm:$0xf]
        %v654 = vld [vmem:[%s2 + $0xc] sm:$0xf]
        %v655 = vld [vmem:[%s2 + $0x10] sm:$0xf]
        %v656 = vld [vmem:[%s2 + $0x14] sm:$0xf]
        %v657 = vld [vmem:[%s2 + $0x18] sm:$0xf]
        %v658 = vld [vmem:[%s2 + $0x1c] sm:$0xf]
        %v659 = vld [vmem:[%s2 + $0x20] sm:$0xf]
        %v660 = vld [vmem:[%s2 + $0x24] sm:$0xf]
        %v661 = vld [vmem:[%s2 + $0x28] sm:$0xf]
        %v662 = vld [vmem:[%s2 + $0x2c] sm:$0xf]
        %v663 = vld [vmem:[%s2 + $0x30] sm:$0xf]
        %v664 = vld [vmem:[%s2 + $0x34] sm:$0xf]
        %v665 = vld [vmem:[%s2 + $0x38] sm:$0xf]
        %v666 = vld [vmem:[%s2 + $0x3c] sm:$0xf]
        %v667 = vld [vmem:[%s2 + $0x40] sm:$0xf]
        %v668 = vld [vmem:[%s2 + $0x44] sm:$0xf]
        %v669 = vld [vmem:[%s2 + $0x48] sm:$0xf]
        %v670 = vld [vmem:[%s2 + $0x4c] sm:$0xf]
        %v671 = vld [vmem:[%s2 + $0x50] sm:$0xf]
        %v672 = vld [vmem:[%s2 + $0x54] sm:$0xf]
        %v673 = vld [vmem:[%s2 + $0x58] sm:$0xf]
        %v674 = vld [vmem:[%s2 + $0x5c] sm:$0xf]
        %v675 = vld [vmem:[%s2 + $0x60] sm:$0xf]
        %v676 = vld [vmem:[%s2 + $0x64] sm:$0xf]
        %v677 = vld [vmem:[%s2 + $0x68] sm:$0xf]
        %v678 = vld [vmem:[%s2 + $0x6c] sm:$0xf]
        %v679 = vld [vmem:[%s2 + $0x70] sm:$0xf]
        %v680 = vld [vmem:[%s2 + $0x74] sm:$0xf]
        %v681 = vld [vmem:[%s2 + $0x78] sm:$0xf]
        %v682 = vld [vmem:[%s2 + $0x7c] sm:$0xf]
        %v683 = vld [vmem:[%s2 + $0x80] sm:$0xf]
        %v684 = vld [vmem:[%s2 + $0x84] sm:$0xf]
        %v685 = vld [vmem:[%s2 + $0x88] sm:$0xf]
        %v686 = vld [vmem:[%s2 + $0x8c] sm:$0xf]
        %v687 = vld [vmem:[%s2 + $0x90] sm:$0xf]
        %v688 = vld [vmem:[%s2 + $0x94] sm:$0xf]
        %v689 = vld [vmem:[%s2 + $0x98] sm:$0xf]
        %v690 = vld [vmem:[%s2 + $0x9c] sm:$0xf]
        %v691 = vld [vmem:[%s2 + $0xa0] sm:$0xf]
        %v692 = vld [vmem:[%s2 + $0xa4] sm:$0xf]
        %v693 = vld [vmem:[%s2 + $0xa8] sm:$0xf]
        %v694 = vld [vmem:[%s2 + $0xac] sm:$0xf]
        %v695 = vld [vmem:[%s2 + $0xb0] sm:$0xf]
        %v696 = vld [vmem:[%s2 + $0xb4] sm:$0xf]
        %v697 = vld [vmem:[%s2 + $0xb8] sm:$0xf]
        %v698 = vld [vmem:[%s2 + $0xbc] sm:$0xf]
        %v699 = vld [vmem:[%s2 + $0xc0] sm:$0xf]
        %v700 = vld [vmem:[%s2 + $0xc4] sm:$0xf]
        %v701 = vld [vmem:[%s2 + $0xc8] sm:$0xf]
        %v702 = vld [vmem:[%s2 + $0xcc] sm:$0xf]
        %v703 = vld [vmem:[%s2 + $0xd0] sm:$0xf]
        %v704 = vld [vmem:[%s2 + $0xd4] sm:$0xf]
        %v705 = vld [vmem:[%s2 + $0xd8] sm:$0xf]
        %v706 = vld [vmem:[%s2 + $0xdc] sm:$0xf]
        %v707 = vld [vmem:[%s2 + $0xe0] sm:$0xf]
        %v708 = vld [vmem:[%s2 + $0xe4] sm:$0xf]
        %v709 = vld [vmem:[%s2 + $0xe8] sm:$0xf]
        %v710 = vld [vmem:[%s2 + $0xec] sm:$0xf]
        %v711 = vld [vmem:[%s2 + $0xf0] sm:$0xf]
        %v712 = vld [vmem:[%s2 + $0xf4] sm:$0xf]
        %v713 = vld [vmem:[%s2 + $0xf8] sm:$0xf]
        %v714 = vld [vmem:[%s2 + $0xfc] sm:$0xf]
        %v715 = vld [vmem:[%s2 + $0x100] sm:$0xf]
        %v716 = vld [vmem:[%s2 + $0x104] sm:$0xf]
        %v717 = vld [vmem:[%s2 + $0x108] sm:$0xf]
        %v718 = vld [vmem:[%s2 + $0x10c] sm:$0xf]
        %v719 = vld [vmem:[%s2 + $0x110] sm:$0xf]
        %v720 = vld [vmem:[%s2 + $0x114] sm:$0xf]
        %v721 = vld [vmem:[%s2 + $0x118] sm:$0xf]
        %v722 = vld [vmem:[%s2 + $0x11c] sm:$0xf]
        %v723 = vld [vmem:[%s2 + $0x120] sm:$0xf]
        %v724 = vld [vmem:[%s2 + $0x124] sm:$0xf]
        %v725 = vld [vmem:[%s2 + $0x128] sm:$0xf]
        %v726 = vld [vmem:[%s2 + $0x12c] sm:$0xf]
        %v727 = vld [vmem:[%s2 + $0x130] sm:$0xf]
        %v728 = vld [vmem:[%s2 + $0x134] sm:$0xf]
        %v729 = vld [vmem:[%s2 + $0x138] sm:$0xf]
        %v730 = vld [vmem:[%s2 + $0x13c] sm:$0xf]
        %v731 = vld [vmem:[%s2 + $0x140] sm:$0xf]
        %v732 = vld [vmem:[%s2 + $0x144] sm:$0xf]
        %v733 = vld [vmem:[%s2 + $0x148] sm:$0xf]
        %v734 = vld [vmem:[%s2 + $0x14c] sm:$0xf]
        %v735 = vld [vmem:[%s2 + $0x150] sm:$0xf]
        %v736 = vld [vmem:[%s2 + $0x154] sm:$0xf]
        %v737 = vld [vmem:[%s2 + $0x158] sm:$0xf]
        %v738 = vld [vmem:[%s2 + $0x15c] sm:$0xf]
        %v739 = vld [vmem:[%s2 + $0x160] sm:$0xf]
        %v740 = vld [vmem:[%s2 + $0x164] sm:$0xf]
        %v741 = vld [vmem:[%s2 + $0x168] sm:$0xf]
        %v742 = vld [vmem:[%s2 + $0x16c] sm:$0xf]
        %v743 = vld [vmem:[%s2 + $0x170] sm:$0xf]
        %v744 = vld [vmem:[%s2 + $0x174] sm:$0xf]
        %v745 = vld [vmem:[%s2 + $0x178] sm:$0xf]
        %v746 = vld [vmem:[%s2 + $0x17c] sm:$0xf]
        %v747 = vld [vmem:[%s1] sm:$0xff]
        %v748 = vld [vmem:[%s1 + $0x8] sm:$0xff]
        %v749 = vld [vmem:[%s1 + $0x10] sm:$0xff]
        %v750 = vld [vmem:[%s1 + $0x18] sm:$0xff]
        %v751 = vld [vmem:[%s1 + $0x20] sm:$0xff]
        %v752 = vld [vmem:[%s1 + $0x28] sm:$0xff]
        %v753 = vld [vmem:[%s1 + $0x30] sm:$0xff]
        %v754 = vld [vmem:[%s1 + $0x38] sm:$0xff]
        %v755 = vld [vmem:[%s1 + $0x40] sm:$0xff]
        %v756 = vld [vmem:[%s1 + $0x48] sm:$0xff]
        %v757 = vld [vmem:[%s1 + $0x50] sm:$0xff]
        %v758 = vld [vmem:[%s1 + $0x58] sm:$0xff]
        %v759 = vld [vmem:[%s1 + $0x60] sm:$0xff]
        %v760 = vld [vmem:[%s1 + $0x68] sm:$0xff]
        %v761 = vld [vmem:[%s1 + $0x70] sm:$0xff]
        %v762 = vld [vmem:[%s1 + $0x78] sm:$0xff]
        %v763 = vld [vmem:[%s1 + $0x80] sm:$0xff]
        %v764 = vld [vmem:[%s1 + $0x88] sm:$0xff]
        %v765 = vld [vmem:[%s1 + $0x90] sm:$0xff]
        %v766 = vld [vmem:[%s1 + $0x98] sm:$0xff]
        %v767 = vld [vmem:[%s1 + $0xa0] sm:$0xff]
        %v768 = vld [vmem:[%s1 + $0xa8] sm:$0xff]
        %v769 = vld [vmem:[%s1 + $0xb0] sm:$0xff]
        %v770 = vld [vmem:[%s1 + $0xb8] sm:$0xff]
        %v771 = vld [vmem:[%s1 + $0xc0] sm:$0xff]
        %v772 = vld [vmem:[%s1 + $0xc8] sm:$0xff]
        %v773 = vld [vmem:[%s1 + $0xd0] sm:$0xff]
        %v774 = vld [vmem:[%s1 + $0xd8] sm:$0xff]
        %v775 = vld [vmem:[%s1 + $0xe0] sm:$0xff]
        %v776 = vld [vmem:[%s1 + $0xe8] sm:$0xff]
        %v777 = vld [vmem:[%s1 + $0xf0] sm:$0xff]
        %v778 = vld [vmem:[%s1 + $0xf8] sm:$0xff]
        %v875 = vunpack.c.l.b16 %v555
        %v876 = vunpack.c.h.b16 %v555
        %v877 = vunpack.c.l.b16 %v556
        %v878 = vunpack.c.h.b16 %v556
        %v879 = vunpack.c.l.b16 %v557
        %v880 = vunpack.c.h.b16 %v557
        %v881 = vunpack.c.l.b16 %v558
        %v882 = vunpack.c.h.b16 %v558
        %v883 = vunpack.c.l.b16 %v559
        %v884 = vunpack.c.h.b16 %v559
        %v885 = vunpack.c.l.b16 %v560
        %v886 = vunpack.c.h.b16 %v560
        %v887 = vunpack.c.l.b16 %v561
        %v888 = vunpack.c.h.b16 %v561
        %v889 = vunpack.c.l.b16 %v562
        %v890 = vunpack.c.h.b16 %v562
        %v891 = vunpack.c.l.b16 %v563
        %v892 = vunpack.c.h.b16 %v563
        %v893 = vunpack.c.l.b16 %v564
        %v894 = vunpack.c.h.b16 %v564
        %v895 = vunpack.c.l.b16 %v565
        %v896 = vunpack.c.h.b16 %v565
        %v897 = vunpack.c.l.b16 %v566
        %v898 = vunpack.c.h.b16 %v566
        %v899 = vunpack.c.l.b16 %v567
        %v900 = vunpack.c.h.b16 %v567
        %v901 = vunpack.c.l.b16 %v568
        %v902 = vunpack.c.h.b16 %v568
        %v903 = vunpack.c.l.b16 %v569
        %v904 = vunpack.c.h.b16 %v569
        %v905 = vunpack.c.l.b16 %v570
        %v906 = vunpack.c.h.b16 %v570
        %v907 = vunpack.c.l.b16 %v571
        %v908 = vunpack.c.h.b16 %v571
        %v909 = vunpack.c.l.b16 %v572
        %v910 = vunpack.c.h.b16 %v572
        %v911 = vunpack.c.l.b16 %v573
        %v912 = vunpack.c.h.b16 %v573
        %v913 = vunpack.c.l.b16 %v574
        %v914 = vunpack.c.h.b16 %v574
        %v915 = vunpack.c.l.b16 %v575
        %v916 = vunpack.c.h.b16 %v575
        %v917 = vunpack.c.l.b16 %v576
        %v918 = vunpack.c.h.b16 %v576
        %v919 = vunpack.c.l.b16 %v577
        %v920 = vunpack.c.h.b16 %v577
        %v921 = vunpack.c.l.b16 %v578
        %v922 = vunpack.c.h.b16 %v578
        %v923 = vunpack.c.l.b16 %v579
        %v924 = vunpack.c.h.b16 %v579
        %v925 = vunpack.c.l.b16 %v580
        %v926 = vunpack.c.h.b16 %v580
        %v927 = vunpack.c.l.b16 %v581
        %v928 = vunpack.c.h.b16 %v581
        %v929 = vunpack.c.l.b16 %v582
        %v930 = vunpack.c.h.b16 %v582
        %v931 = vunpack.c.l.b16 %v583
        %v932 = vunpack.c.h.b16 %v583
        %v933 = vunpack.c.l.b16 %v584
        %v934 = vunpack.c.h.b16 %v584
        %v935 = vunpack.c.l.b16 %v585
        %v936 = vunpack.c.h.b16 %v585
        %v937 = vunpack.c.l.b16 %v586
        %v938 = vunpack.c.h.b16 %v586
        %v939 = vunpack.c.l.b16 %v587
        %v940 = vunpack.c.h.b16 %v587
        %v941 = vunpack.c.l.b16 %v588
        %v942 = vunpack.c.h.b16 %v588
        %v943 = vunpack.c.l.b16 %v589
        %v944 = vunpack.c.h.b16 %v589
        %v945 = vunpack.c.l.b16 %v590
        %v946 = vunpack.c.h.b16 %v590
        %v947 = vunpack.c.l.b16 %v591
        %v948 = vunpack.c.h.b16 %v591
        %v949 = vunpack.c.l.b16 %v592
        %v950 = vunpack.c.h.b16 %v592
        %v951 = vunpack.c.l.b16 %v593
        %v952 = vunpack.c.h.b16 %v593
        %v953 = vunpack.c.l.b16 %v594
        %v954 = vunpack.c.h.b16 %v594
        %v955 = vunpack.c.l.b16 %v595
        %v956 = vunpack.c.h.b16 %v595
        %v957 = vunpack.c.l.b16 %v596
        %v958 = vunpack.c.h.b16 %v596
        %v959 = vunpack.c.l.b16 %v597
        %v960 = vunpack.c.h.b16 %v597
        %v961 = vunpack.c.l.b16 %v598
        %v962 = vunpack.c.h.b16 %v598
        %v963 = vunpack.c.l.b16 %v599
        %v964 = vunpack.c.h.b16 %v599
        %v965 = vunpack.c.l.b16 %v600
        %v966 = vunpack.c.h.b16 %v600
        %v967 = vunpack.c.l.b16 %v601
        %v968 = vunpack.c.h.b16 %v601
        %v969 = vunpack.c.l.b16 %v602
        %v970 = vunpack.c.h.b16 %v602
        %v971 = vunpack.c.l.b16 %v603
        %v972 = vunpack.c.h.b16 %v603
        %v973 = vunpack.c.l.b16 %v604
        %v974 = vunpack.c.h.b16 %v604
        %v975 = vunpack.c.l.b16 %v605
        %v976 = vunpack.c.h.b16 %v605
        %v977 = vunpack.c.l.b16 %v606
        %v978 = vunpack.c.h.b16 %v606
        %v979 = vunpack.c.l.b16 %v607
        %v980 = vunpack.c.h.b16 %v607
        %v981 = vunpack.c.l.b16 %v608
        %v982 = vunpack.c.h.b16 %v608
        %v983 = vunpack.c.l.b16 %v609
        %v984 = vunpack.c.h.b16 %v609
        %v985 = vunpack.c.l.b16 %v610
        %v986 = vunpack.c.h.b16 %v610
        %v987 = vunpack.c.l.b16 %v611
        %v988 = vunpack.c.h.b16 %v611
        %v989 = vunpack.c.l.b16 %v612
        %v990 = vunpack.c.h.b16 %v612
        %v991 = vunpack.c.l.b16 %v613
        %v992 = vunpack.c.h.b16 %v613
        %v993 = vunpack.c.l.b16 %v614
        %v994 = vunpack.c.h.b16 %v614
        %v995 = vunpack.c.l.b16 %v615
        %v996 = vunpack.c.h.b16 %v615
        %v997 = vunpack.c.l.b16 %v616
        %v998 = vunpack.c.h.b16 %v616
        %v999 = vunpack.c.l.b16 %v617
        %v1000 = vunpack.c.h.b16 %v617
        %v1001 = vunpack.c.l.b16 %v618
        %v1002 = vunpack.c.h.b16 %v618
        %v1003 = vunpack.c.l.b16 %v619
        %v1004 = vunpack.c.h.b16 %v619
        %v1005 = vunpack.c.l.b16 %v620
        %v1006 = vunpack.c.h.b16 %v620
        %v1007 = vunpack.c.l.b16 %v621
        %v1008 = vunpack.c.h.b16 %v621
        %v1009 = vunpack.c.l.b16 %v622
        %v1010 = vunpack.c.h.b16 %v622
        %v1011 = vunpack.c.l.b16 %v623
        %v1012 = vunpack.c.h.b16 %v623
        %v1013 = vunpack.c.l.b16 %v624
        %v1014 = vunpack.c.h.b16 %v624
        %v1015 = vunpack.c.l.b16 %v625
        %v1016 = vunpack.c.h.b16 %v625
        %v1017 = vunpack.c.l.b16 %v626
        %v1018 = vunpack.c.h.b16 %v626
        %v1019 = vunpack.c.l.b16 %v627
        %v1020 = vunpack.c.h.b16 %v627
        %v1021 = vunpack.c.l.b16 %v628
        %v1022 = vunpack.c.h.b16 %v628
        %v1023 = vunpack.c.l.b16 %v629
        %v1024 = vunpack.c.h.b16 %v629
        %v1025 = vunpack.c.l.b16 %v630
        %v1026 = vunpack.c.h.b16 %v630
        %v1027 = vunpack.c.l.b16 %v631
        %v1028 = vunpack.c.h.b16 %v631
        %v1029 = vunpack.c.l.b16 %v632
        %v1030 = vunpack.c.h.b16 %v632
        %v1031 = vunpack.c.l.b16 %v633
        %v1032 = vunpack.c.h.b16 %v633
        %v1033 = vunpack.c.l.b16 %v634
        %v1034 = vunpack.c.h.b16 %v634
        %v1035 = vunpack.c.l.b16 %v635
        %v1036 = vunpack.c.h.b16 %v635
        %v1037 = vunpack.c.l.b16 %v636
        %v1038 = vunpack.c.h.b16 %v636
        %v1039 = vunpack.c.l.b16 %v637
        %v1040 = vunpack.c.h.b16 %v637
        %v1041 = vunpack.c.l.b16 %v638
        %v1042 = vunpack.c.h.b16 %v638
        %v1043 = vunpack.c.l.b16 %v639
        %v1044 = vunpack.c.h.b16 %v639
        %v1045 = vunpack.c.l.b16 %v640
        %v1046 = vunpack.c.h.b16 %v640
        %v1047 = vunpack.c.l.b16 %v641
        %v1048 = vunpack.c.h.b16 %v641
        %v1049 = vunpack.c.l.b16 %v642
        %v1050 = vunpack.c.h.b16 %v642
        %v1051 = vunpack.c.l.b16 %v643
        %v1052 = vunpack.c.h.b16 %v643
        %v1053 = vunpack.c.l.b16 %v644
        %v1054 = vunpack.c.h.b16 %v644
        %v1055 = vunpack.c.l.b16 %v645
        %v1056 = vunpack.c.h.b16 %v645
        %v1057 = vunpack.c.l.b16 %v646
        %v1058 = vunpack.c.h.b16 %v646
        %v1059 = vunpack.c.l.b16 %v647
        %v1060 = vunpack.c.h.b16 %v647
        %v1061 = vunpack.c.l.b16 %v648
        %v1062 = vunpack.c.h.b16 %v648
        %v1063 = vunpack.c.l.b16 %v649
        %v1064 = vunpack.c.h.b16 %v649
        %v1065 = vunpack.c.l.b16 %v650
        %v1066 = vunpack.c.h.b16 %v650
        %v1067 = vpack.c.b16 %v881, %v875
        %v1068 = vpack.c.b16 %v882, %v876
        %v1069 = vpack.c.b16 %v883, %v877
        %v1070 = vpack.c.b16 %v884, %v878
        %v1071 = vpack.c.b16 %v885, %v879
        %v1072 = vpack.c.b16 %v886, %v880
        %v1073 = vpack.c.b16 %v893, %v887
        %v1074 = vpack.c.b16 %v894, %v888
        %v1075 = vpack.c.b16 %v895, %v889
        %v1076 = vpack.c.b16 %v896, %v890
        %v1077 = vpack.c.b16 %v897, %v891
        %v1078 = vpack.c.b16 %v898, %v892
        %v1079 = vpack.c.b16 %v905, %v899
        %v1080 = vpack.c.b16 %v906, %v900
        %v1081 = vpack.c.b16 %v907, %v901
        %v1082 = vpack.c.b16 %v908, %v902
        %v1083 = vpack.c.b16 %v909, %v903
        %v1084 = vpack.c.b16 %v910, %v904
        %v1085 = vpack.c.b16 %v917, %v911
        %v1086 = vpack.c.b16 %v918, %v912
        %v1087 = vpack.c.b16 %v919, %v913
        %v1088 = vpack.c.b16 %v920, %v914
        %v1089 = vpack.c.b16 %v921, %v915
        %v1090 = vpack.c.b16 %v922, %v916
        %v1091 = vpack.c.b16 %v929, %v923
        %v1092 = vpack.c.b16 %v930, %v924
        %v1093 = vpack.c.b16 %v931, %v925
        %v1094 = vpack.c.b16 %v932, %v926
        %v1095 = vpack.c.b16 %v933, %v927
        %v1096 = vpack.c.b16 %v934, %v928
        %v1097 = vpack.c.b16 %v941, %v935
        %v1098 = vpack.c.b16 %v942, %v936
        %v1099 = vpack.c.b16 %v943, %v937
        %v1100 = vpack.c.b16 %v944, %v938
        %v1101 = vpack.c.b16 %v945, %v939
        %v1102 = vpack.c.b16 %v946, %v940
        %v1103 = vpack.c.b16 %v953, %v947
        %v1104 = vpack.c.b16 %v954, %v948
        %v1105 = vpack.c.b16 %v955, %v949
        %v1106 = vpack.c.b16 %v956, %v950
        %v1107 = vpack.c.b16 %v957, %v951
        %v1108 = vpack.c.b16 %v958, %v952
        %v1109 = vpack.c.b16 %v965, %v959
        %v1110 = vpack.c.b16 %v966, %v960
        %v1111 = vpack.c.b16 %v967, %v961
        %v1112 = vpack.c.b16 %v968, %v962
        %v1113 = vpack.c.b16 %v969, %v963
        %v1114 = vpack.c.b16 %v970, %v964
        %v1115 = vpack.c.b16 %v977, %v971
        %v1116 = vpack.c.b16 %v978, %v972
        %v1117 = vpack.c.b16 %v979, %v973
        %v1118 = vpack.c.b16 %v980, %v974
        %v1119 = vpack.c.b16 %v981, %v975
        %v1120 = vpack.c.b16 %v982, %v976
        %v1121 = vpack.c.b16 %v989, %v983
        %v1122 = vpack.c.b16 %v990, %v984
        %v1123 = vpack.c.b16 %v991, %v985
        %v1124 = vpack.c.b16 %v992, %v986
        %v1125 = vpack.c.b16 %v993, %v987
        %v1126 = vpack.c.b16 %v994, %v988
        %v1127 = vpack.c.b16 %v1001, %v995
        %v1128 = vpack.c.b16 %v1002, %v996
        %v1129 = vpack.c.b16 %v1003, %v997
        %v1130 = vpack.c.b16 %v1004, %v998
        %v1131 = vpack.c.b16 %v1005, %v999
        %v1132 = vpack.c.b16 %v1006, %v1000
        %v1133 = vpack.c.b16 %v1013, %v1007
        %v1134 = vpack.c.b16 %v1014, %v1008
        %v1135 = vpack.c.b16 %v1015, %v1009
        %v1136 = vpack.c.b16 %v1016, %v1010
        %v1137 = vpack.c.b16 %v1017, %v1011
        %v1138 = vpack.c.b16 %v1018, %v1012
        %v1139 = vpack.c.b16 %v1025, %v1019
        %v1140 = vpack.c.b16 %v1026, %v1020
        %v1141 = vpack.c.b16 %v1027, %v1021
        %v1142 = vpack.c.b16 %v1028, %v1022
        %v1143 = vpack.c.b16 %v1029, %v1023
        %v1144 = vpack.c.b16 %v1030, %v1024
        %v1145 = vpack.c.b16 %v1037, %v1031
        %v1146 = vpack.c.b16 %v1038, %v1032
        %v1147 = vpack.c.b16 %v1039, %v1033
        %v1148 = vpack.c.b16 %v1040, %v1034
        %v1149 = vpack.c.b16 %v1041, %v1035
        %v1150 = vpack.c.b16 %v1042, %v1036
        %v1151 = vpack.c.b16 %v1049, %v1043
        %v1152 = vpack.c.b16 %v1050, %v1044
        %v1153 = vpack.c.b16 %v1051, %v1045
        %v1154 = vpack.c.b16 %v1052, %v1046
        %v1155 = vpack.c.b16 %v1053, %v1047
        %v1156 = vpack.c.b16 %v1054, %v1048
        %v1157 = vpack.c.b16 %v1061, %v1055
        %v1158 = vpack.c.b16 %v1062, %v1056
        %v1159 = vpack.c.b16 %v1063, %v1057
        %v1160 = vpack.c.b16 %v1064, %v1058
        %v1161 = vpack.c.b16 %v1065, %v1059
        %v1162 = vpack.c.b16 %v1066, %v1060
        %v1355 = vunpack.c.l.b16 %v651
        %v1356 = vunpack.c.l.b16 %v652
        %v1357 = vunpack.c.l.b16 %v653
        %v1358 = vunpack.c.l.b16 %v654
        %v1359 = vunpack.c.l.b16 %v655
        %v1360 = vunpack.c.l.b16 %v656
        %v1361 = vunpack.c.l.b16 %v657
        %v1362 = vunpack.c.l.b16 %v658
        %v1363 = vunpack.c.l.b16 %v659
        %v1364 = vunpack.c.l.b16 %v660
        %v1365 = vunpack.c.l.b16 %v661
        %v1366 = vunpack.c.l.b16 %v662
        %v1367 = vunpack.c.l.b16 %v663
        %v1368 = vunpack.c.l.b16 %v664
        %v1369 = vunpack.c.l.b16 %v665
        %v1370 = vunpack.c.l.b16 %v666
        %v1371 = vunpack.c.l.b16 %v667
        %v1372 = vunpack.c.l.b16 %v668
        %v1373 = vunpack.c.l.b16 %v669
        %v1374 = vunpack.c.l.b16 %v670
        %v1375 = vunpack.c.l.b16 %v671
        %v1376 = vunpack.c.l.b16 %v672
        %v1377 = vunpack.c.l.b16 %v673
        %v1378 = vunpack.c.l.b16 %v674
        %v1379 = vunpack.c.l.b16 %v675
        %v1380 = vunpack.c.l.b16 %v676
        %v1381 = vunpack.c.l.b16 %v677
        %v1382 = vunpack.c.l.b16 %v678
        %v1383 = vunpack.c.l.b16 %v679
        %v1384 = vunpack.c.l.b16 %v680
        %v1385 = vunpack.c.l.b16 %v681
        %v1386 = vunpack.c.l.b16 %v682
        %v1387 = vunpack.c.l.b16 %v683
        %v1388 = vunpack.c.l.b16 %v684
        %v1389 = vunpack.c.l.b16 %v685
        %v1390 = vunpack.c.l.b16 %v686
        %v1391 = vunpack.c.l.b16 %v687
        %v1392 = vunpack.c.l.b16 %v688
        %v1393 = vunpack.c.l.b16 %v689
        %v1394 = vunpack.c.l.b16 %v690
        %v1395 = vunpack.c.l.b16 %v691
        %v1396 = vunpack.c.l.b16 %v692
        %v1397 = vunpack.c.l.b16 %v693
        %v1398 = vunpack.c.l.b16 %v694
        %v1399 = vunpack.c.l.b16 %v695
        %v1400 = vunpack.c.l.b16 %v696
        %v1401 = vunpack.c.l.b16 %v697
        %v1402 = vunpack.c.l.b16 %v698
        %v1403 = vunpack.c.l.b16 %v699
        %v1404 = vunpack.c.l.b16 %v700
        %v1405 = vunpack.c.l.b16 %v701
        %v1406 = vunpack.c.l.b16 %v702
        %v1407 = vunpack.c.l.b16 %v703
        %v1408 = vunpack.c.l.b16 %v704
        %v1409 = vunpack.c.l.b16 %v705
        %v1410 = vunpack.c.l.b16 %v706
        %v1411 = vunpack.c.l.b16 %v707
        %v1412 = vunpack.c.l.b16 %v708
        %v1413 = vunpack.c.l.b16 %v709
        %v1414 = vunpack.c.l.b16 %v710
        %v1415 = vunpack.c.l.b16 %v711
        %v1416 = vunpack.c.l.b16 %v712
        %v1417 = vunpack.c.l.b16 %v713
        %v1418 = vunpack.c.l.b16 %v714
        %v1419 = vunpack.c.l.b16 %v715
        %v1420 = vunpack.c.l.b16 %v716
        %v1421 = vunpack.c.l.b16 %v717
        %v1422 = vunpack.c.l.b16 %v718
        %v1423 = vunpack.c.l.b16 %v719
        %v1424 = vunpack.c.l.b16 %v720
        %v1425 = vunpack.c.l.b16 %v721
        %v1426 = vunpack.c.l.b16 %v722
        %v1427 = vunpack.c.l.b16 %v723
        %v1428 = vunpack.c.l.b16 %v724
        %v1429 = vunpack.c.l.b16 %v725
        %v1430 = vunpack.c.l.b16 %v726
        %v1431 = vunpack.c.l.b16 %v727
        %v1432 = vunpack.c.l.b16 %v728
        %v1433 = vunpack.c.l.b16 %v729
        %v1434 = vunpack.c.l.b16 %v730
        %v1435 = vunpack.c.l.b16 %v731
        %v1436 = vunpack.c.l.b16 %v732
        %v1437 = vunpack.c.l.b16 %v733
        %v1438 = vunpack.c.l.b16 %v734
        %v1439 = vunpack.c.l.b16 %v735
        %v1440 = vunpack.c.l.b16 %v736
        %v1441 = vunpack.c.l.b16 %v737
        %v1442 = vunpack.c.l.b16 %v738
        %v1443 = vunpack.c.l.b16 %v739
        %v1444 = vunpack.c.l.b16 %v740
        %v1445 = vunpack.c.l.b16 %v741
        %v1446 = vunpack.c.l.b16 %v742
        %v1447 = vunpack.c.l.b16 %v743
        %v1448 = vunpack.c.l.b16 %v744
        %v1449 = vunpack.c.l.b16 %v745
        %v1450 = vunpack.c.l.b16 %v746
        %v1451 = vpack.c.b16 %v1356, %v1355
        %v1452 = vpack.c.b16 %v1358, %v1357
        %v1453 = vpack.c.b16 %v1360, %v1359
        %v1454 = vpack.c.b16 %v1362, %v1361
        %v1455 = vpack.c.b16 %v1364, %v1363
        %v1456 = vpack.c.b16 %v1366, %v1365
        %v1457 = vpack.c.b16 %v1368, %v1367
        %v1458 = vpack.c.b16 %v1370, %v1369
        %v1459 = vpack.c.b16 %v1372, %v1371
        %v1460 = vpack.c.b16 %v1374, %v1373
        %v1461 = vpack.c.b16 %v1376, %v1375
        %v1462 = vpack.c.b16 %v1378, %v1377
        %v1463 = vpack.c.b16 %v1380, %v1379
        %v1464 = vpack.c.b16 %v1382, %v1381
        %v1465 = vpack.c.b16 %v1384, %v1383
        %v1466 = vpack.c.b16 %v1386, %v1385
        %v1467 = vpack.c.b16 %v1388, %v1387
        %v1468 = vpack.c.b16 %v1390, %v1389
        %v1469 = vpack.c.b16 %v1392, %v1391
        %v1470 = vpack.c.b16 %v1394, %v1393
        %v1471 = vpack.c.b16 %v1396, %v1395
        %v1472 = vpack.c.b16 %v1398, %v1397
        %v1473 = vpack.c.b16 %v1400, %v1399
        %v1474 = vpack.c.b16 %v1402, %v1401
        %v1475 = vpack.c.b16 %v1404, %v1403
        %v1476 = vpack.c.b16 %v1406, %v1405
        %v1477 = vpack.c.b16 %v1408, %v1407
        %v1478 = vpack.c.b16 %v1410, %v1409
        %v1479 = vpack.c.b16 %v1412, %v1411
        %v1480 = vpack.c.b16 %v1414, %v1413
        %v1481 = vpack.c.b16 %v1416, %v1415
        %v1482 = vpack.c.b16 %v1418, %v1417
        %v1483 = vpack.c.b16 %v1420, %v1419
        %v1484 = vpack.c.b16 %v1422, %v1421
        %v1485 = vpack.c.b16 %v1424, %v1423
        %v1486 = vpack.c.b16 %v1426, %v1425
        %v1487 = vpack.c.b16 %v1428, %v1427
        %v1488 = vpack.c.b16 %v1430, %v1429
        %v1489 = vpack.c.b16 %v1432, %v1431
        %v1490 = vpack.c.b16 %v1434, %v1433
        %v1491 = vpack.c.b16 %v1436, %v1435
        %v1492 = vpack.c.b16 %v1438, %v1437
        %v1493 = vpack.c.b16 %v1440, %v1439
        %v1494 = vpack.c.b16 %v1442, %v1441
        %v1495 = vpack.c.b16 %v1444, %v1443
        %v1496 = vpack.c.b16 %v1446, %v1445
        %v1497 = vpack.c.b16 %v1448, %v1447
        %v1498 = vpack.c.b16 %v1450, %v1449
        %1547 = vmatprep.subr.bf16.mxu0 0
        %1548 = vmatpush1.bf16.msra.mxu0 %v1458
        %1549 = vmatprep.subr.bf16.mxu0 0
        %1550 = vmatpush1.bf16.msra.mxu0 %v1457
        %1551 = vmatprep.subr.bf16.mxu0 0
        %1552 = vmatpush1.bf16.msra.mxu0 %v1456
        %1553 = vmatprep.subr.bf16.mxu0 0
        %1554 = vmatpush1.bf16.msra.mxu0 %v1455
        %1555 = vmatprep.subr.bf16.mxu0 0
        %1556 = vmatpush1.bf16.msra.mxu0 %v1454
        %1557 = vmatprep.subr.bf16.mxu0 0
        %1558 = vmatpush1.bf16.msra.mxu0 %v1453
        %1559 = vmatprep.subr.bf16.mxu0 0
        %1560 = vmatpush1.bf16.msra.mxu0 %v1452
        %1561 = vmatprep.subr.bf16.mxu0 0
        %1562 = vmatpush1.bf16.msra.mxu0 %v1451
        %1563 = vmatprep.subr.bf16.mxu0 0
        %1564 = vmatpush2.bf16.msra.mxu0 %v1466
        %1565 = vmatprep.subr.bf16.mxu0 0
        %1566 = vmatpush2.bf16.msra.mxu0 %v1465
        %1567 = vmatprep.subr.bf16.mxu0 0
        %1568 = vmatpush2.bf16.msra.mxu0 %v1464
        %1569 = vmatprep.subr.bf16.mxu0 0
        %1570 = vmatpush2.bf16.msra.mxu0 %v1463
        %1571 = vmatprep.subr.bf16.mxu0 0
        %1572 = vmatpush2.bf16.msra.mxu0 %v1462
        %1573 = vmatprep.subr.bf16.mxu0 0
        %1574 = vmatpush2.bf16.msra.mxu0 %v1461
        %1575 = vmatprep.subr.bf16.mxu0 0
        %1576 = vmatpush2.bf16.msra.mxu0 %v1460
        %1577 = vmatprep.subr.bf16.mxu0 0
        %1578 = vmatpush2.bf16.msra.mxu0 %v1459
        %1579 = vmatprep.mubr.bf16.mxu0 %v1068
        %1580 = vmatmul.mubr.bf16.gmra.mxu0 %v1067
        %v1581 = vpop.f32.mrf.mxu0
        %v1582 = vadd.f32 %v747, %v1581
        %v1583 = vpop.f32.mrf.mxu0
        %v1584 = vpop.f32.mrf.mxu0
        %v1585 = vadd.f32 %v748, %v1584
        %v1586 = vpop.f32.mrf.mxu0
        %1587 = vmatprep.mubr.bf16.mxu0 %v1074
        %1588 = vmatmul.mubr.bf16.gmra.mxu0 %v1073
        %v1589 = vpop.f32.mrf.mxu0
        %v1590 = vadd.f32 %v749, %v1589
        %v1591 = vpop.f32.mrf.mxu0
        %v1592 = vpop.f32.mrf.mxu0
        %v1593 = vadd.f32 %v750, %v1592
        %v1594 = vpop.f32.mrf.mxu0
        %1595 = vmatprep.mubr.bf16.mxu0 %v1080
        %1596 = vmatmul.mubr.bf16.gmra.mxu0 %v1079
        %v1597 = vpop.f32.mrf.mxu0
        %v1598 = vadd.f32 %v751, %v1597
        %v1599 = vpop.f32.mrf.mxu0
        %v1600 = vpop.f32.mrf.mxu0
        %v1601 = vadd.f32 %v752, %v1600
        %v1602 = vpop.f32.mrf.mxu0
        %1603 = vmatprep.mubr.bf16.mxu0 %v1086
        %1604 = vmatmul.mubr.bf16.gmra.mxu0 %v1085
        %v1605 = vpop.f32.mrf.mxu0
        %v1606 = vadd.f32 %v753, %v1605
        %v1607 = vpop.f32.mrf.mxu0
        %v1608 = vpop.f32.mrf.mxu0
        %v1609 = vadd.f32 %v754, %v1608
        %v1610 = vpop.f32.mrf.mxu0
        %1611 = vmatprep.mubr.bf16.mxu0 %v1092
        %1612 = vmatmul.mubr.bf16.gmra.mxu0 %v1091
        %v1613 = vpop.f32.mrf.mxu0
        %v1614 = vadd.f32 %v755, %v1613
        %v1615 = vpop.f32.mrf.mxu0
        %v1616 = vpop.f32.mrf.mxu0
        %v1617 = vadd.f32 %v756, %v1616
        %v1618 = vpop.f32.mrf.mxu0
        %1619 = vmatprep.mubr.bf16.mxu0 %v1098
        %1620 = vmatmul.mubr.bf16.gmra.mxu0 %v1097
        %v1621 = vpop.f32.mrf.mxu0
        %v1622 = vadd.f32 %v757, %v1621
        %v1623 = vpop.f32.mrf.mxu0
        %v1624 = vpop.f32.mrf.mxu0
        %v1625 = vadd.f32 %v758, %v1624
        %v1626 = vpop.f32.mrf.mxu0
        %1627 = vmatprep.mubr.bf16.mxu0 %v1104
        %1628 = vmatmul.mubr.bf16.gmra.mxu0 %v1103
        %v1629 = vpop.f32.mrf.mxu0
        %v1630 = vadd.f32 %v759, %v1629
        %v1631 = vpop.f32.mrf.mxu0
        %v1632 = vpop.f32.mrf.mxu0
        %v1633 = vadd.f32 %v760, %v1632
        %v1634 = vpop.f32.mrf.mxu0
        %1635 = vmatprep.mubr.bf16.mxu0 %v1110
        %1636 = vmatmul.mubr.bf16.gmra.mxu0 %v1109
        %v1637 = vpop.f32.mrf.mxu0
        %v1638 = vadd.f32 %v761, %v1637
        %v1639 = vpop.f32.mrf.mxu0
        %v1640 = vpop.f32.mrf.mxu0
        %v1641 = vadd.f32 %v762, %v1640
        %v1642 = vpop.f32.mrf.mxu0
        %1643 = vmatprep.mubr.bf16.mxu0 %v1116
        %1644 = vmatmul.mubr.bf16.gmra.mxu0 %v1115
        %v1645 = vpop.f32.mrf.mxu0
        %v1646 = vadd.f32 %v763, %v1645
        %v1647 = vpop.f32.mrf.mxu0
        %v1648 = vpop.f32.mrf.mxu0
        %v1649 = vadd.f32 %v764, %v1648
        %v1650 = vpop.f32.mrf.mxu0
        %1651 = vmatprep.mubr.bf16.mxu0 %v1122
        %1652 = vmatmul.mubr.bf16.gmra.mxu0 %v1121
        %v1653 = vpop.f32.mrf.mxu0
        %v1654 = vadd.f32 %v765, %v1653
        %v1655 = vpop.f32.mrf.mxu0
        %v1656 = vpop.f32.mrf.mxu0
        %v1657 = vadd.f32 %v766, %v1656
        %v1658 = vpop.f32.mrf.mxu0
        %1659 = vmatprep.mubr.bf16.mxu0 %v1128
        %1660 = vmatmul.mubr.bf16.gmra.mxu0 %v1127
        %v1661 = vpop.f32.mrf.mxu0
        %v1662 = vadd.f32 %v767, %v1661
        %v1663 = vpop.f32.mrf.mxu0
        %v1664 = vpop.f32.mrf.mxu0
        %v1665 = vadd.f32 %v768, %v1664
        %v1666 = vpop.f32.mrf.mxu0
        %1667 = vmatprep.mubr.bf16.mxu0 %v1134
        %1668 = vmatmul.mubr.bf16.gmra.mxu0 %v1133
        %v1669 = vpop.f32.mrf.mxu0
        %v1670 = vadd.f32 %v769, %v1669
        %v1671 = vpop.f32.mrf.mxu0
        %v1672 = vpop.f32.mrf.mxu0
        %v1673 = vadd.f32 %v770, %v1672
        %v1674 = vpop.f32.mrf.mxu0
        %1675 = vmatprep.mubr.bf16.mxu0 %v1140
        %1676 = vmatmul.mubr.bf16.gmra.mxu0 %v1139
        %v1677 = vpop.f32.mrf.mxu0
        %v1678 = vadd.f32 %v771, %v1677
        %v1679 = vpop.f32.mrf.mxu0
        %v1680 = vpop.f32.mrf.mxu0
        %v1681 = vadd.f32 %v772, %v1680
        %v1682 = vpop.f32.mrf.mxu0
        %1683 = vmatprep.mubr.bf16.mxu0 %v1146
        %1684 = vmatmul.mubr.bf16.gmra.mxu0 %v1145
        %v1685 = vpop.f32.mrf.mxu0
        %v1686 = vadd.f32 %v773, %v1685
        %v1687 = vpop.f32.mrf.mxu0
        %v1688 = vpop.f32.mrf.mxu0
        %v1689 = vadd.f32 %v774, %v1688
        %v1690 = vpop.f32.mrf.mxu0
        %1691 = vmatprep.mubr.bf16.mxu0 %v1152
        %1692 = vmatmul.mubr.bf16.gmra.mxu0 %v1151
        %v1693 = vpop.f32.mrf.mxu0
        %v1694 = vadd.f32 %v775, %v1693
        %v1695 = vpop.f32.mrf.mxu0
        %v1696 = vpop.f32.mrf.mxu0
        %v1697 = vadd.f32 %v776, %v1696
        %v1698 = vpop.f32.mrf.mxu0
        %1699 = vmatprep.mubr.bf16.mxu0 %v1158
        %1700 = vmatmul.mubr.bf16.gmra.mxu0 %v1157
        %v1701 = vpop.f32.mrf.mxu0
        %v1702 = vadd.f32 %v777, %v1701
        %v1703 = vpop.f32.mrf.mxu0
        %v1704 = vpop.f32.mrf.mxu0
        %v1705 = vadd.f32 %v778, %v1704
        %v1706 = vpop.f32.mrf.mxu0
        %1707 = vdwg.mxu0
        %1708 = vmatprep.subr.bf16.mxu0 0
        %1709 = vmatpush1.bf16.msra.mxu0 %v1474
        %1710 = vmatprep.subr.bf16.mxu0 0
        %1711 = vmatpush1.bf16.msra.mxu0 %v1473
        %1712 = vmatprep.subr.bf16.mxu0 0
        %1713 = vmatpush1.bf16.msra.mxu0 %v1472
        %1714 = vmatprep.subr.bf16.mxu0 0
        %1715 = vmatpush1.bf16.msra.mxu0 %v1471
        %1716 = vmatprep.subr.bf16.mxu0 0
        %1717 = vmatpush1.bf16.msra.mxu0 %v1470
        %1718 = vmatprep.subr.bf16.mxu0 0
        %1719 = vmatpush1.bf16.msra.mxu0 %v1469
        %1720 = vmatprep.subr.bf16.mxu0 0
        %1721 = vmatpush1.bf16.msra.mxu0 %v1468
        %1722 = vmatprep.subr.bf16.mxu0 0
        %1723 = vmatpush1.bf16.msra.mxu0 %v1467
        %1724 = vmatprep.subr.bf16.mxu0 0
        %1725 = vmatpush2.bf16.msra.mxu0 %v1482
        %1726 = vmatprep.subr.bf16.mxu0 0
        %1727 = vmatpush2.bf16.msra.mxu0 %v1481
        %1728 = vmatprep.subr.bf16.mxu0 0
        %1729 = vmatpush2.bf16.msra.mxu0 %v1480
        %1730 = vmatprep.subr.bf16.mxu0 0
        %1731 = vmatpush2.bf16.msra.mxu0 %v1479
        %1732 = vmatprep.subr.bf16.mxu0 0
        %1733 = vmatpush2.bf16.msra.mxu0 %v1478
        %1734 = vmatprep.subr.bf16.mxu0 0
        %1735 = vmatpush2.bf16.msra.mxu0 %v1477
        %1736 = vmatprep.subr.bf16.mxu0 0
        %1737 = vmatpush2.bf16.msra.mxu0 %v1476
        %1738 = vmatprep.subr.bf16.mxu0 0
        %1739 = vmatpush2.bf16.msra.mxu0 %v1475
        %1740 = vmatprep.mubr.bf16.mxu0 %v1070
        %1741 = vmatmul.mubr.bf16.gmra.mxu0 %v1069
        %v1742 = vpop.f32.mrf.mxu0
        %v1743 = vadd.f32 %v1582, %v1742
        %v1744 = vpop.f32.mrf.mxu0
        %v1745 = vpop.f32.mrf.mxu0
        %v1746 = vadd.f32 %v1585, %v1745
        %v1747 = vpop.f32.mrf.mxu0
        %1748 = vmatprep.mubr.bf16.mxu0 %v1076
        %1749 = vmatmul.mubr.bf16.gmra.mxu0 %v1075
        %v1750 = vpop.f32.mrf.mxu0
        %v1751 = vadd.f32 %v1590, %v1750
        %v1752 = vpop.f32.mrf.mxu0
        %v1753 = vpop.f32.mrf.mxu0
        %v1754 = vadd.f32 %v1593, %v1753
        %v1755 = vpop.f32.mrf.mxu0
        %1756 = vmatprep.mubr.bf16.mxu0 %v1082
        %1757 = vmatmul.mubr.bf16.gmra.mxu0 %v1081
        %v1758 = vpop.f32.mrf.mxu0
        %v1759 = vadd.f32 %v1598, %v1758
        %v1760 = vpop.f32.mrf.mxu0
        %v1761 = vpop.f32.mrf.mxu0
        %v1762 = vadd.f32 %v1601, %v1761
        %v1763 = vpop.f32.mrf.mxu0
        %1764 = vmatprep.mubr.bf16.mxu0 %v1088
        %1765 = vmatmul.mubr.bf16.gmra.mxu0 %v1087
        %v1766 = vpop.f32.mrf.mxu0
        %v1767 = vadd.f32 %v1606, %v1766
        %v1768 = vpop.f32.mrf.mxu0
        %v1769 = vpop.f32.mrf.mxu0
        %v1770 = vadd.f32 %v1609, %v1769
        %v1771 = vpop.f32.mrf.mxu0
        %1772 = vmatprep.mubr.bf16.mxu0 %v1094
        %1773 = vmatmul.mubr.bf16.gmra.mxu0 %v1093
        %v1774 = vpop.f32.mrf.mxu0
        %v1775 = vadd.f32 %v1614, %v1774
        %v1776 = vpop.f32.mrf.mxu0
        %v1777 = vpop.f32.mrf.mxu0
        %v1778 = vadd.f32 %v1617, %v1777
        %v1779 = vpop.f32.mrf.mxu0
        %1780 = vmatprep.mubr.bf16.mxu0 %v1100
        %1781 = vmatmul.mubr.bf16.gmra.mxu0 %v1099
        %v1782 = vpop.f32.mrf.mxu0
        %v1783 = vadd.f32 %v1622, %v1782
        %v1784 = vpop.f32.mrf.mxu0
        %v1785 = vpop.f32.mrf.mxu0
        %v1786 = vadd.f32 %v1625, %v1785
        %v1787 = vpop.f32.mrf.mxu0
        %1788 = vmatprep.mubr.bf16.mxu0 %v1106
        %1789 = vmatmul.mubr.bf16.gmra.mxu0 %v1105
        %v1790 = vpop.f32.mrf.mxu0
        %v1791 = vadd.f32 %v1630, %v1790
        %v1792 = vpop.f32.mrf.mxu0
        %v1793 = vpop.f32.mrf.mxu0
        %v1794 = vadd.f32 %v1633, %v1793
        %v1795 = vpop.f32.mrf.mxu0
        %1796 = vmatprep.mubr.bf16.mxu0 %v1112
        %1797 = vmatmul.mubr.bf16.gmra.mxu0 %v1111
        %v1798 = vpop.f32.mrf.mxu0
        %v1799 = vadd.f32 %v1638, %v1798
        %v1800 = vpop.f32.mrf.mxu0
        %v1801 = vpop.f32.mrf.mxu0
        %v1802 = vadd.f32 %v1641, %v1801
        %v1803 = vpop.f32.mrf.mxu0
        %1804 = vmatprep.mubr.bf16.mxu0 %v1118
        %1805 = vmatmul.mubr.bf16.gmra.mxu0 %v1117
        %v1806 = vpop.f32.mrf.mxu0
        %v1807 = vadd.f32 %v1646, %v1806
        %v1808 = vpop.f32.mrf.mxu0
        %v1809 = vpop.f32.mrf.mxu0
        %v1810 = vadd.f32 %v1649, %v1809
        %v1811 = vpop.f32.mrf.mxu0
        %1812 = vmatprep.mubr.bf16.mxu0 %v1124
        %1813 = vmatmul.mubr.bf16.gmra.mxu0 %v1123
        %v1814 = vpop.f32.mrf.mxu0
        %v1815 = vadd.f32 %v1654, %v1814
        %v1816 = vpop.f32.mrf.mxu0
        %v1817 = vpop.f32.mrf.mxu0
        %v1818 = vadd.f32 %v1657, %v1817
        %v1819 = vpop.f32.mrf.mxu0
        %1820 = vmatprep.mubr.bf16.mxu0 %v1130
        %1821 = vmatmul.mubr.bf16.gmra.mxu0 %v1129
        %v1822 = vpop.f32.mrf.mxu0
        %v1823 = vadd.f32 %v1662, %v1822
        %v1824 = vpop.f32.mrf.mxu0
        %v1825 = vpop.f32.mrf.mxu0
        %v1826 = vadd.f32 %v1665, %v1825
        %v1827 = vpop.f32.mrf.mxu0
        %1828 = vmatprep.mubr.bf16.mxu0 %v1136
        %1829 = vmatmul.mubr.bf16.gmra.mxu0 %v1135
        %v1830 = vpop.f32.mrf.mxu0
        %v1831 = vadd.f32 %v1670, %v1830
        %v1832 = vpop.f32.mrf.mxu0
        %v1833 = vpop.f32.mrf.mxu0
        %v1834 = vadd.f32 %v1673, %v1833
        %v1835 = vpop.f32.mrf.mxu0
        %1836 = vmatprep.mubr.bf16.mxu0 %v1142
        %1837 = vmatmul.mubr.bf16.gmra.mxu0 %v1141
        %v1838 = vpop.f32.mrf.mxu0
        %v1839 = vadd.f32 %v1678, %v1838
        %v1840 = vpop.f32.mrf.mxu0
        %v1841 = vpop.f32.mrf.mxu0
        %v1842 = vadd.f32 %v1681, %v1841
        %v1843 = vpop.f32.mrf.mxu0
        %1844 = vmatprep.mubr.bf16.mxu0 %v1148
        %1845 = vmatmul.mubr.bf16.gmra.mxu0 %v1147
        %v1846 = vpop.f32.mrf.mxu0
        %v1847 = vadd.f32 %v1686, %v1846
        %v1848 = vpop.f32.mrf.mxu0
        %v1849 = vpop.f32.mrf.mxu0
        %v1850 = vadd.f32 %v1689, %v1849
        %v1851 = vpop.f32.mrf.mxu0
        %1852 = vmatprep.mubr.bf16.mxu0 %v1154
        %1853 = vmatmul.mubr.bf16.gmra.mxu0 %v1153
        %v1854 = vpop.f32.mrf.mxu0
        %v1855 = vadd.f32 %v1694, %v1854
        %v1856 = vpop.f32.mrf.mxu0
        %v1857 = vpop.f32.mrf.mxu0
        %v1858 = vadd.f32 %v1697, %v1857
        %v1859 = vpop.f32.mrf.mxu0
        %1860 = vmatprep.mubr.bf16.mxu0 %v1160
        %1861 = vmatmul.mubr.bf16.gmra.mxu0 %v1159
        %v1862 = vpop.f32.mrf.mxu0
        %v1863 = vadd.f32 %v1702, %v1862
        %v1864 = vpop.f32.mrf.mxu0
        %v1865 = vpop.f32.mrf.mxu0
        %v1866 = vadd.f32 %v1705, %v1865
        %v1867 = vpop.f32.mrf.mxu0
        %1868 = vdwg.mxu0
        %1869 = vmatprep.subr.bf16.mxu0 0
        %1870 = vmatpush1.bf16.msra.mxu0 %v1490
        %1871 = vmatprep.subr.bf16.mxu0 0
        %1872 = vmatpush1.bf16.msra.mxu0 %v1489
        %1873 = vmatprep.subr.bf16.mxu0 0
        %1874 = vmatpush1.bf16.msra.mxu0 %v1488
        %1875 = vmatprep.subr.bf16.mxu0 0
        %1876 = vmatpush1.bf16.msra.mxu0 %v1487
        %1877 = vmatprep.subr.bf16.mxu0 0
        %1878 = vmatpush1.bf16.msra.mxu0 %v1486
        %1879 = vmatprep.subr.bf16.mxu0 0
        %1880 = vmatpush1.bf16.msra.mxu0 %v1485
        %1881 = vmatprep.subr.bf16.mxu0 0
        %1882 = vmatpush1.bf16.msra.mxu0 %v1484
        %1883 = vmatprep.subr.bf16.mxu0 0
        %1884 = vmatpush1.bf16.msra.mxu0 %v1483
        %1885 = vmatprep.subr.bf16.mxu0 0
        %1886 = vmatpush2.bf16.msra.mxu0 %v1498
        %1887 = vmatprep.subr.bf16.mxu0 0
        %1888 = vmatpush2.bf16.msra.mxu0 %v1497
        %1889 = vmatprep.subr.bf16.mxu0 0
        %1890 = vmatpush2.bf16.msra.mxu0 %v1496
        %1891 = vmatprep.subr.bf16.mxu0 0
        %1892 = vmatpush2.bf16.msra.mxu0 %v1495
        %1893 = vmatprep.subr.bf16.mxu0 0
        %1894 = vmatpush2.bf16.msra.mxu0 %v1494
        %1895 = vmatprep.subr.bf16.mxu0 0
        %1896 = vmatpush2.bf16.msra.mxu0 %v1493
        %1897 = vmatprep.subr.bf16.mxu0 0
        %1898 = vmatpush2.bf16.msra.mxu0 %v1492
        %1899 = vmatprep.subr.bf16.mxu0 0
        %1900 = vmatpush2.bf16.msra.mxu0 %v1491
        %1901 = vmatprep.mubr.bf16.mxu0 %v1072
        %1902 = vmatmul.mubr.bf16.gmra.mxu0 %v1071
        %v1903 = vpop.f32.mrf.mxu0
        %v1904 = vadd.f32 %v1743, %v1903
        %v1905 = vpop.f32.mrf.mxu0
        %v1906 = vpop.f32.mrf.mxu0
        %v1907 = vadd.f32 %v1746, %v1906
        %v1908 = vpop.f32.mrf.mxu0
        %1909 = vmatprep.mubr.bf16.mxu0 %v1078
        %1910 = vmatmul.mubr.bf16.gmra.mxu0 %v1077
        %v1911 = vpop.f32.mrf.mxu0
        %v1912 = vadd.f32 %v1751, %v1911
        %v1913 = vpop.f32.mrf.mxu0
        %v1914 = vpop.f32.mrf.mxu0
        %v1915 = vadd.f32 %v1754, %v1914
        %v1916 = vpop.f32.mrf.mxu0
        %1917 = vmatprep.mubr.bf16.mxu0 %v1084
        %1918 = vmatmul.mubr.bf16.gmra.mxu0 %v1083
        %v1919 = vpop.f32.mrf.mxu0
        %v1920 = vadd.f32 %v1759, %v1919
        %v1921 = vpop.f32.mrf.mxu0
        %v1922 = vpop.f32.mrf.mxu0
        %v1923 = vadd.f32 %v1762, %v1922
        %v1924 = vpop.f32.mrf.mxu0
        %1925 = vmatprep.mubr.bf16.mxu0 %v1090
        %1926 = vmatmul.mubr.bf16.gmra.mxu0 %v1089
        %v1927 = vpop.f32.mrf.mxu0
        %v1928 = vadd.f32 %v1767, %v1927
        %v1929 = vpop.f32.mrf.mxu0
        %v1930 = vpop.f32.mrf.mxu0
        %v1931 = vadd.f32 %v1770, %v1930
        %v1932 = vpop.f32.mrf.mxu0
        %1933 = vmatprep.mubr.bf16.mxu0 %v1096
        %1934 = vmatmul.mubr.bf16.gmra.mxu0 %v1095
        %v1935 = vpop.f32.mrf.mxu0
        %v1936 = vadd.f32 %v1775, %v1935
        %v1937 = vpop.f32.mrf.mxu0
        %v1938 = vpop.f32.mrf.mxu0
        %v1939 = vadd.f32 %v1778, %v1938
        %v1940 = vpop.f32.mrf.mxu0
        %1941 = vmatprep.mubr.bf16.mxu0 %v1102
        %1942 = vmatmul.mubr.bf16.gmra.mxu0 %v1101
        %v1943 = vpop.f32.mrf.mxu0
        %v1944 = vadd.f32 %v1783, %v1943
        %v1945 = vpop.f32.mrf.mxu0
        %v1946 = vpop.f32.mrf.mxu0
        %v1947 = vadd.f32 %v1786, %v1946
        %v1948 = vpop.f32.mrf.mxu0
        %1949 = vmatprep.mubr.bf16.mxu0 %v1108
        %1950 = vmatmul.mubr.bf16.gmra.mxu0 %v1107
        %v1951 = vpop.f32.mrf.mxu0
        %v1952 = vadd.f32 %v1791, %v1951
        %v1953 = vpop.f32.mrf.mxu0
        %v1954 = vpop.f32.mrf.mxu0
        %v1955 = vadd.f32 %v1794, %v1954
        %v1956 = vpop.f32.mrf.mxu0
        %1957 = vmatprep.mubr.bf16.mxu0 %v1114
        %1958 = vmatmul.mubr.bf16.gmra.mxu0 %v1113
        %v1959 = vpop.f32.mrf.mxu0
        %v1960 = vadd.f32 %v1799, %v1959
        %v1961 = vpop.f32.mrf.mxu0
        %v1962 = vpop.f32.mrf.mxu0
        %v1963 = vadd.f32 %v1802, %v1962
        %v1964 = vpop.f32.mrf.mxu0
        %1965 = vmatprep.mubr.bf16.mxu0 %v1120
        %1966 = vmatmul.mubr.bf16.gmra.mxu0 %v1119
        %v1967 = vpop.f32.mrf.mxu0
        %v1968 = vadd.f32 %v1807, %v1967
        %v1969 = vpop.f32.mrf.mxu0
        %v1970 = vpop.f32.mrf.mxu0
        %v1971 = vadd.f32 %v1810, %v1970
        %v1972 = vpop.f32.mrf.mxu0
        %1973 = vmatprep.mubr.bf16.mxu0 %v1126
        %1974 = vmatmul.mubr.bf16.gmra.mxu0 %v1125
        %v1975 = vpop.f32.mrf.mxu0
        %v1976 = vadd.f32 %v1815, %v1975
        %v1977 = vpop.f32.mrf.mxu0
        %v1978 = vpop.f32.mrf.mxu0
        %v1979 = vadd.f32 %v1818, %v1978
        %v1980 = vpop.f32.mrf.mxu0
        %1981 = vmatprep.mubr.bf16.mxu0 %v1132
        %1982 = vmatmul.mubr.bf16.gmra.mxu0 %v1131
        %v1983 = vpop.f32.mrf.mxu0
        %v1984 = vadd.f32 %v1823, %v1983
        %v1985 = vpop.f32.mrf.mxu0
        %v1986 = vpop.f32.mrf.mxu0
        %v1987 = vadd.f32 %v1826, %v1986
        %v1988 = vpop.f32.mrf.mxu0
        %1989 = vmatprep.mubr.bf16.mxu0 %v1138
        %1990 = vmatmul.mubr.bf16.gmra.mxu0 %v1137
        %v1991 = vpop.f32.mrf.mxu0
        %v1992 = vadd.f32 %v1831, %v1991
        %v1993 = vpop.f32.mrf.mxu0
        %v1994 = vpop.f32.mrf.mxu0
        %v1995 = vadd.f32 %v1834, %v1994
        %v1996 = vpop.f32.mrf.mxu0
        %1997 = vmatprep.mubr.bf16.mxu0 %v1144
        %1998 = vmatmul.mubr.bf16.gmra.mxu0 %v1143
        %v1999 = vpop.f32.mrf.mxu0
        %v2000 = vadd.f32 %v1839, %v1999
        %v2001 = vpop.f32.mrf.mxu0
        %v2002 = vpop.f32.mrf.mxu0
        %v2003 = vadd.f32 %v1842, %v2002
        %v2004 = vpop.f32.mrf.mxu0
        %2005 = vmatprep.mubr.bf16.mxu0 %v1150
        %2006 = vmatmul.mubr.bf16.gmra.mxu0 %v1149
        %v2007 = vpop.f32.mrf.mxu0
        %v2008 = vadd.f32 %v1847, %v2007
        %v2009 = vpop.f32.mrf.mxu0
        %v2010 = vpop.f32.mrf.mxu0
        %v2011 = vadd.f32 %v1850, %v2010
        %v2012 = vpop.f32.mrf.mxu0
        %2013 = vmatprep.mubr.bf16.mxu0 %v1156
        %2014 = vmatmul.mubr.bf16.gmra.mxu0 %v1155
        %v2015 = vpop.f32.mrf.mxu0
        %v2016 = vadd.f32 %v1855, %v2015
        %v2017 = vpop.f32.mrf.mxu0
        %v2018 = vpop.f32.mrf.mxu0
        %v2019 = vadd.f32 %v1858, %v2018
        %v2020 = vpop.f32.mrf.mxu0
        %2021 = vmatprep.mubr.bf16.mxu0 %v1162
        %2022 = vmatmul.mubr.bf16.gmra.mxu0 %v1161
        %v2023 = vpop.f32.mrf.mxu0
        %v2024 = vadd.f32 %v1863, %v2023
        %v2025 = vpop.f32.mrf.mxu0
        %v2026 = vpop.f32.mrf.mxu0
        %v2027 = vadd.f32 %v1866, %v2026
        %v2028 = vpop.f32.mrf.mxu0
        %2029 = vdwg.mxu0
        %v2030 = vpack.c.bf16 %v1907, %v1904
        %v2031 = vpack.c.bf16 %v1915, %v1912
        %v2032 = vpack.c.bf16 %v1923, %v1920
        %v2033 = vpack.c.bf16 %v1931, %v1928
        %v2034 = vpack.c.bf16 %v1939, %v1936
        %v2035 = vpack.c.bf16 %v1947, %v1944
        %v2036 = vpack.c.bf16 %v1955, %v1952
        %v2037 = vpack.c.bf16 %v1963, %v1960
        %v2038 = vpack.c.bf16 %v1971, %v1968
        %v2039 = vpack.c.bf16 %v1979, %v1976
        %v2040 = vpack.c.bf16 %v1987, %v1984
        %v2041 = vpack.c.bf16 %v1995, %v1992
        %v2042 = vpack.c.bf16 %v2003, %v2000
        %v2043 = vpack.c.bf16 %v2011, %v2008
        %v2044 = vpack.c.bf16 %v2019, %v2016
        %v2045 = vpack.c.bf16 %v2027, %v2024
        %v2046 = vld [vmem:[%s3] sm:$0xf]
        %v2047 = vld [vmem:[%s3 + $0x4] sm:$0xf]
        %v2048 = vld [vmem:[%s3 + $0x8] sm:$0xf]
        %v2049 = vld [vmem:[%s3 + $0xc] sm:$0xf]
        %v2050 = vld [vmem:[%s4] sm:$0x1]
        %v2052 = vlaneseq
        %v2053 = vshrl.u32 %v2052, 7
        %v2054 = vsub.s32 0, %v2053
        %v2055 = vrot.slane %v2050, %v2054
        %v2061 = vunpack.c.l.b16 %v2046
        %v2062 = vunpack.c.l.b16 %v2047
        %v2063 = vunpack.c.l.b16 %v2048
        %v2064 = vunpack.c.l.b16 %v2049
        %v2065 = vpack.c.b16 %v2062, %v2061
        %v2066 = vpack.c.b16 %v2064, %v2063
        %vm2069 = vcmask 261120
        %v2071 = vsel %vm2069, %v2030, 0
        %v2074 = vsel %vm2069, %v2031, 0
        %v2077 = vsel %vm2069, %v2032, 0
        %v2080 = vsel %vm2069, %v2033, 0
        %v2083 = vsel %vm2069, %v2034, 0
        %v2086 = vsel %vm2069, %v2035, 0
        %v2089 = vsel %vm2069, %v2036, 0
        %v2092 = vsel %vm2069, %v2037, 0
        %v2095 = vsel %vm2069, %v2038, 0
        %v2098 = vsel %vm2069, %v2039, 0
        %v2101 = vsel %vm2069, %v2040, 0
        %v2104 = vsel %vm2069, %v2041, 0
        %v2107 = vsel %vm2069, %v2042, 0
        %v2110 = vsel %vm2069, %v2043, 0
        %v2113 = vsel %vm2069, %v2044, 0
        %v2116 = vsel %vm2069, %v2045, 0
        %2118 = vmatprep.subr.bf16.mxu0 0
        %2119 = vmatpush1.bf16.msra.mxu0 0
        %2120 = vmatprep.subr.bf16.mxu0 0
        %2121 = vmatpush1.bf16.msra.mxu0 0
        %2122 = vmatprep.subr.bf16.mxu0 0
        %2123 = vmatpush1.bf16.msra.mxu0 0
        %2124 = vmatprep.subr.bf16.mxu0 0
        %2125 = vmatpush1.bf16.msra.mxu0 0
        %2126 = vmatprep.subr.bf16.mxu0 0
        %2127 = vmatpush1.bf16.msra.mxu0 0
        %2128 = vmatprep.subr.bf16.mxu0 0
        %2129 = vmatpush1.bf16.msra.mxu0 0
        %2130 = vmatprep.subr.bf16.mxu0 0
        %2131 = vmatpush1.bf16.msra.mxu0 %v2066
        %2132 = vmatprep.subr.bf16.mxu0 0
        %2133 = vmatpush1.bf16.msra.mxu0 %v2065
        %2134 = vmatprep.subr.bf16.mxu0 0
        %2135 = vmatpush2.bf16.msra.mxu0 0
        %2136 = vmatprep.subr.bf16.mxu0 0
        %2137 = vmatpush2.bf16.msra.mxu0 0
        %2138 = vmatprep.subr.bf16.mxu0 0
        %2139 = vmatpush2.bf16.msra.mxu0 0
        %2140 = vmatprep.subr.bf16.mxu0 0
        %2141 = vmatpush2.bf16.msra.mxu0 0
        %2142 = vmatprep.subr.bf16.mxu0 0
        %2143 = vmatpush2.bf16.msra.mxu0 0
        %2144 = vmatprep.subr.bf16.mxu0 0
        %2145 = vmatpush2.bf16.msra.mxu0 0
        %2146 = vmatprep.subr.bf16.mxu0 0
        %2147 = vmatpush2.bf16.msra.mxu0 0
        %2148 = vmatprep.subr.bf16.mxu0 0
        %2149 = vmatpush2.bf16.msra.mxu0 0
        %2150 = vmatprep.mubr.bf16.mxu0 0
        %2151 = vmatmul.mubr.bf16.gmra.mxu0 %v2071
        %v2152 = vpop.f32.mrf.mxu0
        %v2153 = vadd.f32 %v2055, %v2152
        %v2154 = vpop.f32.mrf.mxu0
        %v2155 = vpop.f32.mrf.mxu0
        %v2156 = vadd.f32 %v2055, %v2155
        %v2157 = vpop.f32.mrf.mxu0
        %2158 = vmatprep.mubr.bf16.mxu0 0
        %2159 = vmatmul.mubr.bf16.gmra.mxu0 %v2074
        %v2160 = vpop.f32.mrf.mxu0
        %v2161 = vadd.f32 %v2055, %v2160
        %v2162 = vpop.f32.mrf.mxu0
        %v2163 = vpop.f32.mrf.mxu0
        %v2164 = vadd.f32 %v2055, %v2163
        %v2165 = vpop.f32.mrf.mxu0
        %2166 = vmatprep.mubr.bf16.mxu0 0
        %2167 = vmatmul.mubr.bf16.gmra.mxu0 %v2077
        %v2168 = vpop.f32.mrf.mxu0
        %v2169 = vadd.f32 %v2055, %v2168
        %v2170 = vpop.f32.mrf.mxu0
        %v2171 = vpop.f32.mrf.mxu0
        %v2172 = vadd.f32 %v2055, %v2171
        %v2173 = vpop.f32.mrf.mxu0
        %2174 = vmatprep.mubr.bf16.mxu0 0
        %2175 = vmatmul.mubr.bf16.gmra.mxu0 %v2080
        %v2176 = vpop.f32.mrf.mxu0
        %v2177 = vadd.f32 %v2055, %v2176
        %v2178 = vpop.f32.mrf.mxu0
        %v2179 = vpop.f32.mrf.mxu0
        %v2180 = vadd.f32 %v2055, %v2179
        %v2181 = vpop.f32.mrf.mxu0
        %2182 = vmatprep.mubr.bf16.mxu0 0
        %2183 = vmatmul.mubr.bf16.gmra.mxu0 %v2083
        %v2184 = vpop.f32.mrf.mxu0
        %v2185 = vadd.f32 %v2055, %v2184
        %v2186 = vpop.f32.mrf.mxu0
        %v2187 = vpop.f32.mrf.mxu0
        %v2188 = vadd.f32 %v2055, %v2187
        %v2189 = vpop.f32.mrf.mxu0
        %2190 = vmatprep.mubr.bf16.mxu0 0
        %2191 = vmatmul.mubr.bf16.gmra.mxu0 %v2086
        %v2192 = vpop.f32.mrf.mxu0
        %v2193 = vadd.f32 %v2055, %v2192
        %v2194 = vpop.f32.mrf.mxu0
        %v2195 = vpop.f32.mrf.mxu0
        %v2196 = vadd.f32 %v2055, %v2195
        %v2197 = vpop.f32.mrf.mxu0
        %2198 = vmatprep.mubr.bf16.mxu0 0
        %2199 = vmatmul.mubr.bf16.gmra.mxu0 %v2089
        %v2200 = vpop.f32.mrf.mxu0
        %v2201 = vadd.f32 %v2055, %v2200
        %v2202 = vpop.f32.mrf.mxu0
        %v2203 = vpop.f32.mrf.mxu0
        %v2204 = vadd.f32 %v2055, %v2203
        %v2205 = vpop.f32.mrf.mxu0
        %2206 = vmatprep.mubr.bf16.mxu0 0
        %2207 = vmatmul.mubr.bf16.gmra.mxu0 %v2092
        %v2208 = vpop.f32.mrf.mxu0
        %v2209 = vadd.f32 %v2055, %v2208
        %v2210 = vpop.f32.mrf.mxu0
        %v2211 = vpop.f32.mrf.mxu0
        %v2212 = vadd.f32 %v2055, %v2211
        %v2213 = vpop.f32.mrf.mxu0
        %2214 = vmatprep.mubr.bf16.mxu0 0
        %2215 = vmatmul.mubr.bf16.gmra.mxu0 %v2095
        %v2216 = vpop.f32.mrf.mxu0
        %v2217 = vadd.f32 %v2055, %v2216
        %v2218 = vpop.f32.mrf.mxu0
        %v2219 = vpop.f32.mrf.mxu0
        %v2220 = vadd.f32 %v2055, %v2219
        %v2221 = vpop.f32.mrf.mxu0
        %2222 = vmatprep.mubr.bf16.mxu0 0
        %2223 = vmatmul.mubr.bf16.gmra.mxu0 %v2098
        %v2224 = vpop.f32.mrf.mxu0
        %v2225 = vadd.f32 %v2055, %v2224
        %v2226 = vpop.f32.mrf.mxu0
        %v2227 = vpop.f32.mrf.mxu0
        %v2228 = vadd.f32 %v2055, %v2227
        %v2229 = vpop.f32.mrf.mxu0
        %2230 = vmatprep.mubr.bf16.mxu0 0
        %2231 = vmatmul.mubr.bf16.gmra.mxu0 %v2101
        %v2232 = vpop.f32.mrf.mxu0
        %v2233 = vadd.f32 %v2055, %v2232
        %v2234 = vpop.f32.mrf.mxu0
        %v2235 = vpop.f32.mrf.mxu0
        %v2236 = vadd.f32 %v2055, %v2235
        %v2237 = vpop.f32.mrf.mxu0
        %2238 = vmatprep.mubr.bf16.mxu0 0
        %2239 = vmatmul.mubr.bf16.gmra.mxu0 %v2104
        %v2240 = vpop.f32.mrf.mxu0
        %v2241 = vadd.f32 %v2055, %v2240
        %v2242 = vpop.f32.mrf.mxu0
        %v2243 = vpop.f32.mrf.mxu0
        %v2244 = vadd.f32 %v2055, %v2243
        %v2245 = vpop.f32.mrf.mxu0
        %2246 = vmatprep.mubr.bf16.mxu0 0
        %2247 = vmatmul.mubr.bf16.gmra.mxu0 %v2107
        %v2248 = vpop.f32.mrf.mxu0
        %v2249 = vadd.f32 %v2055, %v2248
        %v2250 = vpop.f32.mrf.mxu0
        %v2251 = vpop.f32.mrf.mxu0
        %v2252 = vadd.f32 %v2055, %v2251
        %v2253 = vpop.f32.mrf.mxu0
        %2254 = vmatprep.mubr.bf16.mxu0 0
        %2255 = vmatmul.mubr.bf16.gmra.mxu0 %v2110
        %v2256 = vpop.f32.mrf.mxu0
        %v2257 = vadd.f32 %v2055, %v2256
        %v2258 = vpop.f32.mrf.mxu0
        %v2259 = vpop.f32.mrf.mxu0
        %v2260 = vadd.f32 %v2055, %v2259
        %v2261 = vpop.f32.mrf.mxu0
        %2262 = vmatprep.mubr.bf16.mxu0 0
        %2263 = vmatmul.mubr.bf16.gmra.mxu0 %v2113
        %v2264 = vpop.f32.mrf.mxu0
        %v2265 = vadd.f32 %v2055, %v2264
        %v2266 = vpop.f32.mrf.mxu0
        %v2267 = vpop.f32.mrf.mxu0
        %v2268 = vadd.f32 %v2055, %v2267
        %v2269 = vpop.f32.mrf.mxu0
        %2270 = vmatprep.mubr.bf16.mxu0 0
        %2271 = vmatmul.mubr.bf16.gmra.mxu0 %v2116
        %v2272 = vpop.f32.mrf.mxu0
        %v2273 = vadd.f32 %v2055, %v2272
        %v2274 = vpop.f32.mrf.mxu0
        %v2275 = vpop.f32.mrf.mxu0
        %v2276 = vadd.f32 %v2055, %v2275
        %v2277 = vpop.f32.mrf.mxu0
        %2278 = vdwg.mxu0
        %v2279 = vmul.f32 %v2153, %v2153
        %v2280 = vmul.f32 %v2156, %v2156
        %v2281 = vmul.f32 %v2161, %v2161
        %v2282 = vmul.f32 %v2164, %v2164
        %v2283 = vmul.f32 %v2169, %v2169
        %v2284 = vmul.f32 %v2172, %v2172
        %v2285 = vmul.f32 %v2177, %v2177
        %v2286 = vmul.f32 %v2180, %v2180
        %v2287 = vmul.f32 %v2185, %v2185
        %v2288 = vmul.f32 %v2188, %v2188
        %v2289 = vmul.f32 %v2193, %v2193
        %v2290 = vmul.f32 %v2196, %v2196
        %v2291 = vmul.f32 %v2201, %v2201
        %v2292 = vmul.f32 %v2204, %v2204
        %v2293 = vmul.f32 %v2209, %v2209
        %v2294 = vmul.f32 %v2212, %v2212
        %v2295 = vmul.f32 %v2217, %v2217
        %v2296 = vmul.f32 %v2220, %v2220
        %v2297 = vmul.f32 %v2225, %v2225
        %v2298 = vmul.f32 %v2228, %v2228
        %v2299 = vmul.f32 %v2233, %v2233
        %v2300 = vmul.f32 %v2236, %v2236
        %v2301 = vmul.f32 %v2241, %v2241
        %v2302 = vmul.f32 %v2244, %v2244
        %v2303 = vmul.f32 %v2249, %v2249
        %v2304 = vmul.f32 %v2252, %v2252
        %v2305 = vmul.f32 %v2257, %v2257
        %v2306 = vmul.f32 %v2260, %v2260
        %v2307 = vmul.f32 %v2265, %v2265
        %v2308 = vmul.f32 %v2268, %v2268
        %v2309 = vmul.f32 %v2273, %v2273
        %v2310 = vmul.f32 %v2276, %v2276
        %v2311 = vmul.f32 %v2153, %v2279
        %v2312 = vmul.f32 %v2156, %v2280
        %v2313 = vmul.f32 %v2161, %v2281
        %v2314 = vmul.f32 %v2164, %v2282
        %v2315 = vmul.f32 %v2169, %v2283
        %v2316 = vmul.f32 %v2172, %v2284
        %v2317 = vmul.f32 %v2177, %v2285
        %v2318 = vmul.f32 %v2180, %v2286
        %v2319 = vmul.f32 %v2185, %v2287
        %v2320 = vmul.f32 %v2188, %v2288
        %v2321 = vmul.f32 %v2193, %v2289
        %v2322 = vmul.f32 %v2196, %v2290
        %v2323 = vmul.f32 %v2201, %v2291
        %v2324 = vmul.f32 %v2204, %v2292
        %v2325 = vmul.f32 %v2209, %v2293
        %v2326 = vmul.f32 %v2212, %v2294
        %v2327 = vmul.f32 %v2217, %v2295
        %v2328 = vmul.f32 %v2220, %v2296
        %v2329 = vmul.f32 %v2225, %v2297
        %v2330 = vmul.f32 %v2228, %v2298
        %v2331 = vmul.f32 %v2233, %v2299
        %v2332 = vmul.f32 %v2236, %v2300
        %v2333 = vmul.f32 %v2241, %v2301
        %v2334 = vmul.f32 %v2244, %v2302
        %v2335 = vmul.f32 %v2249, %v2303
        %v2336 = vmul.f32 %v2252, %v2304
        %v2337 = vmul.f32 %v2257, %v2305
        %v2338 = vmul.f32 %v2260, %v2306
        %v2339 = vmul.f32 %v2265, %v2307
        %v2340 = vmul.f32 %v2268, %v2308
        %v2341 = vmul.f32 %v2273, %v2309
        %v2342 = vmul.f32 %v2276, %v2310
        %v2343 = vmul.f32 %v2311, 0.044715
        %v2344 = vmul.f32 %v2312, 0.044715
        %v2345 = vmul.f32 %v2313, 0.044715
        %v2346 = vmul.f32 %v2314, 0.044715
        %v2347 = vmul.f32 %v2315, 0.044715
        %v2348 = vmul.f32 %v2316, 0.044715
        %v2349 = vmul.f32 %v2317, 0.044715
        %v2350 = vmul.f32 %v2318, 0.044715
        %v2351 = vmul.f32 %v2319, 0.044715
        %v2352 = vmul.f32 %v2320, 0.044715
        %v2353 = vmul.f32 %v2321, 0.044715
        %v2354 = vmul.f32 %v2322, 0.044715
        %v2355 = vmul.f32 %v2323, 0.044715
        %v2356 = vmul.f32 %v2324, 0.044715
        %v2357 = vmul.f32 %v2325, 0.044715
        %v2358 = vmul.f32 %v2326, 0.044715
        %v2359 = vmul.f32 %v2327, 0.044715
        %v2360 = vmul.f32 %v2328, 0.044715
        %v2361 = vmul.f32 %v2329, 0.044715
        %v2362 = vmul.f32 %v2330, 0.044715
        %v2363 = vmul.f32 %v2331, 0.044715
        %v2364 = vmul.f32 %v2332, 0.044715
        %v2365 = vmul.f32 %v2333, 0.044715
        %v2366 = vmul.f32 %v2334, 0.044715
        %v2367 = vmul.f32 %v2335, 0.044715
        %v2368 = vmul.f32 %v2336, 0.044715
        %v2369 = vmul.f32 %v2337, 0.044715
        %v2370 = vmul.f32 %v2338, 0.044715
        %v2371 = vmul.f32 %v2339, 0.044715
        %v2372 = vmul.f32 %v2340, 0.044715
        %v2373 = vmul.f32 %v2341, 0.044715
        %v2374 = vmul.f32 %v2342, 0.044715
        %v2375 = vadd.f32 %v2153, %v2343
        %v2376 = vadd.f32 %v2156, %v2344
        %v2377 = vadd.f32 %v2161, %v2345
        %v2378 = vadd.f32 %v2164, %v2346
        %v2379 = vadd.f32 %v2169, %v2347
        %v2380 = vadd.f32 %v2172, %v2348
        %v2381 = vadd.f32 %v2177, %v2349
        %v2382 = vadd.f32 %v2180, %v2350
        %v2383 = vadd.f32 %v2185, %v2351
        %v2384 = vadd.f32 %v2188, %v2352
        %v2385 = vadd.f32 %v2193, %v2353
        %v2386 = vadd.f32 %v2196, %v2354
        %v2387 = vadd.f32 %v2201, %v2355
        %v2388 = vadd.f32 %v2204, %v2356
        %v2389 = vadd.f32 %v2209, %v2357
        %v2390 = vadd.f32 %v2212, %v2358
        %v2391 = vadd.f32 %v2217, %v2359
        %v2392 = vadd.f32 %v2220, %v2360
        %v2393 = vadd.f32 %v2225, %v2361
        %v2394 = vadd.f32 %v2228, %v2362
        %v2395 = vadd.f32 %v2233, %v2363
        %v2396 = vadd.f32 %v2236, %v2364
        %v2397 = vadd.f32 %v2241, %v2365
        %v2398 = vadd.f32 %v2244, %v2366
        %v2399 = vadd.f32 %v2249, %v2367
        %v2400 = vadd.f32 %v2252, %v2368
        %v2401 = vadd.f32 %v2257, %v2369
        %v2402 = vadd.f32 %v2260, %v2370
        %v2403 = vadd.f32 %v2265, %v2371
        %v2404 = vadd.f32 %v2268, %v2372
        %v2405 = vadd.f32 %v2273, %v2373
        %v2406 = vadd.f32 %v2276, %v2374
        %v2407 = vmul.f32 %v2375, 0.7978846
        %v2408 = vmul.f32 %v2376, 0.7978846
        %v2409 = vmul.f32 %v2377, 0.7978846
        %v2410 = vmul.f32 %v2378, 0.7978846
        %v2411 = vmul.f32 %v2379, 0.7978846
        %v2412 = vmul.f32 %v2380, 0.7978846
        %v2413 = vmul.f32 %v2381, 0.7978846
        %v2414 = vmul.f32 %v2382, 0.7978846
        %v2415 = vmul.f32 %v2383, 0.7978846
        %v2416 = vmul.f32 %v2384, 0.7978846
        %v2417 = vmul.f32 %v2385, 0.7978846
        %v2418 = vmul.f32 %v2386, 0.7978846
        %v2419 = vmul.f32 %v2387, 0.7978846
        %v2420 = vmul.f32 %v2388, 0.7978846
        %v2421 = vmul.f32 %v2389, 0.7978846
        %v2422 = vmul.f32 %v2390, 0.7978846
        %v2423 = vmul.f32 %v2391, 0.7978846
        %v2424 = vmul.f32 %v2392, 0.7978846
        %v2425 = vmul.f32 %v2393, 0.7978846
        %v2426 = vmul.f32 %v2394, 0.7978846
        %v2427 = vmul.f32 %v2395, 0.7978846
        %v2428 = vmul.f32 %v2396, 0.7978846
        %v2429 = vmul.f32 %v2397, 0.7978846
        %v2430 = vmul.f32 %v2398, 0.7978846
        %v2431 = vmul.f32 %v2399, 0.7978846
        %v2432 = vmul.f32 %v2400, 0.7978846
        %v2433 = vmul.f32 %v2401, 0.7978846
        %v2434 = vmul.f32 %v2402, 0.7978846
        %v2435 = vmul.f32 %v2403, 0.7978846
        %v2436 = vmul.f32 %v2404, 0.7978846
        %v2437 = vmul.f32 %v2405, 0.7978846
        %v2438 = vmul.f32 %v2406, 0.7978846
        %v2439 = vtanh.pop %v2407
        %v2440 = vtanh.pop %v2408
        %v2441 = vtanh.pop %v2409
        %v2442 = vtanh.pop %v2410
        %v2443 = vtanh.pop %v2411
        %v2444 = vtanh.pop %v2412
        %v2445 = vtanh.pop %v2413
        %v2446 = vtanh.pop %v2414
        %v2447 = vtanh.pop %v2415
        %v2448 = vtanh.pop %v2416
        %v2449 = vtanh.pop %v2417
        %v2450 = vtanh.pop %v2418
        %v2451 = vtanh.pop %v2419
        %v2452 = vtanh.pop %v2420
        %v2453 = vtanh.pop %v2421
        %v2454 = vtanh.pop %v2422
        %v2455 = vtanh.pop %v2423
        %v2456 = vtanh.pop %v2424
        %v2457 = vtanh.pop %v2425
        %v2458 = vtanh.pop %v2426
        %v2459 = vtanh.pop %v2427
        %v2460 = vtanh.pop %v2428
        %v2461 = vtanh.pop %v2429
        %v2462 = vtanh.pop %v2430
        %v2463 = vtanh.pop %v2431
        %v2464 = vtanh.pop %v2432
        %v2465 = vtanh.pop %v2433
        %v2466 = vtanh.pop %v2434
        %v2467 = vtanh.pop %v2435
        %v2468 = vtanh.pop %v2436
        %v2469 = vtanh.pop %v2437
        %v2470 = vtanh.pop %v2438
        %v2471 = vadd.f32 %v2439, 1.0
        %v2472 = vadd.f32 %v2440, 1.0
        %v2473 = vadd.f32 %v2441, 1.0
        %v2474 = vadd.f32 %v2442, 1.0
        %v2475 = vadd.f32 %v2443, 1.0
        %v2476 = vadd.f32 %v2444, 1.0
        %v2477 = vadd.f32 %v2445, 1.0
        %v2478 = vadd.f32 %v2446, 1.0
        %v2479 = vadd.f32 %v2447, 1.0
        %v2480 = vadd.f32 %v2448, 1.0
        %v2481 = vadd.f32 %v2449, 1.0
        %v2482 = vadd.f32 %v2450, 1.0
        %v2483 = vadd.f32 %v2451, 1.0
        %v2484 = vadd.f32 %v2452, 1.0
        %v2485 = vadd.f32 %v2453, 1.0
        %v2486 = vadd.f32 %v2454, 1.0
        %v2487 = vadd.f32 %v2455, 1.0
        %v2488 = vadd.f32 %v2456, 1.0
        %v2489 = vadd.f32 %v2457, 1.0
        %v2490 = vadd.f32 %v2458, 1.0
        %v2491 = vadd.f32 %v2459, 1.0
        %v2492 = vadd.f32 %v2460, 1.0
        %v2493 = vadd.f32 %v2461, 1.0
        %v2494 = vadd.f32 %v2462, 1.0
        %v2495 = vadd.f32 %v2463, 1.0
        %v2496 = vadd.f32 %v2464, 1.0
        %v2497 = vadd.f32 %v2465, 1.0
        %v2498 = vadd.f32 %v2466, 1.0
        %v2499 = vadd.f32 %v2467, 1.0
        %v2500 = vadd.f32 %v2468, 1.0
        %v2501 = vadd.f32 %v2469, 1.0
        %v2502 = vadd.f32 %v2470, 1.0
        %v2503 = vmul.f32 %v2471, 0.5
        %v2504 = vmul.f32 %v2472, 0.5
        %v2505 = vmul.f32 %v2473, 0.5
        %v2506 = vmul.f32 %v2474, 0.5
        %v2507 = vmul.f32 %v2475, 0.5
        %v2508 = vmul.f32 %v2476, 0.5
        %v2509 = vmul.f32 %v2477, 0.5
        %v2510 = vmul.f32 %v2478, 0.5
        %v2511 = vmul.f32 %v2479, 0.5
        %v2512 = vmul.f32 %v2480, 0.5
        %v2513 = vmul.f32 %v2481, 0.5
        %v2514 = vmul.f32 %v2482, 0.5
        %v2515 = vmul.f32 %v2483, 0.5
        %v2516 = vmul.f32 %v2484, 0.5
        %v2517 = vmul.f32 %v2485, 0.5
        %v2518 = vmul.f32 %v2486, 0.5
        %v2519 = vmul.f32 %v2487, 0.5
        %v2520 = vmul.f32 %v2488, 0.5
        %v2521 = vmul.f32 %v2489, 0.5
        %v2522 = vmul.f32 %v2490, 0.5
        %v2523 = vmul.f32 %v2491, 0.5
        %v2524 = vmul.f32 %v2492, 0.5
        %v2525 = vmul.f32 %v2493, 0.5
        %v2526 = vmul.f32 %v2494, 0.5
        %v2527 = vmul.f32 %v2495, 0.5
        %v2528 = vmul.f32 %v2496, 0.5
        %v2529 = vmul.f32 %v2497, 0.5
        %v2530 = vmul.f32 %v2498, 0.5
        %v2531 = vmul.f32 %v2499, 0.5
        %v2532 = vmul.f32 %v2500, 0.5
        %v2533 = vmul.f32 %v2501, 0.5
        %v2534 = vmul.f32 %v2502, 0.5
        %v2535 = vmul.f32 %v2153, %v2503
        %v2536 = vmul.f32 %v2156, %v2504
        %v2537 = vmul.f32 %v2161, %v2505
        %v2538 = vmul.f32 %v2164, %v2506
        %v2539 = vmul.f32 %v2169, %v2507
        %v2540 = vmul.f32 %v2172, %v2508
        %v2541 = vmul.f32 %v2177, %v2509
        %v2542 = vmul.f32 %v2180, %v2510
        %v2543 = vmul.f32 %v2185, %v2511
        %v2544 = vmul.f32 %v2188, %v2512
        %v2545 = vmul.f32 %v2193, %v2513
        %v2546 = vmul.f32 %v2196, %v2514
        %v2547 = vmul.f32 %v2201, %v2515
        %v2548 = vmul.f32 %v2204, %v2516
        %v2549 = vmul.f32 %v2209, %v2517
        %v2550 = vmul.f32 %v2212, %v2518
        %v2551 = vmul.f32 %v2217, %v2519
        %v2552 = vmul.f32 %v2220, %v2520
        %v2553 = vmul.f32 %v2225, %v2521
        %v2554 = vmul.f32 %v2228, %v2522
        %v2555 = vmul.f32 %v2233, %v2523
        %v2556 = vmul.f32 %v2236, %v2524
        %v2557 = vmul.f32 %v2241, %v2525
        %v2558 = vmul.f32 %v2244, %v2526
        %v2559 = vmul.f32 %v2249, %v2527
        %v2560 = vmul.f32 %v2252, %v2528
        %v2561 = vmul.f32 %v2257, %v2529
        %v2562 = vmul.f32 %v2260, %v2530
        %v2563 = vmul.f32 %v2265, %v2531
        %v2564 = vmul.f32 %v2268, %v2532
        %v2565 = vmul.f32 %v2273, %v2533
        %v2566 = vmul.f32 %v2276, %v2534
        %v2567 = vpack.c.bf16 %v2536, %v2535
        %v2568 = vpack.c.bf16 %v2538, %v2537
        %v2569 = vpack.c.bf16 %v2540, %v2539
        %v2570 = vpack.c.bf16 %v2542, %v2541
        %v2571 = vpack.c.bf16 %v2544, %v2543
        %v2572 = vpack.c.bf16 %v2546, %v2545
        %v2573 = vpack.c.bf16 %v2548, %v2547
        %v2574 = vpack.c.bf16 %v2550, %v2549
        %v2575 = vpack.c.bf16 %v2552, %v2551
        %v2576 = vpack.c.bf16 %v2554, %v2553
        %v2577 = vpack.c.bf16 %v2556, %v2555
        %v2578 = vpack.c.bf16 %v2558, %v2557
        %v2579 = vpack.c.bf16 %v2560, %v2559
        %v2580 = vpack.c.bf16 %v2562, %v2561
        %v2581 = vpack.c.bf16 %v2564, %v2563
        %v2582 = vpack.c.bf16 %v2566, %v2565
        %v2583 = vld [vmem:[%s5] sm:$0xf]
        %v2584 = vld [vmem:[%s5 + $0x4] sm:$0xf]
        %v2585 = vld [vmem:[%s5 + $0x8] sm:$0xf]
        %v2586 = vld [vmem:[%s5 + $0xc] sm:$0xf]
        %v2587 = vld [vmem:[%s5 + $0x10] sm:$0xf]
        %v2588 = vld [vmem:[%s5 + $0x14] sm:$0xf]
        %v2589 = vld [vmem:[%s5 + $0x18] sm:$0xf]
        %v2590 = vld [vmem:[%s5 + $0x1c] sm:$0xf]
        %v2591 = vld [vmem:[%s6] sm:$0x1]
        %v2593 = vlaneseq
        %v2594 = vshrl.u32 %v2593, 7
        %v2595 = vsub.s32 0, %v2594
        %v2596 = vrot.slane %v2591, %v2595
        %v2606 = vunpack.c.l.b16 %v2583
        %v2607 = vunpack.c.l.b16 %v2584
        %v2608 = vunpack.c.l.b16 %v2585
        %v2609 = vunpack.c.l.b16 %v2586
        %v2610 = vunpack.c.l.b16 %v2587
        %v2611 = vunpack.c.l.b16 %v2588
        %v2612 = vunpack.c.l.b16 %v2589
        %v2613 = vunpack.c.l.b16 %v2590
        %v2614 = vpack.c.b16 %v2607, %v2606
        %v2615 = vpack.c.b16 %v2609, %v2608
        %v2616 = vpack.c.b16 %v2611, %v2610
        %v2617 = vpack.c.b16 %v2613, %v2612
        %vm2622 = vcmask 523264
        %v2624 = vsel %vm2622, %v2567, 0
        %v2627 = vsel %vm2622, %v2568, 0
        %v2630 = vsel %vm2622, %v2569, 0
        %v2633 = vsel %vm2622, %v2570, 0
        %v2636 = vsel %vm2622, %v2571, 0
        %v2639 = vsel %vm2622, %v2572, 0
        %v2642 = vsel %vm2622, %v2573, 0
        %v2645 = vsel %vm2622, %v2574, 0
        %v2648 = vsel %vm2622, %v2575, 0
        %v2651 = vsel %vm2622, %v2576, 0
        %v2654 = vsel %vm2622, %v2577, 0
        %v2657 = vsel %vm2622, %v2578, 0
        %v2660 = vsel %vm2622, %v2579, 0
        %v2663 = vsel %vm2622, %v2580, 0
        %v2666 = vsel %vm2622, %v2581, 0
        %v2669 = vsel %vm2622, %v2582, 0
        %2671 = vmatprep.subr.bf16.mxu0 0
        %2672 = vmatpush1.bf16.msra.mxu0 0
        %2673 = vmatprep.subr.bf16.mxu0 0
        %2674 = vmatpush1.bf16.msra.mxu0 0
        %2675 = vmatprep.subr.bf16.mxu0 0
        %2676 = vmatpush1.bf16.msra.mxu0 0
        %2677 = vmatprep.subr.bf16.mxu0 0
        %2678 = vmatpush1.bf16.msra.mxu0 0
        %2679 = vmatprep.subr.bf16.mxu0 0
        %2680 = vmatpush1.bf16.msra.mxu0 %v2617
        %2681 = vmatprep.subr.bf16.mxu0 0
        %2682 = vmatpush1.bf16.msra.mxu0 %v2616
        %2683 = vmatprep.subr.bf16.mxu0 0
        %2684 = vmatpush1.bf16.msra.mxu0 %v2615
        %2685 = vmatprep.subr.bf16.mxu0 0
        %2686 = vmatpush1.bf16.msra.mxu0 %v2614
        %2687 = vmatprep.subr.bf16.mxu0 0
        %2688 = vmatpush2.bf16.msra.mxu0 0
        %2689 = vmatprep.subr.bf16.mxu0 0
        %2690 = vmatpush2.bf16.msra.mxu0 0
        %2691 = vmatprep.subr.bf16.mxu0 0
        %2692 = vmatpush2.bf16.msra.mxu0 0
        %2693 = vmatprep.subr.bf16.mxu0 0
        %2694 = vmatpush2.bf16.msra.mxu0 0
        %2695 = vmatprep.subr.bf16.mxu0 0
        %2696 = vmatpush2.bf16.msra.mxu0 0
        %2697 = vmatprep.subr.bf16.mxu0 0
        %2698 = vmatpush2.bf16.msra.mxu0 0
        %2699 = vmatprep.subr.bf16.mxu0 0
        %2700 = vmatpush2.bf16.msra.mxu0 0
        %2701 = vmatprep.subr.bf16.mxu0 0
        %2702 = vmatpush2.bf16.msra.mxu0 0
        %2703 = vmatprep.mubr.bf16.mxu0 0
        %2704 = vmatmul.mubr.bf16.gmra.mxu0 %v2624
        %v2705 = vpop.f32.mrf.mxu0
        %v2706 = vadd.f32 %v2596, %v2705
        %v2707 = vpop.f32.mrf.mxu0
        %v2708 = vpop.f32.mrf.mxu0
        %v2709 = vadd.f32 %v2596, %v2708
        %v2710 = vpop.f32.mrf.mxu0
        %2711 = vmatprep.mubr.bf16.mxu0 0
        %2712 = vmatmul.mubr.bf16.gmra.mxu0 %v2627
        %v2713 = vpop.f32.mrf.mxu0
        %v2714 = vadd.f32 %v2596, %v2713
        %v2715 = vpop.f32.mrf.mxu0
        %v2716 = vpop.f32.mrf.mxu0
        %v2717 = vadd.f32 %v2596, %v2716
        %v2718 = vpop.f32.mrf.mxu0
        %2719 = vmatprep.mubr.bf16.mxu0 0
        %2720 = vmatmul.mubr.bf16.gmra.mxu0 %v2630
        %v2721 = vpop.f32.mrf.mxu0
        %v2722 = vadd.f32 %v2596, %v2721
        %v2723 = vpop.f32.mrf.mxu0
        %v2724 = vpop.f32.mrf.mxu0
        %v2725 = vadd.f32 %v2596, %v2724
        %v2726 = vpop.f32.mrf.mxu0
        %2727 = vmatprep.mubr.bf16.mxu0 0
        %2728 = vmatmul.mubr.bf16.gmra.mxu0 %v2633
        %v2729 = vpop.f32.mrf.mxu0
        %v2730 = vadd.f32 %v2596, %v2729
        %v2731 = vpop.f32.mrf.mxu0
        %v2732 = vpop.f32.mrf.mxu0
        %v2733 = vadd.f32 %v2596, %v2732
        %v2734 = vpop.f32.mrf.mxu0
        %2735 = vmatprep.mubr.bf16.mxu0 0
        %2736 = vmatmul.mubr.bf16.gmra.mxu0 %v2636
        %v2737 = vpop.f32.mrf.mxu0
        %v2738 = vadd.f32 %v2596, %v2737
        %v2739 = vpop.f32.mrf.mxu0
        %v2740 = vpop.f32.mrf.mxu0
        %v2741 = vadd.f32 %v2596, %v2740
        %v2742 = vpop.f32.mrf.mxu0
        %2743 = vmatprep.mubr.bf16.mxu0 0
        %2744 = vmatmul.mubr.bf16.gmra.mxu0 %v2639
        %v2745 = vpop.f32.mrf.mxu0
        %v2746 = vadd.f32 %v2596, %v2745
        %v2747 = vpop.f32.mrf.mxu0
        %v2748 = vpop.f32.mrf.mxu0
        %v2749 = vadd.f32 %v2596, %v2748
        %v2750 = vpop.f32.mrf.mxu0
        %2751 = vmatprep.mubr.bf16.mxu0 0
        %2752 = vmatmul.mubr.bf16.gmra.mxu0 %v2642
        %v2753 = vpop.f32.mrf.mxu0
        %v2754 = vadd.f32 %v2596, %v2753
        %v2755 = vpop.f32.mrf.mxu0
        %v2756 = vpop.f32.mrf.mxu0
        %v2757 = vadd.f32 %v2596, %v2756
        %v2758 = vpop.f32.mrf.mxu0
        %2759 = vmatprep.mubr.bf16.mxu0 0
        %2760 = vmatmul.mubr.bf16.gmra.mxu0 %v2645
        %v2761 = vpop.f32.mrf.mxu0
        %v2762 = vadd.f32 %v2596, %v2761
        %v2763 = vpop.f32.mrf.mxu0
        %v2764 = vpop.f32.mrf.mxu0
        %v2765 = vadd.f32 %v2596, %v2764
        %v2766 = vpop.f32.mrf.mxu0
        %2767 = vmatprep.mubr.bf16.mxu0 0
        %2768 = vmatmul.mubr.bf16.gmra.mxu0 %v2648
        %v2769 = vpop.f32.mrf.mxu0
        %v2770 = vadd.f32 %v2596, %v2769
        %v2771 = vpop.f32.mrf.mxu0
        %v2772 = vpop.f32.mrf.mxu0
        %v2773 = vadd.f32 %v2596, %v2772
        %v2774 = vpop.f32.mrf.mxu0
        %2775 = vmatprep.mubr.bf16.mxu0 0
        %2776 = vmatmul.mubr.bf16.gmra.mxu0 %v2651
        %v2777 = vpop.f32.mrf.mxu0
        %v2778 = vadd.f32 %v2596, %v2777
        %v2779 = vpop.f32.mrf.mxu0
        %v2780 = vpop.f32.mrf.mxu0
        %v2781 = vadd.f32 %v2596, %v2780
        %v2782 = vpop.f32.mrf.mxu0
        %2783 = vmatprep.mubr.bf16.mxu0 0
        %2784 = vmatmul.mubr.bf16.gmra.mxu0 %v2654
        %v2785 = vpop.f32.mrf.mxu0
        %v2786 = vadd.f32 %v2596, %v2785
        %v2787 = vpop.f32.mrf.mxu0
        %v2788 = vpop.f32.mrf.mxu0
        %v2789 = vadd.f32 %v2596, %v2788
        %v2790 = vpop.f32.mrf.mxu0
        %2791 = vmatprep.mubr.bf16.mxu0 0
        %2792 = vmatmul.mubr.bf16.gmra.mxu0 %v2657
        %v2793 = vpop.f32.mrf.mxu0
        %v2794 = vadd.f32 %v2596, %v2793
        %v2795 = vpop.f32.mrf.mxu0
        %v2796 = vpop.f32.mrf.mxu0
        %v2797 = vadd.f32 %v2596, %v2796
        %v2798 = vpop.f32.mrf.mxu0
        %2799 = vmatprep.mubr.bf16.mxu0 0
        %2800 = vmatmul.mubr.bf16.gmra.mxu0 %v2660
        %v2801 = vpop.f32.mrf.mxu0
        %v2802 = vadd.f32 %v2596, %v2801
        %v2803 = vpop.f32.mrf.mxu0
        %v2804 = vpop.f32.mrf.mxu0
        %v2805 = vadd.f32 %v2596, %v2804
        %v2806 = vpop.f32.mrf.mxu0
        %2807 = vmatprep.mubr.bf16.mxu0 0
        %2808 = vmatmul.mubr.bf16.gmra.mxu0 %v2663
        %v2809 = vpop.f32.mrf.mxu0
        %v2810 = vadd.f32 %v2596, %v2809
        %v2811 = vpop.f32.mrf.mxu0
        %v2812 = vpop.f32.mrf.mxu0
        %v2813 = vadd.f32 %v2596, %v2812
        %v2814 = vpop.f32.mrf.mxu0
        %2815 = vmatprep.mubr.bf16.mxu0 0
        %2816 = vmatmul.mubr.bf16.gmra.mxu0 %v2666
        %v2817 = vpop.f32.mrf.mxu0
        %v2818 = vadd.f32 %v2596, %v2817
        %v2819 = vpop.f32.mrf.mxu0
        %v2820 = vpop.f32.mrf.mxu0
        %v2821 = vadd.f32 %v2596, %v2820
        %v2822 = vpop.f32.mrf.mxu0
        %2823 = vmatprep.mubr.bf16.mxu0 0
        %2824 = vmatmul.mubr.bf16.gmra.mxu0 %v2669
        %v2825 = vpop.f32.mrf.mxu0
        %v2826 = vadd.f32 %v2596, %v2825
        %v2827 = vpop.f32.mrf.mxu0
        %v2828 = vpop.f32.mrf.mxu0
        %v2829 = vadd.f32 %v2596, %v2828
        %v2830 = vpop.f32.mrf.mxu0
        %2831 = vdwg.mxu0
        %v2832 = vadd.f32 %v1904, %v2706
        %v2833 = vadd.f32 %v1907, %v2709
        %v2834 = vadd.f32 %v1912, %v2714
        %v2835 = vadd.f32 %v1915, %v2717
        %v2836 = vadd.f32 %v1920, %v2722
        %v2837 = vadd.f32 %v1923, %v2725
        %v2838 = vadd.f32 %v1928, %v2730
        %v2839 = vadd.f32 %v1931, %v2733
        %v2840 = vadd.f32 %v1936, %v2738
        %v2841 = vadd.f32 %v1939, %v2741
        %v2842 = vadd.f32 %v1944, %v2746
        %v2843 = vadd.f32 %v1947, %v2749
        %v2844 = vadd.f32 %v1952, %v2754
        %v2845 = vadd.f32 %v1955, %v2757
        %v2846 = vadd.f32 %v1960, %v2762
        %v2847 = vadd.f32 %v1963, %v2765
        %v2848 = vadd.f32 %v1968, %v2770
        %v2849 = vadd.f32 %v1971, %v2773
        %v2850 = vadd.f32 %v1976, %v2778
        %v2851 = vadd.f32 %v1979, %v2781
        %v2852 = vadd.f32 %v1984, %v2786
        %v2853 = vadd.f32 %v1987, %v2789
        %v2854 = vadd.f32 %v1992, %v2794
        %v2855 = vadd.f32 %v1995, %v2797
        %v2856 = vadd.f32 %v2000, %v2802
        %v2857 = vadd.f32 %v2003, %v2805
        %v2858 = vadd.f32 %v2008, %v2810
        %v2859 = vadd.f32 %v2011, %v2813
        %v2860 = vadd.f32 %v2016, %v2818
        %v2861 = vadd.f32 %v2019, %v2821
        %v2862 = vadd.f32 %v2024, %v2826
        %v2863 = vadd.f32 %v2027, %v2829
        %v2864 = vpack.c.bf16 %v2833, %v2832
        %v2865 = vpack.c.bf16 %v2835, %v2834
        %v2866 = vpack.c.bf16 %v2837, %v2836
        %v2867 = vpack.c.bf16 %v2839, %v2838
        %v2868 = vpack.c.bf16 %v2841, %v2840
        %v2869 = vpack.c.bf16 %v2843, %v2842
        %v2870 = vpack.c.bf16 %v2845, %v2844
        %v2871 = vpack.c.bf16 %v2847, %v2846
        %v2872 = vpack.c.bf16 %v2849, %v2848
        %v2873 = vpack.c.bf16 %v2851, %v2850
        %v2874 = vpack.c.bf16 %v2853, %v2852
        %v2875 = vpack.c.bf16 %v2855, %v2854
        %v2876 = vpack.c.bf16 %v2857, %v2856
        %v2877 = vpack.c.bf16 %v2859, %v2858
        %v2878 = vpack.c.bf16 %v2861, %v2860
        %v2879 = vpack.c.bf16 %v2863, %v2862
        %s2880 = scalar_lea.vmem %s3, 16
        %v2881 = vld [vmem:[%s2880] sm:$0xf]
        %v2882 = vld [vmem:[%s2880 + $0x4] sm:$0xf]
        %v2883 = vld [vmem:[%s2880 + $0x8] sm:$0xf]
        %v2884 = vld [vmem:[%s2880 + $0xc] sm:$0xf]
        %s2885 = scalar_lea.vmem %s4, 1
        %v2886 = vld [vmem:[%s2885] sm:$0x1]
        %v2888 = vlaneseq
        %v2889 = vshrl.u32 %v2888, 7
        %v2890 = vsub.s32 0, %v2889
        %v2891 = vrot.slane %v2886, %v2890
        %v2897 = vunpack.c.l.b16 %v2881
        %v2898 = vunpack.c.l.b16 %v2882
        %v2899 = vunpack.c.l.b16 %v2883
        %v2900 = vunpack.c.l.b16 %v2884
        %v2901 = vpack.c.b16 %v2898, %v2897
        %v2902 = vpack.c.b16 %v2900, %v2899
        %v2906 = vsel %vm2069, %v2864, 0
        %v2909 = vsel %vm2069, %v2865, 0
        %v2912 = vsel %vm2069, %v2866, 0
        %v2915 = vsel %vm2069, %v2867, 0
        %v2918 = vsel %vm2069, %v2868, 0
        %v2921 = vsel %vm2069, %v2869, 0
        %v2924 = vsel %vm2069, %v2870, 0
        %v2927 = vsel %vm2069, %v2871, 0
        %v2930 = vsel %vm2069, %v2872, 0
        %v2933 = vsel %vm2069, %v2873, 0
        %v2936 = vsel %vm2069, %v2874, 0
        %v2939 = vsel %vm2069, %v2875, 0
        %v2942 = vsel %vm2069, %v2876, 0
        %v2945 = vsel %vm2069, %v2877, 0
        %v2948 = vsel %vm2069, %v2878, 0
        %v2951 = vsel %vm2069, %v2879, 0
        %2953 = vmatprep.subr.bf16.mxu0 0
        %2954 = vmatpush1.bf16.msra.mxu0 0
        %2955 = vmatprep.subr.bf16.mxu0 0
        %2956 = vmatpush1.bf16.msra.mxu0 0
        %2957 = vmatprep.subr.bf16.mxu0 0
        %2958 = vmatpush1.bf16.msra.mxu0 0
        %2959 = vmatprep.subr.bf16.mxu0 0
        %2960 = vmatpush1.bf16.msra.mxu0 0
        %2961 = vmatprep.subr.bf16.mxu0 0
        %2962 = vmatpush1.bf16.msra.mxu0 0
        %2963 = vmatprep.subr.bf16.mxu0 0
        %2964 = vmatpush1.bf16.msra.mxu0 0
        %2965 = vmatprep.subr.bf16.mxu0 0
        %2966 = vmatpush1.bf16.msra.mxu0 %v2902
        %2967 = vmatprep.subr.bf16.mxu0 0
        %2968 = vmatpush1.bf16.msra.mxu0 %v2901
        %2969 = vmatprep.subr.bf16.mxu0 0
        %2970 = vmatpush2.bf16.msra.mxu0 0
        %2971 = vmatprep.subr.bf16.mxu0 0
        %2972 = vmatpush2.bf16.msra.mxu0 0
        %2973 = vmatprep.subr.bf16.mxu0 0
        %2974 = vmatpush2.bf16.msra.mxu0 0
        %2975 = vmatprep.subr.bf16.mxu0 0
        %2976 = vmatpush2.bf16.msra.mxu0 0
        %2977 = vmatprep.subr.bf16.mxu0 0
        %2978 = vmatpush2.bf16.msra.mxu0 0
        %2979 = vmatprep.subr.bf16.mxu0 0
        %2980 = vmatpush2.bf16.msra.mxu0 0
        %2981 = vmatprep.subr.bf16.mxu0 0
        %2982 = vmatpush2.bf16.msra.mxu0 0
        %2983 = vmatprep.subr.bf16.mxu0 0
        %2984 = vmatpush2.bf16.msra.mxu0 0
        %2985 = vmatprep.mubr.bf16.mxu0 0
        %2986 = vmatmul.mubr.bf16.gmra.mxu0 %v2906
        %v2987 = vpop.f32.mrf.mxu0
        %v2988 = vadd.f32 %v2891, %v2987
        %v2989 = vpop.f32.mrf.mxu0
        %v2990 = vpop.f32.mrf.mxu0
        %v2991 = vadd.f32 %v2891, %v2990
        %v2992 = vpop.f32.mrf.mxu0
        %2993 = vmatprep.mubr.bf16.mxu0 0
        %2994 = vmatmul.mubr.bf16.gmra.mxu0 %v2909
        %v2995 = vpop.f32.mrf.mxu0
        %v2996 = vadd.f32 %v2891, %v2995
        %v2997 = vpop.f32.mrf.mxu0
        %v2998 = vpop.f32.mrf.mxu0
        %v2999 = vadd.f32 %v2891, %v2998
        %v3000 = vpop.f32.mrf.mxu0
        %3001 = vmatprep.mubr.bf16.mxu0 0
        %3002 = vmatmul.mubr.bf16.gmra.mxu0 %v2912
        %v3003 = vpop.f32.mrf.mxu0
        %v3004 = vadd.f32 %v2891, %v3003
        %v3005 = vpop.f32.mrf.mxu0
        %v3006 = vpop.f32.mrf.mxu0
        %v3007 = vadd.f32 %v2891, %v3006
        %v3008 = vpop.f32.mrf.mxu0
        %3009 = vmatprep.mubr.bf16.mxu0 0
        %3010 = vmatmul.mubr.bf16.gmra.mxu0 %v2915
        %v3011 = vpop.f32.mrf.mxu0
        %v3012 = vadd.f32 %v2891, %v3011
        %v3013 = vpop.f32.mrf.mxu0
        %v3014 = vpop.f32.mrf.mxu0
        %v3015 = vadd.f32 %v2891, %v3014
        %v3016 = vpop.f32.mrf.mxu0
        %3017 = vmatprep.mubr.bf16.mxu0 0
        %3018 = vmatmul.mubr.bf16.gmra.mxu0 %v2918
        %v3019 = vpop.f32.mrf.mxu0
        %v3020 = vadd.f32 %v2891, %v3019
        %v3021 = vpop.f32.mrf.mxu0
        %v3022 = vpop.f32.mrf.mxu0
        %v3023 = vadd.f32 %v2891, %v3022
        %v3024 = vpop.f32.mrf.mxu0
        %3025 = vmatprep.mubr.bf16.mxu0 0
        %3026 = vmatmul.mubr.bf16.gmra.mxu0 %v2921
        %v3027 = vpop.f32.mrf.mxu0
        %v3028 = vadd.f32 %v2891, %v3027
        %v3029 = vpop.f32.mrf.mxu0
        %v3030 = vpop.f32.mrf.mxu0
        %v3031 = vadd.f32 %v2891, %v3030
        %v3032 = vpop.f32.mrf.mxu0
        %3033 = vmatprep.mubr.bf16.mxu0 0
        %3034 = vmatmul.mubr.bf16.gmra.mxu0 %v2924
        %v3035 = vpop.f32.mrf.mxu0
        %v3036 = vadd.f32 %v2891, %v3035
        %v3037 = vpop.f32.mrf.mxu0
        %v3038 = vpop.f32.mrf.mxu0
        %v3039 = vadd.f32 %v2891, %v3038
        %v3040 = vpop.f32.mrf.mxu0
        %3041 = vmatprep.mubr.bf16.mxu0 0
        %3042 = vmatmul.mubr.bf16.gmra.mxu0 %v2927
        %v3043 = vpop.f32.mrf.mxu0
        %v3044 = vadd.f32 %v2891, %v3043
        %v3045 = vpop.f32.mrf.mxu0
        %v3046 = vpop.f32.mrf.mxu0
        %v3047 = vadd.f32 %v2891, %v3046
        %v3048 = vpop.f32.mrf.mxu0
        %3049 = vmatprep.mubr.bf16.mxu0 0
        %3050 = vmatmul.mubr.bf16.gmra.mxu0 %v2930
        %v3051 = vpop.f32.mrf.mxu0
        %v3052 = vadd.f32 %v2891, %v3051
        %v3053 = vpop.f32.mrf.mxu0
        %v3054 = vpop.f32.mrf.mxu0
        %v3055 = vadd.f32 %v2891, %v3054
        %v3056 = vpop.f32.mrf.mxu0
        %3057 = vmatprep.mubr.bf16.mxu0 0
        %3058 = vmatmul.mubr.bf16.gmra.mxu0 %v2933
        %v3059 = vpop.f32.mrf.mxu0
        %v3060 = vadd.f32 %v2891, %v3059
        %v3061 = vpop.f32.mrf.mxu0
        %v3062 = vpop.f32.mrf.mxu0
        %v3063 = vadd.f32 %v2891, %v3062
        %v3064 = vpop.f32.mrf.mxu0
        %3065 = vmatprep.mubr.bf16.mxu0 0
        %3066 = vmatmul.mubr.bf16.gmra.mxu0 %v2936
        %v3067 = vpop.f32.mrf.mxu0
        %v3068 = vadd.f32 %v2891, %v3067
        %v3069 = vpop.f32.mrf.mxu0
        %v3070 = vpop.f32.mrf.mxu0
        %v3071 = vadd.f32 %v2891, %v3070
        %v3072 = vpop.f32.mrf.mxu0
        %3073 = vmatprep.mubr.bf16.mxu0 0
        %3074 = vmatmul.mubr.bf16.gmra.mxu0 %v2939
        %v3075 = vpop.f32.mrf.mxu0
        %v3076 = vadd.f32 %v2891, %v3075
        %v3077 = vpop.f32.mrf.mxu0
        %v3078 = vpop.f32.mrf.mxu0
        %v3079 = vadd.f32 %v2891, %v3078
        %v3080 = vpop.f32.mrf.mxu0
        %3081 = vmatprep.mubr.bf16.mxu0 0
        %3082 = vmatmul.mubr.bf16.gmra.mxu0 %v2942
        %v3083 = vpop.f32.mrf.mxu0
        %v3084 = vadd.f32 %v2891, %v3083
        %v3085 = vpop.f32.mrf.mxu0
        %v3086 = vpop.f32.mrf.mxu0
        %v3087 = vadd.f32 %v2891, %v3086
        %v3088 = vpop.f32.mrf.mxu0
        %3089 = vmatprep.mubr.bf16.mxu0 0
        %3090 = vmatmul.mubr.bf16.gmra.mxu0 %v2945
        %v3091 = vpop.f32.mrf.mxu0
        %v3092 = vadd.f32 %v2891, %v3091
        %v3093 = vpop.f32.mrf.mxu0
        %v3094 = vpop.f32.mrf.mxu0
        %v3095 = vadd.f32 %v2891, %v3094
        %v3096 = vpop.f32.mrf.mxu0
        %3097 = vmatprep.mubr.bf16.mxu0 0
        %3098 = vmatmul.mubr.bf16.gmra.mxu0 %v2948
        %v3099 = vpop.f32.mrf.mxu0
        %v3100 = vadd.f32 %v2891, %v3099
        %v3101 = vpop.f32.mrf.mxu0
        %v3102 = vpop.f32.mrf.mxu0
        %v3103 = vadd.f32 %v2891, %v3102
        %v3104 = vpop.f32.mrf.mxu0
        %3105 = vmatprep.mubr.bf16.mxu0 0
        %3106 = vmatmul.mubr.bf16.gmra.mxu0 %v2951
        %v3107 = vpop.f32.mrf.mxu0
        %v3108 = vadd.f32 %v2891, %v3107
        %v3109 = vpop.f32.mrf.mxu0
        %v3110 = vpop.f32.mrf.mxu0
        %v3111 = vadd.f32 %v2891, %v3110
        %v3112 = vpop.f32.mrf.mxu0
        %3113 = vdwg.mxu0
        %v3114 = vmul.f32 %v2988, %v2988
        %v3115 = vmul.f32 %v2991, %v2991
        %v3116 = vmul.f32 %v2996, %v2996
        %v3117 = vmul.f32 %v2999, %v2999
        %v3118 = vmul.f32 %v3004, %v3004
        %v3119 = vmul.f32 %v3007, %v3007
        %v3120 = vmul.f32 %v3012, %v3012
        %v3121 = vmul.f32 %v3015, %v3015
        %v3122 = vmul.f32 %v3020, %v3020
        %v3123 = vmul.f32 %v3023, %v3023
        %v3124 = vmul.f32 %v3028, %v3028
        %v3125 = vmul.f32 %v3031, %v3031
        %v3126 = vmul.f32 %v3036, %v3036
        %v3127 = vmul.f32 %v3039, %v3039
        %v3128 = vmul.f32 %v3044, %v3044
        %v3129 = vmul.f32 %v3047, %v3047
        %v3130 = vmul.f32 %v3052, %v3052
        %v3131 = vmul.f32 %v3055, %v3055
        %v3132 = vmul.f32 %v3060, %v3060
        %v3133 = vmul.f32 %v3063, %v3063
        %v3134 = vmul.f32 %v3068, %v3068
        %v3135 = vmul.f32 %v3071, %v3071
        %v3136 = vmul.f32 %v3076, %v3076
        %v3137 = vmul.f32 %v3079, %v3079
        %v3138 = vmul.f32 %v3084, %v3084
        %v3139 = vmul.f32 %v3087, %v3087
        %v3140 = vmul.f32 %v3092, %v3092
        %v3141 = vmul.f32 %v3095, %v3095
        %v3142 = vmul.f32 %v3100, %v3100
        %v3143 = vmul.f32 %v3103, %v3103
        %v3144 = vmul.f32 %v3108, %v3108
        %v3145 = vmul.f32 %v3111, %v3111
        %v3146 = vmul.f32 %v2988, %v3114
        %v3147 = vmul.f32 %v2991, %v3115
        %v3148 = vmul.f32 %v2996, %v3116
        %v3149 = vmul.f32 %v2999, %v3117
        %v3150 = vmul.f32 %v3004, %v3118
        %v3151 = vmul.f32 %v3007, %v3119
        %v3152 = vmul.f32 %v3012, %v3120
        %v3153 = vmul.f32 %v3015, %v3121
        %v3154 = vmul.f32 %v3020, %v3122
        %v3155 = vmul.f32 %v3023, %v3123
        %v3156 = vmul.f32 %v3028, %v3124
        %v3157 = vmul.f32 %v3031, %v3125
        %v3158 = vmul.f32 %v3036, %v3126
        %v3159 = vmul.f32 %v3039, %v3127
        %v3160 = vmul.f32 %v3044, %v3128
        %v3161 = vmul.f32 %v3047, %v3129
        %v3162 = vmul.f32 %v3052, %v3130
        %v3163 = vmul.f32 %v3055, %v3131
        %v3164 = vmul.f32 %v3060, %v3132
        %v3165 = vmul.f32 %v3063, %v3133
        %v3166 = vmul.f32 %v3068, %v3134
        %v3167 = vmul.f32 %v3071, %v3135
        %v3168 = vmul.f32 %v3076, %v3136
        %v3169 = vmul.f32 %v3079, %v3137
        %v3170 = vmul.f32 %v3084, %v3138
        %v3171 = vmul.f32 %v3087, %v3139
        %v3172 = vmul.f32 %v3092, %v3140
        %v3173 = vmul.f32 %v3095, %v3141
        %v3174 = vmul.f32 %v3100, %v3142
        %v3175 = vmul.f32 %v3103, %v3143
        %v3176 = vmul.f32 %v3108, %v3144
        %v3177 = vmul.f32 %v3111, %v3145
        %v3178 = vmul.f32 %v3146, 0.044715
        %v3179 = vmul.f32 %v3147, 0.044715
        %v3180 = vmul.f32 %v3148, 0.044715
        %v3181 = vmul.f32 %v3149, 0.044715
        %v3182 = vmul.f32 %v3150, 0.044715
        %v3183 = vmul.f32 %v3151, 0.044715
        %v3184 = vmul.f32 %v3152, 0.044715
        %v3185 = vmul.f32 %v3153, 0.044715
        %v3186 = vmul.f32 %v3154, 0.044715
        %v3187 = vmul.f32 %v3155, 0.044715
        %v3188 = vmul.f32 %v3156, 0.044715
        %v3189 = vmul.f32 %v3157, 0.044715
        %v3190 = vmul.f32 %v3158, 0.044715
        %v3191 = vmul.f32 %v3159, 0.044715
        %v3192 = vmul.f32 %v3160, 0.044715
        %v3193 = vmul.f32 %v3161, 0.044715
        %v3194 = vmul.f32 %v3162, 0.044715
        %v3195 = vmul.f32 %v3163, 0.044715
        %v3196 = vmul.f32 %v3164, 0.044715
        %v3197 = vmul.f32 %v3165, 0.044715
        %v3198 = vmul.f32 %v3166, 0.044715
        %v3199 = vmul.f32 %v3167, 0.044715
        %v3200 = vmul.f32 %v3168, 0.044715
        %v3201 = vmul.f32 %v3169, 0.044715
        %v3202 = vmul.f32 %v3170, 0.044715
        %v3203 = vmul.f32 %v3171, 0.044715
        %v3204 = vmul.f32 %v3172, 0.044715
        %v3205 = vmul.f32 %v3173, 0.044715
        %v3206 = vmul.f32 %v3174, 0.044715
        %v3207 = vmul.f32 %v3175, 0.044715
        %v3208 = vmul.f32 %v3176, 0.044715
        %v3209 = vmul.f32 %v3177, 0.044715
        %v3210 = vadd.f32 %v2988, %v3178
        %v3211 = vadd.f32 %v2991, %v3179
        %v3212 = vadd.f32 %v2996, %v3180
        %v3213 = vadd.f32 %v2999, %v3181
        %v3214 = vadd.f32 %v3004, %v3182
        %v3215 = vadd.f32 %v3007, %v3183
        %v3216 = vadd.f32 %v3012, %v3184
        %v3217 = vadd.f32 %v3015, %v3185
        %v3218 = vadd.f32 %v3020, %v3186
        %v3219 = vadd.f32 %v3023, %v3187
        %v3220 = vadd.f32 %v3028, %v3188
        %v3221 = vadd.f32 %v3031, %v3189
        %v3222 = vadd.f32 %v3036, %v3190
        %v3223 = vadd.f32 %v3039, %v3191
        %v3224 = vadd.f32 %v3044, %v3192
        %v3225 = vadd.f32 %v3047, %v3193
        %v3226 = vadd.f32 %v3052, %v3194
        %v3227 = vadd.f32 %v3055, %v3195
        %v3228 = vadd.f32 %v3060, %v3196
        %v3229 = vadd.f32 %v3063, %v3197
        %v3230 = vadd.f32 %v3068, %v3198
        %v3231 = vadd.f32 %v3071, %v3199
        %v3232 = vadd.f32 %v3076, %v3200
        %v3233 = vadd.f32 %v3079, %v3201
        %v3234 = vadd.f32 %v3084, %v3202
        %v3235 = vadd.f32 %v3087, %v3203
        %v3236 = vadd.f32 %v3092, %v3204
        %v3237 = vadd.f32 %v3095, %v3205
        %v3238 = vadd.f32 %v3100, %v3206
        %v3239 = vadd.f32 %v3103, %v3207
        %v3240 = vadd.f32 %v3108, %v3208
        %v3241 = vadd.f32 %v3111, %v3209
        %v3242 = vmul.f32 %v3210, 0.7978846
        %v3243 = vmul.f32 %v3211, 0.7978846
        %v3244 = vmul.f32 %v3212, 0.7978846
        %v3245 = vmul.f32 %v3213, 0.7978846
        %v3246 = vmul.f32 %v3214, 0.7978846
        %v3247 = vmul.f32 %v3215, 0.7978846
        %v3248 = vmul.f32 %v3216, 0.7978846
        %v3249 = vmul.f32 %v3217, 0.7978846
        %v3250 = vmul.f32 %v3218, 0.7978846
        %v3251 = vmul.f32 %v3219, 0.7978846
        %v3252 = vmul.f32 %v3220, 0.7978846
        %v3253 = vmul.f32 %v3221, 0.7978846
        %v3254 = vmul.f32 %v3222, 0.7978846
        %v3255 = vmul.f32 %v3223, 0.7978846
        %v3256 = vmul.f32 %v3224, 0.7978846
        %v3257 = vmul.f32 %v3225, 0.7978846
        %v3258 = vmul.f32 %v3226, 0.7978846
        %v3259 = vmul.f32 %v3227, 0.7978846
        %v3260 = vmul.f32 %v3228, 0.7978846
        %v3261 = vmul.f32 %v3229, 0.7978846
        %v3262 = vmul.f32 %v3230, 0.7978846
        %v3263 = vmul.f32 %v3231, 0.7978846
        %v3264 = vmul.f32 %v3232, 0.7978846
        %v3265 = vmul.f32 %v3233, 0.7978846
        %v3266 = vmul.f32 %v3234, 0.7978846
        %v3267 = vmul.f32 %v3235, 0.7978846
        %v3268 = vmul.f32 %v3236, 0.7978846
        %v3269 = vmul.f32 %v3237, 0.7978846
        %v3270 = vmul.f32 %v3238, 0.7978846
        %v3271 = vmul.f32 %v3239, 0.7978846
        %v3272 = vmul.f32 %v3240, 0.7978846
        %v3273 = vmul.f32 %v3241, 0.7978846
        %v3274 = vtanh.pop %v3242
        %v3275 = vtanh.pop %v3243
        %v3276 = vtanh.pop %v3244
        %v3277 = vtanh.pop %v3245
        %v3278 = vtanh.pop %v3246
        %v3279 = vtanh.pop %v3247
        %v3280 = vtanh.pop %v3248
        %v3281 = vtanh.pop %v3249
        %v3282 = vtanh.pop %v3250
        %v3283 = vtanh.pop %v3251
        %v3284 = vtanh.pop %v3252
        %v3285 = vtanh.pop %v3253
        %v3286 = vtanh.pop %v3254
        %v3287 = vtanh.pop %v3255
        %v3288 = vtanh.pop %v3256
        %v3289 = vtanh.pop %v3257
        %v3290 = vtanh.pop %v3258
        %v3291 = vtanh.pop %v3259
        %v3292 = vtanh.pop %v3260
        %v3293 = vtanh.pop %v3261
        %v3294 = vtanh.pop %v3262
        %v3295 = vtanh.pop %v3263
        %v3296 = vtanh.pop %v3264
        %v3297 = vtanh.pop %v3265
        %v3298 = vtanh.pop %v3266
        %v3299 = vtanh.pop %v3267
        %v3300 = vtanh.pop %v3268
        %v3301 = vtanh.pop %v3269
        %v3302 = vtanh.pop %v3270
        %v3303 = vtanh.pop %v3271
        %v3304 = vtanh.pop %v3272
        %v3305 = vtanh.pop %v3273
        %v3306 = vadd.f32 %v3274, 1.0
        %v3307 = vadd.f32 %v3275, 1.0
        %v3308 = vadd.f32 %v3276, 1.0
        %v3309 = vadd.f32 %v3277, 1.0
        %v3310 = vadd.f32 %v3278, 1.0
        %v3311 = vadd.f32 %v3279, 1.0
        %v3312 = vadd.f32 %v3280, 1.0
        %v3313 = vadd.f32 %v3281, 1.0
        %v3314 = vadd.f32 %v3282, 1.0
        %v3315 = vadd.f32 %v3283, 1.0
        %v3316 = vadd.f32 %v3284, 1.0
        %v3317 = vadd.f32 %v3285, 1.0
        %v3318 = vadd.f32 %v3286, 1.0
        %v3319 = vadd.f32 %v3287, 1.0
        %v3320 = vadd.f32 %v3288, 1.0
        %v3321 = vadd.f32 %v3289, 1.0
        %v3322 = vadd.f32 %v3290, 1.0
        %v3323 = vadd.f32 %v3291, 1.0
        %v3324 = vadd.f32 %v3292, 1.0
        %v3325 = vadd.f32 %v3293, 1.0
        %v3326 = vadd.f32 %v3294, 1.0
        %v3327 = vadd.f32 %v3295, 1.0
        %v3328 = vadd.f32 %v3296, 1.0
        %v3329 = vadd.f32 %v3297, 1.0
        %v3330 = vadd.f32 %v3298, 1.0
        %v3331 = vadd.f32 %v3299, 1.0
        %v3332 = vadd.f32 %v3300, 1.0
        %v3333 = vadd.f32 %v3301, 1.0
        %v3334 = vadd.f32 %v3302, 1.0
        %v3335 = vadd.f32 %v3303, 1.0
        %v3336 = vadd.f32 %v3304, 1.0
        %v3337 = vadd.f32 %v3305, 1.0
        %v3338 = vmul.f32 %v3306, 0.5
        %v3339 = vmul.f32 %v3307, 0.5
        %v3340 = vmul.f32 %v3308, 0.5
        %v3341 = vmul.f32 %v3309, 0.5
        %v3342 = vmul.f32 %v3310, 0.5
        %v3343 = vmul.f32 %v3311, 0.5
        %v3344 = vmul.f32 %v3312, 0.5
        %v3345 = vmul.f32 %v3313, 0.5
        %v3346 = vmul.f32 %v3314, 0.5
        %v3347 = vmul.f32 %v3315, 0.5
        %v3348 = vmul.f32 %v3316, 0.5
        %v3349 = vmul.f32 %v3317, 0.5
        %v3350 = vmul.f32 %v3318, 0.5
        %v3351 = vmul.f32 %v3319, 0.5
        %v3352 = vmul.f32 %v3320, 0.5
        %v3353 = vmul.f32 %v3321, 0.5
        %v3354 = vmul.f32 %v3322, 0.5
        %v3355 = vmul.f32 %v3323, 0.5
        %v3356 = vmul.f32 %v3324, 0.5
        %v3357 = vmul.f32 %v3325, 0.5
        %v3358 = vmul.f32 %v3326, 0.5
        %v3359 = vmul.f32 %v3327, 0.5
        %v3360 = vmul.f32 %v3328, 0.5
        %v3361 = vmul.f32 %v3329, 0.5
        %v3362 = vmul.f32 %v3330, 0.5
        %v3363 = vmul.f32 %v3331, 0.5
        %v3364 = vmul.f32 %v3332, 0.5
        %v3365 = vmul.f32 %v3333, 0.5
        %v3366 = vmul.f32 %v3334, 0.5
        %v3367 = vmul.f32 %v3335, 0.5
        %v3368 = vmul.f32 %v3336, 0.5
        %v3369 = vmul.f32 %v3337, 0.5
        %v3370 = vmul.f32 %v2988, %v3338
        %v3371 = vmul.f32 %v2991, %v3339
        %v3372 = vmul.f32 %v2996, %v3340
        %v3373 = vmul.f32 %v2999, %v3341
        %v3374 = vmul.f32 %v3004, %v3342
        %v3375 = vmul.f32 %v3007, %v3343
        %v3376 = vmul.f32 %v3012, %v3344
        %v3377 = vmul.f32 %v3015, %v3345
        %v3378 = vmul.f32 %v3020, %v3346
        %v3379 = vmul.f32 %v3023, %v3347
        %v3380 = vmul.f32 %v3028, %v3348
        %v3381 = vmul.f32 %v3031, %v3349
        %v3382 = vmul.f32 %v3036, %v3350
        %v3383 = vmul.f32 %v3039, %v3351
        %v3384 = vmul.f32 %v3044, %v3352
        %v3385 = vmul.f32 %v3047, %v3353
        %v3386 = vmul.f32 %v3052, %v3354
        %v3387 = vmul.f32 %v3055, %v3355
        %v3388 = vmul.f32 %v3060, %v3356
        %v3389 = vmul.f32 %v3063, %v3357
        %v3390 = vmul.f32 %v3068, %v3358
        %v3391 = vmul.f32 %v3071, %v3359
        %v3392 = vmul.f32 %v3076, %v3360
        %v3393 = vmul.f32 %v3079, %v3361
        %v3394 = vmul.f32 %v3084, %v3362
        %v3395 = vmul.f32 %v3087, %v3363
        %v3396 = vmul.f32 %v3092, %v3364
        %v3397 = vmul.f32 %v3095, %v3365
        %v3398 = vmul.f32 %v3100, %v3366
        %v3399 = vmul.f32 %v3103, %v3367
        %v3400 = vmul.f32 %v3108, %v3368
        %v3401 = vmul.f32 %v3111, %v3369
        %v3402 = vpack.c.bf16 %v3371, %v3370
        %v3403 = vpack.c.bf16 %v3373, %v3372
        %v3404 = vpack.c.bf16 %v3375, %v3374
        %v3405 = vpack.c.bf16 %v3377, %v3376
        %v3406 = vpack.c.bf16 %v3379, %v3378
        %v3407 = vpack.c.bf16 %v3381, %v3380
        %v3408 = vpack.c.bf16 %v3383, %v3382
        %v3409 = vpack.c.bf16 %v3385, %v3384
        %v3410 = vpack.c.bf16 %v3387, %v3386
        %v3411 = vpack.c.bf16 %v3389, %v3388
        %v3412 = vpack.c.bf16 %v3391, %v3390
        %v3413 = vpack.c.bf16 %v3393, %v3392
        %v3414 = vpack.c.bf16 %v3395, %v3394
        %v3415 = vpack.c.bf16 %v3397, %v3396
        %v3416 = vpack.c.bf16 %v3399, %v3398
        %v3417 = vpack.c.bf16 %v3401, %v3400
        %s3418 = scalar_lea.vmem %s5, 32
        %v3419 = vld [vmem:[%s3418] sm:$0xf]
        %v3420 = vld [vmem:[%s3418 + $0x4] sm:$0xf]
        %v3421 = vld [vmem:[%s3418 + $0x8] sm:$0xf]
        %v3422 = vld [vmem:[%s3418 + $0xc] sm:$0xf]
        %v3423 = vld [vmem:[%s3418 + $0x10] sm:$0xf]
        %v3424 = vld [vmem:[%s3418 + $0x14] sm:$0xf]
        %v3425 = vld [vmem:[%s3418 + $0x18] sm:$0xf]
        %v3426 = vld [vmem:[%s3418 + $0x1c] sm:$0xf]
        %s3427 = scalar_lea.vmem %s6, 1
        %v3428 = vld [vmem:[%s3427] sm:$0x1]
        %v3430 = vlaneseq
        %v3431 = vshrl.u32 %v3430, 7
        %v3432 = vsub.s32 0, %v3431
        %v3433 = vrot.slane %v3428, %v3432
        %v3443 = vunpack.c.l.b16 %v3419
        %v3444 = vunpack.c.l.b16 %v3420
        %v3445 = vunpack.c.l.b16 %v3421
        %v3446 = vunpack.c.l.b16 %v3422
        %v3447 = vunpack.c.l.b16 %v3423
        %v3448 = vunpack.c.l.b16 %v3424
        %v3449 = vunpack.c.l.b16 %v3425
        %v3450 = vunpack.c.l.b16 %v3426
        %v3451 = vpack.c.b16 %v3444, %v3443
        %v3452 = vpack.c.b16 %v3446, %v3445
        %v3453 = vpack.c.b16 %v3448, %v3447
        %v3454 = vpack.c.b16 %v3450, %v3449
        %v3460 = vsel %vm2622, %v3402, 0
        %v3463 = vsel %vm2622, %v3403, 0
        %v3466 = vsel %vm2622, %v3404, 0
        %v3469 = vsel %vm2622, %v3405, 0
        %v3472 = vsel %vm2622, %v3406, 0
        %v3475 = vsel %vm2622, %v3407, 0
        %v3478 = vsel %vm2622, %v3408, 0
        %v3481 = vsel %vm2622, %v3409, 0
        %v3484 = vsel %vm2622, %v3410, 0
        %v3487 = vsel %vm2622, %v3411, 0
        %v3490 = vsel %vm2622, %v3412, 0
        %v3493 = vsel %vm2622, %v3413, 0
        %v3496 = vsel %vm2622, %v3414, 0
        %v3499 = vsel %vm2622, %v3415, 0
        %v3502 = vsel %vm2622, %v3416, 0
        %v3505 = vsel %vm2622, %v3417, 0
        %3507 = vmatprep.subr.bf16.mxu0 0
        %3508 = vmatpush1.bf16.msra.mxu0 0
        %3509 = vmatprep.subr.bf16.mxu0 0
        %3510 = vmatpush1.bf16.msra.mxu0 0
        %3511 = vmatprep.subr.bf16.mxu0 0
        %3512 = vmatpush1.bf16.msra.mxu0 0
        %3513 = vmatprep.subr.bf16.mxu0 0
        %3514 = vmatpush1.bf16.msra.mxu0 0
        %3515 = vmatprep.subr.bf16.mxu0 0
        %3516 = vmatpush1.bf16.msra.mxu0 %v3454
        %3517 = vmatprep.subr.bf16.mxu0 0
        %3518 = vmatpush1.bf16.msra.mxu0 %v3453
        %3519 = vmatprep.subr.bf16.mxu0 0
        %3520 = vmatpush1.bf16.msra.mxu0 %v3452
        %3521 = vmatprep.subr.bf16.mxu0 0
        %3522 = vmatpush1.bf16.msra.mxu0 %v3451
        %3523 = vmatprep.subr.bf16.mxu0 0
        %3524 = vmatpush2.bf16.msra.mxu0 0
        %3525 = vmatprep.subr.bf16.mxu0 0
        %3526 = vmatpush2.bf16.msra.mxu0 0
        %3527 = vmatprep.subr.bf16.mxu0 0
        %3528 = vmatpush2.bf16.msra.mxu0 0
        %3529 = vmatprep.subr.bf16.mxu0 0
        %3530 = vmatpush2.bf16.msra.mxu0 0
        %3531 = vmatprep.subr.bf16.mxu0 0
        %3532 = vmatpush2.bf16.msra.mxu0 0
        %3533 = vmatprep.subr.bf16.mxu0 0
        %3534 = vmatpush2.bf16.msra.mxu0 0
        %3535 = vmatprep.subr.bf16.mxu0 0
        %3536 = vmatpush2.bf16.msra.mxu0 0
        %3537 = vmatprep.subr.bf16.mxu0 0
        %3538 = vmatpush2.bf16.msra.mxu0 0
        %3539 = vmatprep.mubr.bf16.mxu0 0
        %3540 = vmatmul.mubr.bf16.gmra.mxu0 %v3460
        %v3541 = vpop.f32.mrf.mxu0
        %v3542 = vadd.f32 %v3433, %v3541
        %v3543 = vpop.f32.mrf.mxu0
        %v3544 = vpop.f32.mrf.mxu0
        %v3545 = vadd.f32 %v3433, %v3544
        %v3546 = vpop.f32.mrf.mxu0
        %3547 = vmatprep.mubr.bf16.mxu0 0
        %3548 = vmatmul.mubr.bf16.gmra.mxu0 %v3463
        %v3549 = vpop.f32.mrf.mxu0
        %v3550 = vadd.f32 %v3433, %v3549
        %v3551 = vpop.f32.mrf.mxu0
        %v3552 = vpop.f32.mrf.mxu0
        %v3553 = vadd.f32 %v3433, %v3552
        %v3554 = vpop.f32.mrf.mxu0
        %3555 = vmatprep.mubr.bf16.mxu0 0
        %3556 = vmatmul.mubr.bf16.gmra.mxu0 %v3466
        %v3557 = vpop.f32.mrf.mxu0
        %v3558 = vadd.f32 %v3433, %v3557
        %v3559 = vpop.f32.mrf.mxu0
        %v3560 = vpop.f32.mrf.mxu0
        %v3561 = vadd.f32 %v3433, %v3560
        %v3562 = vpop.f32.mrf.mxu0
        %3563 = vmatprep.mubr.bf16.mxu0 0
        %3564 = vmatmul.mubr.bf16.gmra.mxu0 %v3469
        %v3565 = vpop.f32.mrf.mxu0
        %v3566 = vadd.f32 %v3433, %v3565
        %v3567 = vpop.f32.mrf.mxu0
        %v3568 = vpop.f32.mrf.mxu0
        %v3569 = vadd.f32 %v3433, %v3568
        %v3570 = vpop.f32.mrf.mxu0
        %3571 = vmatprep.mubr.bf16.mxu0 0
        %3572 = vmatmul.mubr.bf16.gmra.mxu0 %v3472
        %v3573 = vpop.f32.mrf.mxu0
        %v3574 = vadd.f32 %v3433, %v3573
        %v3575 = vpop.f32.mrf.mxu0
        %v3576 = vpop.f32.mrf.mxu0
        %v3577 = vadd.f32 %v3433, %v3576
        %v3578 = vpop.f32.mrf.mxu0
        %3579 = vmatprep.mubr.bf16.mxu0 0
        %3580 = vmatmul.mubr.bf16.gmra.mxu0 %v3475
        %v3581 = vpop.f32.mrf.mxu0
        %v3582 = vadd.f32 %v3433, %v3581
        %v3583 = vpop.f32.mrf.mxu0
        %v3584 = vpop.f32.mrf.mxu0
        %v3585 = vadd.f32 %v3433, %v3584
        %v3586 = vpop.f32.mrf.mxu0
        %3587 = vmatprep.mubr.bf16.mxu0 0
        %3588 = vmatmul.mubr.bf16.gmra.mxu0 %v3478
        %v3589 = vpop.f32.mrf.mxu0
        %v3590 = vadd.f32 %v3433, %v3589
        %v3591 = vpop.f32.mrf.mxu0
        %v3592 = vpop.f32.mrf.mxu0
        %v3593 = vadd.f32 %v3433, %v3592
        %v3594 = vpop.f32.mrf.mxu0
        %3595 = vmatprep.mubr.bf16.mxu0 0
        %3596 = vmatmul.mubr.bf16.gmra.mxu0 %v3481
        %v3597 = vpop.f32.mrf.mxu0
        %v3598 = vadd.f32 %v3433, %v3597
        %v3599 = vpop.f32.mrf.mxu0
        %v3600 = vpop.f32.mrf.mxu0
        %v3601 = vadd.f32 %v3433, %v3600
        %v3602 = vpop.f32.mrf.mxu0
        %3603 = vmatprep.mubr.bf16.mxu0 0
        %3604 = vmatmul.mubr.bf16.gmra.mxu0 %v3484
        %v3605 = vpop.f32.mrf.mxu0
        %v3606 = vadd.f32 %v3433, %v3605
        %v3607 = vpop.f32.mrf.mxu0
        %v3608 = vpop.f32.mrf.mxu0
        %v3609 = vadd.f32 %v3433, %v3608
        %v3610 = vpop.f32.mrf.mxu0
        %3611 = vmatprep.mubr.bf16.mxu0 0
        %3612 = vmatmul.mubr.bf16.gmra.mxu0 %v3487
        %v3613 = vpop.f32.mrf.mxu0
        %v3614 = vadd.f32 %v3433, %v3613
        %v3615 = vpop.f32.mrf.mxu0
        %v3616 = vpop.f32.mrf.mxu0
        %v3617 = vadd.f32 %v3433, %v3616
        %v3618 = vpop.f32.mrf.mxu0
        %3619 = vmatprep.mubr.bf16.mxu0 0
        %3620 = vmatmul.mubr.bf16.gmra.mxu0 %v3490
        %v3621 = vpop.f32.mrf.mxu0
        %v3622 = vadd.f32 %v3433, %v3621
        %v3623 = vpop.f32.mrf.mxu0
        %v3624 = vpop.f32.mrf.mxu0
        %v3625 = vadd.f32 %v3433, %v3624
        %v3626 = vpop.f32.mrf.mxu0
        %3627 = vmatprep.mubr.bf16.mxu0 0
        %3628 = vmatmul.mubr.bf16.gmra.mxu0 %v3493
        %v3629 = vpop.f32.mrf.mxu0
        %v3630 = vadd.f32 %v3433, %v3629
        %v3631 = vpop.f32.mrf.mxu0
        %v3632 = vpop.f32.mrf.mxu0
        %v3633 = vadd.f32 %v3433, %v3632
        %v3634 = vpop.f32.mrf.mxu0
        %3635 = vmatprep.mubr.bf16.mxu0 0
        %3636 = vmatmul.mubr.bf16.gmra.mxu0 %v3496
        %v3637 = vpop.f32.mrf.mxu0
        %v3638 = vadd.f32 %v3433, %v3637
        %v3639 = vpop.f32.mrf.mxu0
        %v3640 = vpop.f32.mrf.mxu0
        %v3641 = vadd.f32 %v3433, %v3640
        %v3642 = vpop.f32.mrf.mxu0
        %3643 = vmatprep.mubr.bf16.mxu0 0
        %3644 = vmatmul.mubr.bf16.gmra.mxu0 %v3499
        %v3645 = vpop.f32.mrf.mxu0
        %v3646 = vadd.f32 %v3433, %v3645
        %v3647 = vpop.f32.mrf.mxu0
        %v3648 = vpop.f32.mrf.mxu0
        %v3649 = vadd.f32 %v3433, %v3648
        %v3650 = vpop.f32.mrf.mxu0
        %3651 = vmatprep.mubr.bf16.mxu0 0
        %3652 = vmatmul.mubr.bf16.gmra.mxu0 %v3502
        %v3653 = vpop.f32.mrf.mxu0
        %v3654 = vadd.f32 %v3433, %v3653
        %v3655 = vpop.f32.mrf.mxu0
        %v3656 = vpop.f32.mrf.mxu0
        %v3657 = vadd.f32 %v3433, %v3656
        %v3658 = vpop.f32.mrf.mxu0
        %3659 = vmatprep.mubr.bf16.mxu0 0
        %3660 = vmatmul.mubr.bf16.gmra.mxu0 %v3505
        %v3661 = vpop.f32.mrf.mxu0
        %v3662 = vadd.f32 %v3433, %v3661
        %v3663 = vpop.f32.mrf.mxu0
        %v3664 = vpop.f32.mrf.mxu0
        %v3665 = vadd.f32 %v3433, %v3664
        %v3666 = vpop.f32.mrf.mxu0
        %3667 = vdwg.mxu0
        %v3668 = vadd.f32 %v2832, %v3542
        %v3669 = vadd.f32 %v2833, %v3545
        %v3670 = vadd.f32 %v2834, %v3550
        %v3671 = vadd.f32 %v2835, %v3553
        %v3672 = vadd.f32 %v2836, %v3558
        %v3673 = vadd.f32 %v2837, %v3561
        %v3674 = vadd.f32 %v2838, %v3566
        %v3675 = vadd.f32 %v2839, %v3569
        %v3676 = vadd.f32 %v2840, %v3574
        %v3677 = vadd.f32 %v2841, %v3577
        %v3678 = vadd.f32 %v2842, %v3582
        %v3679 = vadd.f32 %v2843, %v3585
        %v3680 = vadd.f32 %v2844, %v3590
        %v3681 = vadd.f32 %v2845, %v3593
        %v3682 = vadd.f32 %v2846, %v3598
        %v3683 = vadd.f32 %v2847, %v3601
        %v3684 = vadd.f32 %v2848, %v3606
        %v3685 = vadd.f32 %v2849, %v3609
        %v3686 = vadd.f32 %v2850, %v3614
        %v3687 = vadd.f32 %v2851, %v3617
        %v3688 = vadd.f32 %v2852, %v3622
        %v3689 = vadd.f32 %v2853, %v3625
        %v3690 = vadd.f32 %v2854, %v3630
        %v3691 = vadd.f32 %v2855, %v3633
        %v3692 = vadd.f32 %v2856, %v3638
        %v3693 = vadd.f32 %v2857, %v3641
        %v3694 = vadd.f32 %v2858, %v3646
        %v3695 = vadd.f32 %v2859, %v3649
        %v3696 = vadd.f32 %v2860, %v3654
        %v3697 = vadd.f32 %v2861, %v3657
        %v3698 = vadd.f32 %v2862, %v3662
        %v3699 = vadd.f32 %v2863, %v3665
        %v3700 = vpack.c.bf16 %v3669, %v3668
        %v3701 = vpack.c.bf16 %v3671, %v3670
        %v3702 = vpack.c.bf16 %v3673, %v3672
        %v3703 = vpack.c.bf16 %v3675, %v3674
        %v3704 = vpack.c.bf16 %v3677, %v3676
        %v3705 = vpack.c.bf16 %v3679, %v3678
        %v3706 = vpack.c.bf16 %v3681, %v3680
        %v3707 = vpack.c.bf16 %v3683, %v3682
        %v3708 = vpack.c.bf16 %v3685, %v3684
        %v3709 = vpack.c.bf16 %v3687, %v3686
        %v3710 = vpack.c.bf16 %v3689, %v3688
        %v3711 = vpack.c.bf16 %v3691, %v3690
        %v3712 = vpack.c.bf16 %v3693, %v3692
        %v3713 = vpack.c.bf16 %v3695, %v3694
        %v3714 = vpack.c.bf16 %v3697, %v3696
        %v3715 = vpack.c.bf16 %v3699, %v3698
        %s3716 = scalar_lea.vmem %s3, 32
        %v3717 = vld [vmem:[%s3716] sm:$0xf]
        %v3718 = vld [vmem:[%s3716 + $0x4] sm:$0xf]
        %v3719 = vld [vmem:[%s3716 + $0x8] sm:$0xf]
        %v3720 = vld [vmem:[%s3716 + $0xc] sm:$0xf]
        %s3721 = scalar_lea.vmem %s4, 2
        %v3722 = vld [vmem:[%s3721] sm:$0x1]
        %v3724 = vlaneseq
        %v3725 = vshrl.u32 %v3724, 7
        %v3726 = vsub.s32 0, %v3725
        %v3727 = vrot.slane %v3722, %v3726
        %v3733 = vunpack.c.l.b16 %v3717
        %v3734 = vunpack.c.l.b16 %v3718
        %v3735 = vunpack.c.l.b16 %v3719
        %v3736 = vunpack.c.l.b16 %v3720
        %v3737 = vpack.c.b16 %v3734, %v3733
        %v3738 = vpack.c.b16 %v3736, %v3735
        %v3742 = vsel %vm2069, %v3700, 0
        %v3745 = vsel %vm2069, %v3701, 0
        %v3748 = vsel %vm2069, %v3702, 0
        %v3751 = vsel %vm2069, %v3703, 0
        %v3754 = vsel %vm2069, %v3704, 0
        %v3757 = vsel %vm2069, %v3705, 0
        %v3760 = vsel %vm2069, %v3706, 0
        %v3763 = vsel %vm2069, %v3707, 0
        %v3766 = vsel %vm2069, %v3708, 0
        %v3769 = vsel %vm2069, %v3709, 0
        %v3772 = vsel %vm2069, %v3710, 0
        %v3775 = vsel %vm2069, %v3711, 0
        %v3778 = vsel %vm2069, %v3712, 0
        %v3781 = vsel %vm2069, %v3713, 0
        %v3784 = vsel %vm2069, %v3714, 0
        %v3787 = vsel %vm2069, %v3715, 0
        %3789 = vmatprep.subr.bf16.mxu0 0
        %3790 = vmatpush1.bf16.msra.mxu0 0
        %3791 = vmatprep.subr.bf16.mxu0 0
        %3792 = vmatpush1.bf16.msra.mxu0 0
        %3793 = vmatprep.subr.bf16.mxu0 0
        %3794 = vmatpush1.bf16.msra.mxu0 0
        %3795 = vmatprep.subr.bf16.mxu0 0
        %3796 = vmatpush1.bf16.msra.mxu0 0
        %3797 = vmatprep.subr.bf16.mxu0 0
        %3798 = vmatpush1.bf16.msra.mxu0 0
        %3799 = vmatprep.subr.bf16.mxu0 0
        %3800 = vmatpush1.bf16.msra.mxu0 0
        %3801 = vmatprep.subr.bf16.mxu0 0
        %3802 = vmatpush1.bf16.msra.mxu0 %v3738
        %3803 = vmatprep.subr.bf16.mxu0 0
        %3804 = vmatpush1.bf16.msra.mxu0 %v3737
        %3805 = vmatprep.subr.bf16.mxu0 0
        %3806 = vmatpush2.bf16.msra.mxu0 0
        %3807 = vmatprep.subr.bf16.mxu0 0
        %3808 = vmatpush2.bf16.msra.mxu0 0
        %3809 = vmatprep.subr.bf16.mxu0 0
        %3810 = vmatpush2.bf16.msra.mxu0 0
        %3811 = vmatprep.subr.bf16.mxu0 0
        %3812 = vmatpush2.bf16.msra.mxu0 0
        %3813 = vmatprep.subr.bf16.mxu0 0
        %3814 = vmatpush2.bf16.msra.mxu0 0
        %3815 = vmatprep.subr.bf16.mxu0 0
        %3816 = vmatpush2.bf16.msra.mxu0 0
        %3817 = vmatprep.subr.bf16.mxu0 0
        %3818 = vmatpush2.bf16.msra.mxu0 0
        %3819 = vmatprep.subr.bf16.mxu0 0
        %3820 = vmatpush2.bf16.msra.mxu0 0
        %3821 = vmatprep.mubr.bf16.mxu0 0
        %3822 = vmatmul.mubr.bf16.gmra.mxu0 %v3742
        %v3823 = vpop.f32.mrf.mxu0
        %v3824 = vadd.f32 %v3727, %v3823
        %v3825 = vpop.f32.mrf.mxu0
        %v3826 = vpop.f32.mrf.mxu0
        %v3827 = vadd.f32 %v3727, %v3826
        %v3828 = vpop.f32.mrf.mxu0
        %3829 = vmatprep.mubr.bf16.mxu0 0
        %3830 = vmatmul.mubr.bf16.gmra.mxu0 %v3745
        %v3831 = vpop.f32.mrf.mxu0
        %v3832 = vadd.f32 %v3727, %v3831
        %v3833 = vpop.f32.mrf.mxu0
        %v3834 = vpop.f32.mrf.mxu0
        %v3835 = vadd.f32 %v3727, %v3834
        %v3836 = vpop.f32.mrf.mxu0
        %3837 = vmatprep.mubr.bf16.mxu0 0
        %3838 = vmatmul.mubr.bf16.gmra.mxu0 %v3748
        %v3839 = vpop.f32.mrf.mxu0
        %v3840 = vadd.f32 %v3727, %v3839
        %v3841 = vpop.f32.mrf.mxu0
        %v3842 = vpop.f32.mrf.mxu0
        %v3843 = vadd.f32 %v3727, %v3842
        %v3844 = vpop.f32.mrf.mxu0
        %3845 = vmatprep.mubr.bf16.mxu0 0
        %3846 = vmatmul.mubr.bf16.gmra.mxu0 %v3751
        %v3847 = vpop.f32.mrf.mxu0
        %v3848 = vadd.f32 %v3727, %v3847
        %v3849 = vpop.f32.mrf.mxu0
        %v3850 = vpop.f32.mrf.mxu0
        %v3851 = vadd.f32 %v3727, %v3850
        %v3852 = vpop.f32.mrf.mxu0
        %3853 = vmatprep.mubr.bf16.mxu0 0
        %3854 = vmatmul.mubr.bf16.gmra.mxu0 %v3754
        %v3855 = vpop.f32.mrf.mxu0
        %v3856 = vadd.f32 %v3727, %v3855
        %v3857 = vpop.f32.mrf.mxu0
        %v3858 = vpop.f32.mrf.mxu0
        %v3859 = vadd.f32 %v3727, %v3858
        %v3860 = vpop.f32.mrf.mxu0
        %3861 = vmatprep.mubr.bf16.mxu0 0
        %3862 = vmatmul.mubr.bf16.gmra.mxu0 %v3757
        %v3863 = vpop.f32.mrf.mxu0
        %v3864 = vadd.f32 %v3727, %v3863
        %v3865 = vpop.f32.mrf.mxu0
        %v3866 = vpop.f32.mrf.mxu0
        %v3867 = vadd.f32 %v3727, %v3866
        %v3868 = vpop.f32.mrf.mxu0
        %3869 = vmatprep.mubr.bf16.mxu0 0
        %3870 = vmatmul.mubr.bf16.gmra.mxu0 %v3760
        %v3871 = vpop.f32.mrf.mxu0
        %v3872 = vadd.f32 %v3727, %v3871
        %v3873 = vpop.f32.mrf.mxu0
        %v3874 = vpop.f32.mrf.mxu0
        %v3875 = vadd.f32 %v3727, %v3874
        %v3876 = vpop.f32.mrf.mxu0
        %3877 = vmatprep.mubr.bf16.mxu0 0
        %3878 = vmatmul.mubr.bf16.gmra.mxu0 %v3763
        %v3879 = vpop.f32.mrf.mxu0
        %v3880 = vadd.f32 %v3727, %v3879
        %v3881 = vpop.f32.mrf.mxu0
        %v3882 = vpop.f32.mrf.mxu0
        %v3883 = vadd.f32 %v3727, %v3882
        %v3884 = vpop.f32.mrf.mxu0
        %3885 = vmatprep.mubr.bf16.mxu0 0
        %3886 = vmatmul.mubr.bf16.gmra.mxu0 %v3766
        %v3887 = vpop.f32.mrf.mxu0
        %v3888 = vadd.f32 %v3727, %v3887
        %v3889 = vpop.f32.mrf.mxu0
        %v3890 = vpop.f32.mrf.mxu0
        %v3891 = vadd.f32 %v3727, %v3890
        %v3892 = vpop.f32.mrf.mxu0
        %3893 = vmatprep.mubr.bf16.mxu0 0
        %3894 = vmatmul.mubr.bf16.gmra.mxu0 %v3769
        %v3895 = vpop.f32.mrf.mxu0
        %v3896 = vadd.f32 %v3727, %v3895
        %v3897 = vpop.f32.mrf.mxu0
        %v3898 = vpop.f32.mrf.mxu0
        %v3899 = vadd.f32 %v3727, %v3898
        %v3900 = vpop.f32.mrf.mxu0
        %3901 = vmatprep.mubr.bf16.mxu0 0
        %3902 = vmatmul.mubr.bf16.gmra.mxu0 %v3772
        %v3903 = vpop.f32.mrf.mxu0
        %v3904 = vadd.f32 %v3727, %v3903
        %v3905 = vpop.f32.mrf.mxu0
        %v3906 = vpop.f32.mrf.mxu0
        %v3907 = vadd.f32 %v3727, %v3906
        %v3908 = vpop.f32.mrf.mxu0
        %3909 = vmatprep.mubr.bf16.mxu0 0
        %3910 = vmatmul.mubr.bf16.gmra.mxu0 %v3775
        %v3911 = vpop.f32.mrf.mxu0
        %v3912 = vadd.f32 %v3727, %v3911
        %v3913 = vpop.f32.mrf.mxu0
        %v3914 = vpop.f32.mrf.mxu0
        %v3915 = vadd.f32 %v3727, %v3914
        %v3916 = vpop.f32.mrf.mxu0
        %3917 = vmatprep.mubr.bf16.mxu0 0
        %3918 = vmatmul.mubr.bf16.gmra.mxu0 %v3778
        %v3919 = vpop.f32.mrf.mxu0
        %v3920 = vadd.f32 %v3727, %v3919
        %v3921 = vpop.f32.mrf.mxu0
        %v3922 = vpop.f32.mrf.mxu0
        %v3923 = vadd.f32 %v3727, %v3922
        %v3924 = vpop.f32.mrf.mxu0
        %3925 = vmatprep.mubr.bf16.mxu0 0
        %3926 = vmatmul.mubr.bf16.gmra.mxu0 %v3781
        %v3927 = vpop.f32.mrf.mxu0
        %v3928 = vadd.f32 %v3727, %v3927
        %v3929 = vpop.f32.mrf.mxu0
        %v3930 = vpop.f32.mrf.mxu0
        %v3931 = vadd.f32 %v3727, %v3930
        %v3932 = vpop.f32.mrf.mxu0
        %3933 = vmatprep.mubr.bf16.mxu0 0
        %3934 = vmatmul.mubr.bf16.gmra.mxu0 %v3784
        %v3935 = vpop.f32.mrf.mxu0
        %v3936 = vadd.f32 %v3727, %v3935
        %v3937 = vpop.f32.mrf.mxu0
        %v3938 = vpop.f32.mrf.mxu0
        %v3939 = vadd.f32 %v3727, %v3938
        %v3940 = vpop.f32.mrf.mxu0
        %3941 = vmatprep.mubr.bf16.mxu0 0
        %3942 = vmatmul.mubr.bf16.gmra.mxu0 %v3787
        %v3943 = vpop.f32.mrf.mxu0
        %v3944 = vadd.f32 %v3727, %v3943
        %v3945 = vpop.f32.mrf.mxu0
        %v3946 = vpop.f32.mrf.mxu0
        %v3947 = vadd.f32 %v3727, %v3946
        %v3948 = vpop.f32.mrf.mxu0
        %3949 = vdwg.mxu0
        %v3950 = vmul.f32 %v3824, %v3824
        %v3951 = vmul.f32 %v3827, %v3827
        %v3952 = vmul.f32 %v3832, %v3832
        %v3953 = vmul.f32 %v3835, %v3835
        %v3954 = vmul.f32 %v3840, %v3840
        %v3955 = vmul.f32 %v3843, %v3843
        %v3956 = vmul.f32 %v3848, %v3848
        %v3957 = vmul.f32 %v3851, %v3851
        %v3958 = vmul.f32 %v3856, %v3856
        %v3959 = vmul.f32 %v3859, %v3859
        %v3960 = vmul.f32 %v3864, %v3864
        %v3961 = vmul.f32 %v3867, %v3867
        %v3962 = vmul.f32 %v3872, %v3872
        %v3963 = vmul.f32 %v3875, %v3875
        %v3964 = vmul.f32 %v3880, %v3880
        %v3965 = vmul.f32 %v3883, %v3883
        %v3966 = vmul.f32 %v3888, %v3888
        %v3967 = vmul.f32 %v3891, %v3891
        %v3968 = vmul.f32 %v3896, %v3896
        %v3969 = vmul.f32 %v3899, %v3899
        %v3970 = vmul.f32 %v3904, %v3904
        %v3971 = vmul.f32 %v3907, %v3907
        %v3972 = vmul.f32 %v3912, %v3912
        %v3973 = vmul.f32 %v3915, %v3915
        %v3974 = vmul.f32 %v3920, %v3920
        %v3975 = vmul.f32 %v3923, %v3923
        %v3976 = vmul.f32 %v3928, %v3928
        %v3977 = vmul.f32 %v3931, %v3931
        %v3978 = vmul.f32 %v3936, %v3936
        %v3979 = vmul.f32 %v3939, %v3939
        %v3980 = vmul.f32 %v3944, %v3944
        %v3981 = vmul.f32 %v3947, %v3947
        %v3982 = vmul.f32 %v3824, %v3950
        %v3983 = vmul.f32 %v3827, %v3951
        %v3984 = vmul.f32 %v3832, %v3952
        %v3985 = vmul.f32 %v3835, %v3953
        %v3986 = vmul.f32 %v3840, %v3954
        %v3987 = vmul.f32 %v3843, %v3955
        %v3988 = vmul.f32 %v3848, %v3956
        %v3989 = vmul.f32 %v3851, %v3957
        %v3990 = vmul.f32 %v3856, %v3958
        %v3991 = vmul.f32 %v3859, %v3959
        %v3992 = vmul.f32 %v3864, %v3960
        %v3993 = vmul.f32 %v3867, %v3961
        %v3994 = vmul.f32 %v3872, %v3962
        %v3995 = vmul.f32 %v3875, %v3963
        %v3996 = vmul.f32 %v3880, %v3964
        %v3997 = vmul.f32 %v3883, %v3965
        %v3998 = vmul.f32 %v3888, %v3966
        %v3999 = vmul.f32 %v3891, %v3967
        %v4000 = vmul.f32 %v3896, %v3968
        %v4001 = vmul.f32 %v3899, %v3969
        %v4002 = vmul.f32 %v3904, %v3970
        %v4003 = vmul.f32 %v3907, %v3971
        %v4004 = vmul.f32 %v3912, %v3972
        %v4005 = vmul.f32 %v3915, %v3973
        %v4006 = vmul.f32 %v3920, %v3974
        %v4007 = vmul.f32 %v3923, %v3975
        %v4008 = vmul.f32 %v3928, %v3976
        %v4009 = vmul.f32 %v3931, %v3977
        %v4010 = vmul.f32 %v3936, %v3978
        %v4011 = vmul.f32 %v3939, %v3979
        %v4012 = vmul.f32 %v3944, %v3980
        %v4013 = vmul.f32 %v3947, %v3981
        %v4014 = vmul.f32 %v3982, 0.044715
        %v4015 = vmul.f32 %v3983, 0.044715
        %v4016 = vmul.f32 %v3984, 0.044715
        %v4017 = vmul.f32 %v3985, 0.044715
        %v4018 = vmul.f32 %v3986, 0.044715
        %v4019 = vmul.f32 %v3987, 0.044715
        %v4020 = vmul.f32 %v3988, 0.044715
        %v4021 = vmul.f32 %v3989, 0.044715
        %v4022 = vmul.f32 %v3990, 0.044715
        %v4023 = vmul.f32 %v3991, 0.044715
        %v4024 = vmul.f32 %v3992, 0.044715
        %v4025 = vmul.f32 %v3993, 0.044715
        %v4026 = vmul.f32 %v3994, 0.044715
        %v4027 = vmul.f32 %v3995, 0.044715
        %v4028 = vmul.f32 %v3996, 0.044715
        %v4029 = vmul.f32 %v3997, 0.044715
        %v4030 = vmul.f32 %v3998, 0.044715
        %v4031 = vmul.f32 %v3999, 0.044715
        %v4032 = vmul.f32 %v4000, 0.044715
        %v4033 = vmul.f32 %v4001, 0.044715
        %v4034 = vmul.f32 %v4002, 0.044715
        %v4035 = vmul.f32 %v4003, 0.044715
        %v4036 = vmul.f32 %v4004, 0.044715
        %v4037 = vmul.f32 %v4005, 0.044715
        %v4038 = vmul.f32 %v4006, 0.044715
        %v4039 = vmul.f32 %v4007, 0.044715
        %v4040 = vmul.f32 %v4008, 0.044715
        %v4041 = vmul.f32 %v4009, 0.044715
        %v4042 = vmul.f32 %v4010, 0.044715
        %v4043 = vmul.f32 %v4011, 0.044715
        %v4044 = vmul.f32 %v4012, 0.044715
        %v4045 = vmul.f32 %v4013, 0.044715
        %v4046 = vadd.f32 %v3824, %v4014
        %v4047 = vadd.f32 %v3827, %v4015
        %v4048 = vadd.f32 %v3832, %v4016
        %v4049 = vadd.f32 %v3835, %v4017
        %v4050 = vadd.f32 %v3840, %v4018
        %v4051 = vadd.f32 %v3843, %v4019
        %v4052 = vadd.f32 %v3848, %v4020
        %v4053 = vadd.f32 %v3851, %v4021
        %v4054 = vadd.f32 %v3856, %v4022
        %v4055 = vadd.f32 %v3859, %v4023
        %v4056 = vadd.f32 %v3864, %v4024
        %v4057 = vadd.f32 %v3867, %v4025
        %v4058 = vadd.f32 %v3872, %v4026
        %v4059 = vadd.f32 %v3875, %v4027
        %v4060 = vadd.f32 %v3880, %v4028
        %v4061 = vadd.f32 %v3883, %v4029
        %v4062 = vadd.f32 %v3888, %v4030
        %v4063 = vadd.f32 %v3891, %v4031
        %v4064 = vadd.f32 %v3896, %v4032
        %v4065 = vadd.f32 %v3899, %v4033
        %v4066 = vadd.f32 %v3904, %v4034
        %v4067 = vadd.f32 %v3907, %v4035
        %v4068 = vadd.f32 %v3912, %v4036
        %v4069 = vadd.f32 %v3915, %v4037
        %v4070 = vadd.f32 %v3920, %v4038
        %v4071 = vadd.f32 %v3923, %v4039
        %v4072 = vadd.f32 %v3928, %v4040
        %v4073 = vadd.f32 %v3931, %v4041
        %v4074 = vadd.f32 %v3936, %v4042
        %v4075 = vadd.f32 %v3939, %v4043
        %v4076 = vadd.f32 %v3944, %v4044
        %v4077 = vadd.f32 %v3947, %v4045
        %v4078 = vmul.f32 %v4046, 0.7978846
        %v4079 = vmul.f32 %v4047, 0.7978846
        %v4080 = vmul.f32 %v4048, 0.7978846
        %v4081 = vmul.f32 %v4049, 0.7978846
        %v4082 = vmul.f32 %v4050, 0.7978846
        %v4083 = vmul.f32 %v4051, 0.7978846
        %v4084 = vmul.f32 %v4052, 0.7978846
        %v4085 = vmul.f32 %v4053, 0.7978846
        %v4086 = vmul.f32 %v4054, 0.7978846
        %v4087 = vmul.f32 %v4055, 0.7978846
        %v4088 = vmul.f32 %v4056, 0.7978846
        %v4089 = vmul.f32 %v4057, 0.7978846
        %v4090 = vmul.f32 %v4058, 0.7978846
        %v4091 = vmul.f32 %v4059, 0.7978846
        %v4092 = vmul.f32 %v4060, 0.7978846
        %v4093 = vmul.f32 %v4061, 0.7978846
        %v4094 = vmul.f32 %v4062, 0.7978846
        %v4095 = vmul.f32 %v4063, 0.7978846
        %v4096 = vmul.f32 %v4064, 0.7978846
        %v4097 = vmul.f32 %v4065, 0.7978846
        %v4098 = vmul.f32 %v4066, 0.7978846
        %v4099 = vmul.f32 %v4067, 0.7978846
        %v4100 = vmul.f32 %v4068, 0.7978846
        %v4101 = vmul.f32 %v4069, 0.7978846
        %v4102 = vmul.f32 %v4070, 0.7978846
        %v4103 = vmul.f32 %v4071, 0.7978846
        %v4104 = vmul.f32 %v4072, 0.7978846
        %v4105 = vmul.f32 %v4073, 0.7978846
        %v4106 = vmul.f32 %v4074, 0.7978846
        %v4107 = vmul.f32 %v4075, 0.7978846
        %v4108 = vmul.f32 %v4076, 0.7978846
        %v4109 = vmul.f32 %v4077, 0.7978846
        %v4110 = vtanh.pop %v4078
        %v4111 = vtanh.pop %v4079
        %v4112 = vtanh.pop %v4080
        %v4113 = vtanh.pop %v4081
        %v4114 = vtanh.pop %v4082
        %v4115 = vtanh.pop %v4083
        %v4116 = vtanh.pop %v4084
        %v4117 = vtanh.pop %v4085
        %v4118 = vtanh.pop %v4086
        %v4119 = vtanh.pop %v4087
        %v4120 = vtanh.pop %v4088
        %v4121 = vtanh.pop %v4089
        %v4122 = vtanh.pop %v4090
        %v4123 = vtanh.pop %v4091
        %v4124 = vtanh.pop %v4092
        %v4125 = vtanh.pop %v4093
        %v4126 = vtanh.pop %v4094
        %v4127 = vtanh.pop %v4095
        %v4128 = vtanh.pop %v4096
        %v4129 = vtanh.pop %v4097
        %v4130 = vtanh.pop %v4098
        %v4131 = vtanh.pop %v4099
        %v4132 = vtanh.pop %v4100
        %v4133 = vtanh.pop %v4101
        %v4134 = vtanh.pop %v4102
        %v4135 = vtanh.pop %v4103
        %v4136 = vtanh.pop %v4104
        %v4137 = vtanh.pop %v4105
        %v4138 = vtanh.pop %v4106
        %v4139 = vtanh.pop %v4107
        %v4140 = vtanh.pop %v4108
        %v4141 = vtanh.pop %v4109
        %v4142 = vadd.f32 %v4110, 1.0
        %v4143 = vadd.f32 %v4111, 1.0
        %v4144 = vadd.f32 %v4112, 1.0
        %v4145 = vadd.f32 %v4113, 1.0
        %v4146 = vadd.f32 %v4114, 1.0
        %v4147 = vadd.f32 %v4115, 1.0
        %v4148 = vadd.f32 %v4116, 1.0
        %v4149 = vadd.f32 %v4117, 1.0
        %v4150 = vadd.f32 %v4118, 1.0
        %v4151 = vadd.f32 %v4119, 1.0
        %v4152 = vadd.f32 %v4120, 1.0
        %v4153 = vadd.f32 %v4121, 1.0
        %v4154 = vadd.f32 %v4122, 1.0
        %v4155 = vadd.f32 %v4123, 1.0
        %v4156 = vadd.f32 %v4124, 1.0
        %v4157 = vadd.f32 %v4125, 1.0
        %v4158 = vadd.f32 %v4126, 1.0
        %v4159 = vadd.f32 %v4127, 1.0
        %v4160 = vadd.f32 %v4128, 1.0
        %v4161 = vadd.f32 %v4129, 1.0
        %v4162 = vadd.f32 %v4130, 1.0
        %v4163 = vadd.f32 %v4131, 1.0
        %v4164 = vadd.f32 %v4132, 1.0
        %v4165 = vadd.f32 %v4133, 1.0
        %v4166 = vadd.f32 %v4134, 1.0
        %v4167 = vadd.f32 %v4135, 1.0
        %v4168 = vadd.f32 %v4136, 1.0
        %v4169 = vadd.f32 %v4137, 1.0
        %v4170 = vadd.f32 %v4138, 1.0
        %v4171 = vadd.f32 %v4139, 1.0
        %v4172 = vadd.f32 %v4140, 1.0
        %v4173 = vadd.f32 %v4141, 1.0
        %v4174 = vmul.f32 %v4142, 0.5
        %v4175 = vmul.f32 %v4143, 0.5
        %v4176 = vmul.f32 %v4144, 0.5
        %v4177 = vmul.f32 %v4145, 0.5
        %v4178 = vmul.f32 %v4146, 0.5
        %v4179 = vmul.f32 %v4147, 0.5
        %v4180 = vmul.f32 %v4148, 0.5
        %v4181 = vmul.f32 %v4149, 0.5
        %v4182 = vmul.f32 %v4150, 0.5
        %v4183 = vmul.f32 %v4151, 0.5
        %v4184 = vmul.f32 %v4152, 0.5
        %v4185 = vmul.f32 %v4153, 0.5
        %v4186 = vmul.f32 %v4154, 0.5
        %v4187 = vmul.f32 %v4155, 0.5
        %v4188 = vmul.f32 %v4156, 0.5
        %v4189 = vmul.f32 %v4157, 0.5
        %v4190 = vmul.f32 %v4158, 0.5
        %v4191 = vmul.f32 %v4159, 0.5
        %v4192 = vmul.f32 %v4160, 0.5
        %v4193 = vmul.f32 %v4161, 0.5
        %v4194 = vmul.f32 %v4162, 0.5
        %v4195 = vmul.f32 %v4163, 0.5
        %v4196 = vmul.f32 %v4164, 0.5
        %v4197 = vmul.f32 %v4165, 0.5
        %v4198 = vmul.f32 %v4166, 0.5
        %v4199 = vmul.f32 %v4167, 0.5
        %v4200 = vmul.f32 %v4168, 0.5
        %v4201 = vmul.f32 %v4169, 0.5
        %v4202 = vmul.f32 %v4170, 0.5
        %v4203 = vmul.f32 %v4171, 0.5
        %v4204 = vmul.f32 %v4172, 0.5
        %v4205 = vmul.f32 %v4173, 0.5
        %v4206 = vmul.f32 %v3824, %v4174
        %v4207 = vmul.f32 %v3827, %v4175
        %v4208 = vmul.f32 %v3832, %v4176
        %v4209 = vmul.f32 %v3835, %v4177
        %v4210 = vmul.f32 %v3840, %v4178
        %v4211 = vmul.f32 %v3843, %v4179
        %v4212 = vmul.f32 %v3848, %v4180
        %v4213 = vmul.f32 %v3851, %v4181
        %v4214 = vmul.f32 %v3856, %v4182
        %v4215 = vmul.f32 %v3859, %v4183
        %v4216 = vmul.f32 %v3864, %v4184
        %v4217 = vmul.f32 %v3867, %v4185
        %v4218 = vmul.f32 %v3872, %v4186
        %v4219 = vmul.f32 %v3875, %v4187
        %v4220 = vmul.f32 %v3880, %v4188
        %v4221 = vmul.f32 %v3883, %v4189
        %v4222 = vmul.f32 %v3888, %v4190
        %v4223 = vmul.f32 %v3891, %v4191
        %v4224 = vmul.f32 %v3896, %v4192
        %v4225 = vmul.f32 %v3899, %v4193
        %v4226 = vmul.f32 %v3904, %v4194
        %v4227 = vmul.f32 %v3907, %v4195
        %v4228 = vmul.f32 %v3912, %v4196
        %v4229 = vmul.f32 %v3915, %v4197
        %v4230 = vmul.f32 %v3920, %v4198
        %v4231 = vmul.f32 %v3923, %v4199
        %v4232 = vmul.f32 %v3928, %v4200
        %v4233 = vmul.f32 %v3931, %v4201
        %v4234 = vmul.f32 %v3936, %v4202
        %v4235 = vmul.f32 %v3939, %v4203
        %v4236 = vmul.f32 %v3944, %v4204
        %v4237 = vmul.f32 %v3947, %v4205
        %v4238 = vpack.c.bf16 %v4207, %v4206
        %v4239 = vpack.c.bf16 %v4209, %v4208
        %v4240 = vpack.c.bf16 %v4211, %v4210
        %v4241 = vpack.c.bf16 %v4213, %v4212
        %v4242 = vpack.c.bf16 %v4215, %v4214
        %v4243 = vpack.c.bf16 %v4217, %v4216
        %v4244 = vpack.c.bf16 %v4219, %v4218
        %v4245 = vpack.c.bf16 %v4221, %v4220
        %v4246 = vpack.c.bf16 %v4223, %v4222
        %v4247 = vpack.c.bf16 %v4225, %v4224
        %v4248 = vpack.c.bf16 %v4227, %v4226
        %v4249 = vpack.c.bf16 %v4229, %v4228
        %v4250 = vpack.c.bf16 %v4231, %v4230
        %v4251 = vpack.c.bf16 %v4233, %v4232
        %v4252 = vpack.c.bf16 %v4235, %v4234
        %v4253 = vpack.c.bf16 %v4237, %v4236
        %s4254 = scalar_lea.vmem %s5, 64
        %v4255 = vld [vmem:[%s4254] sm:$0xf]
        %v4256 = vld [vmem:[%s4254 + $0x4] sm:$0xf]
        %v4257 = vld [vmem:[%s4254 + $0x8] sm:$0xf]
        %v4258 = vld [vmem:[%s4254 + $0xc] sm:$0xf]
        %v4259 = vld [vmem:[%s4254 + $0x10] sm:$0xf]
        %v4260 = vld [vmem:[%s4254 + $0x14] sm:$0xf]
        %v4261 = vld [vmem:[%s4254 + $0x18] sm:$0xf]
        %v4262 = vld [vmem:[%s4254 + $0x1c] sm:$0xf]
        %s4263 = scalar_lea.vmem %s6, 2
        %v4264 = vld [vmem:[%s4263] sm:$0x1]
        %v4266 = vlaneseq
        %v4267 = vshrl.u32 %v4266, 7
        %v4268 = vsub.s32 0, %v4267
        %v4269 = vrot.slane %v4264, %v4268
        %v4279 = vunpack.c.l.b16 %v4255
        %v4280 = vunpack.c.l.b16 %v4256
        %v4281 = vunpack.c.l.b16 %v4257
        %v4282 = vunpack.c.l.b16 %v4258
        %v4283 = vunpack.c.l.b16 %v4259
        %v4284 = vunpack.c.l.b16 %v4260
        %v4285 = vunpack.c.l.b16 %v4261
        %v4286 = vunpack.c.l.b16 %v4262
        %v4287 = vpack.c.b16 %v4280, %v4279
        %v4288 = vpack.c.b16 %v4282, %v4281
        %v4289 = vpack.c.b16 %v4284, %v4283
        %v4290 = vpack.c.b16 %v4286, %v4285
        %v4296 = vsel %vm2622, %v4238, 0
        %v4299 = vsel %vm2622, %v4239, 0
        %v4302 = vsel %vm2622, %v4240, 0
        %v4305 = vsel %vm2622, %v4241, 0
        %v4308 = vsel %vm2622, %v4242, 0
        %v4311 = vsel %vm2622, %v4243, 0
        %v4314 = vsel %vm2622, %v4244, 0
        %v4317 = vsel %vm2622, %v4245, 0
        %v4320 = vsel %vm2622, %v4246, 0
        %v4323 = vsel %vm2622, %v4247, 0
        %v4326 = vsel %vm2622, %v4248, 0
        %v4329 = vsel %vm2622, %v4249, 0
        %v4332 = vsel %vm2622, %v4250, 0
        %v4335 = vsel %vm2622, %v4251, 0
        %v4338 = vsel %vm2622, %v4252, 0
        %v4341 = vsel %vm2622, %v4253, 0
        %4343 = vmatprep.subr.bf16.mxu0 0
        %4344 = vmatpush1.bf16.msra.mxu0 0
        %4345 = vmatprep.subr.bf16.mxu0 0
        %4346 = vmatpush1.bf16.msra.mxu0 0
        %4347 = vmatprep.subr.bf16.mxu0 0
        %4348 = vmatpush1.bf16.msra.mxu0 0
        %4349 = vmatprep.subr.bf16.mxu0 0
        %4350 = vmatpush1.bf16.msra.mxu0 0
        %4351 = vmatprep.subr.bf16.mxu0 0
        %4352 = vmatpush1.bf16.msra.mxu0 %v4290
        %4353 = vmatprep.subr.bf16.mxu0 0
        %4354 = vmatpush1.bf16.msra.mxu0 %v4289
        %4355 = vmatprep.subr.bf16.mxu0 0
        %4356 = vmatpush1.bf16.msra.mxu0 %v4288
        %4357 = vmatprep.subr.bf16.mxu0 0
        %4358 = vmatpush1.bf16.msra.mxu0 %v4287
        %4359 = vmatprep.subr.bf16.mxu0 0
        %4360 = vmatpush2.bf16.msra.mxu0 0
        %4361 = vmatprep.subr.bf16.mxu0 0
        %4362 = vmatpush2.bf16.msra.mxu0 0
        %4363 = vmatprep.subr.bf16.mxu0 0
        %4364 = vmatpush2.bf16.msra.mxu0 0
        %4365 = vmatprep.subr.bf16.mxu0 0
        %4366 = vmatpush2.bf16.msra.mxu0 0
        %4367 = vmatprep.subr.bf16.mxu0 0
        %4368 = vmatpush2.bf16.msra.mxu0 0
        %4369 = vmatprep.subr.bf16.mxu0 0
        %4370 = vmatpush2.bf16.msra.mxu0 0
        %4371 = vmatprep.subr.bf16.mxu0 0
        %4372 = vmatpush2.bf16.msra.mxu0 0
        %4373 = vmatprep.subr.bf16.mxu0 0
        %4374 = vmatpush2.bf16.msra.mxu0 0
        %4375 = vmatprep.mubr.bf16.mxu0 0
        %4376 = vmatmul.mubr.bf16.gmra.mxu0 %v4296
        %v4377 = vpop.f32.mrf.mxu0
        %v4378 = vadd.f32 %v4269, %v4377
        %v4379 = vpop.f32.mrf.mxu0
        %v4380 = vpop.f32.mrf.mxu0
        %v4381 = vadd.f32 %v4269, %v4380
        %v4382 = vpop.f32.mrf.mxu0
        %4383 = vmatprep.mubr.bf16.mxu0 0
        %4384 = vmatmul.mubr.bf16.gmra.mxu0 %v4299
        %v4385 = vpop.f32.mrf.mxu0
        %v4386 = vadd.f32 %v4269, %v4385
        %v4387 = vpop.f32.mrf.mxu0
        %v4388 = vpop.f32.mrf.mxu0
        %v4389 = vadd.f32 %v4269, %v4388
        %v4390 = vpop.f32.mrf.mxu0
        %4391 = vmatprep.mubr.bf16.mxu0 0
        %4392 = vmatmul.mubr.bf16.gmra.mxu0 %v4302
        %v4393 = vpop.f32.mrf.mxu0
        %v4394 = vadd.f32 %v4269, %v4393
        %v4395 = vpop.f32.mrf.mxu0
        %v4396 = vpop.f32.mrf.mxu0
        %v4397 = vadd.f32 %v4269, %v4396
        %v4398 = vpop.f32.mrf.mxu0
        %4399 = vmatprep.mubr.bf16.mxu0 0
        %4400 = vmatmul.mubr.bf16.gmra.mxu0 %v4305
        %v4401 = vpop.f32.mrf.mxu0
        %v4402 = vadd.f32 %v4269, %v4401
        %v4403 = vpop.f32.mrf.mxu0
        %v4404 = vpop.f32.mrf.mxu0
        %v4405 = vadd.f32 %v4269, %v4404
        %v4406 = vpop.f32.mrf.mxu0
        %4407 = vmatprep.mubr.bf16.mxu0 0
        %4408 = vmatmul.mubr.bf16.gmra.mxu0 %v4308
        %v4409 = vpop.f32.mrf.mxu0
        %v4410 = vadd.f32 %v4269, %v4409
        %v4411 = vpop.f32.mrf.mxu0
        %v4412 = vpop.f32.mrf.mxu0
        %v4413 = vadd.f32 %v4269, %v4412
        %v4414 = vpop.f32.mrf.mxu0
        %4415 = vmatprep.mubr.bf16.mxu0 0
        %4416 = vmatmul.mubr.bf16.gmra.mxu0 %v4311
        %v4417 = vpop.f32.mrf.mxu0
        %v4418 = vadd.f32 %v4269, %v4417
        %v4419 = vpop.f32.mrf.mxu0
        %v4420 = vpop.f32.mrf.mxu0
        %v4421 = vadd.f32 %v4269, %v4420
        %v4422 = vpop.f32.mrf.mxu0
        %4423 = vmatprep.mubr.bf16.mxu0 0
        %4424 = vmatmul.mubr.bf16.gmra.mxu0 %v4314
        %v4425 = vpop.f32.mrf.mxu0
        %v4426 = vadd.f32 %v4269, %v4425
        %v4427 = vpop.f32.mrf.mxu0
        %v4428 = vpop.f32.mrf.mxu0
        %v4429 = vadd.f32 %v4269, %v4428
        %v4430 = vpop.f32.mrf.mxu0
        %4431 = vmatprep.mubr.bf16.mxu0 0
        %4432 = vmatmul.mubr.bf16.gmra.mxu0 %v4317
        %v4433 = vpop.f32.mrf.mxu0
        %v4434 = vadd.f32 %v4269, %v4433
        %v4435 = vpop.f32.mrf.mxu0
        %v4436 = vpop.f32.mrf.mxu0
        %v4437 = vadd.f32 %v4269, %v4436
        %v4438 = vpop.f32.mrf.mxu0
        %4439 = vmatprep.mubr.bf16.mxu0 0
        %4440 = vmatmul.mubr.bf16.gmra.mxu0 %v4320
        %v4441 = vpop.f32.mrf.mxu0
        %v4442 = vadd.f32 %v4269, %v4441
        %v4443 = vpop.f32.mrf.mxu0
        %v4444 = vpop.f32.mrf.mxu0
        %v4445 = vadd.f32 %v4269, %v4444
        %v4446 = vpop.f32.mrf.mxu0
        %4447 = vmatprep.mubr.bf16.mxu0 0
        %4448 = vmatmul.mubr.bf16.gmra.mxu0 %v4323
        %v4449 = vpop.f32.mrf.mxu0
        %v4450 = vadd.f32 %v4269, %v4449
        %v4451 = vpop.f32.mrf.mxu0
        %v4452 = vpop.f32.mrf.mxu0
        %v4453 = vadd.f32 %v4269, %v4452
        %v4454 = vpop.f32.mrf.mxu0
        %4455 = vmatprep.mubr.bf16.mxu0 0
        %4456 = vmatmul.mubr.bf16.gmra.mxu0 %v4326
        %v4457 = vpop.f32.mrf.mxu0
        %v4458 = vadd.f32 %v4269, %v4457
        %v4459 = vpop.f32.mrf.mxu0
        %v4460 = vpop.f32.mrf.mxu0
        %v4461 = vadd.f32 %v4269, %v4460
        %v4462 = vpop.f32.mrf.mxu0
        %4463 = vmatprep.mubr.bf16.mxu0 0
        %4464 = vmatmul.mubr.bf16.gmra.mxu0 %v4329
        %v4465 = vpop.f32.mrf.mxu0
        %v4466 = vadd.f32 %v4269, %v4465
        %v4467 = vpop.f32.mrf.mxu0
        %v4468 = vpop.f32.mrf.mxu0
        %v4469 = vadd.f32 %v4269, %v4468
        %v4470 = vpop.f32.mrf.mxu0
        %4471 = vmatprep.mubr.bf16.mxu0 0
        %4472 = vmatmul.mubr.bf16.gmra.mxu0 %v4332
        %v4473 = vpop.f32.mrf.mxu0
        %v4474 = vadd.f32 %v4269, %v4473
        %v4475 = vpop.f32.mrf.mxu0
        %v4476 = vpop.f32.mrf.mxu0
        %v4477 = vadd.f32 %v4269, %v4476
        %v4478 = vpop.f32.mrf.mxu0
        %4479 = vmatprep.mubr.bf16.mxu0 0
        %4480 = vmatmul.mubr.bf16.gmra.mxu0 %v4335
        %v4481 = vpop.f32.mrf.mxu0
        %v4482 = vadd.f32 %v4269, %v4481
        %v4483 = vpop.f32.mrf.mxu0
        %v4484 = vpop.f32.mrf.mxu0
        %v4485 = vadd.f32 %v4269, %v4484
        %v4486 = vpop.f32.mrf.mxu0
        %4487 = vmatprep.mubr.bf16.mxu0 0
        %4488 = vmatmul.mubr.bf16.gmra.mxu0 %v4338
        %v4489 = vpop.f32.mrf.mxu0
        %v4490 = vadd.f32 %v4269, %v4489
        %v4491 = vpop.f32.mrf.mxu0
        %v4492 = vpop.f32.mrf.mxu0
        %v4493 = vadd.f32 %v4269, %v4492
        %v4494 = vpop.f32.mrf.mxu0
        %4495 = vmatprep.mubr.bf16.mxu0 0
        %4496 = vmatmul.mubr.bf16.gmra.mxu0 %v4341
        %v4497 = vpop.f32.mrf.mxu0
        %v4498 = vadd.f32 %v4269, %v4497
        %v4499 = vpop.f32.mrf.mxu0
        %v4500 = vpop.f32.mrf.mxu0
        %v4501 = vadd.f32 %v4269, %v4500
        %v4502 = vpop.f32.mrf.mxu0
        %4503 = vdwg.mxu0
        %v4504 = vadd.f32 %v3668, %v4378
        %v4505 = vadd.f32 %v3669, %v4381
        %v4506 = vadd.f32 %v3670, %v4386
        %v4507 = vadd.f32 %v3671, %v4389
        %v4508 = vadd.f32 %v3672, %v4394
        %v4509 = vadd.f32 %v3673, %v4397
        %v4510 = vadd.f32 %v3674, %v4402
        %v4511 = vadd.f32 %v3675, %v4405
        %v4512 = vadd.f32 %v3676, %v4410
        %v4513 = vadd.f32 %v3677, %v4413
        %v4514 = vadd.f32 %v3678, %v4418
        %v4515 = vadd.f32 %v3679, %v4421
        %v4516 = vadd.f32 %v3680, %v4426
        %v4517 = vadd.f32 %v3681, %v4429
        %v4518 = vadd.f32 %v3682, %v4434
        %v4519 = vadd.f32 %v3683, %v4437
        %v4520 = vadd.f32 %v3684, %v4442
        %v4521 = vadd.f32 %v3685, %v4445
        %v4522 = vadd.f32 %v3686, %v4450
        %v4523 = vadd.f32 %v3687, %v4453
        %v4524 = vadd.f32 %v3688, %v4458
        %v4525 = vadd.f32 %v3689, %v4461
        %v4526 = vadd.f32 %v3690, %v4466
        %v4527 = vadd.f32 %v3691, %v4469
        %v4528 = vadd.f32 %v3692, %v4474
        %v4529 = vadd.f32 %v3693, %v4477
        %v4530 = vadd.f32 %v3694, %v4482
        %v4531 = vadd.f32 %v3695, %v4485
        %v4532 = vadd.f32 %v3696, %v4490
        %v4533 = vadd.f32 %v3697, %v4493
        %v4534 = vadd.f32 %v3698, %v4498
        %v4535 = vadd.f32 %v3699, %v4501
        %v4536 = vpack.c.bf16 %v4505, %v4504
        %v4537 = vpack.c.bf16 %v4507, %v4506
        %v4538 = vpack.c.bf16 %v4509, %v4508
        %v4539 = vpack.c.bf16 %v4511, %v4510
        %v4540 = vpack.c.bf16 %v4513, %v4512
        %v4541 = vpack.c.bf16 %v4515, %v4514
        %v4542 = vpack.c.bf16 %v4517, %v4516
        %v4543 = vpack.c.bf16 %v4519, %v4518
        %v4544 = vpack.c.bf16 %v4521, %v4520
        %v4545 = vpack.c.bf16 %v4523, %v4522
        %v4546 = vpack.c.bf16 %v4525, %v4524
        %v4547 = vpack.c.bf16 %v4527, %v4526
        %v4548 = vpack.c.bf16 %v4529, %v4528
        %v4549 = vpack.c.bf16 %v4531, %v4530
        %v4550 = vpack.c.bf16 %v4533, %v4532
        %v4551 = vpack.c.bf16 %v4535, %v4534
        %s4552 = scalar_lea.vmem %s3, 48
        %v4553 = vld [vmem:[%s4552] sm:$0xf]
        %v4554 = vld [vmem:[%s4552 + $0x4] sm:$0xf]
        %v4555 = vld [vmem:[%s4552 + $0x8] sm:$0xf]
        %v4556 = vld [vmem:[%s4552 + $0xc] sm:$0xf]
        %s4557 = scalar_lea.vmem %s4, 3
        %v4558 = vld [vmem:[%s4557] sm:$0x1]
        %v4560 = vlaneseq
        %v4561 = vshrl.u32 %v4560, 7
        %v4562 = vsub.s32 0, %v4561
        %v4563 = vrot.slane %v4558, %v4562
        %v4569 = vunpack.c.l.b16 %v4553
        %v4570 = vunpack.c.l.b16 %v4554
        %v4571 = vunpack.c.l.b16 %v4555
        %v4572 = vunpack.c.l.b16 %v4556
        %v4573 = vpack.c.b16 %v4570, %v4569
        %v4574 = vpack.c.b16 %v4572, %v4571
        %v4578 = vsel %vm2069, %v4536, 0
        %v4581 = vsel %vm2069, %v4537, 0
        %v4584 = vsel %vm2069, %v4538, 0
        %v4587 = vsel %vm2069, %v4539, 0
        %v4590 = vsel %vm2069, %v4540, 0
        %v4593 = vsel %vm2069, %v4541, 0
        %v4596 = vsel %vm2069, %v4542, 0
        %v4599 = vsel %vm2069, %v4543, 0
        %v4602 = vsel %vm2069, %v4544, 0
        %v4605 = vsel %vm2069, %v4545, 0
        %v4608 = vsel %vm2069, %v4546, 0
        %v4611 = vsel %vm2069, %v4547, 0
        %v4614 = vsel %vm2069, %v4548, 0
        %v4617 = vsel %vm2069, %v4549, 0
        %v4620 = vsel %vm2069, %v4550, 0
        %v4623 = vsel %vm2069, %v4551, 0
        %4625 = vmatprep.subr.bf16.mxu0 0
        %4626 = vmatpush1.bf16.msra.mxu0 0
        %4627 = vmatprep.subr.bf16.mxu0 0
        %4628 = vmatpush1.bf16.msra.mxu0 0
        %4629 = vmatprep.subr.bf16.mxu0 0
        %4630 = vmatpush1.bf16.msra.mxu0 0
        %4631 = vmatprep.subr.bf16.mxu0 0
        %4632 = vmatpush1.bf16.msra.mxu0 0
        %4633 = vmatprep.subr.bf16.mxu0 0
        %4634 = vmatpush1.bf16.msra.mxu0 0
        %4635 = vmatprep.subr.bf16.mxu0 0
        %4636 = vmatpush1.bf16.msra.mxu0 0
        %4637 = vmatprep.subr.bf16.mxu0 0
        %4638 = vmatpush1.bf16.msra.mxu0 %v4574
        %4639 = vmatprep.subr.bf16.mxu0 0
        %4640 = vmatpush1.bf16.msra.mxu0 %v4573
        %4641 = vmatprep.subr.bf16.mxu0 0
        %4642 = vmatpush2.bf16.msra.mxu0 0
        %4643 = vmatprep.subr.bf16.mxu0 0
        %4644 = vmatpush2.bf16.msra.mxu0 0
        %4645 = vmatprep.subr.bf16.mxu0 0
        %4646 = vmatpush2.bf16.msra.mxu0 0
        %4647 = vmatprep.subr.bf16.mxu0 0
        %4648 = vmatpush2.bf16.msra.mxu0 0
        %4649 = vmatprep.subr.bf16.mxu0 0
        %4650 = vmatpush2.bf16.msra.mxu0 0
        %4651 = vmatprep.subr.bf16.mxu0 0
        %4652 = vmatpush2.bf16.msra.mxu0 0
        %4653 = vmatprep.subr.bf16.mxu0 0
        %4654 = vmatpush2.bf16.msra.mxu0 0
        %4655 = vmatprep.subr.bf16.mxu0 0
        %4656 = vmatpush2.bf16.msra.mxu0 0
        %4657 = vmatprep.mubr.bf16.mxu0 0
        %4658 = vmatmul.mubr.bf16.gmra.mxu0 %v4578
        %v4659 = vpop.f32.mrf.mxu0
        %v4660 = vadd.f32 %v4563, %v4659
        %v4661 = vpop.f32.mrf.mxu0
        %v4662 = vpop.f32.mrf.mxu0
        %v4663 = vadd.f32 %v4563, %v4662
        %v4664 = vpop.f32.mrf.mxu0
        %4665 = vmatprep.mubr.bf16.mxu0 0
        %4666 = vmatmul.mubr.bf16.gmra.mxu0 %v4581
        %v4667 = vpop.f32.mrf.mxu0
        %v4668 = vadd.f32 %v4563, %v4667
        %v4669 = vpop.f32.mrf.mxu0
        %v4670 = vpop.f32.mrf.mxu0
        %v4671 = vadd.f32 %v4563, %v4670
        %v4672 = vpop.f32.mrf.mxu0
        %4673 = vmatprep.mubr.bf16.mxu0 0
        %4674 = vmatmul.mubr.bf16.gmra.mxu0 %v4584
        %v4675 = vpop.f32.mrf.mxu0
        %v4676 = vadd.f32 %v4563, %v4675
        %v4677 = vpop.f32.mrf.mxu0
        %v4678 = vpop.f32.mrf.mxu0
        %v4679 = vadd.f32 %v4563, %v4678
        %v4680 = vpop.f32.mrf.mxu0
        %4681 = vmatprep.mubr.bf16.mxu0 0
        %4682 = vmatmul.mubr.bf16.gmra.mxu0 %v4587
        %v4683 = vpop.f32.mrf.mxu0
        %v4684 = vadd.f32 %v4563, %v4683
        %v4685 = vpop.f32.mrf.mxu0
        %v4686 = vpop.f32.mrf.mxu0
        %v4687 = vadd.f32 %v4563, %v4686
        %v4688 = vpop.f32.mrf.mxu0
        %4689 = vmatprep.mubr.bf16.mxu0 0
        %4690 = vmatmul.mubr.bf16.gmra.mxu0 %v4590
        %v4691 = vpop.f32.mrf.mxu0
        %v4692 = vadd.f32 %v4563, %v4691
        %v4693 = vpop.f32.mrf.mxu0
        %v4694 = vpop.f32.mrf.mxu0
        %v4695 = vadd.f32 %v4563, %v4694
        %v4696 = vpop.f32.mrf.mxu0
        %4697 = vmatprep.mubr.bf16.mxu0 0
        %4698 = vmatmul.mubr.bf16.gmra.mxu0 %v4593
        %v4699 = vpop.f32.mrf.mxu0
        %v4700 = vadd.f32 %v4563, %v4699
        %v4701 = vpop.f32.mrf.mxu0
        %v4702 = vpop.f32.mrf.mxu0
        %v4703 = vadd.f32 %v4563, %v4702
        %v4704 = vpop.f32.mrf.mxu0
        %4705 = vmatprep.mubr.bf16.mxu0 0
        %4706 = vmatmul.mubr.bf16.gmra.mxu0 %v4596
        %v4707 = vpop.f32.mrf.mxu0
        %v4708 = vadd.f32 %v4563, %v4707
        %v4709 = vpop.f32.mrf.mxu0
        %v4710 = vpop.f32.mrf.mxu0
        %v4711 = vadd.f32 %v4563, %v4710
        %v4712 = vpop.f32.mrf.mxu0
        %4713 = vmatprep.mubr.bf16.mxu0 0
        %4714 = vmatmul.mubr.bf16.gmra.mxu0 %v4599
        %v4715 = vpop.f32.mrf.mxu0
        %v4716 = vadd.f32 %v4563, %v4715
        %v4717 = vpop.f32.mrf.mxu0
        %v4718 = vpop.f32.mrf.mxu0
        %v4719 = vadd.f32 %v4563, %v4718
        %v4720 = vpop.f32.mrf.mxu0
        %4721 = vmatprep.mubr.bf16.mxu0 0
        %4722 = vmatmul.mubr.bf16.gmra.mxu0 %v4602
        %v4723 = vpop.f32.mrf.mxu0
        %v4724 = vadd.f32 %v4563, %v4723
        %v4725 = vpop.f32.mrf.mxu0
        %v4726 = vpop.f32.mrf.mxu0
        %v4727 = vadd.f32 %v4563, %v4726
        %v4728 = vpop.f32.mrf.mxu0
        %4729 = vmatprep.mubr.bf16.mxu0 0
        %4730 = vmatmul.mubr.bf16.gmra.mxu0 %v4605
        %v4731 = vpop.f32.mrf.mxu0
        %v4732 = vadd.f32 %v4563, %v4731
        %v4733 = vpop.f32.mrf.mxu0
        %v4734 = vpop.f32.mrf.mxu0
        %v4735 = vadd.f32 %v4563, %v4734
        %v4736 = vpop.f32.mrf.mxu0
        %4737 = vmatprep.mubr.bf16.mxu0 0
        %4738 = vmatmul.mubr.bf16.gmra.mxu0 %v4608
        %v4739 = vpop.f32.mrf.mxu0
        %v4740 = vadd.f32 %v4563, %v4739
        %v4741 = vpop.f32.mrf.mxu0
        %v4742 = vpop.f32.mrf.mxu0
        %v4743 = vadd.f32 %v4563, %v4742
        %v4744 = vpop.f32.mrf.mxu0
        %4745 = vmatprep.mubr.bf16.mxu0 0
        %4746 = vmatmul.mubr.bf16.gmra.mxu0 %v4611
        %v4747 = vpop.f32.mrf.mxu0
        %v4748 = vadd.f32 %v4563, %v4747
        %v4749 = vpop.f32.mrf.mxu0
        %v4750 = vpop.f32.mrf.mxu0
        %v4751 = vadd.f32 %v4563, %v4750
        %v4752 = vpop.f32.mrf.mxu0
        %4753 = vmatprep.mubr.bf16.mxu0 0
        %4754 = vmatmul.mubr.bf16.gmra.mxu0 %v4614
        %v4755 = vpop.f32.mrf.mxu0
        %v4756 = vadd.f32 %v4563, %v4755
        %v4757 = vpop.f32.mrf.mxu0
        %v4758 = vpop.f32.mrf.mxu0
        %v4759 = vadd.f32 %v4563, %v4758
        %v4760 = vpop.f32.mrf.mxu0
        %4761 = vmatprep.mubr.bf16.mxu0 0
        %4762 = vmatmul.mubr.bf16.gmra.mxu0 %v4617
        %v4763 = vpop.f32.mrf.mxu0
        %v4764 = vadd.f32 %v4563, %v4763
        %v4765 = vpop.f32.mrf.mxu0
        %v4766 = vpop.f32.mrf.mxu0
        %v4767 = vadd.f32 %v4563, %v4766
        %v4768 = vpop.f32.mrf.mxu0
        %4769 = vmatprep.mubr.bf16.mxu0 0
        %4770 = vmatmul.mubr.bf16.gmra.mxu0 %v4620
        %v4771 = vpop.f32.mrf.mxu0
        %v4772 = vadd.f32 %v4563, %v4771
        %v4773 = vpop.f32.mrf.mxu0
        %v4774 = vpop.f32.mrf.mxu0
        %v4775 = vadd.f32 %v4563, %v4774
        %v4776 = vpop.f32.mrf.mxu0
        %4777 = vmatprep.mubr.bf16.mxu0 0
        %4778 = vmatmul.mubr.bf16.gmra.mxu0 %v4623
        %v4779 = vpop.f32.mrf.mxu0
        %v4780 = vadd.f32 %v4563, %v4779
        %v4781 = vpop.f32.mrf.mxu0
        %v4782 = vpop.f32.mrf.mxu0
        %v4783 = vadd.f32 %v4563, %v4782
        %v4784 = vpop.f32.mrf.mxu0
        %4785 = vdwg.mxu0
        %v4786 = vmul.f32 %v4660, %v4660
        %v4787 = vmul.f32 %v4663, %v4663
        %v4788 = vmul.f32 %v4668, %v4668
        %v4789 = vmul.f32 %v4671, %v4671
        %v4790 = vmul.f32 %v4676, %v4676
        %v4791 = vmul.f32 %v4679, %v4679
        %v4792 = vmul.f32 %v4684, %v4684
        %v4793 = vmul.f32 %v4687, %v4687
        %v4794 = vmul.f32 %v4692, %v4692
        %v4795 = vmul.f32 %v4695, %v4695
        %v4796 = vmul.f32 %v4700, %v4700
        %v4797 = vmul.f32 %v4703, %v4703
        %v4798 = vmul.f32 %v4708, %v4708
        %v4799 = vmul.f32 %v4711, %v4711
        %v4800 = vmul.f32 %v4716, %v4716
        %v4801 = vmul.f32 %v4719, %v4719
        %v4802 = vmul.f32 %v4724, %v4724
        %v4803 = vmul.f32 %v4727, %v4727
        %v4804 = vmul.f32 %v4732, %v4732
        %v4805 = vmul.f32 %v4735, %v4735
        %v4806 = vmul.f32 %v4740, %v4740
        %v4807 = vmul.f32 %v4743, %v4743
        %v4808 = vmul.f32 %v4748, %v4748
        %v4809 = vmul.f32 %v4751, %v4751
        %v4810 = vmul.f32 %v4756, %v4756
        %v4811 = vmul.f32 %v4759, %v4759
        %v4812 = vmul.f32 %v4764, %v4764
        %v4813 = vmul.f32 %v4767, %v4767
        %v4814 = vmul.f32 %v4772, %v4772
        %v4815 = vmul.f32 %v4775, %v4775
        %v4816 = vmul.f32 %v4780, %v4780
        %v4817 = vmul.f32 %v4783, %v4783
        %v4818 = vmul.f32 %v4660, %v4786
        %v4819 = vmul.f32 %v4663, %v4787
        %v4820 = vmul.f32 %v4668, %v4788
        %v4821 = vmul.f32 %v4671, %v4789
        %v4822 = vmul.f32 %v4676, %v4790
        %v4823 = vmul.f32 %v4679, %v4791
        %v4824 = vmul.f32 %v4684, %v4792
        %v4825 = vmul.f32 %v4687, %v4793
        %v4826 = vmul.f32 %v4692, %v4794
        %v4827 = vmul.f32 %v4695, %v4795
        %v4828 = vmul.f32 %v4700, %v4796
        %v4829 = vmul.f32 %v4703, %v4797
        %v4830 = vmul.f32 %v4708, %v4798
        %v4831 = vmul.f32 %v4711, %v4799
        %v4832 = vmul.f32 %v4716, %v4800
        %v4833 = vmul.f32 %v4719, %v4801
        %v4834 = vmul.f32 %v4724, %v4802
        %v4835 = vmul.f32 %v4727, %v4803
        %v4836 = vmul.f32 %v4732, %v4804
        %v4837 = vmul.f32 %v4735, %v4805
        %v4838 = vmul.f32 %v4740, %v4806
        %v4839 = vmul.f32 %v4743, %v4807
        %v4840 = vmul.f32 %v4748, %v4808
        %v4841 = vmul.f32 %v4751, %v4809
        %v4842 = vmul.f32 %v4756, %v4810
        %v4843 = vmul.f32 %v4759, %v4811
        %v4844 = vmul.f32 %v4764, %v4812
        %v4845 = vmul.f32 %v4767, %v4813
        %v4846 = vmul.f32 %v4772, %v4814
        %v4847 = vmul.f32 %v4775, %v4815
        %v4848 = vmul.f32 %v4780, %v4816
        %v4849 = vmul.f32 %v4783, %v4817
        %v4850 = vmul.f32 %v4818, 0.044715
        %v4851 = vmul.f32 %v4819, 0.044715
        %v4852 = vmul.f32 %v4820, 0.044715
        %v4853 = vmul.f32 %v4821, 0.044715
        %v4854 = vmul.f32 %v4822, 0.044715
        %v4855 = vmul.f32 %v4823, 0.044715
        %v4856 = vmul.f32 %v4824, 0.044715
        %v4857 = vmul.f32 %v4825, 0.044715
        %v4858 = vmul.f32 %v4826, 0.044715
        %v4859 = vmul.f32 %v4827, 0.044715
        %v4860 = vmul.f32 %v4828, 0.044715
        %v4861 = vmul.f32 %v4829, 0.044715
        %v4862 = vmul.f32 %v4830, 0.044715
        %v4863 = vmul.f32 %v4831, 0.044715
        %v4864 = vmul.f32 %v4832, 0.044715
        %v4865 = vmul.f32 %v4833, 0.044715
        %v4866 = vmul.f32 %v4834, 0.044715
        %v4867 = vmul.f32 %v4835, 0.044715
        %v4868 = vmul.f32 %v4836, 0.044715
        %v4869 = vmul.f32 %v4837, 0.044715
        %v4870 = vmul.f32 %v4838, 0.044715
        %v4871 = vmul.f32 %v4839, 0.044715
        %v4872 = vmul.f32 %v4840, 0.044715
        %v4873 = vmul.f32 %v4841, 0.044715
        %v4874 = vmul.f32 %v4842, 0.044715
        %v4875 = vmul.f32 %v4843, 0.044715
        %v4876 = vmul.f32 %v4844, 0.044715
        %v4877 = vmul.f32 %v4845, 0.044715
        %v4878 = vmul.f32 %v4846, 0.044715
        %v4879 = vmul.f32 %v4847, 0.044715
        %v4880 = vmul.f32 %v4848, 0.044715
        %v4881 = vmul.f32 %v4849, 0.044715
        %v4882 = vadd.f32 %v4660, %v4850
        %v4883 = vadd.f32 %v4663, %v4851
        %v4884 = vadd.f32 %v4668, %v4852
        %v4885 = vadd.f32 %v4671, %v4853
        %v4886 = vadd.f32 %v4676, %v4854
        %v4887 = vadd.f32 %v4679, %v4855
        %v4888 = vadd.f32 %v4684, %v4856
        %v4889 = vadd.f32 %v4687, %v4857
        %v4890 = vadd.f32 %v4692, %v4858
        %v4891 = vadd.f32 %v4695, %v4859
        %v4892 = vadd.f32 %v4700, %v4860
        %v4893 = vadd.f32 %v4703, %v4861
        %v4894 = vadd.f32 %v4708, %v4862
        %v4895 = vadd.f32 %v4711, %v4863
        %v4896 = vadd.f32 %v4716, %v4864
        %v4897 = vadd.f32 %v4719, %v4865
        %v4898 = vadd.f32 %v4724, %v4866
        %v4899 = vadd.f32 %v4727, %v4867
        %v4900 = vadd.f32 %v4732, %v4868
        %v4901 = vadd.f32 %v4735, %v4869
        %v4902 = vadd.f32 %v4740, %v4870
        %v4903 = vadd.f32 %v4743, %v4871
        %v4904 = vadd.f32 %v4748, %v4872
        %v4905 = vadd.f32 %v4751, %v4873
        %v4906 = vadd.f32 %v4756, %v4874
        %v4907 = vadd.f32 %v4759, %v4875
        %v4908 = vadd.f32 %v4764, %v4876
        %v4909 = vadd.f32 %v4767, %v4877
        %v4910 = vadd.f32 %v4772, %v4878
        %v4911 = vadd.f32 %v4775, %v4879
        %v4912 = vadd.f32 %v4780, %v4880
        %v4913 = vadd.f32 %v4783, %v4881
        %v4914 = vmul.f32 %v4882, 0.7978846
        %v4915 = vmul.f32 %v4883, 0.7978846
        %v4916 = vmul.f32 %v4884, 0.7978846
        %v4917 = vmul.f32 %v4885, 0.7978846
        %v4918 = vmul.f32 %v4886, 0.7978846
        %v4919 = vmul.f32 %v4887, 0.7978846
        %v4920 = vmul.f32 %v4888, 0.7978846
        %v4921 = vmul.f32 %v4889, 0.7978846
        %v4922 = vmul.f32 %v4890, 0.7978846
        %v4923 = vmul.f32 %v4891, 0.7978846
        %v4924 = vmul.f32 %v4892, 0.7978846
        %v4925 = vmul.f32 %v4893, 0.7978846
        %v4926 = vmul.f32 %v4894, 0.7978846
        %v4927 = vmul.f32 %v4895, 0.7978846
        %v4928 = vmul.f32 %v4896, 0.7978846
        %v4929 = vmul.f32 %v4897, 0.7978846
        %v4930 = vmul.f32 %v4898, 0.7978846
        %v4931 = vmul.f32 %v4899, 0.7978846
        %v4932 = vmul.f32 %v4900, 0.7978846
        %v4933 = vmul.f32 %v4901, 0.7978846
        %v4934 = vmul.f32 %v4902, 0.7978846
        %v4935 = vmul.f32 %v4903, 0.7978846
        %v4936 = vmul.f32 %v4904, 0.7978846
        %v4937 = vmul.f32 %v4905, 0.7978846
        %v4938 = vmul.f32 %v4906, 0.7978846
        %v4939 = vmul.f32 %v4907, 0.7978846
        %v4940 = vmul.f32 %v4908, 0.7978846
        %v4941 = vmul.f32 %v4909, 0.7978846
        %v4942 = vmul.f32 %v4910, 0.7978846
        %v4943 = vmul.f32 %v4911, 0.7978846
        %v4944 = vmul.f32 %v4912, 0.7978846
        %v4945 = vmul.f32 %v4913, 0.7978846
        %v4946 = vtanh.pop %v4914
        %v4947 = vtanh.pop %v4915
        %v4948 = vtanh.pop %v4916
        %v4949 = vtanh.pop %v4917
        %v4950 = vtanh.pop %v4918
        %v4951 = vtanh.pop %v4919
        %v4952 = vtanh.pop %v4920
        %v4953 = vtanh.pop %v4921
        %v4954 = vtanh.pop %v4922
        %v4955 = vtanh.pop %v4923
        %v4956 = vtanh.pop %v4924
        %v4957 = vtanh.pop %v4925
        %v4958 = vtanh.pop %v4926
        %v4959 = vtanh.pop %v4927
        %v4960 = vtanh.pop %v4928
        %v4961 = vtanh.pop %v4929
        %v4962 = vtanh.pop %v4930
        %v4963 = vtanh.pop %v4931
        %v4964 = vtanh.pop %v4932
        %v4965 = vtanh.pop %v4933
        %v4966 = vtanh.pop %v4934
        %v4967 = vtanh.pop %v4935
        %v4968 = vtanh.pop %v4936
        %v4969 = vtanh.pop %v4937
        %v4970 = vtanh.pop %v4938
        %v4971 = vtanh.pop %v4939
        %v4972 = vtanh.pop %v4940
        %v4973 = vtanh.pop %v4941
        %v4974 = vtanh.pop %v4942
        %v4975 = vtanh.pop %v4943
        %v4976 = vtanh.pop %v4944
        %v4977 = vtanh.pop %v4945
        %v4978 = vadd.f32 %v4946, 1.0
        %v4979 = vadd.f32 %v4947, 1.0
        %v4980 = vadd.f32 %v4948, 1.0
        %v4981 = vadd.f32 %v4949, 1.0
        %v4982 = vadd.f32 %v4950, 1.0
        %v4983 = vadd.f32 %v4951, 1.0
        %v4984 = vadd.f32 %v4952, 1.0
        %v4985 = vadd.f32 %v4953, 1.0
        %v4986 = vadd.f32 %v4954, 1.0
        %v4987 = vadd.f32 %v4955, 1.0
        %v4988 = vadd.f32 %v4956, 1.0
        %v4989 = vadd.f32 %v4957, 1.0
        %v4990 = vadd.f32 %v4958, 1.0
        %v4991 = vadd.f32 %v4959, 1.0
        %v4992 = vadd.f32 %v4960, 1.0
        %v4993 = vadd.f32 %v4961, 1.0
        %v4994 = vadd.f32 %v4962, 1.0
        %v4995 = vadd.f32 %v4963, 1.0
        %v4996 = vadd.f32 %v4964, 1.0
        %v4997 = vadd.f32 %v4965, 1.0
        %v4998 = vadd.f32 %v4966, 1.0
        %v4999 = vadd.f32 %v4967, 1.0
        %v5000 = vadd.f32 %v4968, 1.0
        %v5001 = vadd.f32 %v4969, 1.0
        %v5002 = vadd.f32 %v4970, 1.0
        %v5003 = vadd.f32 %v4971, 1.0
        %v5004 = vadd.f32 %v4972, 1.0
        %v5005 = vadd.f32 %v4973, 1.0
        %v5006 = vadd.f32 %v4974, 1.0
        %v5007 = vadd.f32 %v4975, 1.0
        %v5008 = vadd.f32 %v4976, 1.0
        %v5009 = vadd.f32 %v4977, 1.0
        %v5010 = vmul.f32 %v4978, 0.5
        %v5011 = vmul.f32 %v4979, 0.5
        %v5012 = vmul.f32 %v4980, 0.5
        %v5013 = vmul.f32 %v4981, 0.5
        %v5014 = vmul.f32 %v4982, 0.5
        %v5015 = vmul.f32 %v4983, 0.5
        %v5016 = vmul.f32 %v4984, 0.5
        %v5017 = vmul.f32 %v4985, 0.5
        %v5018 = vmul.f32 %v4986, 0.5
        %v5019 = vmul.f32 %v4987, 0.5
        %v5020 = vmul.f32 %v4988, 0.5
        %v5021 = vmul.f32 %v4989, 0.5
        %v5022 = vmul.f32 %v4990, 0.5
        %v5023 = vmul.f32 %v4991, 0.5
        %v5024 = vmul.f32 %v4992, 0.5
        %v5025 = vmul.f32 %v4993, 0.5
        %v5026 = vmul.f32 %v4994, 0.5
        %v5027 = vmul.f32 %v4995, 0.5
        %v5028 = vmul.f32 %v4996, 0.5
        %v5029 = vmul.f32 %v4997, 0.5
        %v5030 = vmul.f32 %v4998, 0.5
        %v5031 = vmul.f32 %v4999, 0.5
        %v5032 = vmul.f32 %v5000, 0.5
        %v5033 = vmul.f32 %v5001, 0.5
        %v5034 = vmul.f32 %v5002, 0.5
        %v5035 = vmul.f32 %v5003, 0.5
        %v5036 = vmul.f32 %v5004, 0.5
        %v5037 = vmul.f32 %v5005, 0.5
        %v5038 = vmul.f32 %v5006, 0.5
        %v5039 = vmul.f32 %v5007, 0.5
        %v5040 = vmul.f32 %v5008, 0.5
        %v5041 = vmul.f32 %v5009, 0.5
        %v5042 = vmul.f32 %v4660, %v5010
        %v5043 = vmul.f32 %v4663, %v5011
        %v5044 = vmul.f32 %v4668, %v5012
        %v5045 = vmul.f32 %v4671, %v5013
        %v5046 = vmul.f32 %v4676, %v5014
        %v5047 = vmul.f32 %v4679, %v5015
        %v5048 = vmul.f32 %v4684, %v5016
        %v5049 = vmul.f32 %v4687, %v5017
        %v5050 = vmul.f32 %v4692, %v5018
        %v5051 = vmul.f32 %v4695, %v5019
        %v5052 = vmul.f32 %v4700, %v5020
        %v5053 = vmul.f32 %v4703, %v5021
        %v5054 = vmul.f32 %v4708, %v5022
        %v5055 = vmul.f32 %v4711, %v5023
        %v5056 = vmul.f32 %v4716, %v5024
        %v5057 = vmul.f32 %v4719, %v5025
        %v5058 = vmul.f32 %v4724, %v5026
        %v5059 = vmul.f32 %v4727, %v5027
        %v5060 = vmul.f32 %v4732, %v5028
        %v5061 = vmul.f32 %v4735, %v5029
        %v5062 = vmul.f32 %v4740, %v5030
        %v5063 = vmul.f32 %v4743, %v5031
        %v5064 = vmul.f32 %v4748, %v5032
        %v5065 = vmul.f32 %v4751, %v5033
        %v5066 = vmul.f32 %v4756, %v5034
        %v5067 = vmul.f32 %v4759, %v5035
        %v5068 = vmul.f32 %v4764, %v5036
        %v5069 = vmul.f32 %v4767, %v5037
        %v5070 = vmul.f32 %v4772, %v5038
        %v5071 = vmul.f32 %v4775, %v5039
        %v5072 = vmul.f32 %v4780, %v5040
        %v5073 = vmul.f32 %v4783, %v5041
        %v5074 = vpack.c.bf16 %v5043, %v5042
        %v5075 = vpack.c.bf16 %v5045, %v5044
        %v5076 = vpack.c.bf16 %v5047, %v5046
        %v5077 = vpack.c.bf16 %v5049, %v5048
        %v5078 = vpack.c.bf16 %v5051, %v5050
        %v5079 = vpack.c.bf16 %v5053, %v5052
        %v5080 = vpack.c.bf16 %v5055, %v5054
        %v5081 = vpack.c.bf16 %v5057, %v5056
        %v5082 = vpack.c.bf16 %v5059, %v5058
        %v5083 = vpack.c.bf16 %v5061, %v5060
        %v5084 = vpack.c.bf16 %v5063, %v5062
        %v5085 = vpack.c.bf16 %v5065, %v5064
        %v5086 = vpack.c.bf16 %v5067, %v5066
        %v5087 = vpack.c.bf16 %v5069, %v5068
        %v5088 = vpack.c.bf16 %v5071, %v5070
        %v5089 = vpack.c.bf16 %v5073, %v5072
        %s5090 = scalar_lea.vmem %s5, 96
        %v5091 = vld [vmem:[%s5090] sm:$0xf]
        %v5092 = vld [vmem:[%s5090 + $0x4] sm:$0xf]
        %v5093 = vld [vmem:[%s5090 + $0x8] sm:$0xf]
        %v5094 = vld [vmem:[%s5090 + $0xc] sm:$0xf]
        %v5095 = vld [vmem:[%s5090 + $0x10] sm:$0xf]
        %v5096 = vld [vmem:[%s5090 + $0x14] sm:$0xf]
        %v5097 = vld [vmem:[%s5090 + $0x18] sm:$0xf]
        %v5098 = vld [vmem:[%s5090 + $0x1c] sm:$0xf]
        %s5099 = scalar_lea.vmem %s6, 3
        %v5100 = vld [vmem:[%s5099] sm:$0x1]
        %v5102 = vlaneseq
        %v5103 = vshrl.u32 %v5102, 7
        %v5104 = vsub.s32 0, %v5103
        %v5105 = vrot.slane %v5100, %v5104
        %v5115 = vunpack.c.l.b16 %v5091
        %v5116 = vunpack.c.l.b16 %v5092
        %v5117 = vunpack.c.l.b16 %v5093
        %v5118 = vunpack.c.l.b16 %v5094
        %v5119 = vunpack.c.l.b16 %v5095
        %v5120 = vunpack.c.l.b16 %v5096
        %v5121 = vunpack.c.l.b16 %v5097
        %v5122 = vunpack.c.l.b16 %v5098
        %v5123 = vpack.c.b16 %v5116, %v5115
        %v5124 = vpack.c.b16 %v5118, %v5117
        %v5125 = vpack.c.b16 %v5120, %v5119
        %v5126 = vpack.c.b16 %v5122, %v5121
        %v5132 = vsel %vm2622, %v5074, 0
        %v5135 = vsel %vm2622, %v5075, 0
        %v5138 = vsel %vm2622, %v5076, 0
        %v5141 = vsel %vm2622, %v5077, 0
        %v5144 = vsel %vm2622, %v5078, 0
        %v5147 = vsel %vm2622, %v5079, 0
        %v5150 = vsel %vm2622, %v5080, 0
        %v5153 = vsel %vm2622, %v5081, 0
        %v5156 = vsel %vm2622, %v5082, 0
        %v5159 = vsel %vm2622, %v5083, 0
        %v5162 = vsel %vm2622, %v5084, 0
        %v5165 = vsel %vm2622, %v5085, 0
        %v5168 = vsel %vm2622, %v5086, 0
        %v5171 = vsel %vm2622, %v5087, 0
        %v5174 = vsel %vm2622, %v5088, 0
        %v5177 = vsel %vm2622, %v5089, 0
        %5179 = vmatprep.subr.bf16.mxu0 0
        %5180 = vmatpush1.bf16.msra.mxu0 0
        %5181 = vmatprep.subr.bf16.mxu0 0
        %5182 = vmatpush1.bf16.msra.mxu0 0
        %5183 = vmatprep.subr.bf16.mxu0 0
        %5184 = vmatpush1.bf16.msra.mxu0 0
        %5185 = vmatprep.subr.bf16.mxu0 0
        %5186 = vmatpush1.bf16.msra.mxu0 0
        %5187 = vmatprep.subr.bf16.mxu0 0
        %5188 = vmatpush1.bf16.msra.mxu0 %v5126
        %5189 = vmatprep.subr.bf16.mxu0 0
        %5190 = vmatpush1.bf16.msra.mxu0 %v5125
        %5191 = vmatprep.subr.bf16.mxu0 0
        %5192 = vmatpush1.bf16.msra.mxu0 %v5124
        %5193 = vmatprep.subr.bf16.mxu0 0
        %5194 = vmatpush1.bf16.msra.mxu0 %v5123
        %5195 = vmatprep.subr.bf16.mxu0 0
        %5196 = vmatpush2.bf16.msra.mxu0 0
        %5197 = vmatprep.subr.bf16.mxu0 0
        %5198 = vmatpush2.bf16.msra.mxu0 0
        %5199 = vmatprep.subr.bf16.mxu0 0
        %5200 = vmatpush2.bf16.msra.mxu0 0
        %5201 = vmatprep.subr.bf16.mxu0 0
        %5202 = vmatpush2.bf16.msra.mxu0 0
        %5203 = vmatprep.subr.bf16.mxu0 0
        %5204 = vmatpush2.bf16.msra.mxu0 0
        %5205 = vmatprep.subr.bf16.mxu0 0
        %5206 = vmatpush2.bf16.msra.mxu0 0
        %5207 = vmatprep.subr.bf16.mxu0 0
        %5208 = vmatpush2.bf16.msra.mxu0 0
        %5209 = vmatprep.subr.bf16.mxu0 0
        %5210 = vmatpush2.bf16.msra.mxu0 0
        %5211 = vmatprep.mubr.bf16.mxu0 0
        %5212 = vmatmul.mubr.bf16.gmra.mxu0 %v5132
        %v5213 = vpop.f32.mrf.mxu0
        %v5214 = vadd.f32 %v5105, %v5213
        %v5215 = vpop.f32.mrf.mxu0
        %v5216 = vpop.f32.mrf.mxu0
        %v5217 = vadd.f32 %v5105, %v5216
        %v5218 = vpop.f32.mrf.mxu0
        %5219 = vmatprep.mubr.bf16.mxu0 0
        %5220 = vmatmul.mubr.bf16.gmra.mxu0 %v5135
        %v5221 = vpop.f32.mrf.mxu0
        %v5222 = vadd.f32 %v5105, %v5221
        %v5223 = vpop.f32.mrf.mxu0
        %v5224 = vpop.f32.mrf.mxu0
        %v5225 = vadd.f32 %v5105, %v5224
        %v5226 = vpop.f32.mrf.mxu0
        %5227 = vmatprep.mubr.bf16.mxu0 0
        %5228 = vmatmul.mubr.bf16.gmra.mxu0 %v5138
        %v5229 = vpop.f32.mrf.mxu0
        %v5230 = vadd.f32 %v5105, %v5229
        %v5231 = vpop.f32.mrf.mxu0
        %v5232 = vpop.f32.mrf.mxu0
        %v5233 = vadd.f32 %v5105, %v5232
        %v5234 = vpop.f32.mrf.mxu0
        %5235 = vmatprep.mubr.bf16.mxu0 0
        %5236 = vmatmul.mubr.bf16.gmra.mxu0 %v5141
        %v5237 = vpop.f32.mrf.mxu0
        %v5238 = vadd.f32 %v5105, %v5237
        %v5239 = vpop.f32.mrf.mxu0
        %v5240 = vpop.f32.mrf.mxu0
        %v5241 = vadd.f32 %v5105, %v5240
        %v5242 = vpop.f32.mrf.mxu0
        %5243 = vmatprep.mubr.bf16.mxu0 0
        %5244 = vmatmul.mubr.bf16.gmra.mxu0 %v5144
        %v5245 = vpop.f32.mrf.mxu0
        %v5246 = vadd.f32 %v5105, %v5245
        %v5247 = vpop.f32.mrf.mxu0
        %v5248 = vpop.f32.mrf.mxu0
        %v5249 = vadd.f32 %v5105, %v5248
        %v5250 = vpop.f32.mrf.mxu0
        %5251 = vmatprep.mubr.bf16.mxu0 0
        %5252 = vmatmul.mubr.bf16.gmra.mxu0 %v5147
        %v5253 = vpop.f32.mrf.mxu0
        %v5254 = vadd.f32 %v5105, %v5253
        %v5255 = vpop.f32.mrf.mxu0
        %v5256 = vpop.f32.mrf.mxu0
        %v5257 = vadd.f32 %v5105, %v5256
        %v5258 = vpop.f32.mrf.mxu0
        %5259 = vmatprep.mubr.bf16.mxu0 0
        %5260 = vmatmul.mubr.bf16.gmra.mxu0 %v5150
        %v5261 = vpop.f32.mrf.mxu0
        %v5262 = vadd.f32 %v5105, %v5261
        %v5263 = vpop.f32.mrf.mxu0
        %v5264 = vpop.f32.mrf.mxu0
        %v5265 = vadd.f32 %v5105, %v5264
        %v5266 = vpop.f32.mrf.mxu0
        %5267 = vmatprep.mubr.bf16.mxu0 0
        %5268 = vmatmul.mubr.bf16.gmra.mxu0 %v5153
        %v5269 = vpop.f32.mrf.mxu0
        %v5270 = vadd.f32 %v5105, %v5269
        %v5271 = vpop.f32.mrf.mxu0
        %v5272 = vpop.f32.mrf.mxu0
        %v5273 = vadd.f32 %v5105, %v5272
        %v5274 = vpop.f32.mrf.mxu0
        %5275 = vmatprep.mubr.bf16.mxu0 0
        %5276 = vmatmul.mubr.bf16.gmra.mxu0 %v5156
        %v5277 = vpop.f32.mrf.mxu0
        %v5278 = vadd.f32 %v5105, %v5277
        %v5279 = vpop.f32.mrf.mxu0
        %v5280 = vpop.f32.mrf.mxu0
        %v5281 = vadd.f32 %v5105, %v5280
        %v5282 = vpop.f32.mrf.mxu0
        %5283 = vmatprep.mubr.bf16.mxu0 0
        %5284 = vmatmul.mubr.bf16.gmra.mxu0 %v5159
        %v5285 = vpop.f32.mrf.mxu0
        %v5286 = vadd.f32 %v5105, %v5285
        %v5287 = vpop.f32.mrf.mxu0
        %v5288 = vpop.f32.mrf.mxu0
        %v5289 = vadd.f32 %v5105, %v5288
        %v5290 = vpop.f32.mrf.mxu0
        %5291 = vmatprep.mubr.bf16.mxu0 0
        %5292 = vmatmul.mubr.bf16.gmra.mxu0 %v5162
        %v5293 = vpop.f32.mrf.mxu0
        %v5294 = vadd.f32 %v5105, %v5293
        %v5295 = vpop.f32.mrf.mxu0
        %v5296 = vpop.f32.mrf.mxu0
        %v5297 = vadd.f32 %v5105, %v5296
        %v5298 = vpop.f32.mrf.mxu0
        %5299 = vmatprep.mubr.bf16.mxu0 0
        %5300 = vmatmul.mubr.bf16.gmra.mxu0 %v5165
        %v5301 = vpop.f32.mrf.mxu0
        %v5302 = vadd.f32 %v5105, %v5301
        %v5303 = vpop.f32.mrf.mxu0
        %v5304 = vpop.f32.mrf.mxu0
        %v5305 = vadd.f32 %v5105, %v5304
        %v5306 = vpop.f32.mrf.mxu0
        %5307 = vmatprep.mubr.bf16.mxu0 0
        %5308 = vmatmul.mubr.bf16.gmra.mxu0 %v5168
        %v5309 = vpop.f32.mrf.mxu0
        %v5310 = vadd.f32 %v5105, %v5309
        %v5311 = vpop.f32.mrf.mxu0
        %v5312 = vpop.f32.mrf.mxu0
        %v5313 = vadd.f32 %v5105, %v5312
        %v5314 = vpop.f32.mrf.mxu0
        %5315 = vmatprep.mubr.bf16.mxu0 0
        %5316 = vmatmul.mubr.bf16.gmra.mxu0 %v5171
        %v5317 = vpop.f32.mrf.mxu0
        %v5318 = vadd.f32 %v5105, %v5317
        %v5319 = vpop.f32.mrf.mxu0
        %v5320 = vpop.f32.mrf.mxu0
        %v5321 = vadd.f32 %v5105, %v5320
        %v5322 = vpop.f32.mrf.mxu0
        %5323 = vmatprep.mubr.bf16.mxu0 0
        %5324 = vmatmul.mubr.bf16.gmra.mxu0 %v5174
        %v5325 = vpop.f32.mrf.mxu0
        %v5326 = vadd.f32 %v5105, %v5325
        %v5327 = vpop.f32.mrf.mxu0
        %v5328 = vpop.f32.mrf.mxu0
        %v5329 = vadd.f32 %v5105, %v5328
        %v5330 = vpop.f32.mrf.mxu0
        %5331 = vmatprep.mubr.bf16.mxu0 0
        %5332 = vmatmul.mubr.bf16.gmra.mxu0 %v5177
        %v5333 = vpop.f32.mrf.mxu0
        %v5334 = vadd.f32 %v5105, %v5333
        %v5335 = vpop.f32.mrf.mxu0
        %v5336 = vpop.f32.mrf.mxu0
        %v5337 = vadd.f32 %v5105, %v5336
        %v5338 = vpop.f32.mrf.mxu0
        %5339 = vdwg.mxu0
        %v5340 = vadd.f32 %v4504, %v5214
        %v5341 = vadd.f32 %v4505, %v5217
        %v5342 = vadd.f32 %v4506, %v5222
        %v5343 = vadd.f32 %v4507, %v5225
        %v5344 = vadd.f32 %v4508, %v5230
        %v5345 = vadd.f32 %v4509, %v5233
        %v5346 = vadd.f32 %v4510, %v5238
        %v5347 = vadd.f32 %v4511, %v5241
        %v5348 = vadd.f32 %v4512, %v5246
        %v5349 = vadd.f32 %v4513, %v5249
        %v5350 = vadd.f32 %v4514, %v5254
        %v5351 = vadd.f32 %v4515, %v5257
        %v5352 = vadd.f32 %v4516, %v5262
        %v5353 = vadd.f32 %v4517, %v5265
        %v5354 = vadd.f32 %v4518, %v5270
        %v5355 = vadd.f32 %v4519, %v5273
        %v5356 = vadd.f32 %v4520, %v5278
        %v5357 = vadd.f32 %v4521, %v5281
        %v5358 = vadd.f32 %v4522, %v5286
        %v5359 = vadd.f32 %v4523, %v5289
        %v5360 = vadd.f32 %v4524, %v5294
        %v5361 = vadd.f32 %v4525, %v5297
        %v5362 = vadd.f32 %v4526, %v5302
        %v5363 = vadd.f32 %v4527, %v5305
        %v5364 = vadd.f32 %v4528, %v5310
        %v5365 = vadd.f32 %v4529, %v5313
        %v5366 = vadd.f32 %v4530, %v5318
        %v5367 = vadd.f32 %v4531, %v5321
        %v5368 = vadd.f32 %v4532, %v5326
        %v5369 = vadd.f32 %v4533, %v5329
        %v5370 = vadd.f32 %v4534, %v5334
        %v5371 = vadd.f32 %v4535, %v5337
        %5404 = vrot.lane.b32.xlu0 %v3668, 32
        %v5405 = vpop.permute.xlu0 %5404
        %5406 = vrot.lane.b32.xlu0 %v3669, 32
        %v5407 = vpop.permute.xlu0 %5406
        %5408 = vrot.lane.b32.xlu0 %v3670, 32
        %v5409 = vpop.permute.xlu0 %5408
        %5410 = vrot.lane.b32.xlu0 %v3671, 32
        %v5411 = vpop.permute.xlu0 %5410
        %5412 = vrot.lane.b32.xlu0 %v3672, 32
        %v5413 = vpop.permute.xlu0 %5412
        %5414 = vrot.lane.b32.xlu0 %v3673, 32
        %v5415 = vpop.permute.xlu0 %5414
        %5416 = vrot.lane.b32.xlu0 %v3674, 32
        %v5417 = vpop.permute.xlu0 %5416
        %5418 = vrot.lane.b32.xlu0 %v3675, 32
        %v5419 = vpop.permute.xlu0 %5418
        %5420 = vrot.lane.b32.xlu0 %v3676, 32
        %v5421 = vpop.permute.xlu0 %5420
        %5422 = vrot.lane.b32.xlu0 %v3677, 32
        %v5423 = vpop.permute.xlu0 %5422
        %5424 = vrot.lane.b32.xlu0 %v3678, 32
        %v5425 = vpop.permute.xlu0 %5424
        %5426 = vrot.lane.b32.xlu0 %v3679, 32
        %v5427 = vpop.permute.xlu0 %5426
        %5428 = vrot.lane.b32.xlu0 %v3680, 32
        %v5429 = vpop.permute.xlu0 %5428
        %5430 = vrot.lane.b32.xlu0 %v3681, 32
        %v5431 = vpop.permute.xlu0 %5430
        %5432 = vrot.lane.b32.xlu0 %v3682, 32
        %v5433 = vpop.permute.xlu0 %5432
        %5434 = vrot.lane.b32.xlu0 %v3683, 32
        %v5435 = vpop.permute.xlu0 %5434
        %5436 = vrot.lane.b32.xlu0 %v3684, 32
        %v5437 = vpop.permute.xlu0 %5436
        %5438 = vrot.lane.b32.xlu0 %v3685, 32
        %v5439 = vpop.permute.xlu0 %5438
        %5440 = vrot.lane.b32.xlu0 %v3686, 32
        %v5441 = vpop.permute.xlu0 %5440
        %5442 = vrot.lane.b32.xlu0 %v3687, 32
        %v5443 = vpop.permute.xlu0 %5442
        %5444 = vrot.lane.b32.xlu0 %v3688, 32
        %v5445 = vpop.permute.xlu0 %5444
        %5446 = vrot.lane.b32.xlu0 %v3689, 32
        %v5447 = vpop.permute.xlu0 %5446
        %5448 = vrot.lane.b32.xlu0 %v3690, 32
        %v5449 = vpop.permute.xlu0 %5448
        %5450 = vrot.lane.b32.xlu0 %v3691, 32
        %v5451 = vpop.permute.xlu0 %5450
        %5452 = vrot.lane.b32.xlu0 %v3692, 32
        %v5453 = vpop.permute.xlu0 %5452
        %5454 = vrot.lane.b32.xlu0 %v3693, 32
        %v5455 = vpop.permute.xlu0 %5454
        %5456 = vrot.lane.b32.xlu0 %v3694, 32
        %v5457 = vpop.permute.xlu0 %5456
        %5458 = vrot.lane.b32.xlu0 %v3695, 32
        %v5459 = vpop.permute.xlu0 %5458
        %5460 = vrot.lane.b32.xlu0 %v3696, 32
        %v5461 = vpop.permute.xlu0 %5460
        %5462 = vrot.lane.b32.xlu0 %v3697, 32
        %v5463 = vpop.permute.xlu0 %5462
        %5464 = vrot.lane.b32.xlu0 %v3698, 32
        %v5465 = vpop.permute.xlu0 %5464
        %5466 = vrot.lane.b32.xlu0 %v3699, 32
        %v5467 = vpop.permute.xlu0 %5466
        %5532 = vrot.lane.b32.xlu0 %v4504, 64
        %v5533 = vpop.permute.xlu0 %5532
        %5534 = vrot.lane.b32.xlu0 %v4505, 64
        %v5535 = vpop.permute.xlu0 %5534
        %5536 = vrot.lane.b32.xlu0 %v4506, 64
        %v5537 = vpop.permute.xlu0 %5536
        %5538 = vrot.lane.b32.xlu0 %v4507, 64
        %v5539 = vpop.permute.xlu0 %5538
        %5540 = vrot.lane.b32.xlu0 %v4508, 64
        %v5541 = vpop.permute.xlu0 %5540
        %5542 = vrot.lane.b32.xlu0 %v4509, 64
        %v5543 = vpop.permute.xlu0 %5542
        %5544 = vrot.lane.b32.xlu0 %v4510, 64
        %v5545 = vpop.permute.xlu0 %5544
        %5546 = vrot.lane.b32.xlu0 %v4511, 64
        %v5547 = vpop.permute.xlu0 %5546
        %5548 = vrot.lane.b32.xlu0 %v4512, 64
        %v5549 = vpop.permute.xlu0 %5548
        %5550 = vrot.lane.b32.xlu0 %v4513, 64
        %v5551 = vpop.permute.xlu0 %5550
        %5552 = vrot.lane.b32.xlu0 %v4514, 64
        %v5553 = vpop.permute.xlu0 %5552
        %5554 = vrot.lane.b32.xlu0 %v4515, 64
        %v5555 = vpop.permute.xlu0 %5554
        %5556 = vrot.lane.b32.xlu0 %v4516, 64
        %v5557 = vpop.permute.xlu0 %5556
        %5558 = vrot.lane.b32.xlu0 %v4517, 64
        %v5559 = vpop.permute.xlu0 %5558
        %5560 = vrot.lane.b32.xlu0 %v4518, 64
        %v5561 = vpop.permute.xlu0 %5560
        %5562 = vrot.lane.b32.xlu0 %v4519, 64
        %v5563 = vpop.permute.xlu0 %5562
        %5564 = vrot.lane.b32.xlu0 %v4520, 64
        %v5565 = vpop.permute.xlu0 %5564
        %5566 = vrot.lane.b32.xlu0 %v4521, 64
        %v5567 = vpop.permute.xlu0 %5566
        %5568 = vrot.lane.b32.xlu0 %v4522, 64
        %v5569 = vpop.permute.xlu0 %5568
        %5570 = vrot.lane.b32.xlu0 %v4523, 64
        %v5571 = vpop.permute.xlu0 %5570
        %5572 = vrot.lane.b32.xlu0 %v4524, 64
        %v5573 = vpop.permute.xlu0 %5572
        %5574 = vrot.lane.b32.xlu0 %v4525, 64
        %v5575 = vpop.permute.xlu0 %5574
        %5576 = vrot.lane.b32.xlu0 %v4526, 64
        %v5577 = vpop.permute.xlu0 %5576
        %5578 = vrot.lane.b32.xlu0 %v4527, 64
        %v5579 = vpop.permute.xlu0 %5578
        %5580 = vrot.lane.b32.xlu0 %v4528, 64
        %v5581 = vpop.permute.xlu0 %5580
        %5582 = vrot.lane.b32.xlu0 %v4529, 64
        %v5583 = vpop.permute.xlu0 %5582
        %5584 = vrot.lane.b32.xlu0 %v4530, 64
        %v5585 = vpop.permute.xlu0 %5584
        %5586 = vrot.lane.b32.xlu0 %v4531, 64
        %v5587 = vpop.permute.xlu0 %5586
        %5588 = vrot.lane.b32.xlu0 %v4532, 64
        %v5589 = vpop.permute.xlu0 %5588
        %5590 = vrot.lane.b32.xlu0 %v4533, 64
        %v5591 = vpop.permute.xlu0 %5590
        %5592 = vrot.lane.b32.xlu0 %v4534, 64
        %v5593 = vpop.permute.xlu0 %5592
        %5594 = vrot.lane.b32.xlu0 %v4535, 64
        %v5595 = vpop.permute.xlu0 %5594
        %5660 = vrot.lane.b32.xlu0 %v5340, 96
        %v5661 = vpop.permute.xlu0 %5660
        %5662 = vrot.lane.b32.xlu0 %v5341, 96
        %v5663 = vpop.permute.xlu0 %5662
        %5664 = vrot.lane.b32.xlu0 %v5342, 96
        %v5665 = vpop.permute.xlu0 %5664
        %5666 = vrot.lane.b32.xlu0 %v5343, 96
        %v5667 = vpop.permute.xlu0 %5666
        %5668 = vrot.lane.b32.xlu0 %v5344, 96
        %v5669 = vpop.permute.xlu0 %5668
        %5670 = vrot.lane.b32.xlu0 %v5345, 96
        %v5671 = vpop.permute.xlu0 %5670
        %5672 = vrot.lane.b32.xlu0 %v5346, 96
        %v5673 = vpop.permute.xlu0 %5672
        %5674 = vrot.lane.b32.xlu0 %v5347, 96
        %v5675 = vpop.permute.xlu0 %5674
        %5676 = vrot.lane.b32.xlu0 %v5348, 96
        %v5677 = vpop.permute.xlu0 %5676
        %5678 = vrot.lane.b32.xlu0 %v5349, 96
        %v5679 = vpop.permute.xlu0 %5678
        %5680 = vrot.lane.b32.xlu0 %v5350, 96
        %v5681 = vpop.permute.xlu0 %5680
        %5682 = vrot.lane.b32.xlu0 %v5351, 96
        %v5683 = vpop.permute.xlu0 %5682
        %5684 = vrot.lane.b32.xlu0 %v5352, 96
        %v5685 = vpop.permute.xlu0 %5684
        %5686 = vrot.lane.b32.xlu0 %v5353, 96
        %v5687 = vpop.permute.xlu0 %5686
        %5688 = vrot.lane.b32.xlu0 %v5354, 96
        %v5689 = vpop.permute.xlu0 %5688
        %5690 = vrot.lane.b32.xlu0 %v5355, 96
        %v5691 = vpop.permute.xlu0 %5690
        %5692 = vrot.lane.b32.xlu0 %v5356, 96
        %v5693 = vpop.permute.xlu0 %5692
        %5694 = vrot.lane.b32.xlu0 %v5357, 96
        %v5695 = vpop.permute.xlu0 %5694
        %5696 = vrot.lane.b32.xlu0 %v5358, 96
        %v5697 = vpop.permute.xlu0 %5696
        %5698 = vrot.lane.b32.xlu0 %v5359, 96
        %v5699 = vpop.permute.xlu0 %5698
        %5700 = vrot.lane.b32.xlu0 %v5360, 96
        %v5701 = vpop.permute.xlu0 %5700
        %5702 = vrot.lane.b32.xlu0 %v5361, 96
        %v5703 = vpop.permute.xlu0 %5702
        %5704 = vrot.lane.b32.xlu0 %v5362, 96
        %v5705 = vpop.permute.xlu0 %5704
        %5706 = vrot.lane.b32.xlu0 %v5363, 96
        %v5707 = vpop.permute.xlu0 %5706
        %5708 = vrot.lane.b32.xlu0 %v5364, 96
        %v5709 = vpop.permute.xlu0 %5708
        %5710 = vrot.lane.b32.xlu0 %v5365, 96
        %v5711 = vpop.permute.xlu0 %5710
        %5712 = vrot.lane.b32.xlu0 %v5366, 96
        %v5713 = vpop.permute.xlu0 %5712
        %5714 = vrot.lane.b32.xlu0 %v5367, 96
        %v5715 = vpop.permute.xlu0 %5714
        %5716 = vrot.lane.b32.xlu0 %v5368, 96
        %v5717 = vpop.permute.xlu0 %5716
        %5718 = vrot.lane.b32.xlu0 %v5369, 96
        %v5719 = vpop.permute.xlu0 %5718
        %5720 = vrot.lane.b32.xlu0 %v5370, 96
        %v5721 = vpop.permute.xlu0 %5720
        %5722 = vrot.lane.b32.xlu0 %v5371, 96
        %v5723 = vpop.permute.xlu0 %5722
        %v5756 = vsel %vm2069, %v2832, %v5405
        %v5757 = vsel %vm2069, %v2833, %v5407
        %v5758 = vsel %vm2069, %v2834, %v5409
        %v5759 = vsel %vm2069, %v2835, %v5411
        %v5760 = vsel %vm2069, %v2836, %v5413
        %v5761 = vsel %vm2069, %v2837, %v5415
        %v5762 = vsel %vm2069, %v2838, %v5417
        %v5763 = vsel %vm2069, %v2839, %v5419
        %v5764 = vsel %vm2069, %v2840, %v5421
        %v5765 = vsel %vm2069, %v2841, %v5423
        %v5766 = vsel %vm2069, %v2842, %v5425
        %v5767 = vsel %vm2069, %v2843, %v5427
        %v5768 = vsel %vm2069, %v2844, %v5429
        %v5769 = vsel %vm2069, %v2845, %v5431
        %v5770 = vsel %vm2069, %v2846, %v5433
        %v5771 = vsel %vm2069, %v2847, %v5435
        %v5772 = vsel %vm2069, %v2848, %v5437
        %v5773 = vsel %vm2069, %v2849, %v5439
        %v5774 = vsel %vm2069, %v2850, %v5441
        %v5775 = vsel %vm2069, %v2851, %v5443
        %v5776 = vsel %vm2069, %v2852, %v5445
        %v5777 = vsel %vm2069, %v2853, %v5447
        %v5778 = vsel %vm2069, %v2854, %v5449
        %v5779 = vsel %vm2069, %v2855, %v5451
        %v5780 = vsel %vm2069, %v2856, %v5453
        %v5781 = vsel %vm2069, %v2857, %v5455
        %v5782 = vsel %vm2069, %v2858, %v5457
        %v5783 = vsel %vm2069, %v2859, %v5459
        %v5784 = vsel %vm2069, %v2860, %v5461
        %v5785 = vsel %vm2069, %v2861, %v5463
        %v5786 = vsel %vm2069, %v2862, %v5465
        %v5787 = vsel %vm2069, %v2863, %v5467
        %v5788 = vsel %vm2622, %v5756, %v5533
        %v5789 = vsel %vm2622, %v5757, %v5535
        %v5790 = vsel %vm2622, %v5758, %v5537
        %v5791 = vsel %vm2622, %v5759, %v5539
        %v5792 = vsel %vm2622, %v5760, %v5541
        %v5793 = vsel %vm2622, %v5761, %v5543
        %v5794 = vsel %vm2622, %v5762, %v5545
        %v5795 = vsel %vm2622, %v5763, %v5547
        %v5796 = vsel %vm2622, %v5764, %v5549
        %v5797 = vsel %vm2622, %v5765, %v5551
        %v5798 = vsel %vm2622, %v5766, %v5553
        %v5799 = vsel %vm2622, %v5767, %v5555
        %v5800 = vsel %vm2622, %v5768, %v5557
        %v5801 = vsel %vm2622, %v5769, %v5559
        %v5802 = vsel %vm2622, %v5770, %v5561
        %v5803 = vsel %vm2622, %v5771, %v5563
        %v5804 = vsel %vm2622, %v5772, %v5565
        %v5805 = vsel %vm2622, %v5773, %v5567
        %v5806 = vsel %vm2622, %v5774, %v5569
        %v5807 = vsel %vm2622, %v5775, %v5571
        %v5808 = vsel %vm2622, %v5776, %v5573
        %v5809 = vsel %vm2622, %v5777, %v5575
        %v5810 = vsel %vm2622, %v5778, %v5577
        %v5811 = vsel %vm2622, %v5779, %v5579
        %v5812 = vsel %vm2622, %v5780, %v5581
        %v5813 = vsel %vm2622, %v5781, %v5583
        %v5814 = vsel %vm2622, %v5782, %v5585
        %v5815 = vsel %vm2622, %v5783, %v5587
        %v5816 = vsel %vm2622, %v5784, %v5589
        %v5817 = vsel %vm2622, %v5785, %v5591
        %v5818 = vsel %vm2622, %v5786, %v5593
        %v5819 = vsel %vm2622, %v5787, %v5595
        %vm5820 = vcmask 785408
        %v5821 = vsel %vm5820, %v5788, %v5661
        %v5822 = vsel %vm5820, %v5789, %v5663
        %v5823 = vsel %vm5820, %v5790, %v5665
        %v5824 = vsel %vm5820, %v5791, %v5667
        %v5825 = vsel %vm5820, %v5792, %v5669
        %v5826 = vsel %vm5820, %v5793, %v5671
        %v5827 = vsel %vm5820, %v5794, %v5673
        %v5828 = vsel %vm5820, %v5795, %v5675
        %v5829 = vsel %vm5820, %v5796, %v5677
        %v5830 = vsel %vm5820, %v5797, %v5679
        %v5831 = vsel %vm5820, %v5798, %v5681
        %v5832 = vsel %vm5820, %v5799, %v5683
        %v5833 = vsel %vm5820, %v5800, %v5685
        %v5834 = vsel %vm5820, %v5801, %v5687
        %v5835 = vsel %vm5820, %v5802, %v5689
        %v5836 = vsel %vm5820, %v5803, %v5691
        %v5837 = vsel %vm5820, %v5804, %v5693
        %v5838 = vsel %vm5820, %v5805, %v5695
        %v5839 = vsel %vm5820, %v5806, %v5697
        %v5840 = vsel %vm5820, %v5807, %v5699
        %v5841 = vsel %vm5820, %v5808, %v5701
        %v5842 = vsel %vm5820, %v5809, %v5703
        %v5843 = vsel %vm5820, %v5810, %v5705
        %v5844 = vsel %vm5820, %v5811, %v5707
        %v5845 = vsel %vm5820, %v5812, %v5709
        %v5846 = vsel %vm5820, %v5813, %v5711
        %v5847 = vsel %vm5820, %v5814, %v5713
        %v5848 = vsel %vm5820, %v5815, %v5715
        %v5849 = vsel %vm5820, %v5816, %v5717
        %v5850 = vsel %vm5820, %v5817, %v5719
        %v5851 = vsel %vm5820, %v5818, %v5721
        %v5852 = vsel %vm5820, %v5819, %v5723
        %v5853 = vpack.c.bf16 %v5822, %v5821
        %v5854 = vpack.c.bf16 %v5824, %v5823
        %v5855 = vpack.c.bf16 %v5826, %v5825
        %v5856 = vpack.c.bf16 %v5828, %v5827
        %v5857 = vpack.c.bf16 %v5830, %v5829
        %v5858 = vpack.c.bf16 %v5832, %v5831
        %v5859 = vpack.c.bf16 %v5834, %v5833
        %v5860 = vpack.c.bf16 %v5836, %v5835
        %v5861 = vpack.c.bf16 %v5838, %v5837
        %v5862 = vpack.c.bf16 %v5840, %v5839
        %v5863 = vpack.c.bf16 %v5842, %v5841
        %v5864 = vpack.c.bf16 %v5844, %v5843
        %v5865 = vpack.c.bf16 %v5846, %v5845
        %v5866 = vpack.c.bf16 %v5848, %v5847
        %v5867 = vpack.c.bf16 %v5850, %v5849
        %v5868 = vpack.c.bf16 %v5852, %v5851
        %v5869 = vld [vmem:[%s7] sm:$0xf]
        %v5870 = vld [vmem:[%s7 + $0x4] sm:$0xf]
        %v5871 = vld [vmem:[%s7 + $0x8] sm:$0xf]
        %v5872 = vld [vmem:[%s7 + $0xc] sm:$0xf]
        %v5873 = vld [vmem:[%s7 + $0x10] sm:$0xf]
        %v5874 = vld [vmem:[%s7 + $0x14] sm:$0xf]
        %v5875 = vld [vmem:[%s7 + $0x18] sm:$0xf]
        %v5876 = vld [vmem:[%s7 + $0x1c] sm:$0xf]
        %v5877 = vld [vmem:[%s7 + $0x20] sm:$0xf]
        %v5878 = vld [vmem:[%s7 + $0x24] sm:$0xf]
        %v5879 = vld [vmem:[%s7 + $0x28] sm:$0xf]
        %v5880 = vld [vmem:[%s7 + $0x2c] sm:$0xf]
        %v5881 = vld [vmem:[%s7 + $0x30] sm:$0xf]
        %v5882 = vld [vmem:[%s7 + $0x34] sm:$0xf]
        %v5883 = vld [vmem:[%s7 + $0x38] sm:$0xf]
        %v5884 = vld [vmem:[%s7 + $0x3c] sm:$0xf]
        %v5885 = vld [vmem:[%s8] sm:$0x1]
        %v5887 = vlaneseq
        %v5888 = vshrl.u32 %v5887, 7
        %v5889 = vsub.s32 0, %v5888
        %v5890 = vrot.slane %v5885, %v5889
        %v5908 = vunpack.c.l.b16 %v5869
        %v5909 = vunpack.c.l.b16 %v5870
        %v5910 = vunpack.c.l.b16 %v5871
        %v5911 = vunpack.c.l.b16 %v5872
        %v5912 = vunpack.c.l.b16 %v5873
        %v5913 = vunpack.c.l.b16 %v5874
        %v5914 = vunpack.c.l.b16 %v5875
        %v5915 = vunpack.c.l.b16 %v5876
        %v5916 = vunpack.c.l.b16 %v5877
        %v5917 = vunpack.c.l.b16 %v5878
        %v5918 = vunpack.c.l.b16 %v5879
        %v5919 = vunpack.c.l.b16 %v5880
        %v5920 = vunpack.c.l.b16 %v5881
        %v5921 = vunpack.c.l.b16 %v5882
        %v5922 = vunpack.c.l.b16 %v5883
        %v5923 = vunpack.c.l.b16 %v5884
        %v5924 = vpack.c.b16 %v5909, %v5908
        %v5925 = vpack.c.b16 %v5911, %v5910
        %v5926 = vpack.c.b16 %v5913, %v5912
        %v5927 = vpack.c.b16 %v5915, %v5914
        %v5928 = vpack.c.b16 %v5917, %v5916
        %v5929 = vpack.c.b16 %v5919, %v5918
        %v5930 = vpack.c.b16 %v5921, %v5920
        %v5931 = vpack.c.b16 %v5923, %v5922
        %5940 = vmatprep.subr.bf16.mxu0 0
        %5941 = vmatpush1.bf16.msra.mxu0 %v5931
        %5942 = vmatprep.subr.bf16.mxu0 0
        %5943 = vmatpush1.bf16.msra.mxu0 %v5930
        %5944 = vmatprep.subr.bf16.mxu0 0
        %5945 = vmatpush1.bf16.msra.mxu0 %v5929
        %5946 = vmatprep.subr.bf16.mxu0 0
        %5947 = vmatpush1.bf16.msra.mxu0 %v5928
        %5948 = vmatprep.subr.bf16.mxu0 0
        %5949 = vmatpush1.bf16.msra.mxu0 %v5927
        %5950 = vmatprep.subr.bf16.mxu0 0
        %5951 = vmatpush1.bf16.msra.mxu0 %v5926
        %5952 = vmatprep.subr.bf16.mxu0 0
        %5953 = vmatpush1.bf16.msra.mxu0 %v5925
        %5954 = vmatprep.subr.bf16.mxu0 0
        %5955 = vmatpush1.bf16.msra.mxu0 %v5924
        %5956 = vmatprep.subr.bf16.mxu0 0
        %5957 = vmatpush2.bf16.msra.mxu0 0
        %5958 = vmatprep.subr.bf16.mxu0 0
        %5959 = vmatpush2.bf16.msra.mxu0 0
        %5960 = vmatprep.subr.bf16.mxu0 0
        %5961 = vmatpush2.bf16.msra.mxu0 0
        %5962 = vmatprep.subr.bf16.mxu0 0
        %5963 = vmatpush2.bf16.msra.mxu0 0
        %5964 = vmatprep.subr.bf16.mxu0 0
        %5965 = vmatpush2.bf16.msra.mxu0 0
        %5966 = vmatprep.subr.bf16.mxu0 0
        %5967 = vmatpush2.bf16.msra.mxu0 0
        %5968 = vmatprep.subr.bf16.mxu0 0
        %5969 = vmatpush2.bf16.msra.mxu0 0
        %5970 = vmatprep.subr.bf16.mxu0 0
        %5971 = vmatpush2.bf16.msra.mxu0 0
        %5972 = vmatprep.mubr.bf16.mxu0 0
        %5973 = vmatmul.mubr.bf16.gmra.mxu0 %v5853
        %v5974 = vpop.f32.mrf.mxu0
        %v5975 = vadd.f32 %v5890, %v5974
        %v5976 = vpop.f32.mrf.mxu0
        %v5977 = vpop.f32.mrf.mxu0
        %v5978 = vadd.f32 %v5890, %v5977
        %v5979 = vpop.f32.mrf.mxu0
        %5980 = vmatprep.mubr.bf16.mxu0 0
        %5981 = vmatmul.mubr.bf16.gmra.mxu0 %v5854
        %v5982 = vpop.f32.mrf.mxu0
        %v5983 = vadd.f32 %v5890, %v5982
        %v5984 = vpop.f32.mrf.mxu0
        %v5985 = vpop.f32.mrf.mxu0
        %v5986 = vadd.f32 %v5890, %v5985
        %v5987 = vpop.f32.mrf.mxu0
        %5988 = vmatprep.mubr.bf16.mxu0 0
        %5989 = vmatmul.mubr.bf16.gmra.mxu0 %v5855
        %v5990 = vpop.f32.mrf.mxu0
        %v5991 = vadd.f32 %v5890, %v5990
        %v5992 = vpop.f32.mrf.mxu0
        %v5993 = vpop.f32.mrf.mxu0
        %v5994 = vadd.f32 %v5890, %v5993
        %v5995 = vpop.f32.mrf.mxu0
        %5996 = vmatprep.mubr.bf16.mxu0 0
        %5997 = vmatmul.mubr.bf16.gmra.mxu0 %v5856
        %v5998 = vpop.f32.mrf.mxu0
        %v5999 = vadd.f32 %v5890, %v5998
        %v6000 = vpop.f32.mrf.mxu0
        %v6001 = vpop.f32.mrf.mxu0
        %v6002 = vadd.f32 %v5890, %v6001
        %v6003 = vpop.f32.mrf.mxu0
        %6004 = vmatprep.mubr.bf16.mxu0 0
        %6005 = vmatmul.mubr.bf16.gmra.mxu0 %v5857
        %v6006 = vpop.f32.mrf.mxu0
        %v6007 = vadd.f32 %v5890, %v6006
        %v6008 = vpop.f32.mrf.mxu0
        %v6009 = vpop.f32.mrf.mxu0
        %v6010 = vadd.f32 %v5890, %v6009
        %v6011 = vpop.f32.mrf.mxu0
        %6012 = vmatprep.mubr.bf16.mxu0 0
        %6013 = vmatmul.mubr.bf16.gmra.mxu0 %v5858
        %v6014 = vpop.f32.mrf.mxu0
        %v6015 = vadd.f32 %v5890, %v6014
        %v6016 = vpop.f32.mrf.mxu0
        %v6017 = vpop.f32.mrf.mxu0
        %v6018 = vadd.f32 %v5890, %v6017
        %v6019 = vpop.f32.mrf.mxu0
        %6020 = vmatprep.mubr.bf16.mxu0 0
        %6021 = vmatmul.mubr.bf16.gmra.mxu0 %v5859
        %v6022 = vpop.f32.mrf.mxu0
        %v6023 = vadd.f32 %v5890, %v6022
        %v6024 = vpop.f32.mrf.mxu0
        %v6025 = vpop.f32.mrf.mxu0
        %v6026 = vadd.f32 %v5890, %v6025
        %v6027 = vpop.f32.mrf.mxu0
        %6028 = vmatprep.mubr.bf16.mxu0 0
        %6029 = vmatmul.mubr.bf16.gmra.mxu0 %v5860
        %v6030 = vpop.f32.mrf.mxu0
        %v6031 = vadd.f32 %v5890, %v6030
        %v6032 = vpop.f32.mrf.mxu0
        %v6033 = vpop.f32.mrf.mxu0
        %v6034 = vadd.f32 %v5890, %v6033
        %v6035 = vpop.f32.mrf.mxu0
        %6036 = vmatprep.mubr.bf16.mxu0 0
        %6037 = vmatmul.mubr.bf16.gmra.mxu0 %v5861
        %v6038 = vpop.f32.mrf.mxu0
        %v6039 = vadd.f32 %v5890, %v6038
        %v6040 = vpop.f32.mrf.mxu0
        %v6041 = vpop.f32.mrf.mxu0
        %v6042 = vadd.f32 %v5890, %v6041
        %v6043 = vpop.f32.mrf.mxu0
        %6044 = vmatprep.mubr.bf16.mxu0 0
        %6045 = vmatmul.mubr.bf16.gmra.mxu0 %v5862
        %v6046 = vpop.f32.mrf.mxu0
        %v6047 = vadd.f32 %v5890, %v6046
        %v6048 = vpop.f32.mrf.mxu0
        %v6049 = vpop.f32.mrf.mxu0
        %v6050 = vadd.f32 %v5890, %v6049
        %v6051 = vpop.f32.mrf.mxu0
        %6052 = vmatprep.mubr.bf16.mxu0 0
        %6053 = vmatmul.mubr.bf16.gmra.mxu0 %v5863
        %v6054 = vpop.f32.mrf.mxu0
        %v6055 = vadd.f32 %v5890, %v6054
        %v6056 = vpop.f32.mrf.mxu0
        %v6057 = vpop.f32.mrf.mxu0
        %v6058 = vadd.f32 %v5890, %v6057
        %v6059 = vpop.f32.mrf.mxu0
        %6060 = vmatprep.mubr.bf16.mxu0 0
        %6061 = vmatmul.mubr.bf16.gmra.mxu0 %v5864
        %v6062 = vpop.f32.mrf.mxu0
        %v6063 = vadd.f32 %v5890, %v6062
        %v6064 = vpop.f32.mrf.mxu0
        %v6065 = vpop.f32.mrf.mxu0
        %v6066 = vadd.f32 %v5890, %v6065
        %v6067 = vpop.f32.mrf.mxu0
        %6068 = vmatprep.mubr.bf16.mxu0 0
        %6069 = vmatmul.mubr.bf16.gmra.mxu0 %v5865
        %v6070 = vpop.f32.mrf.mxu0
        %v6071 = vadd.f32 %v5890, %v6070
        %v6072 = vpop.f32.mrf.mxu0
        %v6073 = vpop.f32.mrf.mxu0
        %v6074 = vadd.f32 %v5890, %v6073
        %v6075 = vpop.f32.mrf.mxu0
        %6076 = vmatprep.mubr.bf16.mxu0 0
        %6077 = vmatmul.mubr.bf16.gmra.mxu0 %v5866
        %v6078 = vpop.f32.mrf.mxu0
        %v6079 = vadd.f32 %v5890, %v6078
        %v6080 = vpop.f32.mrf.mxu0
        %v6081 = vpop.f32.mrf.mxu0
        %v6082 = vadd.f32 %v5890, %v6081
        %v6083 = vpop.f32.mrf.mxu0
        %6084 = vmatprep.mubr.bf16.mxu0 0
        %6085 = vmatmul.mubr.bf16.gmra.mxu0 %v5867
        %v6086 = vpop.f32.mrf.mxu0
        %v6087 = vadd.f32 %v5890, %v6086
        %v6088 = vpop.f32.mrf.mxu0
        %v6089 = vpop.f32.mrf.mxu0
        %v6090 = vadd.f32 %v5890, %v6089
        %v6091 = vpop.f32.mrf.mxu0
        %6092 = vmatprep.mubr.bf16.mxu0 0
        %6093 = vmatmul.mubr.bf16.gmra.mxu0 %v5868
        %v6094 = vpop.f32.mrf.mxu0
        %v6095 = vadd.f32 %v5890, %v6094
        %v6096 = vpop.f32.mrf.mxu0
        %v6097 = vpop.f32.mrf.mxu0
        %v6098 = vadd.f32 %v5890, %v6097
        %v6099 = vpop.f32.mrf.mxu0
        %6100 = vdwg.mxu0
        %6133 = vrot.lane.b32.xlu0 %v5975, 16
        %v6134 = vpop.permute.xlu0 %6133
        %6135 = vrot.lane.b32.xlu0 %v5978, 16
        %v6136 = vpop.permute.xlu0 %6135
        %6137 = vrot.lane.b32.xlu0 %v5983, 16
        %v6138 = vpop.permute.xlu0 %6137
        %6139 = vrot.lane.b32.xlu0 %v5986, 16
        %v6140 = vpop.permute.xlu0 %6139
        %6141 = vrot.lane.b32.xlu0 %v5991, 16
        %v6142 = vpop.permute.xlu0 %6141
        %6143 = vrot.lane.b32.xlu0 %v5994, 16
        %v6144 = vpop.permute.xlu0 %6143
        %6145 = vrot.lane.b32.xlu0 %v5999, 16
        %v6146 = vpop.permute.xlu0 %6145
        %6147 = vrot.lane.b32.xlu0 %v6002, 16
        %v6148 = vpop.permute.xlu0 %6147
        %6149 = vrot.lane.b32.xlu0 %v6007, 16
        %v6150 = vpop.permute.xlu0 %6149
        %6151 = vrot.lane.b32.xlu0 %v6010, 16
        %v6152 = vpop.permute.xlu0 %6151
        %6153 = vrot.lane.b32.xlu0 %v6015, 16
        %v6154 = vpop.permute.xlu0 %6153
        %6155 = vrot.lane.b32.xlu0 %v6018, 16
        %v6156 = vpop.permute.xlu0 %6155
        %6157 = vrot.lane.b32.xlu0 %v6023, 16
        %v6158 = vpop.permute.xlu0 %6157
        %6159 = vrot.lane.b32.xlu0 %v6026, 16
        %v6160 = vpop.permute.xlu0 %6159
        %6161 = vrot.lane.b32.xlu0 %v6031, 16
        %v6162 = vpop.permute.xlu0 %6161
        %6163 = vrot.lane.b32.xlu0 %v6034, 16
        %v6164 = vpop.permute.xlu0 %6163
        %6165 = vrot.lane.b32.xlu0 %v6039, 16
        %v6166 = vpop.permute.xlu0 %6165
        %6167 = vrot.lane.b32.xlu0 %v6042, 16
        %v6168 = vpop.permute.xlu0 %6167
        %6169 = vrot.lane.b32.xlu0 %v6047, 16
        %v6170 = vpop.permute.xlu0 %6169
        %6171 = vrot.lane.b32.xlu0 %v6050, 16
        %v6172 = vpop.permute.xlu0 %6171
        %6173 = vrot.lane.b32.xlu0 %v6055, 16
        %v6174 = vpop.permute.xlu0 %6173
        %6175 = vrot.lane.b32.xlu0 %v6058, 16
        %v6176 = vpop.permute.xlu0 %6175
        %6177 = vrot.lane.b32.xlu0 %v6063, 16
        %v6178 = vpop.permute.xlu0 %6177
        %6179 = vrot.lane.b32.xlu0 %v6066, 16
        %v6180 = vpop.permute.xlu0 %6179
        %6181 = vrot.lane.b32.xlu0 %v6071, 16
        %v6182 = vpop.permute.xlu0 %6181
        %6183 = vrot.lane.b32.xlu0 %v6074, 16
        %v6184 = vpop.permute.xlu0 %6183
        %6185 = vrot.lane.b32.xlu0 %v6079, 16
        %v6186 = vpop.permute.xlu0 %6185
        %6187 = vrot.lane.b32.xlu0 %v6082, 16
        %v6188 = vpop.permute.xlu0 %6187
        %6189 = vrot.lane.b32.xlu0 %v6087, 16
        %v6190 = vpop.permute.xlu0 %6189
        %6191 = vrot.lane.b32.xlu0 %v6090, 16
        %v6192 = vpop.permute.xlu0 %6191
        %6193 = vrot.lane.b32.xlu0 %v6095, 16
        %v6194 = vpop.permute.xlu0 %6193
        %6195 = vrot.lane.b32.xlu0 %v6098, 16
        %v6196 = vpop.permute.xlu0 %6195
        %v6229 = vadd.f32 %v5975, %v6134
        %v6230 = vadd.f32 %v5978, %v6136
        %v6231 = vadd.f32 %v5983, %v6138
        %v6232 = vadd.f32 %v5986, %v6140
        %v6233 = vadd.f32 %v5991, %v6142
        %v6234 = vadd.f32 %v5994, %v6144
        %v6235 = vadd.f32 %v5999, %v6146
        %v6236 = vadd.f32 %v6002, %v6148
        %v6237 = vadd.f32 %v6007, %v6150
        %v6238 = vadd.f32 %v6010, %v6152
        %v6239 = vadd.f32 %v6015, %v6154
        %v6240 = vadd.f32 %v6018, %v6156
        %v6241 = vadd.f32 %v6023, %v6158
        %v6242 = vadd.f32 %v6026, %v6160
        %v6243 = vadd.f32 %v6031, %v6162
        %v6244 = vadd.f32 %v6034, %v6164
        %v6245 = vadd.f32 %v6039, %v6166
        %v6246 = vadd.f32 %v6042, %v6168
        %v6247 = vadd.f32 %v6047, %v6170
        %v6248 = vadd.f32 %v6050, %v6172
        %v6249 = vadd.f32 %v6055, %v6174
        %v6250 = vadd.f32 %v6058, %v6176
        %v6251 = vadd.f32 %v6063, %v6178
        %v6252 = vadd.f32 %v6066, %v6180
        %v6253 = vadd.f32 %v6071, %v6182
        %v6254 = vadd.f32 %v6074, %v6184
        %v6255 = vadd.f32 %v6079, %v6186
        %v6256 = vadd.f32 %v6082, %v6188
        %v6257 = vadd.f32 %v6087, %v6190
        %v6258 = vadd.f32 %v6090, %v6192
        %v6259 = vadd.f32 %v6095, %v6194
        %v6260 = vadd.f32 %v6098, %v6196
        %v6261 = vpack.c.bf16 %v6230, %v6229
        %v6262 = vpack.c.bf16 %v6232, %v6231
        %v6263 = vpack.c.bf16 %v6234, %v6233
        %v6264 = vpack.c.bf16 %v6236, %v6235
        %v6265 = vpack.c.bf16 %v6238, %v6237
        %v6266 = vpack.c.bf16 %v6240, %v6239
        %v6267 = vpack.c.bf16 %v6242, %v6241
        %v6268 = vpack.c.bf16 %v6244, %v6243
        %v6269 = vpack.c.bf16 %v6246, %v6245
        %v6270 = vpack.c.bf16 %v6248, %v6247
        %v6271 = vpack.c.bf16 %v6250, %v6249
        %v6272 = vpack.c.bf16 %v6252, %v6251
        %v6273 = vpack.c.bf16 %v6254, %v6253
        %v6274 = vpack.c.bf16 %v6256, %v6255
        %v6275 = vpack.c.bf16 %v6258, %v6257
        %v6276 = vpack.c.bf16 %v6260, %v6259
        %s6277 = scalar_lea.vmem %s9, 16
        %v6278 = vld [vmem:[%s6277] sm:$0xf]
        %v6279 = vld [vmem:[%s6277 + $0x4] sm:$0xf]
        %s6280 = scalar_lea.vmem %s10, 2
        %v6281 = vld [vmem:[%s6280] sm:$0x1]
        %v6283 = vlaneseq
        %v6284 = vshrl.u32 %v6283, 7
        %v6285 = vsub.s32 0, %v6284
        %v6286 = vrot.slane %v6281, %v6285
        %6304 = vrot.lane.b32.xlu0 %v6261, 80
        %v6305 = vpop.permute.xlu0 %6304
        %6306 = vrot.lane.b32.xlu0 %v6262, 80
        %v6307 = vpop.permute.xlu0 %6306
        %6308 = vrot.lane.b32.xlu0 %v6263, 80
        %v6309 = vpop.permute.xlu0 %6308
        %6310 = vrot.lane.b32.xlu0 %v6264, 80
        %v6311 = vpop.permute.xlu0 %6310
        %6312 = vrot.lane.b32.xlu0 %v6265, 80
        %v6313 = vpop.permute.xlu0 %6312
        %6314 = vrot.lane.b32.xlu0 %v6266, 80
        %v6315 = vpop.permute.xlu0 %6314
        %6316 = vrot.lane.b32.xlu0 %v6267, 80
        %v6317 = vpop.permute.xlu0 %6316
        %6318 = vrot.lane.b32.xlu0 %v6268, 80
        %v6319 = vpop.permute.xlu0 %6318
        %6320 = vrot.lane.b32.xlu0 %v6269, 80
        %v6321 = vpop.permute.xlu0 %6320
        %6322 = vrot.lane.b32.xlu0 %v6270, 80
        %v6323 = vpop.permute.xlu0 %6322
        %6324 = vrot.lane.b32.xlu0 %v6271, 80
        %v6325 = vpop.permute.xlu0 %6324
        %6326 = vrot.lane.b32.xlu0 %v6272, 80
        %v6327 = vpop.permute.xlu0 %6326
        %6328 = vrot.lane.b32.xlu0 %v6273, 80
        %v6329 = vpop.permute.xlu0 %6328
        %6330 = vrot.lane.b32.xlu0 %v6274, 80
        %v6331 = vpop.permute.xlu0 %6330
        %6332 = vrot.lane.b32.xlu0 %v6275, 80
        %v6333 = vpop.permute.xlu0 %6332
        %6334 = vrot.lane.b32.xlu0 %v6276, 80
        %v6335 = vpop.permute.xlu0 %6334
        %v6338 = vunpack.c.l.b16 %v6278
        %v6339 = vunpack.c.l.b16 %v6279
        %v6340 = vpack.c.b16 %v6339, %v6338
        %vm6342 = vcmask 130048
        %v6344 = vsel %vm6342, %v6305, 0
        %v6347 = vsel %vm6342, %v6307, 0
        %v6350 = vsel %vm6342, %v6309, 0
        %v6353 = vsel %vm6342, %v6311, 0
        %v6356 = vsel %vm6342, %v6313, 0
        %v6359 = vsel %vm6342, %v6315, 0
        %v6362 = vsel %vm6342, %v6317, 0
        %v6365 = vsel %vm6342, %v6319, 0
        %v6368 = vsel %vm6342, %v6321, 0
        %v6371 = vsel %vm6342, %v6323, 0
        %v6374 = vsel %vm6342, %v6325, 0
        %v6377 = vsel %vm6342, %v6327, 0
        %v6380 = vsel %vm6342, %v6329, 0
        %v6383 = vsel %vm6342, %v6331, 0
        %v6386 = vsel %vm6342, %v6333, 0
        %v6389 = vsel %vm6342, %v6335, 0
        %6391 = vmatprep.subr.bf16.mxu0 0
        %6392 = vmatpush1.bf16.msra.mxu0 0
        %6393 = vmatprep.subr.bf16.mxu0 0
        %6394 = vmatpush1.bf16.msra.mxu0 0
        %6395 = vmatprep.subr.bf16.mxu0 0
        %6396 = vmatpush1.bf16.msra.mxu0 0
        %6397 = vmatprep.subr.bf16.mxu0 0
        %6398 = vmatpush1.bf16.msra.mxu0 0
        %6399 = vmatprep.subr.bf16.mxu0 0
        %6400 = vmatpush1.bf16.msra.mxu0 0
        %6401 = vmatprep.subr.bf16.mxu0 0
        %6402 = vmatpush1.bf16.msra.mxu0 0
        %6403 = vmatprep.subr.bf16.mxu0 0
        %6404 = vmatpush1.bf16.msra.mxu0 0
        %6405 = vmatprep.subr.bf16.mxu0 0
        %6406 = vmatpush1.bf16.msra.mxu0 %v6340
        %6407 = vmatprep.subr.bf16.mxu0 0
        %6408 = vmatpush2.bf16.msra.mxu0 0
        %6409 = vmatprep.subr.bf16.mxu0 0
        %6410 = vmatpush2.bf16.msra.mxu0 0
        %6411 = vmatprep.subr.bf16.mxu0 0
        %6412 = vmatpush2.bf16.msra.mxu0 0
        %6413 = vmatprep.subr.bf16.mxu0 0
        %6414 = vmatpush2.bf16.msra.mxu0 0
        %6415 = vmatprep.subr.bf16.mxu0 0
        %6416 = vmatpush2.bf16.msra.mxu0 0
        %6417 = vmatprep.subr.bf16.mxu0 0
        %6418 = vmatpush2.bf16.msra.mxu0 0
        %6419 = vmatprep.subr.bf16.mxu0 0
        %6420 = vmatpush2.bf16.msra.mxu0 0
        %6421 = vmatprep.subr.bf16.mxu0 0
        %6422 = vmatpush2.bf16.msra.mxu0 0
        %6423 = vmatprep.mubr.bf16.mxu0 0
        %6424 = vmatmul.mubr.bf16.gmra.mxu0 %v6344
        %v6425 = vpop.f32.mrf.mxu0
        %v6426 = vadd.f32 %v6286, %v6425
        %v6427 = vpop.f32.mrf.mxu0
        %v6428 = vpop.f32.mrf.mxu0
        %v6429 = vadd.f32 %v6286, %v6428
        %v6430 = vpop.f32.mrf.mxu0
        %6431 = vmatprep.mubr.bf16.mxu0 0
        %6432 = vmatmul.mubr.bf16.gmra.mxu0 %v6347
        %v6433 = vpop.f32.mrf.mxu0
        %v6434 = vadd.f32 %v6286, %v6433
        %v6435 = vpop.f32.mrf.mxu0
        %v6436 = vpop.f32.mrf.mxu0
        %v6437 = vadd.f32 %v6286, %v6436
        %v6438 = vpop.f32.mrf.mxu0
        %6439 = vmatprep.mubr.bf16.mxu0 0
        %6440 = vmatmul.mubr.bf16.gmra.mxu0 %v6350
        %v6441 = vpop.f32.mrf.mxu0
        %v6442 = vadd.f32 %v6286, %v6441
        %v6443 = vpop.f32.mrf.mxu0
        %v6444 = vpop.f32.mrf.mxu0
        %v6445 = vadd.f32 %v6286, %v6444
        %v6446 = vpop.f32.mrf.mxu0
        %6447 = vmatprep.mubr.bf16.mxu0 0
        %6448 = vmatmul.mubr.bf16.gmra.mxu0 %v6353
        %v6449 = vpop.f32.mrf.mxu0
        %v6450 = vadd.f32 %v6286, %v6449
        %v6451 = vpop.f32.mrf.mxu0
        %v6452 = vpop.f32.mrf.mxu0
        %v6453 = vadd.f32 %v6286, %v6452
        %v6454 = vpop.f32.mrf.mxu0
        %6455 = vmatprep.mubr.bf16.mxu0 0
        %6456 = vmatmul.mubr.bf16.gmra.mxu0 %v6356
        %v6457 = vpop.f32.mrf.mxu0
        %v6458 = vadd.f32 %v6286, %v6457
        %v6459 = vpop.f32.mrf.mxu0
        %v6460 = vpop.f32.mrf.mxu0
        %v6461 = vadd.f32 %v6286, %v6460
        %v6462 = vpop.f32.mrf.mxu0
        %6463 = vmatprep.mubr.bf16.mxu0 0
        %6464 = vmatmul.mubr.bf16.gmra.mxu0 %v6359
        %v6465 = vpop.f32.mrf.mxu0
        %v6466 = vadd.f32 %v6286, %v6465
        %v6467 = vpop.f32.mrf.mxu0
        %v6468 = vpop.f32.mrf.mxu0
        %v6469 = vadd.f32 %v6286, %v6468
        %v6470 = vpop.f32.mrf.mxu0
        %6471 = vmatprep.mubr.bf16.mxu0 0
        %6472 = vmatmul.mubr.bf16.gmra.mxu0 %v6362
        %v6473 = vpop.f32.mrf.mxu0
        %v6474 = vadd.f32 %v6286, %v6473
        %v6475 = vpop.f32.mrf.mxu0
        %v6476 = vpop.f32.mrf.mxu0
        %v6477 = vadd.f32 %v6286, %v6476
        %v6478 = vpop.f32.mrf.mxu0
        %6479 = vmatprep.mubr.bf16.mxu0 0
        %6480 = vmatmul.mubr.bf16.gmra.mxu0 %v6365
        %v6481 = vpop.f32.mrf.mxu0
        %v6482 = vadd.f32 %v6286, %v6481
        %v6483 = vpop.f32.mrf.mxu0
        %v6484 = vpop.f32.mrf.mxu0
        %v6485 = vadd.f32 %v6286, %v6484
        %v6486 = vpop.f32.mrf.mxu0
        %6487 = vmatprep.mubr.bf16.mxu0 0
        %6488 = vmatmul.mubr.bf16.gmra.mxu0 %v6368
        %v6489 = vpop.f32.mrf.mxu0
        %v6490 = vadd.f32 %v6286, %v6489
        %v6491 = vpop.f32.mrf.mxu0
        %v6492 = vpop.f32.mrf.mxu0
        %v6493 = vadd.f32 %v6286, %v6492
        %v6494 = vpop.f32.mrf.mxu0
        %6495 = vmatprep.mubr.bf16.mxu0 0
        %6496 = vmatmul.mubr.bf16.gmra.mxu0 %v6371
        %v6497 = vpop.f32.mrf.mxu0
        %v6498 = vadd.f32 %v6286, %v6497
        %v6499 = vpop.f32.mrf.mxu0
        %v6500 = vpop.f32.mrf.mxu0
        %v6501 = vadd.f32 %v6286, %v6500
        %v6502 = vpop.f32.mrf.mxu0
        %6503 = vmatprep.mubr.bf16.mxu0 0
        %6504 = vmatmul.mubr.bf16.gmra.mxu0 %v6374
        %v6505 = vpop.f32.mrf.mxu0
        %v6506 = vadd.f32 %v6286, %v6505
        %v6507 = vpop.f32.mrf.mxu0
        %v6508 = vpop.f32.mrf.mxu0
        %v6509 = vadd.f32 %v6286, %v6508
        %v6510 = vpop.f32.mrf.mxu0
        %6511 = vmatprep.mubr.bf16.mxu0 0
        %6512 = vmatmul.mubr.bf16.gmra.mxu0 %v6377
        %v6513 = vpop.f32.mrf.mxu0
        %v6514 = vadd.f32 %v6286, %v6513
        %v6515 = vpop.f32.mrf.mxu0
        %v6516 = vpop.f32.mrf.mxu0
        %v6517 = vadd.f32 %v6286, %v6516
        %v6518 = vpop.f32.mrf.mxu0
        %6519 = vmatprep.mubr.bf16.mxu0 0
        %6520 = vmatmul.mubr.bf16.gmra.mxu0 %v6380
        %v6521 = vpop.f32.mrf.mxu0
        %v6522 = vadd.f32 %v6286, %v6521
        %v6523 = vpop.f32.mrf.mxu0
        %v6524 = vpop.f32.mrf.mxu0
        %v6525 = vadd.f32 %v6286, %v6524
        %v6526 = vpop.f32.mrf.mxu0
        %6527 = vmatprep.mubr.bf16.mxu0 0
        %6528 = vmatmul.mubr.bf16.gmra.mxu0 %v6383
        %v6529 = vpop.f32.mrf.mxu0
        %v6530 = vadd.f32 %v6286, %v6529
        %v6531 = vpop.f32.mrf.mxu0
        %v6532 = vpop.f32.mrf.mxu0
        %v6533 = vadd.f32 %v6286, %v6532
        %v6534 = vpop.f32.mrf.mxu0
        %6535 = vmatprep.mubr.bf16.mxu0 0
        %6536 = vmatmul.mubr.bf16.gmra.mxu0 %v6386
        %v6537 = vpop.f32.mrf.mxu0
        %v6538 = vadd.f32 %v6286, %v6537
        %v6539 = vpop.f32.mrf.mxu0
        %v6540 = vpop.f32.mrf.mxu0
        %v6541 = vadd.f32 %v6286, %v6540
        %v6542 = vpop.f32.mrf.mxu0
        %6543 = vmatprep.mubr.bf16.mxu0 0
        %6544 = vmatmul.mubr.bf16.gmra.mxu0 %v6389
        %v6545 = vpop.f32.mrf.mxu0
        %v6546 = vadd.f32 %v6286, %v6545
        %v6547 = vpop.f32.mrf.mxu0
        %v6548 = vpop.f32.mrf.mxu0
        %v6549 = vadd.f32 %v6286, %v6548
        %v6550 = vpop.f32.mrf.mxu0
        %6551 = vdwg.mxu0
        %v6552 = vmax.f32 %v6426, 0.0
        %v6553 = vmax.f32 %v6429, 0.0
        %v6554 = vmax.f32 %v6434, 0.0
        %v6555 = vmax.f32 %v6437, 0.0
        %v6556 = vmax.f32 %v6442, 0.0
        %v6557 = vmax.f32 %v6445, 0.0
        %v6558 = vmax.f32 %v6450, 0.0
        %v6559 = vmax.f32 %v6453, 0.0
        %v6560 = vmax.f32 %v6458, 0.0
        %v6561 = vmax.f32 %v6461, 0.0
        %v6562 = vmax.f32 %v6466, 0.0
        %v6563 = vmax.f32 %v6469, 0.0
        %v6564 = vmax.f32 %v6474, 0.0
        %v6565 = vmax.f32 %v6477, 0.0
        %v6566 = vmax.f32 %v6482, 0.0
        %v6567 = vmax.f32 %v6485, 0.0
        %v6568 = vmax.f32 %v6490, 0.0
        %v6569 = vmax.f32 %v6493, 0.0
        %v6570 = vmax.f32 %v6498, 0.0
        %v6571 = vmax.f32 %v6501, 0.0
        %v6572 = vmax.f32 %v6506, 0.0
        %v6573 = vmax.f32 %v6509, 0.0
        %v6574 = vmax.f32 %v6514, 0.0
        %v6575 = vmax.f32 %v6517, 0.0
        %v6576 = vmax.f32 %v6522, 0.0
        %v6577 = vmax.f32 %v6525, 0.0
        %v6578 = vmax.f32 %v6530, 0.0
        %v6579 = vmax.f32 %v6533, 0.0
        %v6580 = vmax.f32 %v6538, 0.0
        %v6581 = vmax.f32 %v6541, 0.0
        %v6582 = vmax.f32 %v6546, 0.0
        %v6583 = vmax.f32 %v6549, 0.0
        %6584 = vrot.lane.b32.xlu0 %v5975, 112
        %v6585 = vpop.permute.xlu0 %6584
        %6586 = vrot.lane.b32.xlu0 %v5978, 112
        %v6587 = vpop.permute.xlu0 %6586
        %6588 = vrot.lane.b32.xlu0 %v5983, 112
        %v6589 = vpop.permute.xlu0 %6588
        %6590 = vrot.lane.b32.xlu0 %v5986, 112
        %v6591 = vpop.permute.xlu0 %6590
        %6592 = vrot.lane.b32.xlu0 %v5991, 112
        %v6593 = vpop.permute.xlu0 %6592
        %6594 = vrot.lane.b32.xlu0 %v5994, 112
        %v6595 = vpop.permute.xlu0 %6594
        %6596 = vrot.lane.b32.xlu0 %v5999, 112
        %v6597 = vpop.permute.xlu0 %6596
        %6598 = vrot.lane.b32.xlu0 %v6002, 112
        %v6599 = vpop.permute.xlu0 %6598
        %6600 = vrot.lane.b32.xlu0 %v6007, 112
        %v6601 = vpop.permute.xlu0 %6600
        %6602 = vrot.lane.b32.xlu0 %v6010, 112
        %v6603 = vpop.permute.xlu0 %6602
        %6604 = vrot.lane.b32.xlu0 %v6015, 112
        %v6605 = vpop.permute.xlu0 %6604
        %6606 = vrot.lane.b32.xlu0 %v6018, 112
        %v6607 = vpop.permute.xlu0 %6606
        %6608 = vrot.lane.b32.xlu0 %v6023, 112
        %v6609 = vpop.permute.xlu0 %6608
        %6610 = vrot.lane.b32.xlu0 %v6026, 112
        %v6611 = vpop.permute.xlu0 %6610
        %6612 = vrot.lane.b32.xlu0 %v6031, 112
        %v6613 = vpop.permute.xlu0 %6612
        %6614 = vrot.lane.b32.xlu0 %v6034, 112
        %v6615 = vpop.permute.xlu0 %6614
        %6616 = vrot.lane.b32.xlu0 %v6039, 112
        %v6617 = vpop.permute.xlu0 %6616
        %6618 = vrot.lane.b32.xlu0 %v6042, 112
        %v6619 = vpop.permute.xlu0 %6618
        %6620 = vrot.lane.b32.xlu0 %v6047, 112
        %v6621 = vpop.permute.xlu0 %6620
        %6622 = vrot.lane.b32.xlu0 %v6050, 112
        %v6623 = vpop.permute.xlu0 %6622
        %6624 = vrot.lane.b32.xlu0 %v6055, 112
        %v6625 = vpop.permute.xlu0 %6624
        %6626 = vrot.lane.b32.xlu0 %v6058, 112
        %v6627 = vpop.permute.xlu0 %6626
        %6628 = vrot.lane.b32.xlu0 %v6063, 112
        %v6629 = vpop.permute.xlu0 %6628
        %6630 = vrot.lane.b32.xlu0 %v6066, 112
        %v6631 = vpop.permute.xlu0 %6630
        %6632 = vrot.lane.b32.xlu0 %v6071, 112
        %v6633 = vpop.permute.xlu0 %6632
        %6634 = vrot.lane.b32.xlu0 %v6074, 112
        %v6635 = vpop.permute.xlu0 %6634
        %6636 = vrot.lane.b32.xlu0 %v6079, 112
        %v6637 = vpop.permute.xlu0 %6636
        %6638 = vrot.lane.b32.xlu0 %v6082, 112
        %v6639 = vpop.permute.xlu0 %6638
        %6640 = vrot.lane.b32.xlu0 %v6087, 112
        %v6641 = vpop.permute.xlu0 %6640
        %6642 = vrot.lane.b32.xlu0 %v6090, 112
        %v6643 = vpop.permute.xlu0 %6642
        %6644 = vrot.lane.b32.xlu0 %v6095, 112
        %v6645 = vpop.permute.xlu0 %6644
        %6646 = vrot.lane.b32.xlu0 %v6098, 112
        %v6647 = vpop.permute.xlu0 %6646
        %v6680 = vadd.f32 %v6552, %v6585
        %v6681 = vadd.f32 %v6553, %v6587
        %v6682 = vadd.f32 %v6554, %v6589
        %v6683 = vadd.f32 %v6555, %v6591
        %v6684 = vadd.f32 %v6556, %v6593
        %v6685 = vadd.f32 %v6557, %v6595
        %v6686 = vadd.f32 %v6558, %v6597
        %v6687 = vadd.f32 %v6559, %v6599
        %v6688 = vadd.f32 %v6560, %v6601
        %v6689 = vadd.f32 %v6561, %v6603
        %v6690 = vadd.f32 %v6562, %v6605
        %v6691 = vadd.f32 %v6563, %v6607
        %v6692 = vadd.f32 %v6564, %v6609
        %v6693 = vadd.f32 %v6565, %v6611
        %v6694 = vadd.f32 %v6566, %v6613
        %v6695 = vadd.f32 %v6567, %v6615
        %v6696 = vadd.f32 %v6568, %v6617
        %v6697 = vadd.f32 %v6569, %v6619
        %v6698 = vadd.f32 %v6570, %v6621
        %v6699 = vadd.f32 %v6571, %v6623
        %v6700 = vadd.f32 %v6572, %v6625
        %v6701 = vadd.f32 %v6573, %v6627
        %v6702 = vadd.f32 %v6574, %v6629
        %v6703 = vadd.f32 %v6575, %v6631
        %v6704 = vadd.f32 %v6576, %v6633
        %v6705 = vadd.f32 %v6577, %v6635
        %v6706 = vadd.f32 %v6578, %v6637
        %v6707 = vadd.f32 %v6579, %v6639
        %v6708 = vadd.f32 %v6580, %v6641
        %v6709 = vadd.f32 %v6581, %v6643
        %v6710 = vadd.f32 %v6582, %v6645
        %v6711 = vadd.f32 %v6583, %v6647
        %v6712 = vpack.c.bf16 %v6681, %v6680
        %v6713 = vpack.c.bf16 %v6683, %v6682
        %v6714 = vpack.c.bf16 %v6685, %v6684
        %v6715 = vpack.c.bf16 %v6687, %v6686
        %v6716 = vpack.c.bf16 %v6689, %v6688
        %v6717 = vpack.c.bf16 %v6691, %v6690
        %v6718 = vpack.c.bf16 %v6693, %v6692
        %v6719 = vpack.c.bf16 %v6695, %v6694
        %v6720 = vpack.c.bf16 %v6697, %v6696
        %v6721 = vpack.c.bf16 %v6699, %v6698
        %v6722 = vpack.c.bf16 %v6701, %v6700
        %v6723 = vpack.c.bf16 %v6703, %v6702
        %v6724 = vpack.c.bf16 %v6705, %v6704
        %v6725 = vpack.c.bf16 %v6707, %v6706
        %v6726 = vpack.c.bf16 %v6709, %v6708
        %v6727 = vpack.c.bf16 %v6711, %v6710
        %s6728 = scalar_lea.vmem %s9, 8
        %v6729 = vld [vmem:[%s6728] sm:$0xf]
        %v6730 = vld [vmem:[%s6728 + $0x4] sm:$0xf]
        %s6731 = scalar_lea.vmem %s10, 1
        %v6732 = vld [vmem:[%s6731] sm:$0x1]
        %v6734 = vlaneseq
        %v6735 = vshrl.u32 %v6734, 7
        %v6736 = vsub.s32 0, %v6735
        %v6737 = vrot.slane %v6732, %v6736
        %v6741 = vunpack.c.l.b16 %v6729
        %v6742 = vunpack.c.l.b16 %v6730
        %v6743 = vpack.c.b16 %v6742, %v6741
        %v6746 = vsel %vm6342, %v6712, 0
        %v6749 = vsel %vm6342, %v6713, 0
        %v6752 = vsel %vm6342, %v6714, 0
        %v6755 = vsel %vm6342, %v6715, 0
        %v6758 = vsel %vm6342, %v6716, 0
        %v6761 = vsel %vm6342, %v6717, 0
        %v6764 = vsel %vm6342, %v6718, 0
        %v6767 = vsel %vm6342, %v6719, 0
        %v6770 = vsel %vm6342, %v6720, 0
        %v6773 = vsel %vm6342, %v6721, 0
        %v6776 = vsel %vm6342, %v6722, 0
        %v6779 = vsel %vm6342, %v6723, 0
        %v6782 = vsel %vm6342, %v6724, 0
        %v6785 = vsel %vm6342, %v6725, 0
        %v6788 = vsel %vm6342, %v6726, 0
        %v6791 = vsel %vm6342, %v6727, 0
        %6793 = vmatprep.subr.bf16.mxu0 0
        %6794 = vmatpush1.bf16.msra.mxu0 0
        %6795 = vmatprep.subr.bf16.mxu0 0
        %6796 = vmatpush1.bf16.msra.mxu0 0
        %6797 = vmatprep.subr.bf16.mxu0 0
        %6798 = vmatpush1.bf16.msra.mxu0 0
        %6799 = vmatprep.subr.bf16.mxu0 0
        %6800 = vmatpush1.bf16.msra.mxu0 0
        %6801 = vmatprep.subr.bf16.mxu0 0
        %6802 = vmatpush1.bf16.msra.mxu0 0
        %6803 = vmatprep.subr.bf16.mxu0 0
        %6804 = vmatpush1.bf16.msra.mxu0 0
        %6805 = vmatprep.subr.bf16.mxu0 0
        %6806 = vmatpush1.bf16.msra.mxu0 0
        %6807 = vmatprep.subr.bf16.mxu0 0
        %6808 = vmatpush1.bf16.msra.mxu0 %v6743
        %6809 = vmatprep.subr.bf16.mxu0 0
        %6810 = vmatpush2.bf16.msra.mxu0 0
        %6811 = vmatprep.subr.bf16.mxu0 0
        %6812 = vmatpush2.bf16.msra.mxu0 0
        %6813 = vmatprep.subr.bf16.mxu0 0
        %6814 = vmatpush2.bf16.msra.mxu0 0
        %6815 = vmatprep.subr.bf16.mxu0 0
        %6816 = vmatpush2.bf16.msra.mxu0 0
        %6817 = vmatprep.subr.bf16.mxu0 0
        %6818 = vmatpush2.bf16.msra.mxu0 0
        %6819 = vmatprep.subr.bf16.mxu0 0
        %6820 = vmatpush2.bf16.msra.mxu0 0
        %6821 = vmatprep.subr.bf16.mxu0 0
        %6822 = vmatpush2.bf16.msra.mxu0 0
        %6823 = vmatprep.subr.bf16.mxu0 0
        %6824 = vmatpush2.bf16.msra.mxu0 0
        %6825 = vmatprep.mubr.bf16.mxu0 0
        %6826 = vmatmul.mubr.bf16.gmra.mxu0 %v6746
        %v6827 = vpop.f32.mrf.mxu0
        %v6828 = vadd.f32 %v6737, %v6827
        %v6829 = vpop.f32.mrf.mxu0
        %v6830 = vpop.f32.mrf.mxu0
        %v6831 = vadd.f32 %v6737, %v6830
        %v6832 = vpop.f32.mrf.mxu0
        %6833 = vmatprep.mubr.bf16.mxu0 0
        %6834 = vmatmul.mubr.bf16.gmra.mxu0 %v6749
        %v6835 = vpop.f32.mrf.mxu0
        %v6836 = vadd.f32 %v6737, %v6835
        %v6837 = vpop.f32.mrf.mxu0
        %v6838 = vpop.f32.mrf.mxu0
        %v6839 = vadd.f32 %v6737, %v6838
        %v6840 = vpop.f32.mrf.mxu0
        %6841 = vmatprep.mubr.bf16.mxu0 0
        %6842 = vmatmul.mubr.bf16.gmra.mxu0 %v6752
        %v6843 = vpop.f32.mrf.mxu0
        %v6844 = vadd.f32 %v6737, %v6843
        %v6845 = vpop.f32.mrf.mxu0
        %v6846 = vpop.f32.mrf.mxu0
        %v6847 = vadd.f32 %v6737, %v6846
        %v6848 = vpop.f32.mrf.mxu0
        %6849 = vmatprep.mubr.bf16.mxu0 0
        %6850 = vmatmul.mubr.bf16.gmra.mxu0 %v6755
        %v6851 = vpop.f32.mrf.mxu0
        %v6852 = vadd.f32 %v6737, %v6851
        %v6853 = vpop.f32.mrf.mxu0
        %v6854 = vpop.f32.mrf.mxu0
        %v6855 = vadd.f32 %v6737, %v6854
        %v6856 = vpop.f32.mrf.mxu0
        %6857 = vmatprep.mubr.bf16.mxu0 0
        %6858 = vmatmul.mubr.bf16.gmra.mxu0 %v6758
        %v6859 = vpop.f32.mrf.mxu0
        %v6860 = vadd.f32 %v6737, %v6859
        %v6861 = vpop.f32.mrf.mxu0
        %v6862 = vpop.f32.mrf.mxu0
        %v6863 = vadd.f32 %v6737, %v6862
        %v6864 = vpop.f32.mrf.mxu0
        %6865 = vmatprep.mubr.bf16.mxu0 0
        %6866 = vmatmul.mubr.bf16.gmra.mxu0 %v6761
        %v6867 = vpop.f32.mrf.mxu0
        %v6868 = vadd.f32 %v6737, %v6867
        %v6869 = vpop.f32.mrf.mxu0
        %v6870 = vpop.f32.mrf.mxu0
        %v6871 = vadd.f32 %v6737, %v6870
        %v6872 = vpop.f32.mrf.mxu0
        %6873 = vmatprep.mubr.bf16.mxu0 0
        %6874 = vmatmul.mubr.bf16.gmra.mxu0 %v6764
        %v6875 = vpop.f32.mrf.mxu0
        %v6876 = vadd.f32 %v6737, %v6875
        %v6877 = vpop.f32.mrf.mxu0
        %v6878 = vpop.f32.mrf.mxu0
        %v6879 = vadd.f32 %v6737, %v6878
        %v6880 = vpop.f32.mrf.mxu0
        %6881 = vmatprep.mubr.bf16.mxu0 0
        %6882 = vmatmul.mubr.bf16.gmra.mxu0 %v6767
        %v6883 = vpop.f32.mrf.mxu0
        %v6884 = vadd.f32 %v6737, %v6883
        %v6885 = vpop.f32.mrf.mxu0
        %v6886 = vpop.f32.mrf.mxu0
        %v6887 = vadd.f32 %v6737, %v6886
        %v6888 = vpop.f32.mrf.mxu0
        %6889 = vmatprep.mubr.bf16.mxu0 0
        %6890 = vmatmul.mubr.bf16.gmra.mxu0 %v6770
        %v6891 = vpop.f32.mrf.mxu0
        %v6892 = vadd.f32 %v6737, %v6891
        %v6893 = vpop.f32.mrf.mxu0
        %v6894 = vpop.f32.mrf.mxu0
        %v6895 = vadd.f32 %v6737, %v6894
        %v6896 = vpop.f32.mrf.mxu0
        %6897 = vmatprep.mubr.bf16.mxu0 0
        %6898 = vmatmul.mubr.bf16.gmra.mxu0 %v6773
        %v6899 = vpop.f32.mrf.mxu0
        %v6900 = vadd.f32 %v6737, %v6899
        %v6901 = vpop.f32.mrf.mxu0
        %v6902 = vpop.f32.mrf.mxu0
        %v6903 = vadd.f32 %v6737, %v6902
        %v6904 = vpop.f32.mrf.mxu0
        %6905 = vmatprep.mubr.bf16.mxu0 0
        %6906 = vmatmul.mubr.bf16.gmra.mxu0 %v6776
        %v6907 = vpop.f32.mrf.mxu0
        %v6908 = vadd.f32 %v6737, %v6907
        %v6909 = vpop.f32.mrf.mxu0
        %v6910 = vpop.f32.mrf.mxu0
        %v6911 = vadd.f32 %v6737, %v6910
        %v6912 = vpop.f32.mrf.mxu0
        %6913 = vmatprep.mubr.bf16.mxu0 0
        %6914 = vmatmul.mubr.bf16.gmra.mxu0 %v6779
        %v6915 = vpop.f32.mrf.mxu0
        %v6916 = vadd.f32 %v6737, %v6915
        %v6917 = vpop.f32.mrf.mxu0
        %v6918 = vpop.f32.mrf.mxu0
        %v6919 = vadd.f32 %v6737, %v6918
        %v6920 = vpop.f32.mrf.mxu0
        %6921 = vmatprep.mubr.bf16.mxu0 0
        %6922 = vmatmul.mubr.bf16.gmra.mxu0 %v6782
        %v6923 = vpop.f32.mrf.mxu0
        %v6924 = vadd.f32 %v6737, %v6923
        %v6925 = vpop.f32.mrf.mxu0
        %v6926 = vpop.f32.mrf.mxu0
        %v6927 = vadd.f32 %v6737, %v6926
        %v6928 = vpop.f32.mrf.mxu0
        %6929 = vmatprep.mubr.bf16.mxu0 0
        %6930 = vmatmul.mubr.bf16.gmra.mxu0 %v6785
        %v6931 = vpop.f32.mrf.mxu0
        %v6932 = vadd.f32 %v6737, %v6931
        %v6933 = vpop.f32.mrf.mxu0
        %v6934 = vpop.f32.mrf.mxu0
        %v6935 = vadd.f32 %v6737, %v6934
        %v6936 = vpop.f32.mrf.mxu0
        %6937 = vmatprep.mubr.bf16.mxu0 0
        %6938 = vmatmul.mubr.bf16.gmra.mxu0 %v6788
        %v6939 = vpop.f32.mrf.mxu0
        %v6940 = vadd.f32 %v6737, %v6939
        %v6941 = vpop.f32.mrf.mxu0
        %v6942 = vpop.f32.mrf.mxu0
        %v6943 = vadd.f32 %v6737, %v6942
        %v6944 = vpop.f32.mrf.mxu0
        %6945 = vmatprep.mubr.bf16.mxu0 0
        %6946 = vmatmul.mubr.bf16.gmra.mxu0 %v6791
        %v6947 = vpop.f32.mrf.mxu0
        %v6948 = vadd.f32 %v6737, %v6947
        %v6949 = vpop.f32.mrf.mxu0
        %v6950 = vpop.f32.mrf.mxu0
        %v6951 = vadd.f32 %v6737, %v6950
        %v6952 = vpop.f32.mrf.mxu0
        %6953 = vdwg.mxu0
        %v6954 = vmax.f32 %v6828, 0.0
        %v6955 = vmax.f32 %v6831, 0.0
        %v6956 = vmax.f32 %v6836, 0.0
        %v6957 = vmax.f32 %v6839, 0.0
        %v6958 = vmax.f32 %v6844, 0.0
        %v6959 = vmax.f32 %v6847, 0.0
        %v6960 = vmax.f32 %v6852, 0.0
        %v6961 = vmax.f32 %v6855, 0.0
        %v6962 = vmax.f32 %v6860, 0.0
        %v6963 = vmax.f32 %v6863, 0.0
        %v6964 = vmax.f32 %v6868, 0.0
        %v6965 = vmax.f32 %v6871, 0.0
        %v6966 = vmax.f32 %v6876, 0.0
        %v6967 = vmax.f32 %v6879, 0.0
        %v6968 = vmax.f32 %v6884, 0.0
        %v6969 = vmax.f32 %v6887, 0.0
        %v6970 = vmax.f32 %v6892, 0.0
        %v6971 = vmax.f32 %v6895, 0.0
        %v6972 = vmax.f32 %v6900, 0.0
        %v6973 = vmax.f32 %v6903, 0.0
        %v6974 = vmax.f32 %v6908, 0.0
        %v6975 = vmax.f32 %v6911, 0.0
        %v6976 = vmax.f32 %v6916, 0.0
        %v6977 = vmax.f32 %v6919, 0.0
        %v6978 = vmax.f32 %v6924, 0.0
        %v6979 = vmax.f32 %v6927, 0.0
        %v6980 = vmax.f32 %v6932, 0.0
        %v6981 = vmax.f32 %v6935, 0.0
        %v6982 = vmax.f32 %v6940, 0.0
        %v6983 = vmax.f32 %v6943, 0.0
        %v6984 = vmax.f32 %v6948, 0.0
        %v6985 = vmax.f32 %v6951, 0.0
        %v6986 = vadd.f32 %v6954, %v5975
        %v6987 = vadd.f32 %v6955, %v5978
        %v6988 = vadd.f32 %v6956, %v5983
        %v6989 = vadd.f32 %v6957, %v5986
        %v6990 = vadd.f32 %v6958, %v5991
        %v6991 = vadd.f32 %v6959, %v5994
        %v6992 = vadd.f32 %v6960, %v5999
        %v6993 = vadd.f32 %v6961, %v6002
        %v6994 = vadd.f32 %v6962, %v6007
        %v6995 = vadd.f32 %v6963, %v6010
        %v6996 = vadd.f32 %v6964, %v6015
        %v6997 = vadd.f32 %v6965, %v6018
        %v6998 = vadd.f32 %v6966, %v6023
        %v6999 = vadd.f32 %v6967, %v6026
        %v7000 = vadd.f32 %v6968, %v6031
        %v7001 = vadd.f32 %v6969, %v6034
        %v7002 = vadd.f32 %v6970, %v6039
        %v7003 = vadd.f32 %v6971, %v6042
        %v7004 = vadd.f32 %v6972, %v6047
        %v7005 = vadd.f32 %v6973, %v6050
        %v7006 = vadd.f32 %v6974, %v6055
        %v7007 = vadd.f32 %v6975, %v6058
        %v7008 = vadd.f32 %v6976, %v6063
        %v7009 = vadd.f32 %v6977, %v6066
        %v7010 = vadd.f32 %v6978, %v6071
        %v7011 = vadd.f32 %v6979, %v6074
        %v7012 = vadd.f32 %v6980, %v6079
        %v7013 = vadd.f32 %v6981, %v6082
        %v7014 = vadd.f32 %v6982, %v6087
        %v7015 = vadd.f32 %v6983, %v6090
        %v7016 = vadd.f32 %v6984, %v6095
        %v7017 = vadd.f32 %v6985, %v6098
        %v7018 = vpack.c.bf16 %v6987, %v6986
        %v7019 = vpack.c.bf16 %v6989, %v6988
        %v7020 = vpack.c.bf16 %v6991, %v6990
        %v7021 = vpack.c.bf16 %v6993, %v6992
        %v7022 = vpack.c.bf16 %v6995, %v6994
        %v7023 = vpack.c.bf16 %v6997, %v6996
        %v7024 = vpack.c.bf16 %v6999, %v6998
        %v7025 = vpack.c.bf16 %v7001, %v7000
        %v7026 = vpack.c.bf16 %v7003, %v7002
        %v7027 = vpack.c.bf16 %v7005, %v7004
        %v7028 = vpack.c.bf16 %v7007, %v7006
        %v7029 = vpack.c.bf16 %v7009, %v7008
        %v7030 = vpack.c.bf16 %v7011, %v7010
        %v7031 = vpack.c.bf16 %v7013, %v7012
        %v7032 = vpack.c.bf16 %v7015, %v7014
        %v7033 = vpack.c.bf16 %v7017, %v7016
        %v7034 = vld [vmem:[%s9] sm:$0xf]
        %v7035 = vld [vmem:[%s9 + $0x4] sm:$0xf]
        %v7036 = vld [vmem:[%s10] sm:$0x1]
        %v7038 = vlaneseq
        %v7039 = vshrl.u32 %v7038, 7
        %v7040 = vsub.s32 0, %v7039
        %v7041 = vrot.slane %v7036, %v7040
        %v7045 = vunpack.c.l.b16 %v7034
        %v7046 = vunpack.c.l.b16 %v7035
        %v7047 = vpack.c.b16 %v7046, %v7045
        %v7050 = vsel %vm6342, %v7018, 0
        %v7053 = vsel %vm6342, %v7019, 0
        %v7056 = vsel %vm6342, %v7020, 0
        %v7059 = vsel %vm6342, %v7021, 0
        %v7062 = vsel %vm6342, %v7022, 0
        %v7065 = vsel %vm6342, %v7023, 0
        %v7068 = vsel %vm6342, %v7024, 0
        %v7071 = vsel %vm6342, %v7025, 0
        %v7074 = vsel %vm6342, %v7026, 0
        %v7077 = vsel %vm6342, %v7027, 0
        %v7080 = vsel %vm6342, %v7028, 0
        %v7083 = vsel %vm6342, %v7029, 0
        %v7086 = vsel %vm6342, %v7030, 0
        %v7089 = vsel %vm6342, %v7031, 0
        %v7092 = vsel %vm6342, %v7032, 0
        %v7095 = vsel %vm6342, %v7033, 0
        %7097 = vmatprep.subr.bf16.mxu0 0
        %7098 = vmatpush1.bf16.msra.mxu0 0
        %7099 = vmatprep.subr.bf16.mxu0 0
        %7100 = vmatpush1.bf16.msra.mxu0 0
        %7101 = vmatprep.subr.bf16.mxu0 0
        %7102 = vmatpush1.bf16.msra.mxu0 0
        %7103 = vmatprep.subr.bf16.mxu0 0
        %7104 = vmatpush1.bf16.msra.mxu0 0
        %7105 = vmatprep.subr.bf16.mxu0 0
        %7106 = vmatpush1.bf16.msra.mxu0 0
        %7107 = vmatprep.subr.bf16.mxu0 0
        %7108 = vmatpush1.bf16.msra.mxu0 0
        %7109 = vmatprep.subr.bf16.mxu0 0
        %7110 = vmatpush1.bf16.msra.mxu0 0
        %7111 = vmatprep.subr.bf16.mxu0 0
        %7112 = vmatpush1.bf16.msra.mxu0 %v7047
        %7113 = vmatprep.subr.bf16.mxu0 0
        %7114 = vmatpush2.bf16.msra.mxu0 0
        %7115 = vmatprep.subr.bf16.mxu0 0
        %7116 = vmatpush2.bf16.msra.mxu0 0
        %7117 = vmatprep.subr.bf16.mxu0 0
        %7118 = vmatpush2.bf16.msra.mxu0 0
        %7119 = vmatprep.subr.bf16.mxu0 0
        %7120 = vmatpush2.bf16.msra.mxu0 0
        %7121 = vmatprep.subr.bf16.mxu0 0
        %7122 = vmatpush2.bf16.msra.mxu0 0
        %7123 = vmatprep.subr.bf16.mxu0 0
        %7124 = vmatpush2.bf16.msra.mxu0 0
        %7125 = vmatprep.subr.bf16.mxu0 0
        %7126 = vmatpush2.bf16.msra.mxu0 0
        %7127 = vmatprep.subr.bf16.mxu0 0
        %7128 = vmatpush2.bf16.msra.mxu0 0
        %7129 = vmatprep.mubr.bf16.mxu0 0
        %7130 = vmatmul.mubr.bf16.gmra.mxu0 %v7050
        %v7131 = vpop.f32.mrf.mxu0
        %v7132 = vadd.f32 %v7041, %v7131
        %v7133 = vpop.f32.mrf.mxu0
        %v7134 = vpop.f32.mrf.mxu0
        %v7135 = vadd.f32 %v7041, %v7134
        %v7136 = vpop.f32.mrf.mxu0
        %7137 = vmatprep.mubr.bf16.mxu0 0
        %7138 = vmatmul.mubr.bf16.gmra.mxu0 %v7053
        %v7139 = vpop.f32.mrf.mxu0
        %v7140 = vadd.f32 %v7041, %v7139
        %v7141 = vpop.f32.mrf.mxu0
        %v7142 = vpop.f32.mrf.mxu0
        %v7143 = vadd.f32 %v7041, %v7142
        %v7144 = vpop.f32.mrf.mxu0
        %7145 = vmatprep.mubr.bf16.mxu0 0
        %7146 = vmatmul.mubr.bf16.gmra.mxu0 %v7056
        %v7147 = vpop.f32.mrf.mxu0
        %v7148 = vadd.f32 %v7041, %v7147
        %v7149 = vpop.f32.mrf.mxu0
        %v7150 = vpop.f32.mrf.mxu0
        %v7151 = vadd.f32 %v7041, %v7150
        %v7152 = vpop.f32.mrf.mxu0
        %7153 = vmatprep.mubr.bf16.mxu0 0
        %7154 = vmatmul.mubr.bf16.gmra.mxu0 %v7059
        %v7155 = vpop.f32.mrf.mxu0
        %v7156 = vadd.f32 %v7041, %v7155
        %v7157 = vpop.f32.mrf.mxu0
        %v7158 = vpop.f32.mrf.mxu0
        %v7159 = vadd.f32 %v7041, %v7158
        %v7160 = vpop.f32.mrf.mxu0
        %7161 = vmatprep.mubr.bf16.mxu0 0
        %7162 = vmatmul.mubr.bf16.gmra.mxu0 %v7062
        %v7163 = vpop.f32.mrf.mxu0
        %v7164 = vadd.f32 %v7041, %v7163
        %v7165 = vpop.f32.mrf.mxu0
        %v7166 = vpop.f32.mrf.mxu0
        %v7167 = vadd.f32 %v7041, %v7166
        %v7168 = vpop.f32.mrf.mxu0
        %7169 = vmatprep.mubr.bf16.mxu0 0
        %7170 = vmatmul.mubr.bf16.gmra.mxu0 %v7065
        %v7171 = vpop.f32.mrf.mxu0
        %v7172 = vadd.f32 %v7041, %v7171
        %v7173 = vpop.f32.mrf.mxu0
        %v7174 = vpop.f32.mrf.mxu0
        %v7175 = vadd.f32 %v7041, %v7174
        %v7176 = vpop.f32.mrf.mxu0
        %7177 = vmatprep.mubr.bf16.mxu0 0
        %7178 = vmatmul.mubr.bf16.gmra.mxu0 %v7068
        %v7179 = vpop.f32.mrf.mxu0
        %v7180 = vadd.f32 %v7041, %v7179
        %v7181 = vpop.f32.mrf.mxu0
        %v7182 = vpop.f32.mrf.mxu0
        %v7183 = vadd.f32 %v7041, %v7182
        %v7184 = vpop.f32.mrf.mxu0
        %7185 = vmatprep.mubr.bf16.mxu0 0
        %7186 = vmatmul.mubr.bf16.gmra.mxu0 %v7071
        %v7187 = vpop.f32.mrf.mxu0
        %v7188 = vadd.f32 %v7041, %v7187
        %v7189 = vpop.f32.mrf.mxu0
        %v7190 = vpop.f32.mrf.mxu0
        %v7191 = vadd.f32 %v7041, %v7190
        %v7192 = vpop.f32.mrf.mxu0
        %7193 = vmatprep.mubr.bf16.mxu0 0
        %7194 = vmatmul.mubr.bf16.gmra.mxu0 %v7074
        %v7195 = vpop.f32.mrf.mxu0
        %v7196 = vadd.f32 %v7041, %v7195
        %v7197 = vpop.f32.mrf.mxu0
        %v7198 = vpop.f32.mrf.mxu0
        %v7199 = vadd.f32 %v7041, %v7198
        %v7200 = vpop.f32.mrf.mxu0
        %7201 = vmatprep.mubr.bf16.mxu0 0
        %7202 = vmatmul.mubr.bf16.gmra.mxu0 %v7077
        %v7203 = vpop.f32.mrf.mxu0
        %v7204 = vadd.f32 %v7041, %v7203
        %v7205 = vpop.f32.mrf.mxu0
        %v7206 = vpop.f32.mrf.mxu0
        %v7207 = vadd.f32 %v7041, %v7206
        %v7208 = vpop.f32.mrf.mxu0
        %7209 = vmatprep.mubr.bf16.mxu0 0
        %7210 = vmatmul.mubr.bf16.gmra.mxu0 %v7080
        %v7211 = vpop.f32.mrf.mxu0
        %v7212 = vadd.f32 %v7041, %v7211
        %v7213 = vpop.f32.mrf.mxu0
        %v7214 = vpop.f32.mrf.mxu0
        %v7215 = vadd.f32 %v7041, %v7214
        %v7216 = vpop.f32.mrf.mxu0
        %7217 = vmatprep.mubr.bf16.mxu0 0
        %7218 = vmatmul.mubr.bf16.gmra.mxu0 %v7083
        %v7219 = vpop.f32.mrf.mxu0
        %v7220 = vadd.f32 %v7041, %v7219
        %v7221 = vpop.f32.mrf.mxu0
        %v7222 = vpop.f32.mrf.mxu0
        %v7223 = vadd.f32 %v7041, %v7222
        %v7224 = vpop.f32.mrf.mxu0
        %7225 = vmatprep.mubr.bf16.mxu0 0
        %7226 = vmatmul.mubr.bf16.gmra.mxu0 %v7086
        %v7227 = vpop.f32.mrf.mxu0
        %v7228 = vadd.f32 %v7041, %v7227
        %v7229 = vpop.f32.mrf.mxu0
        %v7230 = vpop.f32.mrf.mxu0
        %v7231 = vadd.f32 %v7041, %v7230
        %v7232 = vpop.f32.mrf.mxu0
        %7233 = vmatprep.mubr.bf16.mxu0 0
        %7234 = vmatmul.mubr.bf16.gmra.mxu0 %v7089
        %v7235 = vpop.f32.mrf.mxu0
        %v7236 = vadd.f32 %v7041, %v7235
        %v7237 = vpop.f32.mrf.mxu0
        %v7238 = vpop.f32.mrf.mxu0
        %v7239 = vadd.f32 %v7041, %v7238
        %v7240 = vpop.f32.mrf.mxu0
        %7241 = vmatprep.mubr.bf16.mxu0 0
        %7242 = vmatmul.mubr.bf16.gmra.mxu0 %v7092
        %v7243 = vpop.f32.mrf.mxu0
        %v7244 = vadd.f32 %v7041, %v7243
        %v7245 = vpop.f32.mrf.mxu0
        %v7246 = vpop.f32.mrf.mxu0
        %v7247 = vadd.f32 %v7041, %v7246
        %v7248 = vpop.f32.mrf.mxu0
        %7249 = vmatprep.mubr.bf16.mxu0 0
        %7250 = vmatmul.mubr.bf16.gmra.mxu0 %v7095
        %v7251 = vpop.f32.mrf.mxu0
        %v7252 = vadd.f32 %v7041, %v7251
        %v7253 = vpop.f32.mrf.mxu0
        %v7254 = vpop.f32.mrf.mxu0
        %v7255 = vadd.f32 %v7041, %v7254
        %v7256 = vpop.f32.mrf.mxu0
        %7257 = vdwg.mxu0
        %v7258 = vmax.f32 %v7132, 0.0
        %v7259 = vmax.f32 %v7135, 0.0
        %v7260 = vmax.f32 %v7140, 0.0
        %v7261 = vmax.f32 %v7143, 0.0
        %v7262 = vmax.f32 %v7148, 0.0
        %v7263 = vmax.f32 %v7151, 0.0
        %v7264 = vmax.f32 %v7156, 0.0
        %v7265 = vmax.f32 %v7159, 0.0
        %v7266 = vmax.f32 %v7164, 0.0
        %v7267 = vmax.f32 %v7167, 0.0
        %v7268 = vmax.f32 %v7172, 0.0
        %v7269 = vmax.f32 %v7175, 0.0
        %v7270 = vmax.f32 %v7180, 0.0
        %v7271 = vmax.f32 %v7183, 0.0
        %v7272 = vmax.f32 %v7188, 0.0
        %v7273 = vmax.f32 %v7191, 0.0
        %v7274 = vmax.f32 %v7196, 0.0
        %v7275 = vmax.f32 %v7199, 0.0
        %v7276 = vmax.f32 %v7204, 0.0
        %v7277 = vmax.f32 %v7207, 0.0
        %v7278 = vmax.f32 %v7212, 0.0
        %v7279 = vmax.f32 %v7215, 0.0
        %v7280 = vmax.f32 %v7220, 0.0
        %v7281 = vmax.f32 %v7223, 0.0
        %v7282 = vmax.f32 %v7228, 0.0
        %v7283 = vmax.f32 %v7231, 0.0
        %v7284 = vmax.f32 %v7236, 0.0
        %v7285 = vmax.f32 %v7239, 0.0
        %v7286 = vmax.f32 %v7244, 0.0
        %v7287 = vmax.f32 %v7247, 0.0
        %v7288 = vmax.f32 %v7252, 0.0
        %v7289 = vmax.f32 %v7255, 0.0
        %v7290 = vpack.c.bf16 %v7259, %v7258
        %v7291 = vpack.c.bf16 %v7261, %v7260
        %v7292 = vpack.c.bf16 %v7263, %v7262
        %v7293 = vpack.c.bf16 %v7265, %v7264
        %v7294 = vpack.c.bf16 %v7267, %v7266
        %v7295 = vpack.c.bf16 %v7269, %v7268
        %v7296 = vpack.c.bf16 %v7271, %v7270
        %v7297 = vpack.c.bf16 %v7273, %v7272
        %v7298 = vpack.c.bf16 %v7275, %v7274
        %v7299 = vpack.c.bf16 %v7277, %v7276
        %v7300 = vpack.c.bf16 %v7279, %v7278
        %v7301 = vpack.c.bf16 %v7281, %v7280
        %v7302 = vpack.c.bf16 %v7283, %v7282
        %v7303 = vpack.c.bf16 %v7285, %v7284
        %v7304 = vpack.c.bf16 %v7287, %v7286
        %v7305 = vpack.c.bf16 %v7289, %v7288
        %v7306 = vld [vmem:[%s11] sm:$0xf]
        %v7307 = vld [vmem:[%s11 + $0x4] sm:$0xf]
        %v7308 = vld [vmem:[%s12] sm:$0x1]
        %v7310 = vlaneseq
        %v7311 = vshrl.u32 %v7310, 7
        %v7312 = vsub.s32 0, %v7311
        %v7313 = vrot.slane %v7308, %v7312
        %v7317 = vunpack.c.l.b16 %v7306
        %v7318 = vunpack.c.l.b16 %v7307
        %v7319 = vpack.c.b16 %v7318, %v7317
        %v7322 = vsel %vm6342, %v7290, 0
        %v7325 = vsel %vm6342, %v7291, 0
        %v7328 = vsel %vm6342, %v7292, 0
        %v7331 = vsel %vm6342, %v7293, 0
        %v7334 = vsel %vm6342, %v7294, 0
        %v7337 = vsel %vm6342, %v7295, 0
        %v7340 = vsel %vm6342, %v7296, 0
        %v7343 = vsel %vm6342, %v7297, 0
        %v7346 = vsel %vm6342, %v7298, 0
        %v7349 = vsel %vm6342, %v7299, 0
        %v7352 = vsel %vm6342, %v7300, 0
        %v7355 = vsel %vm6342, %v7301, 0
        %v7358 = vsel %vm6342, %v7302, 0
        %v7361 = vsel %vm6342, %v7303, 0
        %v7364 = vsel %vm6342, %v7304, 0
        %v7367 = vsel %vm6342, %v7305, 0
        %7369 = vmatprep.subr.bf16.mxu0 0
        %7370 = vmatpush1.bf16.msra.mxu0 0
        %7371 = vmatprep.subr.bf16.mxu0 0
        %7372 = vmatpush1.bf16.msra.mxu0 0
        %7373 = vmatprep.subr.bf16.mxu0 0
        %7374 = vmatpush1.bf16.msra.mxu0 0
        %7375 = vmatprep.subr.bf16.mxu0 0
        %7376 = vmatpush1.bf16.msra.mxu0 0
        %7377 = vmatprep.subr.bf16.mxu0 0
        %7378 = vmatpush1.bf16.msra.mxu0 0
        %7379 = vmatprep.subr.bf16.mxu0 0
        %7380 = vmatpush1.bf16.msra.mxu0 0
        %7381 = vmatprep.subr.bf16.mxu0 0
        %7382 = vmatpush1.bf16.msra.mxu0 0
        %7383 = vmatprep.subr.bf16.mxu0 0
        %7384 = vmatpush1.bf16.msra.mxu0 %v7319
        %7385 = vmatprep.subr.bf16.mxu0 0
        %7386 = vmatpush2.bf16.msra.mxu0 0
        %7387 = vmatprep.subr.bf16.mxu0 0
        %7388 = vmatpush2.bf16.msra.mxu0 0
        %7389 = vmatprep.subr.bf16.mxu0 0
        %7390 = vmatpush2.bf16.msra.mxu0 0
        %7391 = vmatprep.subr.bf16.mxu0 0
        %7392 = vmatpush2.bf16.msra.mxu0 0
        %7393 = vmatprep.subr.bf16.mxu0 0
        %7394 = vmatpush2.bf16.msra.mxu0 0
        %7395 = vmatprep.subr.bf16.mxu0 0
        %7396 = vmatpush2.bf16.msra.mxu0 0
        %7397 = vmatprep.subr.bf16.mxu0 0
        %7398 = vmatpush2.bf16.msra.mxu0 0
        %7399 = vmatprep.subr.bf16.mxu0 0
        %7400 = vmatpush2.bf16.msra.mxu0 0
        %7401 = vmatprep.mubr.bf16.mxu0 0
        %7402 = vmatmul.mubr.bf16.gmra.mxu0 %v7322
        %v7403 = vpop.f32.mrf.mxu0
        %v7404 = vadd.f32 %v7313, %v7403
        %v7405 = vpop.f32.mrf.mxu0
        %v7406 = vpop.f32.mrf.mxu0
        %v7407 = vadd.f32 %v7313, %v7406
        %v7408 = vpop.f32.mrf.mxu0
        %7409 = vmatprep.mubr.bf16.mxu0 0
        %7410 = vmatmul.mubr.bf16.gmra.mxu0 %v7325
        %v7411 = vpop.f32.mrf.mxu0
        %v7412 = vadd.f32 %v7313, %v7411
        %v7413 = vpop.f32.mrf.mxu0
        %v7414 = vpop.f32.mrf.mxu0
        %v7415 = vadd.f32 %v7313, %v7414
        %v7416 = vpop.f32.mrf.mxu0
        %7417 = vmatprep.mubr.bf16.mxu0 0
        %7418 = vmatmul.mubr.bf16.gmra.mxu0 %v7328
        %v7419 = vpop.f32.mrf.mxu0
        %v7420 = vadd.f32 %v7313, %v7419
        %v7421 = vpop.f32.mrf.mxu0
        %v7422 = vpop.f32.mrf.mxu0
        %v7423 = vadd.f32 %v7313, %v7422
        %v7424 = vpop.f32.mrf.mxu0
        %7425 = vmatprep.mubr.bf16.mxu0 0
        %7426 = vmatmul.mubr.bf16.gmra.mxu0 %v7331
        %v7427 = vpop.f32.mrf.mxu0
        %v7428 = vadd.f32 %v7313, %v7427
        %v7429 = vpop.f32.mrf.mxu0
        %v7430 = vpop.f32.mrf.mxu0
        %v7431 = vadd.f32 %v7313, %v7430
        %v7432 = vpop.f32.mrf.mxu0
        %7433 = vmatprep.mubr.bf16.mxu0 0
        %7434 = vmatmul.mubr.bf16.gmra.mxu0 %v7334
        %v7435 = vpop.f32.mrf.mxu0
        %v7436 = vadd.f32 %v7313, %v7435
        %v7437 = vpop.f32.mrf.mxu0
        %v7438 = vpop.f32.mrf.mxu0
        %v7439 = vadd.f32 %v7313, %v7438
        %v7440 = vpop.f32.mrf.mxu0
        %7441 = vmatprep.mubr.bf16.mxu0 0
        %7442 = vmatmul.mubr.bf16.gmra.mxu0 %v7337
        %v7443 = vpop.f32.mrf.mxu0
        %v7444 = vadd.f32 %v7313, %v7443
        %v7445 = vpop.f32.mrf.mxu0
        %v7446 = vpop.f32.mrf.mxu0
        %v7447 = vadd.f32 %v7313, %v7446
        %v7448 = vpop.f32.mrf.mxu0
        %7449 = vmatprep.mubr.bf16.mxu0 0
        %7450 = vmatmul.mubr.bf16.gmra.mxu0 %v7340
        %v7451 = vpop.f32.mrf.mxu0
        %v7452 = vadd.f32 %v7313, %v7451
        %v7453 = vpop.f32.mrf.mxu0
        %v7454 = vpop.f32.mrf.mxu0
        %v7455 = vadd.f32 %v7313, %v7454
        %v7456 = vpop.f32.mrf.mxu0
        %7457 = vmatprep.mubr.bf16.mxu0 0
        %7458 = vmatmul.mubr.bf16.gmra.mxu0 %v7343
        %v7459 = vpop.f32.mrf.mxu0
        %v7460 = vadd.f32 %v7313, %v7459
        %v7461 = vpop.f32.mrf.mxu0
        %v7462 = vpop.f32.mrf.mxu0
        %v7463 = vadd.f32 %v7313, %v7462
        %v7464 = vpop.f32.mrf.mxu0
        %7465 = vmatprep.mubr.bf16.mxu0 0
        %7466 = vmatmul.mubr.bf16.gmra.mxu0 %v7346
        %v7467 = vpop.f32.mrf.mxu0
        %v7468 = vadd.f32 %v7313, %v7467
        %v7469 = vpop.f32.mrf.mxu0
        %v7470 = vpop.f32.mrf.mxu0
        %v7471 = vadd.f32 %v7313, %v7470
        %v7472 = vpop.f32.mrf.mxu0
        %7473 = vmatprep.mubr.bf16.mxu0 0
        %7474 = vmatmul.mubr.bf16.gmra.mxu0 %v7349
        %v7475 = vpop.f32.mrf.mxu0
        %v7476 = vadd.f32 %v7313, %v7475
        %v7477 = vpop.f32.mrf.mxu0
        %v7478 = vpop.f32.mrf.mxu0
        %v7479 = vadd.f32 %v7313, %v7478
        %v7480 = vpop.f32.mrf.mxu0
        %7481 = vmatprep.mubr.bf16.mxu0 0
        %7482 = vmatmul.mubr.bf16.gmra.mxu0 %v7352
        %v7483 = vpop.f32.mrf.mxu0
        %v7484 = vadd.f32 %v7313, %v7483
        %v7485 = vpop.f32.mrf.mxu0
        %v7486 = vpop.f32.mrf.mxu0
        %v7487 = vadd.f32 %v7313, %v7486
        %v7488 = vpop.f32.mrf.mxu0
        %7489 = vmatprep.mubr.bf16.mxu0 0
        %7490 = vmatmul.mubr.bf16.gmra.mxu0 %v7355
        %v7491 = vpop.f32.mrf.mxu0
        %v7492 = vadd.f32 %v7313, %v7491
        %v7493 = vpop.f32.mrf.mxu0
        %v7494 = vpop.f32.mrf.mxu0
        %v7495 = vadd.f32 %v7313, %v7494
        %v7496 = vpop.f32.mrf.mxu0
        %7497 = vmatprep.mubr.bf16.mxu0 0
        %7498 = vmatmul.mubr.bf16.gmra.mxu0 %v7358
        %v7499 = vpop.f32.mrf.mxu0
        %v7500 = vadd.f32 %v7313, %v7499
        %v7501 = vpop.f32.mrf.mxu0
        %v7502 = vpop.f32.mrf.mxu0
        %v7503 = vadd.f32 %v7313, %v7502
        %v7504 = vpop.f32.mrf.mxu0
        %7505 = vmatprep.mubr.bf16.mxu0 0
        %7506 = vmatmul.mubr.bf16.gmra.mxu0 %v7361
        %v7507 = vpop.f32.mrf.mxu0
        %v7508 = vadd.f32 %v7313, %v7507
        %v7509 = vpop.f32.mrf.mxu0
        %v7510 = vpop.f32.mrf.mxu0
        %v7511 = vadd.f32 %v7313, %v7510
        %v7512 = vpop.f32.mrf.mxu0
        %7513 = vmatprep.mubr.bf16.mxu0 0
        %7514 = vmatmul.mubr.bf16.gmra.mxu0 %v7364
        %v7515 = vpop.f32.mrf.mxu0
        %v7516 = vadd.f32 %v7313, %v7515
        %v7517 = vpop.f32.mrf.mxu0
        %v7518 = vpop.f32.mrf.mxu0
        %v7519 = vadd.f32 %v7313, %v7518
        %v7520 = vpop.f32.mrf.mxu0
        %7521 = vmatprep.mubr.bf16.mxu0 0
        %7522 = vmatmul.mubr.bf16.gmra.mxu0 %v7367
        %v7523 = vpop.f32.mrf.mxu0
        %v7524 = vadd.f32 %v7313, %v7523
        %v7525 = vpop.f32.mrf.mxu0
        %v7526 = vpop.f32.mrf.mxu0
        %v7527 = vadd.f32 %v7313, %v7526
        %v7528 = vpop.f32.mrf.mxu0
        %7529 = vdwg.mxu0
        %v7530 = vmax.f32 %v7404, 0.0
        %v7531 = vmax.f32 %v7407, 0.0
        %v7532 = vmax.f32 %v7412, 0.0
        %v7533 = vmax.f32 %v7415, 0.0
        %v7534 = vmax.f32 %v7420, 0.0
        %v7535 = vmax.f32 %v7423, 0.0
        %v7536 = vmax.f32 %v7428, 0.0
        %v7537 = vmax.f32 %v7431, 0.0
        %v7538 = vmax.f32 %v7436, 0.0
        %v7539 = vmax.f32 %v7439, 0.0
        %v7540 = vmax.f32 %v7444, 0.0
        %v7541 = vmax.f32 %v7447, 0.0
        %v7542 = vmax.f32 %v7452, 0.0
        %v7543 = vmax.f32 %v7455, 0.0
        %v7544 = vmax.f32 %v7460, 0.0
        %v7545 = vmax.f32 %v7463, 0.0
        %v7546 = vmax.f32 %v7468, 0.0
        %v7547 = vmax.f32 %v7471, 0.0
        %v7548 = vmax.f32 %v7476, 0.0
        %v7549 = vmax.f32 %v7479, 0.0
        %v7550 = vmax.f32 %v7484, 0.0
        %v7551 = vmax.f32 %v7487, 0.0
        %v7552 = vmax.f32 %v7492, 0.0
        %v7553 = vmax.f32 %v7495, 0.0
        %v7554 = vmax.f32 %v7500, 0.0
        %v7555 = vmax.f32 %v7503, 0.0
        %v7556 = vmax.f32 %v7508, 0.0
        %v7557 = vmax.f32 %v7511, 0.0
        %v7558 = vmax.f32 %v7516, 0.0
        %v7559 = vmax.f32 %v7519, 0.0
        %v7560 = vmax.f32 %v7524, 0.0
        %v7561 = vmax.f32 %v7527, 0.0
        %v7562 = vld [vmem:[%s13] sm:$0x1]
        %v7564 = vlaneseq
        %v7565 = vshrl.u32 %v7564, 7
        %v7566 = vsub.s32 0, %v7565
        %v7567 = vrot.slane %v7562, %v7566
        %v7569 = vmul.f32 %v7530, %v7567
        %v7570 = vmul.f32 %v7531, %v7567
        %v7571 = vmul.f32 %v7532, %v7567
        %v7572 = vmul.f32 %v7533, %v7567
        %v7573 = vmul.f32 %v7534, %v7567
        %v7574 = vmul.f32 %v7535, %v7567
        %v7575 = vmul.f32 %v7536, %v7567
        %v7576 = vmul.f32 %v7537, %v7567
        %v7577 = vmul.f32 %v7538, %v7567
        %v7578 = vmul.f32 %v7539, %v7567
        %v7579 = vmul.f32 %v7540, %v7567
        %v7580 = vmul.f32 %v7541, %v7567
        %v7581 = vmul.f32 %v7542, %v7567
        %v7582 = vmul.f32 %v7543, %v7567
        %v7583 = vmul.f32 %v7544, %v7567
        %v7584 = vmul.f32 %v7545, %v7567
        %v7585 = vmul.f32 %v7546, %v7567
        %v7586 = vmul.f32 %v7547, %v7567
        %v7587 = vmul.f32 %v7548, %v7567
        %v7588 = vmul.f32 %v7549, %v7567
        %v7589 = vmul.f32 %v7550, %v7567
        %v7590 = vmul.f32 %v7551, %v7567
        %v7591 = vmul.f32 %v7552, %v7567
        %v7592 = vmul.f32 %v7553, %v7567
        %v7593 = vmul.f32 %v7554, %v7567
        %v7594 = vmul.f32 %v7555, %v7567
        %v7595 = vmul.f32 %v7556, %v7567
        %v7596 = vmul.f32 %v7557, %v7567
        %v7597 = vmul.f32 %v7558, %v7567
        %v7598 = vmul.f32 %v7559, %v7567
        %v7599 = vmul.f32 %v7560, %v7567
        %v7600 = vmul.f32 %v7561, %v7567
        %vm7601 = vcmask 64512
        %v7602 = vsel %vm7601, %v7569, 0.0
        %7603 = vadd.xlane.f32.xlu0 %v7602
        %v7604 = vpop.xlane.xlu0 %7603
        %v7605 = vsel %vm7601, %v7570, 0.0
        %7606 = vadd.xlane.f32.xlu0 %v7605
        %v7607 = vpop.xlane.xlu0 %7606
        %v7608 = vsel %vm7601, %v7571, 0.0
        %7609 = vadd.xlane.f32.xlu0 %v7608
        %v7610 = vpop.xlane.xlu0 %7609
        %v7611 = vsel %vm7601, %v7572, 0.0
        %7612 = vadd.xlane.f32.xlu0 %v7611
        %v7613 = vpop.xlane.xlu0 %7612
        %v7614 = vsel %vm7601, %v7573, 0.0
        %7615 = vadd.xlane.f32.xlu0 %v7614
        %v7616 = vpop.xlane.xlu0 %7615
        %v7617 = vsel %vm7601, %v7574, 0.0
        %7618 = vadd.xlane.f32.xlu0 %v7617
        %v7619 = vpop.xlane.xlu0 %7618
        %v7620 = vsel %vm7601, %v7575, 0.0
        %7621 = vadd.xlane.f32.xlu0 %v7620
        %v7622 = vpop.xlane.xlu0 %7621
        %v7623 = vsel %vm7601, %v7576, 0.0
        %7624 = vadd.xlane.f32.xlu0 %v7623
        %v7625 = vpop.xlane.xlu0 %7624
        %v7626 = vsel %vm7601, %v7577, 0.0
        %7627 = vadd.xlane.f32.xlu0 %v7626
        %v7628 = vpop.xlane.xlu0 %7627
        %v7629 = vsel %vm7601, %v7578, 0.0
        %7630 = vadd.xlane.f32.xlu0 %v7629
        %v7631 = vpop.xlane.xlu0 %7630
        %v7632 = vsel %vm7601, %v7579, 0.0
        %7633 = vadd.xlane.f32.xlu0 %v7632
        %v7634 = vpop.xlane.xlu0 %7633
        %v7635 = vsel %vm7601, %v7580, 0.0
        %7636 = vadd.xlane.f32.xlu0 %v7635
        %v7637 = vpop.xlane.xlu0 %7636
        %v7638 = vsel %vm7601, %v7581, 0.0
        %7639 = vadd.xlane.f32.xlu0 %v7638
        %v7640 = vpop.xlane.xlu0 %7639
        %v7641 = vsel %vm7601, %v7582, 0.0
        %7642 = vadd.xlane.f32.xlu0 %v7641
        %v7643 = vpop.xlane.xlu0 %7642
        %v7644 = vsel %vm7601, %v7583, 0.0
        %7645 = vadd.xlane.f32.xlu0 %v7644
        %v7646 = vpop.xlane.xlu0 %7645
        %v7647 = vsel %vm7601, %v7584, 0.0
        %7648 = vadd.xlane.f32.xlu0 %v7647
        %v7649 = vpop.xlane.xlu0 %7648
        %v7650 = vsel %vm7601, %v7585, 0.0
        %7651 = vadd.xlane.f32.xlu0 %v7650
        %v7652 = vpop.xlane.xlu0 %7651
        %v7653 = vsel %vm7601, %v7586, 0.0
        %7654 = vadd.xlane.f32.xlu0 %v7653
        %v7655 = vpop.xlane.xlu0 %7654
        %v7656 = vsel %vm7601, %v7587, 0.0
        %7657 = vadd.xlane.f32.xlu0 %v7656
        %v7658 = vpop.xlane.xlu0 %7657
        %v7659 = vsel %vm7601, %v7588, 0.0
        %7660 = vadd.xlane.f32.xlu0 %v7659
        %v7661 = vpop.xlane.xlu0 %7660
        %v7662 = vsel %vm7601, %v7589, 0.0
        %7663 = vadd.xlane.f32.xlu0 %v7662
        %v7664 = vpop.xlane.xlu0 %7663
        %v7665 = vsel %vm7601, %v7590, 0.0
        %7666 = vadd.xlane.f32.xlu0 %v7665
        %v7667 = vpop.xlane.xlu0 %7666
        %v7668 = vsel %vm7601, %v7591, 0.0
        %7669 = vadd.xlane.f32.xlu0 %v7668
        %v7670 = vpop.xlane.xlu0 %7669
        %v7671 = vsel %vm7601, %v7592, 0.0
        %7672 = vadd.xlane.f32.xlu0 %v7671
        %v7673 = vpop.xlane.xlu0 %7672
        %v7674 = vsel %vm7601, %v7593, 0.0
        %7675 = vadd.xlane.f32.xlu0 %v7674
        %v7676 = vpop.xlane.xlu0 %7675
        %v7677 = vsel %vm7601, %v7594, 0.0
        %7678 = vadd.xlane.f32.xlu0 %v7677
        %v7679 = vpop.xlane.xlu0 %7678
        %v7680 = vsel %vm7601, %v7595, 0.0
        %7681 = vadd.xlane.f32.xlu0 %v7680
        %v7682 = vpop.xlane.xlu0 %7681
        %v7683 = vsel %vm7601, %v7596, 0.0
        %7684 = vadd.xlane.f32.xlu0 %v7683
        %v7685 = vpop.xlane.xlu0 %7684
        %v7686 = vsel %vm7601, %v7597, 0.0
        %7687 = vadd.xlane.f32.xlu0 %v7686
        %v7688 = vpop.xlane.xlu0 %7687
        %v7689 = vsel %vm7601, %v7598, 0.0
        %7690 = vadd.xlane.f32.xlu0 %v7689
        %v7691 = vpop.xlane.xlu0 %7690
        %v7692 = vsel %vm7601, %v7599, 0.0
        %7693 = vadd.xlane.f32.xlu0 %v7692
        %v7694 = vpop.xlane.xlu0 %7693
        %v7695 = vsel %vm7601, %v7600, 0.0
        %7696 = vadd.xlane.f32.xlu0 %v7695
        %v7697 = vpop.xlane.xlu0 %7696
        %v7698 = vld [vmem:[#allocation2] sm:$0x1]
        %v7700 = vlaneseq
        %v7701 = vshrl.u32 %v7700, 7
        %v7702 = vsub.s32 0, %v7701
        %v7703 = vrot.slane %v7698, %v7702
        %v7705 = vadd.f32 %v7604, %v7703
        %v7706 = vadd.f32 %v7607, %v7703
        %v7707 = vadd.f32 %v7610, %v7703
        %v7708 = vadd.f32 %v7613, %v7703
        %v7709 = vadd.f32 %v7616, %v7703
        %v7710 = vadd.f32 %v7619, %v7703
        %v7711 = vadd.f32 %v7622, %v7703
        %v7712 = vadd.f32 %v7625, %v7703
        %v7713 = vadd.f32 %v7628, %v7703
        %v7714 = vadd.f32 %v7631, %v7703
        %v7715 = vadd.f32 %v7634, %v7703
        %v7716 = vadd.f32 %v7637, %v7703
        %v7717 = vadd.f32 %v7640, %v7703
        %v7718 = vadd.f32 %v7643, %v7703
        %v7719 = vadd.f32 %v7646, %v7703
        %v7720 = vadd.f32 %v7649, %v7703
        %v7721 = vadd.f32 %v7652, %v7703
        %v7722 = vadd.f32 %v7655, %v7703
        %v7723 = vadd.f32 %v7658, %v7703
        %v7724 = vadd.f32 %v7661, %v7703
        %v7725 = vadd.f32 %v7664, %v7703
        %v7726 = vadd.f32 %v7667, %v7703
        %v7727 = vadd.f32 %v7670, %v7703
        %v7728 = vadd.f32 %v7673, %v7703
        %v7729 = vadd.f32 %v7676, %v7703
        %v7730 = vadd.f32 %v7679, %v7703
        %v7731 = vadd.f32 %v7682, %v7703
        %v7732 = vadd.f32 %v7685, %v7703
        %v7733 = vadd.f32 %v7688, %v7703
        %v7734 = vadd.f32 %v7691, %v7703
        %v7735 = vadd.f32 %v7694, %v7703
        %v7736 = vadd.f32 %v7697, %v7703
        %v7737 = vmax.f32 %v7705, 0.0
        %v7738 = vmax.f32 %v7706, 0.0
        %v7739 = vmax.f32 %v7707, 0.0
        %v7740 = vmax.f32 %v7708, 0.0
        %v7741 = vmax.f32 %v7709, 0.0
        %v7742 = vmax.f32 %v7710, 0.0
        %v7743 = vmax.f32 %v7711, 0.0
        %v7744 = vmax.f32 %v7712, 0.0
        %v7745 = vmax.f32 %v7713, 0.0
        %v7746 = vmax.f32 %v7714, 0.0
        %v7747 = vmax.f32 %v7715, 0.0
        %v7748 = vmax.f32 %v7716, 0.0
        %v7749 = vmax.f32 %v7717, 0.0
        %v7750 = vmax.f32 %v7718, 0.0
        %v7751 = vmax.f32 %v7719, 0.0
        %v7752 = vmax.f32 %v7720, 0.0
        %v7753 = vmax.f32 %v7721, 0.0
        %v7754 = vmax.f32 %v7722, 0.0
        %v7755 = vmax.f32 %v7723, 0.0
        %v7756 = vmax.f32 %v7724, 0.0
        %v7757 = vmax.f32 %v7725, 0.0
        %v7758 = vmax.f32 %v7726, 0.0
        %v7759 = vmax.f32 %v7727, 0.0
        %v7760 = vmax.f32 %v7728, 0.0
        %v7761 = vmax.f32 %v7729, 0.0
        %v7762 = vmax.f32 %v7730, 0.0
        %v7763 = vmax.f32 %v7731, 0.0
        %v7764 = vmax.f32 %v7732, 0.0
        %v7765 = vmax.f32 %v7733, 0.0
        %v7766 = vmax.f32 %v7734, 0.0
        %v7767 = vmax.f32 %v7735, 0.0
        %v7768 = vmax.f32 %v7736, 0.0
        %v7769 = vld [vmem:[%s16] sm:$0xff]
        %v7770 = vld [vmem:[%s16 + $0x8] sm:$0xff]
        %v7771 = vld [vmem:[%s16 + $0x10] sm:$0xff]
        %v7772 = vld [vmem:[%s16 + $0x18] sm:$0xff]
        %v7773 = vld [vmem:[%s16 + $0x20] sm:$0xff]
        %v7774 = vld [vmem:[%s16 + $0x28] sm:$0xff]
        %v7775 = vld [vmem:[%s16 + $0x30] sm:$0xff]
        %v7776 = vld [vmem:[%s16 + $0x38] sm:$0xff]
        %v7777 = vld [vmem:[%s16 + $0x40] sm:$0xff]
        %v7778 = vld [vmem:[%s16 + $0x48] sm:$0xff]
        %v7779 = vld [vmem:[%s16 + $0x50] sm:$0xff]
        %v7780 = vld [vmem:[%s16 + $0x58] sm:$0xff]
        %v7781 = vld [vmem:[%s16 + $0x60] sm:$0xff]
        %v7782 = vld [vmem:[%s16 + $0x68] sm:$0xff]
        %v7783 = vld [vmem:[%s16 + $0x70] sm:$0xff]
        %v7784 = vld [vmem:[%s16 + $0x78] sm:$0xff]
        %v7785 = vld [vmem:[%s16 + $0x80] sm:$0xff]
        %v7786 = vld [vmem:[%s16 + $0x88] sm:$0xff]
        %v7787 = vld [vmem:[%s16 + $0x90] sm:$0xff]
        %v7788 = vld [vmem:[%s16 + $0x98] sm:$0xff]
        %v7789 = vld [vmem:[%s16 + $0xa0] sm:$0xff]
        %v7790 = vld [vmem:[%s16 + $0xa8] sm:$0xff]
        %v7791 = vld [vmem:[%s16 + $0xb0] sm:$0xff]
        %v7792 = vld [vmem:[%s16 + $0xb8] sm:$0xff]
        %v7793 = vld [vmem:[%s16 + $0xc0] sm:$0xff]
        %v7794 = vld [vmem:[%s16 + $0xc8] sm:$0xff]
        %v7795 = vld [vmem:[%s16 + $0xd0] sm:$0xff]
        %v7796 = vld [vmem:[%s16 + $0xd8] sm:$0xff]
        %v7797 = vld [vmem:[%s16 + $0xe0] sm:$0xff]
        %v7798 = vld [vmem:[%s16 + $0xe8] sm:$0xff]
        %v7799 = vld [vmem:[%s16 + $0xf0] sm:$0xff]
        %v7800 = vld [vmem:[%s16 + $0xf8] sm:$0xff]
        %7802 = vset.pattern.permute.xlu0 0
        %7803 = vperm.xlu0 %7802, %v7737
        %v7804 = vpop.permute.xlu0 %7803
        %7807 = vset.pattern.permute.xlu0 0
        %7808 = vperm.xlu0 %7807, %v7738
        %v7809 = vpop.permute.xlu0 %7808
        %7812 = vset.pattern.permute.xlu0 0
        %7813 = vperm.xlu0 %7812, %v7739
        %v7814 = vpop.permute.xlu0 %7813
        %7817 = vset.pattern.permute.xlu0 0
        %7818 = vperm.xlu0 %7817, %v7740
        %v7819 = vpop.permute.xlu0 %7818
        %7822 = vset.pattern.permute.xlu0 0
        %7823 = vperm.xlu0 %7822, %v7741
        %v7824 = vpop.permute.xlu0 %7823
        %7827 = vset.pattern.permute.xlu0 0
        %7828 = vperm.xlu0 %7827, %v7742
        %v7829 = vpop.permute.xlu0 %7828
        %7832 = vset.pattern.permute.xlu0 0
        %7833 = vperm.xlu0 %7832, %v7743
        %v7834 = vpop.permute.xlu0 %7833
        %7837 = vset.pattern.permute.xlu0 0
        %7838 = vperm.xlu0 %7837, %v7744
        %v7839 = vpop.permute.xlu0 %7838
        %7842 = vset.pattern.permute.xlu0 0
        %7843 = vperm.xlu0 %7842, %v7745
        %v7844 = vpop.permute.xlu0 %7843
        %7847 = vset.pattern.permute.xlu0 0
        %7848 = vperm.xlu0 %7847, %v7746
        %v7849 = vpop.permute.xlu0 %7848
        %7852 = vset.pattern.permute.xlu0 0
        %7853 = vperm.xlu0 %7852, %v7747
        %v7854 = vpop.permute.xlu0 %7853
        %7857 = vset.pattern.permute.xlu0 0
        %7858 = vperm.xlu0 %7857, %v7748
        %v7859 = vpop.permute.xlu0 %7858
        %7862 = vset.pattern.permute.xlu0 0
        %7863 = vperm.xlu0 %7862, %v7749
        %v7864 = vpop.permute.xlu0 %7863
        %7867 = vset.pattern.permute.xlu0 0
        %7868 = vperm.xlu0 %7867, %v7750
        %v7869 = vpop.permute.xlu0 %7868
        %7872 = vset.pattern.permute.xlu0 0
        %7873 = vperm.xlu0 %7872, %v7751
        %v7874 = vpop.permute.xlu0 %7873
        %7877 = vset.pattern.permute.xlu0 0
        %7878 = vperm.xlu0 %7877, %v7752
        %v7879 = vpop.permute.xlu0 %7878
        %7882 = vset.pattern.permute.xlu0 0
        %7883 = vperm.xlu0 %7882, %v7753
        %v7884 = vpop.permute.xlu0 %7883
        %7887 = vset.pattern.permute.xlu0 0
        %7888 = vperm.xlu0 %7887, %v7754
        %v7889 = vpop.permute.xlu0 %7888
        %7892 = vset.pattern.permute.xlu0 0
        %7893 = vperm.xlu0 %7892, %v7755
        %v7894 = vpop.permute.xlu0 %7893
        %7897 = vset.pattern.permute.xlu0 0
        %7898 = vperm.xlu0 %7897, %v7756
        %v7899 = vpop.permute.xlu0 %7898
        %7902 = vset.pattern.permute.xlu0 0
        %7903 = vperm.xlu0 %7902, %v7757
        %v7904 = vpop.permute.xlu0 %7903
        %7907 = vset.pattern.permute.xlu0 0
        %7908 = vperm.xlu0 %7907, %v7758
        %v7909 = vpop.permute.xlu0 %7908
        %7912 = vset.pattern.permute.xlu0 0
        %7913 = vperm.xlu0 %7912, %v7759
        %v7914 = vpop.permute.xlu0 %7913
        %7917 = vset.pattern.permute.xlu0 0
        %7918 = vperm.xlu0 %7917, %v7760
        %v7919 = vpop.permute.xlu0 %7918
        %7922 = vset.pattern.permute.xlu0 0
        %7923 = vperm.xlu0 %7922, %v7761
        %v7924 = vpop.permute.xlu0 %7923
        %7927 = vset.pattern.permute.xlu0 0
        %7928 = vperm.xlu0 %7927, %v7762
        %v7929 = vpop.permute.xlu0 %7928
        %7932 = vset.pattern.permute.xlu0 0
        %7933 = vperm.xlu0 %7932, %v7763
        %v7934 = vpop.permute.xlu0 %7933
        %7937 = vset.pattern.permute.xlu0 0
        %7938 = vperm.xlu0 %7937, %v7764
        %v7939 = vpop.permute.xlu0 %7938
        %7942 = vset.pattern.permute.xlu0 0
        %7943 = vperm.xlu0 %7942, %v7765
        %v7944 = vpop.permute.xlu0 %7943
        %7947 = vset.pattern.permute.xlu0 0
        %7948 = vperm.xlu0 %7947, %v7766
        %v7949 = vpop.permute.xlu0 %7948
        %7952 = vset.pattern.permute.xlu0 0
        %7953 = vperm.xlu0 %7952, %v7767
        %v7954 = vpop.permute.xlu0 %7953
        %7957 = vset.pattern.permute.xlu0 0
        %7958 = vperm.xlu0 %7957, %v7768
        %v7959 = vpop.permute.xlu0 %7958
        %v7961 = vmul.f32 %v7804, %v7769
        %v7962 = vmul.f32 %v7809, %v7770
        %v7963 = vmul.f32 %v7814, %v7771
        %v7964 = vmul.f32 %v7819, %v7772
        %v7965 = vmul.f32 %v7824, %v7773
        %v7966 = vmul.f32 %v7829, %v7774
        %v7967 = vmul.f32 %v7834, %v7775
        %v7968 = vmul.f32 %v7839, %v7776
        %v7969 = vmul.f32 %v7844, %v7777
        %v7970 = vmul.f32 %v7849, %v7778
        %v7971 = vmul.f32 %v7854, %v7779
        %v7972 = vmul.f32 %v7859, %v7780
        %v7973 = vmul.f32 %v7864, %v7781
        %v7974 = vmul.f32 %v7869, %v7782
        %v7975 = vmul.f32 %v7874, %v7783
        %v7976 = vmul.f32 %v7879, %v7784
        %v7977 = vmul.f32 %v7884, %v7785
        %v7978 = vmul.f32 %v7889, %v7786
        %v7979 = vmul.f32 %v7894, %v7787
        %v7980 = vmul.f32 %v7899, %v7788
        %v7981 = vmul.f32 %v7904, %v7789
        %v7982 = vmul.f32 %v7909, %v7790
        %v7983 = vmul.f32 %v7914, %v7791
        %v7984 = vmul.f32 %v7919, %v7792
        %v7985 = vmul.f32 %v7924, %v7793
        %v7986 = vmul.f32 %v7929, %v7794
        %v7987 = vmul.f32 %v7934, %v7795
        %v7988 = vmul.f32 %v7939, %v7796
        %v7989 = vmul.f32 %v7944, %v7797
        %v7990 = vmul.f32 %v7949, %v7798
        %v7991 = vmul.f32 %v7954, %v7799
        %v7992 = vmul.f32 %v7959, %v7800
        %v7993 = vpack.c.bf16 %v7962, %v7961
        %v7994 = vpack.c.bf16 %v7964, %v7963
        %v7995 = vpack.c.bf16 %v7966, %v7965
        %v7996 = vpack.c.bf16 %v7968, %v7967
        %v7997 = vpack.c.bf16 %v7970, %v7969
        %v7998 = vpack.c.bf16 %v7972, %v7971
        %v7999 = vpack.c.bf16 %v7974, %v7973
        %v8000 = vpack.c.bf16 %v7976, %v7975
        %v8001 = vpack.c.bf16 %v7978, %v7977
        %v8002 = vpack.c.bf16 %v7980, %v7979
        %v8003 = vpack.c.bf16 %v7982, %v7981
        %v8004 = vpack.c.bf16 %v7984, %v7983
        %v8005 = vpack.c.bf16 %v7986, %v7985
        %v8006 = vpack.c.bf16 %v7988, %v7987
        %v8007 = vpack.c.bf16 %v7990, %v7989
        %v8008 = vpack.c.bf16 %v7992, %v7991
        %v8009 = vld [vmem:[%s15] sm:$0xff]
        %v8010 = vld [vmem:[%s15 + $0x8] sm:$0xff]
        %v8011 = vld [vmem:[%s15 + $0x10] sm:$0xff]
        %v8012 = vld [vmem:[%s15 + $0x18] sm:$0xff]
        %v8013 = vld [vmem:[%s15 + $0x20] sm:$0xff]
        %v8014 = vld [vmem:[%s15 + $0x28] sm:$0xff]
        %v8015 = vld [vmem:[%s15 + $0x30] sm:$0xff]
        %v8016 = vld [vmem:[%s15 + $0x38] sm:$0xff]
        %v8025 = vunpack.c.l.b16 %v8009
        %v8026 = vunpack.c.h.b16 %v8009
        %v8027 = vunpack.c.l.b16 %v8010
        %v8028 = vunpack.c.h.b16 %v8010
        %v8029 = vunpack.c.l.b16 %v8011
        %v8030 = vunpack.c.h.b16 %v8011
        %v8031 = vunpack.c.l.b16 %v8012
        %v8032 = vunpack.c.h.b16 %v8012
        %v8033 = vunpack.c.l.b16 %v8013
        %v8034 = vunpack.c.h.b16 %v8013
        %v8035 = vunpack.c.l.b16 %v8014
        %v8036 = vunpack.c.h.b16 %v8014
        %v8037 = vunpack.c.l.b16 %v8015
        %v8038 = vunpack.c.h.b16 %v8015
        %v8039 = vunpack.c.l.b16 %v8016
        %v8040 = vunpack.c.h.b16 %v8016
        %v8041 = vpack.c.b16 %v8027, %v8025
        %v8042 = vpack.c.b16 %v8028, %v8026
        %v8043 = vpack.c.b16 %v8031, %v8029
        %v8044 = vpack.c.b16 %v8032, %v8030
        %v8045 = vpack.c.b16 %v8035, %v8033
        %v8046 = vpack.c.b16 %v8036, %v8034
        %v8047 = vpack.c.b16 %v8039, %v8037
        %v8048 = vpack.c.b16 %v8040, %v8038
        %8057 = vmatprep.subr.bf16.mxu0 0
        %8058 = vmatpush1.bf16.msra.mxu0 %v8000
        %8059 = vmatprep.subr.bf16.mxu0 0
        %8060 = vmatpush1.bf16.msra.mxu0 %v7999
        %8061 = vmatprep.subr.bf16.mxu0 0
        %8062 = vmatpush1.bf16.msra.mxu0 %v7998
        %8063 = vmatprep.subr.bf16.mxu0 0
        %8064 = vmatpush1.bf16.msra.mxu0 %v7997
        %8065 = vmatprep.subr.bf16.mxu0 0
        %8066 = vmatpush1.bf16.msra.mxu0 %v7996
        %8067 = vmatprep.subr.bf16.mxu0 0
        %8068 = vmatpush1.bf16.msra.mxu0 %v7995
        %8069 = vmatprep.subr.bf16.mxu0 0
        %8070 = vmatpush1.bf16.msra.mxu0 %v7994
        %8071 = vmatprep.subr.bf16.mxu0 0
        %8072 = vmatpush1.bf16.msra.mxu0 %v7993
        %8073 = vmatprep.subr.bf16.mxu0 0
        %8074 = vmatpush2.bf16.msra.mxu0 %v8008
        %8075 = vmatprep.subr.bf16.mxu0 0
        %8076 = vmatpush2.bf16.msra.mxu0 %v8007
        %8077 = vmatprep.subr.bf16.mxu0 0
        %8078 = vmatpush2.bf16.msra.mxu0 %v8006
        %8079 = vmatprep.subr.bf16.mxu0 0
        %8080 = vmatpush2.bf16.msra.mxu0 %v8005
        %8081 = vmatprep.subr.bf16.mxu0 0
        %8082 = vmatpush2.bf16.msra.mxu0 %v8004
        %8083 = vmatprep.subr.bf16.mxu0 0
        %8084 = vmatpush2.bf16.msra.mxu0 %v8003
        %8085 = vmatprep.subr.bf16.mxu0 0
        %8086 = vmatpush2.bf16.msra.mxu0 %v8002
        %8087 = vmatprep.subr.bf16.mxu0 0
        %8088 = vmatpush2.bf16.msra.mxu0 %v8001
        %8089 = vmatprep.mubr.bf16.mxu0 %v8042
        %8090 = vmatmul.mubr.bf16.gmra.mxu0 %v8041
        %v8091 = vpop.f32.mrf.mxu0
        %v8092 = vadd.f32 0.0, %v8091
        %v8093 = vpop.f32.mrf.mxu0
        %v8094 = vpop.f32.mrf.mxu0
        %v8095 = vadd.f32 0.0, %v8094
        %v8096 = vpop.f32.mrf.mxu0
        %8097 = vmatprep.mubr.bf16.mxu0 %v8044
        %8098 = vmatmul.mubr.bf16.gmra.mxu0 %v8043
        %v8099 = vpop.f32.mrf.mxu0
        %v8100 = vadd.f32 0.0, %v8099
        %v8101 = vpop.f32.mrf.mxu0
        %v8102 = vpop.f32.mrf.mxu0
        %v8103 = vadd.f32 0.0, %v8102
        %v8104 = vpop.f32.mrf.mxu0
        %8105 = vmatprep.mubr.bf16.mxu0 %v8046
        %8106 = vmatmul.mubr.bf16.gmra.mxu0 %v8045
        %v8107 = vpop.f32.mrf.mxu0
        %v8108 = vadd.f32 0.0, %v8107
        %v8109 = vpop.f32.mrf.mxu0
        %v8110 = vpop.f32.mrf.mxu0
        %v8111 = vadd.f32 0.0, %v8110
        %v8112 = vpop.f32.mrf.mxu0
        %8113 = vmatprep.mubr.bf16.mxu0 %v8048
        %8114 = vmatmul.mubr.bf16.gmra.mxu0 %v8047
        %v8115 = vpop.f32.mrf.mxu0
        %v8116 = vadd.f32 0.0, %v8115
        %v8117 = vpop.f32.mrf.mxu0
        %v8118 = vpop.f32.mrf.mxu0
        %v8119 = vadd.f32 0.0, %v8118
        %v8120 = vpop.f32.mrf.mxu0
        %8121 = vdwg.mxu0
        %8122 = vst.msk [vmem:[%s546] sm:$0xff] %vm2622, %v8092
        %8123 = vst.msk [vmem:[%s546 + $0x8] sm:$0xff] %vm2622, %v8095
        %8124 = vst.msk [vmem:[%s546 + $0x10] sm:$0xff] %vm2622, %v8100
        %8125 = vst.msk [vmem:[%s546 + $0x18] sm:$0xff] %vm2622, %v8103
        %8126 = vst.msk [vmem:[%s546 + $0x20] sm:$0xff] %vm2622, %v8108
        %8127 = vst.msk [vmem:[%s546 + $0x28] sm:$0xff] %vm2622, %v8111
        %8128 = vst.msk [vmem:[%s546 + $0x30] sm:$0xff] %vm2622, %v8116
        %8129 = vst.msk [vmem:[%s546 + $0x38] sm:$0xff] %vm2622, %v8119
        %s8130 = sand.u32 %s403, 1
        %s8131 = scalar_lea.sflag [#allocation4], %s8130
        %s8132 = sand.u32 %s403, 1
        %s8133 = smul.addr %s8132, 64
        %s8134 = scalar_lea.vmem [#allocation3], %s8133
        // Predicated region
        $region89: #{dpt_depth_model_forward.3} parent=87 // pred_check
          %p8135 = pneg %p413
        $region90: #{dpt_depth_model_forward.3} parent=87 // pred_check_branch
          %8137 = sbr.rel (%p8135) target = $region92
        $region91: #{dpt_depth_model_forward.3} parent=87 // pred_region
          %s8139 = ssub.s32 1024, 1024
          %8140 = vsyncadd %s8131, %s8139
          %s8141 = smul.addr %s33, 8
          %s8142 = smul.addr %s8141, 128
          %s8143 = scalar_lea.hbm %s17, %s8142
          %s8144 = sshll.u32 %s8134, 4
          %s8145 = int_to_ptr.vmem [resolvable:$true] %s8144
          %8150 = dma.vmem_to_hbm [thread:$0]  %s8145, 1024, %s8143, %s8131, 128, 128, 8
        $region92: #{dpt_depth_model_forward.3} parent=87 // pred_fallthru
          _
      $region88: #{dpt_depth_model_forward.3} parent=5 // pred_fallthru
        _
      %p8151 = scmp.le.s32.totalorder 2, %s28
      // Predicated region
      $region93: #{dpt_depth_model_forward.3} parent=5 // pred_check
        %p8152 = pneg %p8151
      $region94: #{dpt_depth_model_forward.3} parent=5 // pred_check_branch
        %8154 = sbr.rel (%p8152) target = $region96
      $region95: #{dpt_depth_model_forward.3} parent=5 // pred_region
        %s8155 = ssub.s32 %s28, 2
        // Predicated region
        $region97: #{dpt_depth_model_forward.3} parent=95 // pred_check
          %p8156 = pneg %p419
        $region98: #{dpt_depth_model_forward.3} parent=95 // pred_check_branch
          %8158 = sbr.rel (%p8156) target = $region100
        $region99: #{dpt_depth_model_forward.3} parent=95 // pred_region
          %s8159 = sand.u32 %s404, 1
          %s8160 = scalar_lea.sflag [#allocation4], %s8159
          %s8161 = sand.u32 %s404, 1
          %s8162 = smul.addr %s8161, 64
          %s8163 = scalar_lea.vmem [#allocation3], %s8162
          %8164 = dma.done %s8160, 1024
        $region100: #{dpt_depth_model_forward.3} parent=95 // pred_fallthru
          _
      $region96: #{dpt_depth_model_forward.3} parent=5 // pred_fallthru
        _
    $region6: #{dpt_depth_model_forward.3} parent=1 // loop_footer
      %s32 = sadd.s32 1, %s28
    $region7: #{dpt_depth_model_forward.3} parent=1 // loop_footer_branch
      %27 = sbr.rel target = $region3
    $region8: #{dpt_depth_model_forward.3} parent=1 // loop_exit
      _
    %8165 = vsyncpa [#allocation4], 1
    %s8166 = scalar_lea.sflag [#allocation4], 1
    %8167 = vsyncpa %s8166, 1

</llo_original>
